<compile_context>
chip_gen: v5e
topology: v5e:2x2
jax: 0.10.0
libtpu: 0.0.40
codegen_flags: <defaults>
</compile_context>

<pallas_src>
import numpy as np
import jax
import jax.numpy as jnp
from jax.experimental import pallas as pl
from jax.experimental.pallas import tpu as pltpu

H = 128          # LSTM hidden size
Z_IN = 216       # LSTM input size
X_IN = 594       # extra features
D = 512          # dense hidden size


def farmer_kernel(z_ref, x_ref,
                  wih_ref, whh_ref, blstm_ref,
                  w1h_ref, w1x_hbm, b1_ref,
                  w2_hbm, b2_ref,
                  w3_hbm, b3_ref,
                  w4_hbm, b4_ref,
                  w5_hbm, b5_ref,
                  w6t_ref, b6_ref,
                  out_ref,
                  w1x_buf, w2_buf, w3_buf, w4_buf, w5_buf, pre_ref, dma_sem):
    B = x_ref.shape[0]
    T = z_ref.shape[0] // B

    hbm_ws = (w1x_hbm, w2_hbm, w3_hbm, w4_hbm, w5_hbm)
    vmem_ws = (w1x_buf, w2_buf, w3_buf, w4_buf, w5_buf)

    # (1) Kick off the bulk dense-weight DMAs (issued in consumption order) so
    #     the ~5 MiB HBM->VMEM copy overlaps with the serial LSTM recurrence.
    for i in range(5):
        pltpu.make_async_copy(hbm_ws[i], vmem_ws[i], dma_sem.at[i]).start()

    # (2) Hoisted input projection + bias: one big matmul instead of T small
    #     ones inside the serial h->h chain; result parked in VMEM scratch.
    pre_ref[...] = (jnp.dot(z_ref[...], wih_ref[...],
                            preferred_element_type=jnp.float32)
                    + blstm_ref[...])                       # (T*B, 4H)

    whh = whh_ref[...]                                      # (128, 4H)

    # (3) Fully unrolled recurrence (T static). Gate columns are pre-permuted
    #     to (i, f, o, g): one sigmoid over the contiguous 3H slab, one tanh.
    h = jnp.zeros((B, H), jnp.float32)
    c = jnp.zeros((B, H), jnp.float32)
    for t in range(T):
        gates = (jnp.dot(h, whh, preferred_element_type=jnp.float32)
                 + pre_ref[pl.ds(t * B, B), :])             # (B, 4H)
        sig = jax.nn.sigmoid(gates[:, :3 * H])
        g_g = jnp.tanh(gates[:, 3 * H:])
        i_g = sig[:, 0 * H:1 * H]
        f_g = sig[:, 1 * H:2 * H]
        o_g = sig[:, 2 * H:3 * H]
        c = f_g * c + i_g * g_g
        h = o_g * jnp.tanh(c)

    x_in = x_ref[...]                                       # (B, 594)

    # dense1 on concat([h, x]) == h @ W1h + x @ W1x + b1.
    pltpu.make_async_copy(w1x_hbm, w1x_buf, dma_sem.at[0]).wait()
    a = (jnp.dot(h, w1h_ref[...], preferred_element_type=jnp.float32)
         + jnp.dot(x_in, w1x_buf[...], preferred_element_type=jnp.float32)
         + b1_ref[...])
    a = jnp.maximum(a, 0.0)

    # dense2..dense5: wait on each weight's DMA only right before its matmul.
    biases = (b2_ref, b3_ref, b4_ref, b5_ref)
    for i in range(4):
        pltpu.make_async_copy(hbm_ws[i + 1], vmem_ws[i + 1],
                              dma_sem.at[i + 1]).wait()
        a = jnp.maximum(
            jnp.dot(a, vmem_ws[i + 1][...],
                    preferred_element_type=jnp.float32)
            + biases[i][...], 0.0)

    # dense6: (B,512)@(512,1) would waste a full MXU pass and emit a 1-lane
    # masked store; use a VPU multiply + XLU lane reduction instead.
    out_ref[...] = (jnp.sum(a * w6t_ref[...], axis=-1, keepdims=True)
                    + b6_ref[...])                          # (B, 1)


def init_params(key):
    """Deterministic synthetic parameters (PyTorch-style uniform init),
    kept in PyTorch layout: gate order (i, f, g, o) along 4H, w6 as (D, 1)."""
    ks = jax.random.split(key, 20)

    def unif(k, shape, fan_in):
        bound = 1.0 / np.sqrt(fan_in)
        return jax.random.uniform(k, shape, jnp.float32, -bound, bound)

    p = {}
    p["wih"] = unif(ks[0], (Z_IN, 4 * H), H)
    p["whh"] = unif(ks[1], (H, 4 * H), H)
    b_ih = unif(ks[2], (1, 4 * H), H)
    b_hh = unif(ks[3], (1, 4 * H), H)
    p["blstm"] = b_ih + b_hh
    fan1 = H + X_IN
    p["w1h"] = unif(ks[4], (H, D), fan1)
    p["w1x"] = unif(ks[5], (X_IN, D), fan1)
    p["b1"] = unif(ks[6], (1, D), fan1)
    for n, (kw, kb) in zip(range(2, 6), [(ks[7], ks[8]), (ks[9], ks[10]),
                                         (ks[11], ks[12]), (ks[13], ks[14])]):
        p[f"w{n}"] = unif(kw, (D, D), D)
        p[f"b{n}"] = unif(kb, (1, D), D)
    p["w6"] = unif(ks[15], (D, 1), D)
    p["b6"] = unif(ks[16], (1, 1), D)
    return p


@jax.jit
def farmer_lstm_forward(z_btf, x, params):
    """z_btf: (B, T, 216) batch-first like PyTorch; x: (B, 594)."""
    B, T, _ = z_btf.shape
    # Time-major then flattened to (T*B, 216) so the kernel can do the input
    # projection as a single MXU matmul.
    z_2d = jnp.transpose(z_btf, (1, 0, 2)).reshape(T * B, Z_IN)

    # Permute LSTM gate columns (i,f,g,o) -> (i,f,o,g) so the kernel applies
    # one sigmoid to a contiguous 3H slab and one tanh to the last H columns.
    def perm(w):
        return jnp.concatenate(
            [w[..., :2 * H], w[..., 3 * H:4 * H], w[..., 2 * H:3 * H]], axis=-1)

    wih = perm(params["wih"])
    whh = perm(params["whh"])
    blstm = perm(params["blstm"])
    w6t = params["w6"].T                                    # (1, 512)

    args = (z_2d, x,
            wih, whh, blstm,
            params["w1h"], params["w1x"], params["b1"],
            params["w2"], params["b2"],
            params["w3"], params["b3"],
            params["w4"], params["b4"],
            params["w5"], params["b5"],
            w6t, params["b6"])

    vmem = pl.BlockSpec(memory_space=pltpu.MemorySpace.VMEM)
    hbm = pl.BlockSpec(memory_space=pl.ANY)
    in_specs = [vmem, vmem,            # z_2d, x
                vmem, vmem, vmem,      # wih, whh, blstm
                vmem, hbm, vmem,       # w1h, w1x (manual DMA), b1
                hbm, vmem,             # w2 (manual DMA), b2
                hbm, vmem,             # w3 (manual DMA), b3
                hbm, vmem,             # w4 (manual DMA), b4
                hbm, vmem,             # w5 (manual DMA), b5
                vmem, vmem]            # w6t, b6

    values = pl.pallas_call(
        farmer_kernel,
        out_shape=jax.ShapeDtypeStruct((B, 1), jnp.float32),
        in_specs=in_specs,
        out_specs=vmem,
        scratch_shapes=[
            pltpu.VMEM((X_IN, D), jnp.float32),       # w1x buffer
            pltpu.VMEM((D, D), jnp.float32),          # w2 buffer
            pltpu.VMEM((D, D), jnp.float32),          # w3 buffer
            pltpu.VMEM((D, D), jnp.float32),          # w4 buffer
            pltpu.VMEM((D, D), jnp.float32),          # w5 buffer
            pltpu.VMEM((T * B, 4 * H), jnp.float32),  # hoisted pre-gates
            pltpu.SemaphoreType.DMA((5,)),
        ],
    )(*args)

    # Greedy action path (return_value=False, exp_epsilon <= 0).
    # TODO(synk): epsilon-greedy random exploration branch (host-side
    # np.random in the original) is not implemented inside the kernel.
    action = jnp.argmax(values[:, 0], axis=0)
    return values, action


def reference_forward(z_btf, x, p):
    """Pure-JAX reference matching the PyTorch semantics (i,f,g,o layout)."""
    B, T, _ = z_btf.shape
    h = jnp.zeros((B, H), jnp.float32)
    c = jnp.zeros((B, H), jnp.float32)
    for t in range(T):
        gates = z_btf[:, t, :] @ p["wih"] + h @ p["whh"] + p["blstm"]
        i_g = jax.nn.sigmoid(gates[:, 0 * H:1 * H])
        f_g = jax.nn.sigmoid(gates[:, 1 * H:2 * H])
        g_g = jnp.tanh(gates[:, 2 * H:3 * H])
        o_g = jax.nn.sigmoid(gates[:, 3 * H:4 * H])
        c = f_g * c + i_g * g_g
        h = o_g * jnp.tanh(c)
    cat = jnp.concatenate([h, x], axis=-1)
    w1 = jnp.concatenate([p["w1h"], p["w1x"]], axis=0)
    a = jnp.maximum(cat @ w1 + p["b1"], 0.0)
    a = jnp.maximum(a @ p["w2"] + p["b2"], 0.0)
    a = jnp.maximum(a @ p["w3"] + p["b3"], 0.0)
    a = jnp.maximum(a @ p["w4"] + p["b4"], 0.0)
    a = jnp.maximum(a @ p["w5"] + p["b5"], 0.0)
    return a @ p["w6"] + p["b6"]


if __name__ == "__main__":
    key = jax.random.PRNGKey(0)
    k_param, k_z, k_x = jax.random.split(key, 3)

    B, T = 8, 8   # B=8 fills one sublane tile; shapes stay small.
    params = init_params(k_param)
    z = jax.random.normal(k_z, (B, T, Z_IN), jnp.float32)
    x = jax.random.normal(k_x, (B, X_IN), jnp.float32)

    values, action = farmer_lstm_forward(z, x, params)
    values = jax.block_until_ready(values)
    action = jax.block_until_ready(action)

    # Full-precision JAX reference; tolerance covers MXU bf16-pass rounding.
    with jax.default_matmul_precision("highest"):
        ref = reference_forward(z, x, params)
    ref_np = np.asarray(jax.block_until_ready(ref))

    np.testing.assert_allclose(np.asarray(values), ref_np,
                               rtol=3e-2, atol=3e-2)
    # Robust action check: the chosen batch element must be (numerically) the
    # best one under the reference values.
    assert ref_np[int(action), 0] >= ref_np[:, 0].max() - 5e-2
    print("KERNEL_OK")
</pallas_src>

<mosaic_0001>
module attributes {stable_mosaic.version = 11 : i64} {
  func.func @farmer_kernel(%arg0: memref<64x216xf32, #tpu.memory_space<vmem>>, %arg1: memref<8x594xf32, #tpu.memory_space<vmem>>, %arg2: memref<216x512xf32, #tpu.memory_space<vmem>>, %arg3: memref<128x512xf32, #tpu.memory_space<vmem>>, %arg4: memref<1x512xf32, #tpu.memory_space<vmem>>, %arg5: memref<128x512xf32, #tpu.memory_space<vmem>>, %arg6: memref<594x512xf32, #tpu.memory_space<any>>, %arg7: memref<1x512xf32, #tpu.memory_space<vmem>>, %arg8: memref<512x512xf32, #tpu.memory_space<any>>, %arg9: memref<1x512xf32, #tpu.memory_space<vmem>>, %arg10: memref<512x512xf32, #tpu.memory_space<any>>, %arg11: memref<1x512xf32, #tpu.memory_space<vmem>>, %arg12: memref<512x512xf32, #tpu.memory_space<any>>, %arg13: memref<1x512xf32, #tpu.memory_space<vmem>>, %arg14: memref<512x512xf32, #tpu.memory_space<any>>, %arg15: memref<1x512xf32, #tpu.memory_space<vmem>>, %arg16: memref<1x512xf32, #tpu.memory_space<vmem>>, %arg17: memref<1x1xf32, #tpu.memory_space<vmem>>, %arg18: memref<8x1xf32, #tpu.memory_space<vmem>>, %arg19: memref<594x512xf32, #tpu.memory_space<vmem>>, %arg20: memref<512x512xf32, #tpu.memory_space<vmem>>, %arg21: memref<512x512xf32, #tpu.memory_space<vmem>>, %arg22: memref<512x512xf32, #tpu.memory_space<vmem>>, %arg23: memref<512x512xf32, #tpu.memory_space<vmem>>, %arg24: memref<64x512xf32, #tpu.memory_space<vmem>>, %arg25: memref<5x!tpu.dma_semaphore, #tpu.memory_space<semaphore_mem>>) attributes {dimension_semantics = [], scalar_prefetch = 0 : i64, scratch_operands = 7 : i64, tpu.core_type = #tpu.core_type<tc>} {
    %c0_i32 = arith.constant 0 : i32
    %0 = tpu.memref_slice %arg25[%c0_i32] : memref<5x!tpu.dma_semaphore, #tpu.memory_space<semaphore_mem>> -> memref<1x!tpu.dma_semaphore, #tpu.memory_space<semaphore_mem>>
    %1 = tpu.memref_squeeze %0 : memref<1x!tpu.dma_semaphore, #tpu.memory_space<semaphore_mem>> -> memref<!tpu.dma_semaphore, #tpu.memory_space<semaphore_mem>>
    tpu.enqueue_dma source(%arg6 : memref<594x512xf32, #tpu.memory_space<any>>) target(%arg19 : memref<594x512xf32, #tpu.memory_space<vmem>>) target_semaphore(%1 : memref<!tpu.dma_semaphore, #tpu.memory_space<semaphore_mem>>)
    %c1_i32 = arith.constant 1 : i32
    %2 = tpu.memref_slice %arg25[%c1_i32] : memref<5x!tpu.dma_semaphore, #tpu.memory_space<semaphore_mem>> -> memref<1x!tpu.dma_semaphore, #tpu.memory_space<semaphore_mem>>
    %3 = tpu.memref_squeeze %2 : memref<1x!tpu.dma_semaphore, #tpu.memory_space<semaphore_mem>> -> memref<!tpu.dma_semaphore, #tpu.memory_space<semaphore_mem>>
    tpu.enqueue_dma source(%arg8 : memref<512x512xf32, #tpu.memory_space<any>>) target(%arg20 : memref<512x512xf32, #tpu.memory_space<vmem>>) target_semaphore(%3 : memref<!tpu.dma_semaphore, #tpu.memory_space<semaphore_mem>>)
    %c2_i32 = arith.constant 2 : i32
    %4 = tpu.memref_slice %arg25[%c2_i32] : memref<5x!tpu.dma_semaphore, #tpu.memory_space<semaphore_mem>> -> memref<1x!tpu.dma_semaphore, #tpu.memory_space<semaphore_mem>>
    %5 = tpu.memref_squeeze %4 : memref<1x!tpu.dma_semaphore, #tpu.memory_space<semaphore_mem>> -> memref<!tpu.dma_semaphore, #tpu.memory_space<semaphore_mem>>
    tpu.enqueue_dma source(%arg10 : memref<512x512xf32, #tpu.memory_space<any>>) target(%arg21 : memref<512x512xf32, #tpu.memory_space<vmem>>) target_semaphore(%5 : memref<!tpu.dma_semaphore, #tpu.memory_space<semaphore_mem>>)
    %c3_i32 = arith.constant 3 : i32
    %6 = tpu.memref_slice %arg25[%c3_i32] : memref<5x!tpu.dma_semaphore, #tpu.memory_space<semaphore_mem>> -> memref<1x!tpu.dma_semaphore, #tpu.memory_space<semaphore_mem>>
    %7 = tpu.memref_squeeze %6 : memref<1x!tpu.dma_semaphore, #tpu.memory_space<semaphore_mem>> -> memref<!tpu.dma_semaphore, #tpu.memory_space<semaphore_mem>>
    tpu.enqueue_dma source(%arg12 : memref<512x512xf32, #tpu.memory_space<any>>) target(%arg22 : memref<512x512xf32, #tpu.memory_space<vmem>>) target_semaphore(%7 : memref<!tpu.dma_semaphore, #tpu.memory_space<semaphore_mem>>)
    %c4_i32 = arith.constant 4 : i32
    %8 = tpu.memref_slice %arg25[%c4_i32] : memref<5x!tpu.dma_semaphore, #tpu.memory_space<semaphore_mem>> -> memref<1x!tpu.dma_semaphore, #tpu.memory_space<semaphore_mem>>
    %9 = tpu.memref_squeeze %8 : memref<1x!tpu.dma_semaphore, #tpu.memory_space<semaphore_mem>> -> memref<!tpu.dma_semaphore, #tpu.memory_space<semaphore_mem>>
    tpu.enqueue_dma source(%arg14 : memref<512x512xf32, #tpu.memory_space<any>>) target(%arg23 : memref<512x512xf32, #tpu.memory_space<vmem>>) target_semaphore(%9 : memref<!tpu.dma_semaphore, #tpu.memory_space<semaphore_mem>>)
    %c0 = arith.constant 0 : index
    %c0_0 = arith.constant 0 : index
    %10 = vector.load %arg0[%c0, %c0_0] : memref<64x216xf32, #tpu.memory_space<vmem>>, vector<64x216xf32>
    %c0_1 = arith.constant 0 : index
    %c0_2 = arith.constant 0 : index
    %11 = vector.load %arg2[%c0_1, %c0_2] : memref<216x512xf32, #tpu.memory_space<vmem>>, vector<216x512xf32>
    %cst = arith.constant dense<0.000000e+00> : vector<64x512xf32>
    %12 = tpu.matmul %10, %11, %cst {dimension_numbers = #tpu.dot_dimension_numbers<[1], [0], [0], [1], [0, 0, 1, 1], [], []>} : vector<64x216xf32>, vector<216x512xf32>, vector<64x512xf32> -> vector<64x512xf32>
    %c0_3 = arith.constant 0 : index
    %c0_4 = arith.constant 0 : index
    %13 = vector.load %arg4[%c0_3, %c0_4] : memref<1x512xf32, #tpu.memory_space<vmem>>, vector<1x512xf32>
    %14 = vector.broadcast %13 : vector<1x512xf32> to vector<64x512xf32>
    %15 = arith.addf %12, %14 : vector<64x512xf32>
    %c0_5 = arith.constant 0 : index
    %c0_6 = arith.constant 0 : index
    %16 = vector.load %arg24[%c0_5, %c0_6] : memref<64x512xf32, #tpu.memory_space<vmem>>, vector<64x512xf32>
    tpu.vector_store %arg24[%c0_5, %c0_6], %15 {strides = array<i32>} : memref<64x512xf32, #tpu.memory_space<vmem>>, vector<64x512xf32>,
    %c0_7 = arith.constant 0 : index
    %c0_8 = arith.constant 0 : index
    %17 = vector.load %arg3[%c0_7, %c0_8] : memref<128x512xf32, #tpu.memory_space<vmem>>, vector<128x512xf32>
    %cst_9 = arith.constant 0.000000e+00 : f32
    %18 = vector.broadcast %cst_9 : f32 to vector<8x128xf32>
    %cst_10 = arith.constant 0.000000e+00 : f32
    %19 = vector.broadcast %cst_10 : f32 to vector<8x128xf32>
    %cst_11 = arith.constant dense<0.000000e+00> : vector<8x512xf32>
    %20 = tpu.matmul %18, %17, %cst_11 {dimension_numbers = #tpu.dot_dimension_numbers<[1], [0], [0], [1], [0, 0, 1, 1], [], []>} : vector<8x128xf32>, vector<128x512xf32>, vector<8x512xf32> -> vector<8x512xf32>
    %c0_12 = arith.constant 0 : index
    %c0_13 = arith.constant 0 : index
    %21 = vector.load %arg24[%c0_12, %c0_13] : memref<64x512xf32, #tpu.memory_space<vmem>>, vector<8x512xf32>
    %22 = arith.addf %20, %21 : vector<8x512xf32>
    %23 = vector.extract_strided_slice %22 {offsets = [0, 0], sizes = [8, 384], strides = [1, 1]} : vector<8x512xf32> to vector<8x384xf32>
    %24 = arith.negf %23 : vector<8x384xf32>
    %25 = math.exp %24 : vector<8x384xf32>
    %cst_14 = arith.constant 1.000000e+00 : f32
    %26 = vector.broadcast %cst_14 : f32 to vector<8x384xf32>
    %27 = arith.addf %26, %25 : vector<8x384xf32>
    %28 = arith.divf %26, %27 : vector<8x384xf32>
    %29 = vector.extract_strided_slice %22 {offsets = [0, 384], sizes = [8, 128], strides = [1, 1]} : vector<8x512xf32> to vector<8x128xf32>
    %30 = math.tanh %29 : vector<8x128xf32>
    %31 = vector.extract_strided_slice %28 {offsets = [0, 0], sizes = [8, 128], strides = [1, 1]} : vector<8x384xf32> to vector<8x128xf32>
    %32 = vector.extract_strided_slice %28 {offsets = [0, 128], sizes = [8, 128], strides = [1, 1]} : vector<8x384xf32> to vector<8x128xf32>
    %33 = vector.extract_strided_slice %28 {offsets = [0, 256], sizes = [8, 128], strides = [1, 1]} : vector<8x384xf32> to vector<8x128xf32>
    %34 = arith.mulf %32, %19 : vector<8x128xf32>
    %35 = arith.mulf %31, %30 : vector<8x128xf32>
    %36 = arith.addf %34, %35 : vector<8x128xf32>
    %37 = math.tanh %36 : vector<8x128xf32>
    %38 = arith.mulf %33, %37 : vector<8x128xf32>
    %cst_15 = arith.constant dense<0.000000e+00> : vector<8x512xf32>
    %39 = tpu.matmul %38, %17, %cst_15 {dimension_numbers = #tpu.dot_dimension_numbers<[1], [0], [0], [1], [0, 0, 1, 1], [], []>} : vector<8x128xf32>, vector<128x512xf32>, vector<8x512xf32> -> vector<8x512xf32>
    %c8 = arith.constant 8 : index
    %c0_16 = arith.constant 0 : index
    %40 = vector.load %arg24[%c8, %c0_16] : memref<64x512xf32, #tpu.memory_space<vmem>>, vector<8x512xf32>
    %41 = arith.addf %39, %40 : vector<8x512xf32>
    %42 = vector.extract_strided_slice %41 {offsets = [0, 0], sizes = [8, 384], strides = [1, 1]} : vector<8x512xf32> to vector<8x384xf32>
    %43 = arith.negf %42 : vector<8x384xf32>
    %44 = math.exp %43 : vector<8x384xf32>
    %cst_17 = arith.constant 1.000000e+00 : f32
    %45 = vector.broadcast %cst_17 : f32 to vector<8x384xf32>
    %46 = arith.addf %45, %44 : vector<8x384xf32>
    %47 = arith.divf %45, %46 : vector<8x384xf32>
    %48 = vector.extract_strided_slice %41 {offsets = [0, 384], sizes = [8, 128], strides = [1, 1]} : vector<8x512xf32> to vector<8x128xf32>
    %49 = math.tanh %48 : vector<8x128xf32>
    %50 = vector.extract_strided_slice %47 {offsets = [0, 0], sizes = [8, 128], strides = [1, 1]} : vector<8x384xf32> to vector<8x128xf32>
    %51 = vector.extract_strided_slice %47 {offsets = [0, 128], sizes = [8, 128], strides = [1, 1]} : vector<8x384xf32> to vector<8x128xf32>
    %52 = vector.extract_strided_slice %47 {offsets = [0, 256], sizes = [8, 128], strides = [1, 1]} : vector<8x384xf32> to vector<8x128xf32>
    %53 = arith.mulf %51, %36 : vector<8x128xf32>
    %54 = arith.mulf %50, %49 : vector<8x128xf32>
    %55 = arith.addf %53, %54 : vector<8x128xf32>
    %56 = math.tanh %55 : vector<8x128xf32>
    %57 = arith.mulf %52, %56 : vector<8x128xf32>
    %cst_18 = arith.constant dense<0.000000e+00> : vector<8x512xf32>
    %58 = tpu.matmul %57, %17, %cst_18 {dimension_numbers = #tpu.dot_dimension_numbers<[1], [0], [0], [1], [0, 0, 1, 1], [], []>} : vector<8x128xf32>, vector<128x512xf32>, vector<8x512xf32> -> vector<8x512xf32>
    %c16 = arith.constant 16 : index
    %c0_19 = arith.constant 0 : index
    %59 = vector.load %arg24[%c16, %c0_19] : memref<64x512xf32, #tpu.memory_space<vmem>>, vector<8x512xf32>
    %60 = arith.addf %58, %59 : vector<8x512xf32>
    %61 = vector.extract_strided_slice %60 {offsets = [0, 0], sizes = [8, 384], strides = [1, 1]} : vector<8x512xf32> to vector<8x384xf32>
    %62 = arith.negf %61 : vector<8x384xf32>
    %63 = math.exp %62 : vector<8x384xf32>
    %cst_20 = arith.constant 1.000000e+00 : f32
    %64 = vector.broadcast %cst_20 : f32 to vector<8x384xf32>
    %65 = arith.addf %64, %63 : vector<8x384xf32>
    %66 = arith.divf %64, %65 : vector<8x384xf32>
    %67 = vector.extract_strided_slice %60 {offsets = [0, 384], sizes = [8, 128], strides = [1, 1]} : vector<8x512xf32> to vector<8x128xf32>
    %68 = math.tanh %67 : vector<8x128xf32>
    %69 = vector.extract_strided_slice %66 {offsets = [0, 0], sizes = [8, 128], strides = [1, 1]} : vector<8x384xf32> to vector<8x128xf32>
    %70 = vector.extract_strided_slice %66 {offsets = [0, 128], sizes = [8, 128], strides = [1, 1]} : vector<8x384xf32> to vector<8x128xf32>
    %71 = vector.extract_strided_slice %66 {offsets = [0, 256], sizes = [8, 128], strides = [1, 1]} : vector<8x384xf32> to vector<8x128xf32>
    %72 = arith.mulf %70, %55 : vector<8x128xf32>
    %73 = arith.mulf %69, %68 : vector<8x128xf32>
    %74 = arith.addf %72, %73 : vector<8x128xf32>
    %75 = math.tanh %74 : vector<8x128xf32>
    %76 = arith.mulf %71, %75 : vector<8x128xf32>
    %cst_21 = arith.constant dense<0.000000e+00> : vector<8x512xf32>
    %77 = tpu.matmul %76, %17, %cst_21 {dimension_numbers = #tpu.dot_dimension_numbers<[1], [0], [0], [1], [0, 0, 1, 1], [], []>} : vector<8x128xf32>, vector<128x512xf32>, vector<8x512xf32> -> vector<8x512xf32>
    %c24 = arith.constant 24 : index
    %c0_22 = arith.constant 0 : index
    %78 = vector.load %arg24[%c24, %c0_22] : memref<64x512xf32, #tpu.memory_space<vmem>>, vector<8x512xf32>
    %79 = arith.addf %77, %78 : vector<8x512xf32>
    %80 = vector.extract_strided_slice %79 {offsets = [0, 0], sizes = [8, 384], strides = [1, 1]} : vector<8x512xf32> to vector<8x384xf32>
    %81 = arith.negf %80 : vector<8x384xf32>
    %82 = math.exp %81 : vector<8x384xf32>
    %cst_23 = arith.constant 1.000000e+00 : f32
    %83 = vector.broadcast %cst_23 : f32 to vector<8x384xf32>
    %84 = arith.addf %83, %82 : vector<8x384xf32>
    %85 = arith.divf %83, %84 : vector<8x384xf32>
    %86 = vector.extract_strided_slice %79 {offsets = [0, 384], sizes = [8, 128], strides = [1, 1]} : vector<8x512xf32> to vector<8x128xf32>
    %87 = math.tanh %86 : vector<8x128xf32>
    %88 = vector.extract_strided_slice %85 {offsets = [0, 0], sizes = [8, 128], strides = [1, 1]} : vector<8x384xf32> to vector<8x128xf32>
    %89 = vector.extract_strided_slice %85 {offsets = [0, 128], sizes = [8, 128], strides = [1, 1]} : vector<8x384xf32> to vector<8x128xf32>
    %90 = vector.extract_strided_slice %85 {offsets = [0, 256], sizes = [8, 128], strides = [1, 1]} : vector<8x384xf32> to vector<8x128xf32>
    %91 = arith.mulf %89, %74 : vector<8x128xf32>
    %92 = arith.mulf %88, %87 : vector<8x128xf32>
    %93 = arith.addf %91, %92 : vector<8x128xf32>
    %94 = math.tanh %93 : vector<8x128xf32>
    %95 = arith.mulf %90, %94 : vector<8x128xf32>
    %cst_24 = arith.constant dense<0.000000e+00> : vector<8x512xf32>
    %96 = tpu.matmul %95, %17, %cst_24 {dimension_numbers = #tpu.dot_dimension_numbers<[1], [0], [0], [1], [0, 0, 1, 1], [], []>} : vector<8x128xf32>, vector<128x512xf32>, vector<8x512xf32> -> vector<8x512xf32>
    %c32 = arith.constant 32 : index
    %c0_25 = arith.constant 0 : index
    %97 = vector.load %arg24[%c32, %c0_25] : memref<64x512xf32, #tpu.memory_space<vmem>>, vector<8x512xf32>
    %98 = arith.addf %96, %97 : vector<8x512xf32>
    %99 = vector.extract_strided_slice %98 {offsets = [0, 0], sizes = [8, 384], strides = [1, 1]} : vector<8x512xf32> to vector<8x384xf32>
    %100 = arith.negf %99 : vector<8x384xf32>
    %101 = math.exp %100 : vector<8x384xf32>
    %cst_26 = arith.constant 1.000000e+00 : f32
    %102 = vector.broadcast %cst_26 : f32 to vector<8x384xf32>
    %103 = arith.addf %102, %101 : vector<8x384xf32>
    %104 = arith.divf %102, %103 : vector<8x384xf32>
    %105 = vector.extract_strided_slice %98 {offsets = [0, 384], sizes = [8, 128], strides = [1, 1]} : vector<8x512xf32> to vector<8x128xf32>
    %106 = math.tanh %105 : vector<8x128xf32>
    %107 = vector.extract_strided_slice %104 {offsets = [0, 0], sizes = [8, 128], strides = [1, 1]} : vector<8x384xf32> to vector<8x128xf32>
    %108 = vector.extract_strided_slice %104 {offsets = [0, 128], sizes = [8, 128], strides = [1, 1]} : vector<8x384xf32> to vector<8x128xf32>
    %109 = vector.extract_strided_slice %104 {offsets = [0, 256], sizes = [8, 128], strides = [1, 1]} : vector<8x384xf32> to vector<8x128xf32>
    %110 = arith.mulf %108, %93 : vector<8x128xf32>
    %111 = arith.mulf %107, %106 : vector<8x128xf32>
    %112 = arith.addf %110, %111 : vector<8x128xf32>
    %113 = math.tanh %112 : vector<8x128xf32>
    %114 = arith.mulf %109, %113 : vector<8x128xf32>
    %cst_27 = arith.constant dense<0.000000e+00> : vector<8x512xf32>
    %115 = tpu.matmul %114, %17, %cst_27 {dimension_numbers = #tpu.dot_dimension_numbers<[1], [0], [0], [1], [0, 0, 1, 1], [], []>} : vector<8x128xf32>, vector<128x512xf32>, vector<8x512xf32> -> vector<8x512xf32>
    %c40 = arith.constant 40 : index
    %c0_28 = arith.constant 0 : index
    %116 = vector.load %arg24[%c40, %c0_28] : memref<64x512xf32, #tpu.memory_space<vmem>>, vector<8x512xf32>
    %117 = arith.addf %115, %116 : vector<8x512xf32>
    %118 = vector.extract_strided_slice %117 {offsets = [0, 0], sizes = [8, 384], strides = [1, 1]} : vector<8x512xf32> to vector<8x384xf32>
    %119 = arith.negf %118 : vector<8x384xf32>
    %120 = math.exp %119 : vector<8x384xf32>
    %cst_29 = arith.constant 1.000000e+00 : f32
    %121 = vector.broadcast %cst_29 : f32 to vector<8x384xf32>
    %122 = arith.addf %121, %120 : vector<8x384xf32>
    %123 = arith.divf %121, %122 : vector<8x384xf32>
    %124 = vector.extract_strided_slice %117 {offsets = [0, 384], sizes = [8, 128], strides = [1, 1]} : vector<8x512xf32> to vector<8x128xf32>
    %125 = math.tanh %124 : vector<8x128xf32>
    %126 = vector.extract_strided_slice %123 {offsets = [0, 0], sizes = [8, 128], strides = [1, 1]} : vector<8x384xf32> to vector<8x128xf32>
    %127 = vector.extract_strided_slice %123 {offsets = [0, 128], sizes = [8, 128], strides = [1, 1]} : vector<8x384xf32> to vector<8x128xf32>
    %128 = vector.extract_strided_slice %123 {offsets = [0, 256], sizes = [8, 128], strides = [1, 1]} : vector<8x384xf32> to vector<8x128xf32>
    %129 = arith.mulf %127, %112 : vector<8x128xf32>
    %130 = arith.mulf %126, %125 : vector<8x128xf32>
    %131 = arith.addf %129, %130 : vector<8x128xf32>
    %132 = math.tanh %131 : vector<8x128xf32>
    %133 = arith.mulf %128, %132 : vector<8x128xf32>
    %cst_30 = arith.constant dense<0.000000e+00> : vector<8x512xf32>
    %134 = tpu.matmul %133, %17, %cst_30 {dimension_numbers = #tpu.dot_dimension_numbers<[1], [0], [0], [1], [0, 0, 1, 1], [], []>} : vector<8x128xf32>, vector<128x512xf32>, vector<8x512xf32> -> vector<8x512xf32>
    %c48 = arith.constant 48 : index
    %c0_31 = arith.constant 0 : index
    %135 = vector.load %arg24[%c48, %c0_31] : memref<64x512xf32, #tpu.memory_space<vmem>>, vector<8x512xf32>
    %136 = arith.addf %134, %135 : vector<8x512xf32>
    %137 = vector.extract_strided_slice %136 {offsets = [0, 0], sizes = [8, 384], strides = [1, 1]} : vector<8x512xf32> to vector<8x384xf32>
    %138 = arith.negf %137 : vector<8x384xf32>
    %139 = math.exp %138 : vector<8x384xf32>
    %cst_32 = arith.constant 1.000000e+00 : f32
    %140 = vector.broadcast %cst_32 : f32 to vector<8x384xf32>
    %141 = arith.addf %140, %139 : vector<8x384xf32>
    %142 = arith.divf %140, %141 : vector<8x384xf32>
    %143 = vector.extract_strided_slice %136 {offsets = [0, 384], sizes = [8, 128], strides = [1, 1]} : vector<8x512xf32> to vector<8x128xf32>
    %144 = math.tanh %143 : vector<8x128xf32>
    %145 = vector.extract_strided_slice %142 {offsets = [0, 0], sizes = [8, 128], strides = [1, 1]} : vector<8x384xf32> to vector<8x128xf32>
    %146 = vector.extract_strided_slice %142 {offsets = [0, 128], sizes = [8, 128], strides = [1, 1]} : vector<8x384xf32> to vector<8x128xf32>
    %147 = vector.extract_strided_slice %142 {offsets = [0, 256], sizes = [8, 128], strides = [1, 1]} : vector<8x384xf32> to vector<8x128xf32>
    %148 = arith.mulf %146, %131 : vector<8x128xf32>
    %149 = arith.mulf %145, %144 : vector<8x128xf32>
    %150 = arith.addf %148, %149 : vector<8x128xf32>
    %151 = math.tanh %150 : vector<8x128xf32>
    %152 = arith.mulf %147, %151 : vector<8x128xf32>
    %cst_33 = arith.constant dense<0.000000e+00> : vector<8x512xf32>
    %153 = tpu.matmul %152, %17, %cst_33 {dimension_numbers = #tpu.dot_dimension_numbers<[1], [0], [0], [1], [0, 0, 1, 1], [], []>} : vector<8x128xf32>, vector<128x512xf32>, vector<8x512xf32> -> vector<8x512xf32>
    %c56 = arith.constant 56 : index
    %c0_34 = arith.constant 0 : index
    %154 = vector.load %arg24[%c56, %c0_34] : memref<64x512xf32, #tpu.memory_space<vmem>>, vector<8x512xf32>
    %155 = arith.addf %153, %154 : vector<8x512xf32>
    %156 = vector.extract_strided_slice %155 {offsets = [0, 0], sizes = [8, 384], strides = [1, 1]} : vector<8x512xf32> to vector<8x384xf32>
    %157 = arith.negf %156 : vector<8x384xf32>
    %158 = math.exp %157 : vector<8x384xf32>
    %cst_35 = arith.constant 1.000000e+00 : f32
    %159 = vector.broadcast %cst_35 : f32 to vector<8x384xf32>
    %160 = arith.addf %159, %158 : vector<8x384xf32>
    %161 = arith.divf %159, %160 : vector<8x384xf32>
    %162 = vector.extract_strided_slice %155 {offsets = [0, 384], sizes = [8, 128], strides = [1, 1]} : vector<8x512xf32> to vector<8x128xf32>
    %163 = math.tanh %162 : vector<8x128xf32>
    %164 = vector.extract_strided_slice %161 {offsets = [0, 0], sizes = [8, 128], strides = [1, 1]} : vector<8x384xf32> to vector<8x128xf32>
    %165 = vector.extract_strided_slice %161 {offsets = [0, 128], sizes = [8, 128], strides = [1, 1]} : vector<8x384xf32> to vector<8x128xf32>
    %166 = vector.extract_strided_slice %161 {offsets = [0, 256], sizes = [8, 128], strides = [1, 1]} : vector<8x384xf32> to vector<8x128xf32>
    %167 = arith.mulf %165, %150 : vector<8x128xf32>
    %168 = arith.mulf %164, %163 : vector<8x128xf32>
    %169 = arith.addf %167, %168 : vector<8x128xf32>
    %170 = math.tanh %169 : vector<8x128xf32>
    %171 = arith.mulf %166, %170 : vector<8x128xf32>
    %c0_36 = arith.constant 0 : index
    %c0_37 = arith.constant 0 : index
    %172 = vector.load %arg1[%c0_36, %c0_37] : memref<8x594xf32, #tpu.memory_space<vmem>>, vector<8x594xf32>
    %c0_i32_38 = arith.constant 0 : i32
    %173 = tpu.memref_slice %arg25[%c0_i32_38] : memref<5x!tpu.dma_semaphore, #tpu.memory_space<semaphore_mem>> -> memref<1x!tpu.dma_semaphore, #tpu.memory_space<semaphore_mem>>
    %174 = tpu.memref_squeeze %173 : memref<1x!tpu.dma_semaphore, #tpu.memory_space<semaphore_mem>> -> memref<!tpu.dma_semaphore, #tpu.memory_space<semaphore_mem>>
    tpu.wait_dma2 semaphore(%174 : memref<!tpu.dma_semaphore, #tpu.memory_space<semaphore_mem>>) src(%arg6 : memref<594x512xf32, #tpu.memory_space<any>>) dst(%arg19 : memref<594x512xf32, #tpu.memory_space<vmem>>)
    %c0_39 = arith.constant 0 : index
    %c0_40 = arith.constant 0 : index
    %175 = vector.load %arg5[%c0_39, %c0_40] : memref<128x512xf32, #tpu.memory_space<vmem>>, vector<128x512xf32>
    %cst_41 = arith.constant dense<0.000000e+00> : vector<8x512xf32>
    %176 = tpu.matmul %171, %175, %cst_41 {dimension_numbers = #tpu.dot_dimension_numbers<[1], [0], [0], [1], [0, 0, 1, 1], [], []>} : vector<8x128xf32>, vector<128x512xf32>, vector<8x512xf32> -> vector<8x512xf32>
    %c0_42 = arith.constant 0 : index
    %c0_43 = arith.constant 0 : index
    %177 = vector.load %arg19[%c0_42, %c0_43] : memref<594x512xf32, #tpu.memory_space<vmem>>, vector<594x512xf32>
    %cst_44 = arith.constant dense<0.000000e+00> : vector<8x512xf32>
    %178 = tpu.matmul %172, %177, %cst_44 {dimension_numbers = #tpu.dot_dimension_numbers<[1], [0], [0], [1], [0, 0, 1, 1], [], []>} : vector<8x594xf32>, vector<594x512xf32>, vector<8x512xf32> -> vector<8x512xf32>
    %179 = arith.addf %176, %178 : vector<8x512xf32>
    %c0_45 = arith.constant 0 : index
    %c0_46 = arith.constant 0 : index
    %180 = vector.load %arg7[%c0_45, %c0_46] : memref<1x512xf32, #tpu.memory_space<vmem>>, vector<1x512xf32>
    %181 = vector.broadcast %180 : vector<1x512xf32> to vector<8x512xf32>
    %182 = arith.addf %179, %181 : vector<8x512xf32>
    %cst_47 = arith.constant 0.000000e+00 : f32
    %183 = vector.broadcast %cst_47 : f32 to vector<8x512xf32>
    %184 = arith.maximumf %182, %183 : vector<8x512xf32>
    %c1_i32_48 = arith.constant 1 : i32
    %185 = tpu.memref_slice %arg25[%c1_i32_48] : memref<5x!tpu.dma_semaphore, #tpu.memory_space<semaphore_mem>> -> memref<1x!tpu.dma_semaphore, #tpu.memory_space<semaphore_mem>>
    %186 = tpu.memref_squeeze %185 : memref<1x!tpu.dma_semaphore, #tpu.memory_space<semaphore_mem>> -> memref<!tpu.dma_semaphore, #tpu.memory_space<semaphore_mem>>
    tpu.wait_dma2 semaphore(%186 : memref<!tpu.dma_semaphore, #tpu.memory_space<semaphore_mem>>) src(%arg8 : memref<512x512xf32, #tpu.memory_space<any>>) dst(%arg20 : memref<512x512xf32, #tpu.memory_space<vmem>>)
    %c0_49 = arith.constant 0 : index
    %c0_50 = arith.constant 0 : index
    %187 = vector.load %arg20[%c0_49, %c0_50] : memref<512x512xf32, #tpu.memory_space<vmem>>, vector<512x512xf32>
    %cst_51 = arith.constant dense<0.000000e+00> : vector<8x512xf32>
    %188 = tpu.matmul %184, %187, %cst_51 {dimension_numbers = #tpu.dot_dimension_numbers<[1], [0], [0], [1], [0, 0, 1, 1], [], []>} : vector<8x512xf32>, vector<512x512xf32>, vector<8x512xf32> -> vector<8x512xf32>
    %c0_52 = arith.constant 0 : index
    %c0_53 = arith.constant 0 : index
    %189 = vector.load %arg9[%c0_52, %c0_53] : memref<1x512xf32, #tpu.memory_space<vmem>>, vector<1x512xf32>
    %190 = vector.broadcast %189 : vector<1x512xf32> to vector<8x512xf32>
    %191 = arith.addf %188, %190 : vector<8x512xf32>
    %cst_54 = arith.constant 0.000000e+00 : f32
    %192 = vector.broadcast %cst_54 : f32 to vector<8x512xf32>
    %193 = arith.maximumf %191, %192 : vector<8x512xf32>
    %c2_i32_55 = arith.constant 2 : i32
    %194 = tpu.memref_slice %arg25[%c2_i32_55] : memref<5x!tpu.dma_semaphore, #tpu.memory_space<semaphore_mem>> -> memref<1x!tpu.dma_semaphore, #tpu.memory_space<semaphore_mem>>
    %195 = tpu.memref_squeeze %194 : memref<1x!tpu.dma_semaphore, #tpu.memory_space<semaphore_mem>> -> memref<!tpu.dma_semaphore, #tpu.memory_space<semaphore_mem>>
    tpu.wait_dma2 semaphore(%195 : memref<!tpu.dma_semaphore, #tpu.memory_space<semaphore_mem>>) src(%arg10 : memref<512x512xf32, #tpu.memory_space<any>>) dst(%arg21 : memref<512x512xf32, #tpu.memory_space<vmem>>)
    %c0_56 = arith.constant 0 : index
    %c0_57 = arith.constant 0 : index
    %196 = vector.load %arg21[%c0_56, %c0_57] : memref<512x512xf32, #tpu.memory_space<vmem>>, vector<512x512xf32>
    %cst_58 = arith.constant dense<0.000000e+00> : vector<8x512xf32>
    %197 = tpu.matmul %193, %196, %cst_58 {dimension_numbers = #tpu.dot_dimension_numbers<[1], [0], [0], [1], [0, 0, 1, 1], [], []>} : vector<8x512xf32>, vector<512x512xf32>, vector<8x512xf32> -> vector<8x512xf32>
    %c0_59 = arith.constant 0 : index
    %c0_60 = arith.constant 0 : index
    %198 = vector.load %arg11[%c0_59, %c0_60] : memref<1x512xf32, #tpu.memory_space<vmem>>, vector<1x512xf32>
    %199 = vector.broadcast %198 : vector<1x512xf32> to vector<8x512xf32>
    %200 = arith.addf %197, %199 : vector<8x512xf32>
    %cst_61 = arith.constant 0.000000e+00 : f32
    %201 = vector.broadcast %cst_61 : f32 to vector<8x512xf32>
    %202 = arith.maximumf %200, %201 : vector<8x512xf32>
    %c3_i32_62 = arith.constant 3 : i32
    %203 = tpu.memref_slice %arg25[%c3_i32_62] : memref<5x!tpu.dma_semaphore, #tpu.memory_space<semaphore_mem>> -> memref<1x!tpu.dma_semaphore, #tpu.memory_space<semaphore_mem>>
    %204 = tpu.memref_squeeze %203 : memref<1x!tpu.dma_semaphore, #tpu.memory_space<semaphore_mem>> -> memref<!tpu.dma_semaphore, #tpu.memory_space<semaphore_mem>>
    tpu.wait_dma2 semaphore(%204 : memref<!tpu.dma_semaphore, #tpu.memory_space<semaphore_mem>>) src(%arg12 : memref<512x512xf32, #tpu.memory_space<any>>) dst(%arg22 : memref<512x512xf32, #tpu.memory_space<vmem>>)
    %c0_63 = arith.constant 0 : index
    %c0_64 = arith.constant 0 : index
    %205 = vector.load %arg22[%c0_63, %c0_64] : memref<512x512xf32, #tpu.memory_space<vmem>>, vector<512x512xf32>
    %cst_65 = arith.constant dense<0.000000e+00> : vector<8x512xf32>
    %206 = tpu.matmul %202, %205, %cst_65 {dimension_numbers = #tpu.dot_dimension_numbers<[1], [0], [0], [1], [0, 0, 1, 1], [], []>} : vector<8x512xf32>, vector<512x512xf32>, vector<8x512xf32> -> vector<8x512xf32>
    %c0_66 = arith.constant 0 : index
    %c0_67 = arith.constant 0 : index
    %207 = vector.load %arg13[%c0_66, %c0_67] : memref<1x512xf32, #tpu.memory_space<vmem>>, vector<1x512xf32>
    %208 = vector.broadcast %207 : vector<1x512xf32> to vector<8x512xf32>
    %209 = arith.addf %206, %208 : vector<8x512xf32>
    %cst_68 = arith.constant 0.000000e+00 : f32
    %210 = vector.broadcast %cst_68 : f32 to vector<8x512xf32>
    %211 = arith.maximumf %209, %210 : vector<8x512xf32>
    %c4_i32_69 = arith.constant 4 : i32
    %212 = tpu.memref_slice %arg25[%c4_i32_69] : memref<5x!tpu.dma_semaphore, #tpu.memory_space<semaphore_mem>> -> memref<1x!tpu.dma_semaphore, #tpu.memory_space<semaphore_mem>>
    %213 = tpu.memref_squeeze %212 : memref<1x!tpu.dma_semaphore, #tpu.memory_space<semaphore_mem>> -> memref<!tpu.dma_semaphore, #tpu.memory_space<semaphore_mem>>
    tpu.wait_dma2 semaphore(%213 : memref<!tpu.dma_semaphore, #tpu.memory_space<semaphore_mem>>) src(%arg14 : memref<512x512xf32, #tpu.memory_space<any>>) dst(%arg23 : memref<512x512xf32, #tpu.memory_space<vmem>>)
    %c0_70 = arith.constant 0 : index
    %c0_71 = arith.constant 0 : index
    %214 = vector.load %arg23[%c0_70, %c0_71] : memref<512x512xf32, #tpu.memory_space<vmem>>, vector<512x512xf32>
    %cst_72 = arith.constant dense<0.000000e+00> : vector<8x512xf32>
    %215 = tpu.matmul %211, %214, %cst_72 {dimension_numbers = #tpu.dot_dimension_numbers<[1], [0], [0], [1], [0, 0, 1, 1], [], []>} : vector<8x512xf32>, vector<512x512xf32>, vector<8x512xf32> -> vector<8x512xf32>
    %c0_73 = arith.constant 0 : index
    %c0_74 = arith.constant 0 : index
    %216 = vector.load %arg15[%c0_73, %c0_74] : memref<1x512xf32, #tpu.memory_space<vmem>>, vector<1x512xf32>
    %217 = vector.broadcast %216 : vector<1x512xf32> to vector<8x512xf32>
    %218 = arith.addf %215, %217 : vector<8x512xf32>
    %cst_75 = arith.constant 0.000000e+00 : f32
    %219 = vector.broadcast %cst_75 : f32 to vector<8x512xf32>
    %220 = arith.maximumf %218, %219 : vector<8x512xf32>
    %c0_76 = arith.constant 0 : index
    %c0_77 = arith.constant 0 : index
    %221 = vector.load %arg16[%c0_76, %c0_77] : memref<1x512xf32, #tpu.memory_space<vmem>>, vector<1x512xf32>
    %222 = vector.broadcast %221 : vector<1x512xf32> to vector<8x512xf32>
    %223 = arith.mulf %220, %222 : vector<8x512xf32>
    %cst_78 = arith.constant dense<0.000000e+00> : vector<8xf32>
    %224 = vector.multi_reduction <add>, %223, %cst_78 [1] : vector<8x512xf32> to vector<8xf32>
    %225 = vector.shape_cast %224 : vector<8xf32> to vector<8x1xf32>
    %c0_79 = arith.constant 0 : index
    %c0_80 = arith.constant 0 : index
    %226 = vector.load %arg17[%c0_79, %c0_80] : memref<1x1xf32, #tpu.memory_space<vmem>>, vector<1x1xf32>
    %227 = vector.broadcast %226 : vector<1x1xf32> to vector<8x1xf32>
    %228 = arith.addf %225, %227 : vector<8x1xf32>
    %c0_81 = arith.constant 0 : index
    %c0_82 = arith.constant 0 : index
    %229 = vector.load %arg18[%c0_81, %c0_82] : memref<8x1xf32, #tpu.memory_space<vmem>>, vector<8x1xf32>
    tpu.vector_store %arg18[%c0_81, %c0_82], %228 {strides = array<i32>} : memref<8x1xf32, #tpu.memory_space<vmem>>, vector<8x1xf32>,
    return
  }
}

</mosaic_0001>

<llo_original>
// kernel: farmer_lstm_forward.1
$region0: #{farmer_lstm_forward.1}
  #allocation0 [shape = 'u32[]', space=smem, size = 0x4, offset = 0x4, fixed_abs, tag = 'smem constant byte address 0x4 - core index']
  #allocation1 [shape = 'u32[72,128]{1,0:T(1,128)}', space=vmem, size = 0x9000, scoped, tag = 'internal scratch']
  #allocation2 [shape = 'f32[594,512]{1,0:T(8,128)}', space=vmem, size = 0x12c000, scoped, tag = 'scratch operand']
  #allocation3 [shape = 'f32[512,512]{1,0:T(8,128)}', space=vmem, size = 0x100000, scoped, tag = 'scratch operand']
  #allocation4 [shape = 'f32[512,512]{1,0:T(8,128)}', space=vmem, size = 0x100000, scoped, tag = 'scratch operand']
  #allocation5 [shape = 'f32[512,512]{1,0:T(8,128)}', space=vmem, size = 0x100000, scoped, tag = 'scratch operand']
  #allocation6 [shape = 'f32[512,512]{1,0:T(8,128)}', space=vmem, size = 0x100000, scoped, tag = 'scratch operand']
  #allocation7 [shape = 'f32[64,512]{1,0:T(8,128)}', space=vmem, size = 0x20000, scoped, tag = 'scratch operand']
  #allocation8 [shape = 's32[5]{0}', space=sflag, size = 0x14, scoped, tag = 'scratch operand']
  #allocation9 [shape = 'f32[1,1]{1,0:T(1,128)S(1)}', space=vmem, size = 0x200, scoped, tag = 'scoped memory for farmer_lstm_forward.1']
  #allocation12 [shape = 's32[]', space=sflag, size = 0x4, offset = 0, fixed_abs, tag = 'sflag constant byte address 0x0 - dummy sync flag']
  #allocation13 [shape = 's32[]', space=sflag, size = 0x4, offset = 0, fixed_abs, tag = 'sflag constant byte address 0x0 - dummy sync flag']
  #allocation14 [shape = 's32[]', space=sflag, size = 0x4, offset = 0, fixed_abs, tag = 'sflag constant byte address 0x0 - dummy sync flag']
  #allocation15 [shape = 's32[]', space=sflag, size = 0x4, offset = 0, fixed_abs, tag = 'sflag constant byte address 0x0 - dummy sync flag']
  #allocation16 [shape = 'u32[]', space=smem, size = 0x4, offset = 0x44, fixed_abs, tag = 'smem constant byte address 0x44 - assertion arg 0']
  #allocation17 [shape = 'u32[]', space=smem, size = 0x4, offset = 0x48, fixed_abs, tag = 'smem constant byte address 0x48 - assertion arg 1']
  #allocation18 [shape = 's32[]', space=sflag, size = 0x4, offset = 0, fixed_abs, tag = 'sflag constant byte address 0x0 - dummy sync flag']
  #allocation19 [shape = 's32[]', space=sflag, size = 0x4, offset = 0, fixed_abs, tag = 'sflag constant byte address 0x0 - dummy sync flag']
  #allocation20 [shape = 's32[]', space=sflag, size = 0x4, offset = 0, fixed_abs, tag = 'sflag constant byte address 0x0 - dummy sync flag']
  #allocation21 [shape = 's32[]', space=sflag, size = 0x4, offset = 0, fixed_abs, tag = 'sflag constant byte address 0x0 - dummy sync flag']
  %s0 = inlined_call_operand.vmem [shape: f32[64,216], index: 0, kind: input, shape index: {}]
  %s1 = inlined_call_operand.vmem [shape: f32[8,594], index: 1, kind: input, shape index: {}]
  %s2 = inlined_call_operand.vmem [shape: f32[216,512], index: 2, kind: input, shape index: {}]
  %s3 = inlined_call_operand.vmem [shape: f32[128,512], index: 3, kind: input, shape index: {}]
  %s4 = inlined_call_operand.vmem [shape: f32[1,512], index: 4, kind: input, shape index: {}]
  %s5 = inlined_call_operand.hbm [shape: f32[128,512], index: 5, kind: input, shape index: {}]
  %s6 = inlined_call_operand.vmem [shape: f32[594,512], index: 6, kind: input, shape index: {}]
  %s7 = inlined_call_operand.vmem [shape: f32[1,512], index: 7, kind: input, shape index: {}]
  %s8 = inlined_call_operand.vmem [shape: f32[512,512], index: 8, kind: input, shape index: {}]
  %s9 = inlined_call_operand.vmem [shape: f32[1,512], index: 9, kind: input, shape index: {}]
  %s10 = inlined_call_operand.hbm [shape: f32[512,512], index: 10, kind: input, shape index: {}]
  %s11 = inlined_call_operand.vmem [shape: f32[1,512], index: 11, kind: input, shape index: {}]
  %s12 = inlined_call_operand.hbm [shape: f32[512,512], index: 12, kind: input, shape index: {}]
  %s13 = inlined_call_operand.vmem [shape: f32[1,512], index: 13, kind: input, shape index: {}]
  %s14 = inlined_call_operand.hbm [shape: f32[512,512], index: 14, kind: input, shape index: {}]
  %s15 = inlined_call_operand.vmem [shape: f32[1,512], index: 15, kind: input, shape index: {}]
  %s16 = inlined_call_operand.vmem [shape: f32[1,512], index: 16, kind: input, shape index: {}]
  %s17 = inlined_call_operand.<no memory space> [shape: f32[1,1], index: 17, kind: input, shape index: {}]
  %s18 = inlined_call_operand.vmem [shape: f32[8,1], index: 18, kind: output, shape index: {}]
  %s19 = sld [smem:[#allocation0]]
  $region116: #{farmer_lstm_forward.1} parent=0
    _
  %s21 = ssub.s32 1, %s19
  %s22 = scalar_select 0, %s21, %s19
  %v23 = vstv %s17
  %24 = vst [vmem:[#allocation9] sm:$0x1] %v23
  $region1: #{farmer_lstm_forward.1} parent=0
    #allocation10 [shape = 'u8[262144]{0}', space=vmem, size = 0x40000, scoped, tag = 'input window, operand 5, single buffered']
    #allocation11 [shape = 's32[1]{0}', space=sflag, size = 0x4, scoped, tag = 'scoped memory for farmer_lstm_forward.1']
    %25 = vsyncpa [#allocation11], 0
    // Predicated region
    $region2: #{farmer_lstm_forward.1} parent=1 // pred_check
      _
    $region3: #{farmer_lstm_forward.1} parent=1 // pred_check_branch
      %27 = sbr.rel (0) target = $region5
    $region4: #{farmer_lstm_forward.1} parent=1 // pred_region
      _
    $region5: #{farmer_lstm_forward.1} parent=1 // pred_fallthru
      _
    // Predicated region
    $region6: #{farmer_lstm_forward.1} parent=1 // pred_check
      _
    $region7: #{farmer_lstm_forward.1} parent=1 // pred_check_branch
      %29 = sbr.rel (0) target = $region9
    $region8: #{farmer_lstm_forward.1} parent=1 // pred_region
      _
    $region9: #{farmer_lstm_forward.1} parent=1 // pred_fallthru
      _
    // Predicated region
    $region10: #{farmer_lstm_forward.1} parent=1 // pred_check
      _
    $region11: #{farmer_lstm_forward.1} parent=1 // pred_check_branch
      %31 = sbr.rel (0) target = $region13
    $region12: #{farmer_lstm_forward.1} parent=1 // pred_region
      _
    $region13: #{farmer_lstm_forward.1} parent=1 // pred_fallthru
      _
    // Predicated region
    $region14: #{farmer_lstm_forward.1} parent=1 // pred_check
      _
    $region15: #{farmer_lstm_forward.1} parent=1 // pred_check_branch
      %33 = sbr.rel (0) target = $region17
    $region16: #{farmer_lstm_forward.1} parent=1 // pred_region
      _
    $region17: #{farmer_lstm_forward.1} parent=1 // pred_fallthru
      _
    // Predicated region
    $region18: #{farmer_lstm_forward.1} parent=1 // pred_check
      _
    $region19: #{farmer_lstm_forward.1} parent=1 // pred_check_branch
      %35 = sbr.rel (0) target = $region21
    $region20: #{farmer_lstm_forward.1} parent=1 // pred_region
      _
    $region21: #{farmer_lstm_forward.1} parent=1 // pred_fallthru
      _
    // Predicated region
    $region22: #{farmer_lstm_forward.1} parent=1 // pred_check
      _
    $region23: #{farmer_lstm_forward.1} parent=1 // pred_check_branch
      %37 = sbr.rel (0) target = $region25
    $region24: #{farmer_lstm_forward.1} parent=1 // pred_region
      %39 = vsyncadd [#allocation11], 0
      %s40 = sshll.u32 %s5, 4
      %s41 = int_to_ptr.hbm [resolvable:$true] %s40
      %s42 = sshll.u32 [#allocation10], 4
      %s43 = int_to_ptr.vmem [resolvable:$true] %s42
      %48 = dma.hbm_to_vmem [thread:$0]  %s41, 8192, %s43, [#allocation11], 512, 512, 32
    $region25: #{farmer_lstm_forward.1} parent=1 // pred_fallthru
      _
    // Predicated region
    $region26: #{farmer_lstm_forward.1} parent=1 // pred_check
      _
    $region27: #{farmer_lstm_forward.1} parent=1 // pred_check_branch
      %50 = sbr.rel (0) target = $region29
    $region28: #{farmer_lstm_forward.1} parent=1 // pred_region
      _
    $region29: #{farmer_lstm_forward.1} parent=1 // pred_fallthru
      _
    // Predicated region
    $region30: #{farmer_lstm_forward.1} parent=1 // pred_check
      _
    $region31: #{farmer_lstm_forward.1} parent=1 // pred_check_branch
      %52 = sbr.rel (0) target = $region33
    $region32: #{farmer_lstm_forward.1} parent=1 // pred_region
      _
    $region33: #{farmer_lstm_forward.1} parent=1 // pred_fallthru
      _
    // Predicated region
    $region34: #{farmer_lstm_forward.1} parent=1 // pred_check
      _
    $region35: #{farmer_lstm_forward.1} parent=1 // pred_check_branch
      %54 = sbr.rel (0) target = $region37
    $region36: #{farmer_lstm_forward.1} parent=1 // pred_region
      _
    $region37: #{farmer_lstm_forward.1} parent=1 // pred_fallthru
      _
    // Predicated region
    $region38: #{farmer_lstm_forward.1} parent=1 // pred_check
      _
    $region39: #{farmer_lstm_forward.1} parent=1 // pred_check_branch
      %56 = sbr.rel (0) target = $region41
    $region40: #{farmer_lstm_forward.1} parent=1 // pred_region
      _
    $region41: #{farmer_lstm_forward.1} parent=1 // pred_fallthru
      _
    // Predicated region
    $region42: #{farmer_lstm_forward.1} parent=1 // pred_check
      _
    $region43: #{farmer_lstm_forward.1} parent=1 // pred_check_branch
      %58 = sbr.rel (0) target = $region45
    $region44: #{farmer_lstm_forward.1} parent=1 // pred_region
      _
    $region45: #{farmer_lstm_forward.1} parent=1 // pred_fallthru
      _
    // Predicated region
    $region46: #{farmer_lstm_forward.1} parent=1 // pred_check
      _
    $region47: #{farmer_lstm_forward.1} parent=1 // pred_check_branch
      %60 = sbr.rel (0) target = $region49
    $region48: #{farmer_lstm_forward.1} parent=1 // pred_region
      _
    $region49: #{farmer_lstm_forward.1} parent=1 // pred_fallthru
      _
    // Predicated region
    $region50: #{farmer_lstm_forward.1} parent=1 // pred_check
      _
    $region51: #{farmer_lstm_forward.1} parent=1 // pred_check_branch
      %62 = sbr.rel (0) target = $region53
    $region52: #{farmer_lstm_forward.1} parent=1 // pred_region
      _
    $region53: #{farmer_lstm_forward.1} parent=1 // pred_fallthru
      _
    // Predicated region
    $region54: #{farmer_lstm_forward.1} parent=1 // pred_check
      _
    $region55: #{farmer_lstm_forward.1} parent=1 // pred_check_branch
      %64 = sbr.rel (0) target = $region57
    $region56: #{farmer_lstm_forward.1} parent=1 // pred_region
      %66 = dma.done [#allocation11], 8192
    $region57: #{farmer_lstm_forward.1} parent=1 // pred_fallthru
      _
    // Predicated region
    $region58: #{farmer_lstm_forward.1} parent=1 // pred_check
      _
    $region59: #{farmer_lstm_forward.1} parent=1 // pred_check_branch
      %68 = sbr.rel (0) target = $region61
    $region60: #{farmer_lstm_forward.1} parent=1 // pred_region
      loop: start=0, step=1, limit=1
      $region62: #{farmer_lstm_forward.1} parent=60 // loop_pre_header
        _
      $region63: #{farmer_lstm_forward.1} parent=60 // loop_header
        %s70 = sphi 0, %s74
        %p71 = scmp.ge.s32.totalorder %s70, 1
        %s75 = sphi %s6, %s6
        %s76 = sphi [#allocation2], [#allocation2]
      $region64: #{farmer_lstm_forward.1} parent=60 // loop_header_branch
        %73 = sbr.rel (%p71) target = $region68
      $region65: #{farmer_lstm_forward.1} parent=60 // loop_body
        %v77 = vld [vmem:[%s75] sm:$0xff]
        %78 = vst [vmem:[%s76] sm:$0xff] %v77
        %v79 = vld [vmem:[%s75 + $0x8] sm:$0xff]
        %80 = vst [vmem:[%s76 + $0x8] sm:$0xff] %v79
        %v81 = vld [vmem:[%s75 + $0x10] sm:$0xff]
        %82 = vst [vmem:[%s76 + $0x10] sm:$0xff] %v81
        %v83 = vld [vmem:[%s75 + $0x18] sm:$0xff]
        %84 = vst [vmem:[%s76 + $0x18] sm:$0xff] %v83
        %v85 = vld [vmem:[%s75 + $0x20] sm:$0xff]
        %86 = vst [vmem:[%s76 + $0x20] sm:$0xff] %v85
        %v87 = vld [vmem:[%s75 + $0x28] sm:$0xff]
        %88 = vst [vmem:[%s76 + $0x28] sm:$0xff] %v87
        %v89 = vld [vmem:[%s75 + $0x30] sm:$0xff]
        %90 = vst [vmem:[%s76 + $0x30] sm:$0xff] %v89
        %v91 = vld [vmem:[%s75 + $0x38] sm:$0xff]
        %92 = vst [vmem:[%s76 + $0x38] sm:$0xff] %v91
        %v93 = vld [vmem:[%s75 + $0x40] sm:$0xff]
        %94 = vst [vmem:[%s76 + $0x40] sm:$0xff] %v93
        %v95 = vld [vmem:[%s75 + $0x48] sm:$0xff]
        %96 = vst [vmem:[%s76 + $0x48] sm:$0xff] %v95
        %v97 = vld [vmem:[%s75 + $0x50] sm:$0xff]
        %98 = vst [vmem:[%s76 + $0x50] sm:$0xff] %v97
        %v99 = vld [vmem:[%s75 + $0x58] sm:$0xff]
        %100 = vst [vmem:[%s76 + $0x58] sm:$0xff] %v99
        %v101 = vld [vmem:[%s75 + $0x60] sm:$0xff]
        %102 = vst [vmem:[%s76 + $0x60] sm:$0xff] %v101
        %v103 = vld [vmem:[%s75 + $0x68] sm:$0xff]
        %104 = vst [vmem:[%s76 + $0x68] sm:$0xff] %v103
        %v105 = vld [vmem:[%s75 + $0x70] sm:$0xff]
        %106 = vst [vmem:[%s76 + $0x70] sm:$0xff] %v105
        %v107 = vld [vmem:[%s75 + $0x78] sm:$0xff]
        %108 = vst [vmem:[%s76 + $0x78] sm:$0xff] %v107
        %v109 = vld [vmem:[%s75 + $0x80] sm:$0xff]
        %110 = vst [vmem:[%s76 + $0x80] sm:$0xff] %v109
        %v111 = vld [vmem:[%s75 + $0x88] sm:$0xff]
        %112 = vst [vmem:[%s76 + $0x88] sm:$0xff] %v111
        %v113 = vld [vmem:[%s75 + $0x90] sm:$0xff]
        %114 = vst [vmem:[%s76 + $0x90] sm:$0xff] %v113
        %v115 = vld [vmem:[%s75 + $0x98] sm:$0xff]
        %116 = vst [vmem:[%s76 + $0x98] sm:$0xff] %v115
        %v117 = vld [vmem:[%s75 + $0xa0] sm:$0xff]
        %118 = vst [vmem:[%s76 + $0xa0] sm:$0xff] %v117
        %v119 = vld [vmem:[%s75 + $0xa8] sm:$0xff]
        %120 = vst [vmem:[%s76 + $0xa8] sm:$0xff] %v119
        %v121 = vld [vmem:[%s75 + $0xb0] sm:$0xff]
        %122 = vst [vmem:[%s76 + $0xb0] sm:$0xff] %v121
        %v123 = vld [vmem:[%s75 + $0xb8] sm:$0xff]
        %124 = vst [vmem:[%s76 + $0xb8] sm:$0xff] %v123
        %v125 = vld [vmem:[%s75 + $0xc0] sm:$0xff]
        %126 = vst [vmem:[%s76 + $0xc0] sm:$0xff] %v125
        %v127 = vld [vmem:[%s75 + $0xc8] sm:$0xff]
        %128 = vst [vmem:[%s76 + $0xc8] sm:$0xff] %v127
        %v129 = vld [vmem:[%s75 + $0xd0] sm:$0xff]
        %130 = vst [vmem:[%s76 + $0xd0] sm:$0xff] %v129
        %v131 = vld [vmem:[%s75 + $0xd8] sm:$0xff]
        %132 = vst [vmem:[%s76 + $0xd8] sm:$0xff] %v131
        %v133 = vld [vmem:[%s75 + $0xe0] sm:$0xff]
        %134 = vst [vmem:[%s76 + $0xe0] sm:$0xff] %v133
        %v135 = vld [vmem:[%s75 + $0xe8] sm:$0xff]
        %136 = vst [vmem:[%s76 + $0xe8] sm:$0xff] %v135
        %v137 = vld [vmem:[%s75 + $0xf0] sm:$0xff]
        %138 = vst [vmem:[%s76 + $0xf0] sm:$0xff] %v137
        %v139 = vld [vmem:[%s75 + $0xf8] sm:$0xff]
        %140 = vst [vmem:[%s76 + $0xf8] sm:$0xff] %v139
        %v141 = vld [vmem:[%s75 + $0x100] sm:$0xff]
        %142 = vst [vmem:[%s76 + $0x100] sm:$0xff] %v141
        %v143 = vld [vmem:[%s75 + $0x108] sm:$0xff]
        %144 = vst [vmem:[%s76 + $0x108] sm:$0xff] %v143
        %v145 = vld [vmem:[%s75 + $0x110] sm:$0xff]
        %146 = vst [vmem:[%s76 + $0x110] sm:$0xff] %v145
        %v147 = vld [vmem:[%s75 + $0x118] sm:$0xff]
        %148 = vst [vmem:[%s76 + $0x118] sm:$0xff] %v147
        %v149 = vld [vmem:[%s75 + $0x120] sm:$0xff]
        %150 = vst [vmem:[%s76 + $0x120] sm:$0xff] %v149
        %v151 = vld [vmem:[%s75 + $0x128] sm:$0xff]
        %152 = vst [vmem:[%s76 + $0x128] sm:$0xff] %v151
        %v153 = vld [vmem:[%s75 + $0x130] sm:$0xff]
        %154 = vst [vmem:[%s76 + $0x130] sm:$0xff] %v153
        %v155 = vld [vmem:[%s75 + $0x138] sm:$0xff]
        %156 = vst [vmem:[%s76 + $0x138] sm:$0xff] %v155
        %v157 = vld [vmem:[%s75 + $0x140] sm:$0xff]
        %158 = vst [vmem:[%s76 + $0x140] sm:$0xff] %v157
        %v159 = vld [vmem:[%s75 + $0x148] sm:$0xff]
        %160 = vst [vmem:[%s76 + $0x148] sm:$0xff] %v159
        %v161 = vld [vmem:[%s75 + $0x150] sm:$0xff]
        %162 = vst [vmem:[%s76 + $0x150] sm:$0xff] %v161
        %v163 = vld [vmem:[%s75 + $0x158] sm:$0xff]
        %164 = vst [vmem:[%s76 + $0x158] sm:$0xff] %v163
        %v165 = vld [vmem:[%s75 + $0x160] sm:$0xff]
        %166 = vst [vmem:[%s76 + $0x160] sm:$0xff] %v165
        %v167 = vld [vmem:[%s75 + $0x168] sm:$0xff]
        %168 = vst [vmem:[%s76 + $0x168] sm:$0xff] %v167
        %v169 = vld [vmem:[%s75 + $0x170] sm:$0xff]
        %170 = vst [vmem:[%s76 + $0x170] sm:$0xff] %v169
        %v171 = vld [vmem:[%s75 + $0x178] sm:$0xff]
        %172 = vst [vmem:[%s76 + $0x178] sm:$0xff] %v171
        %v173 = vld [vmem:[%s75 + $0x180] sm:$0xff]
        %174 = vst [vmem:[%s76 + $0x180] sm:$0xff] %v173
        %v175 = vld [vmem:[%s75 + $0x188] sm:$0xff]
        %176 = vst [vmem:[%s76 + $0x188] sm:$0xff] %v175
        %v177 = vld [vmem:[%s75 + $0x190] sm:$0xff]
        %178 = vst [vmem:[%s76 + $0x190] sm:$0xff] %v177
        %v179 = vld [vmem:[%s75 + $0x198] sm:$0xff]
        %180 = vst [vmem:[%s76 + $0x198] sm:$0xff] %v179
        %v181 = vld [vmem:[%s75 + $0x1a0] sm:$0xff]
        %182 = vst [vmem:[%s76 + $0x1a0] sm:$0xff] %v181
        %v183 = vld [vmem:[%s75 + $0x1a8] sm:$0xff]
        %184 = vst [vmem:[%s76 + $0x1a8] sm:$0xff] %v183
        %v185 = vld [vmem:[%s75 + $0x1b0] sm:$0xff]
        %186 = vst [vmem:[%s76 + $0x1b0] sm:$0xff] %v185
        %v187 = vld [vmem:[%s75 + $0x1b8] sm:$0xff]
        %188 = vst [vmem:[%s76 + $0x1b8] sm:$0xff] %v187
        %v189 = vld [vmem:[%s75 + $0x1c0] sm:$0xff]
        %190 = vst [vmem:[%s76 + $0x1c0] sm:$0xff] %v189
        %v191 = vld [vmem:[%s75 + $0x1c8] sm:$0xff]
        %192 = vst [vmem:[%s76 + $0x1c8] sm:$0xff] %v191
        %v193 = vld [vmem:[%s75 + $0x1d0] sm:$0xff]
        %194 = vst [vmem:[%s76 + $0x1d0] sm:$0xff] %v193
        %v195 = vld [vmem:[%s75 + $0x1d8] sm:$0xff]
        %196 = vst [vmem:[%s76 + $0x1d8] sm:$0xff] %v195
        %v197 = vld [vmem:[%s75 + $0x1e0] sm:$0xff]
        %198 = vst [vmem:[%s76 + $0x1e0] sm:$0xff] %v197
        %v199 = vld [vmem:[%s75 + $0x1e8] sm:$0xff]
        %200 = vst [vmem:[%s76 + $0x1e8] sm:$0xff] %v199
        %v201 = vld [vmem:[%s75 + $0x1f0] sm:$0xff]
        %202 = vst [vmem:[%s76 + $0x1f0] sm:$0xff] %v201
        %v203 = vld [vmem:[%s75 + $0x1f8] sm:$0xff]
        %204 = vst [vmem:[%s76 + $0x1f8] sm:$0xff] %v203
        %v205 = vld [vmem:[%s75 + $0x200] sm:$0xff]
        %206 = vst [vmem:[%s76 + $0x200] sm:$0xff] %v205
        %v207 = vld [vmem:[%s75 + $0x208] sm:$0xff]
        %208 = vst [vmem:[%s76 + $0x208] sm:$0xff] %v207
        %v209 = vld [vmem:[%s75 + $0x210] sm:$0xff]
        %210 = vst [vmem:[%s76 + $0x210] sm:$0xff] %v209
        %v211 = vld [vmem:[%s75 + $0x218] sm:$0xff]
        %212 = vst [vmem:[%s76 + $0x218] sm:$0xff] %v211
        %v213 = vld [vmem:[%s75 + $0x220] sm:$0xff]
        %214 = vst [vmem:[%s76 + $0x220] sm:$0xff] %v213
        %v215 = vld [vmem:[%s75 + $0x228] sm:$0xff]
        %216 = vst [vmem:[%s76 + $0x228] sm:$0xff] %v215
        %v217 = vld [vmem:[%s75 + $0x230] sm:$0xff]
        %218 = vst [vmem:[%s76 + $0x230] sm:$0xff] %v217
        %v219 = vld [vmem:[%s75 + $0x238] sm:$0xff]
        %220 = vst [vmem:[%s76 + $0x238] sm:$0xff] %v219
        %v221 = vld [vmem:[%s75 + $0x240] sm:$0xff]
        %222 = vst [vmem:[%s76 + $0x240] sm:$0xff] %v221
        %v223 = vld [vmem:[%s75 + $0x248] sm:$0xff]
        %224 = vst [vmem:[%s76 + $0x248] sm:$0xff] %v223
        %v225 = vld [vmem:[%s75 + $0x250] sm:$0xff]
        %226 = vst [vmem:[%s76 + $0x250] sm:$0xff] %v225
        %v227 = vld [vmem:[%s75 + $0x258] sm:$0xff]
        %228 = vst [vmem:[%s76 + $0x258] sm:$0xff] %v227
        %v229 = vld [vmem:[%s75 + $0x260] sm:$0xff]
        %230 = vst [vmem:[%s76 + $0x260] sm:$0xff] %v229
        %v231 = vld [vmem:[%s75 + $0x268] sm:$0xff]
        %232 = vst [vmem:[%s76 + $0x268] sm:$0xff] %v231
        %v233 = vld [vmem:[%s75 + $0x270] sm:$0xff]
        %234 = vst [vmem:[%s76 + $0x270] sm:$0xff] %v233
        %v235 = vld [vmem:[%s75 + $0x278] sm:$0xff]
        %236 = vst [vmem:[%s76 + $0x278] sm:$0xff] %v235
        %v237 = vld [vmem:[%s75 + $0x280] sm:$0xff]
        %238 = vst [vmem:[%s76 + $0x280] sm:$0xff] %v237
        %v239 = vld [vmem:[%s75 + $0x288] sm:$0xff]
        %240 = vst [vmem:[%s76 + $0x288] sm:$0xff] %v239
        %v241 = vld [vmem:[%s75 + $0x290] sm:$0xff]
        %242 = vst [vmem:[%s76 + $0x290] sm:$0xff] %v241
        %v243 = vld [vmem:[%s75 + $0x298] sm:$0xff]
        %244 = vst [vmem:[%s76 + $0x298] sm:$0xff] %v243
        %v245 = vld [vmem:[%s75 + $0x2a0] sm:$0xff]
        %246 = vst [vmem:[%s76 + $0x2a0] sm:$0xff] %v245
        %v247 = vld [vmem:[%s75 + $0x2a8] sm:$0xff]
        %248 = vst [vmem:[%s76 + $0x2a8] sm:$0xff] %v247
        %v249 = vld [vmem:[%s75 + $0x2b0] sm:$0xff]
        %250 = vst [vmem:[%s76 + $0x2b0] sm:$0xff] %v249
        %v251 = vld [vmem:[%s75 + $0x2b8] sm:$0xff]
        %252 = vst [vmem:[%s76 + $0x2b8] sm:$0xff] %v251
        %v253 = vld [vmem:[%s75 + $0x2c0] sm:$0xff]
        %254 = vst [vmem:[%s76 + $0x2c0] sm:$0xff] %v253
        %v255 = vld [vmem:[%s75 + $0x2c8] sm:$0xff]
        %256 = vst [vmem:[%s76 + $0x2c8] sm:$0xff] %v255
        %v257 = vld [vmem:[%s75 + $0x2d0] sm:$0xff]
        %258 = vst [vmem:[%s76 + $0x2d0] sm:$0xff] %v257
        %v259 = vld [vmem:[%s75 + $0x2d8] sm:$0xff]
        %260 = vst [vmem:[%s76 + $0x2d8] sm:$0xff] %v259
        %v261 = vld [vmem:[%s75 + $0x2e0] sm:$0xff]
        %262 = vst [vmem:[%s76 + $0x2e0] sm:$0xff] %v261
        %v263 = vld [vmem:[%s75 + $0x2e8] sm:$0xff]
        %264 = vst [vmem:[%s76 + $0x2e8] sm:$0xff] %v263
        %v265 = vld [vmem:[%s75 + $0x2f0] sm:$0xff]
        %266 = vst [vmem:[%s76 + $0x2f0] sm:$0xff] %v265
        %v267 = vld [vmem:[%s75 + $0x2f8] sm:$0xff]
        %268 = vst [vmem:[%s76 + $0x2f8] sm:$0xff] %v267
        %v269 = vld [vmem:[%s75 + $0x300] sm:$0xff]
        %270 = vst [vmem:[%s76 + $0x300] sm:$0xff] %v269
        %v271 = vld [vmem:[%s75 + $0x308] sm:$0xff]
        %272 = vst [vmem:[%s76 + $0x308] sm:$0xff] %v271
        %v273 = vld [vmem:[%s75 + $0x310] sm:$0xff]
        %274 = vst [vmem:[%s76 + $0x310] sm:$0xff] %v273
        %v275 = vld [vmem:[%s75 + $0x318] sm:$0xff]
        %276 = vst [vmem:[%s76 + $0x318] sm:$0xff] %v275
        %v277 = vld [vmem:[%s75 + $0x320] sm:$0xff]
        %278 = vst [vmem:[%s76 + $0x320] sm:$0xff] %v277
        %v279 = vld [vmem:[%s75 + $0x328] sm:$0xff]
        %280 = vst [vmem:[%s76 + $0x328] sm:$0xff] %v279
        %v281 = vld [vmem:[%s75 + $0x330] sm:$0xff]
        %282 = vst [vmem:[%s76 + $0x330] sm:$0xff] %v281
        %v283 = vld [vmem:[%s75 + $0x338] sm:$0xff]
        %284 = vst [vmem:[%s76 + $0x338] sm:$0xff] %v283
        %v285 = vld [vmem:[%s75 + $0x340] sm:$0xff]
        %286 = vst [vmem:[%s76 + $0x340] sm:$0xff] %v285
        %v287 = vld [vmem:[%s75 + $0x348] sm:$0xff]
        %288 = vst [vmem:[%s76 + $0x348] sm:$0xff] %v287
        %v289 = vld [vmem:[%s75 + $0x350] sm:$0xff]
        %290 = vst [vmem:[%s76 + $0x350] sm:$0xff] %v289
        %v291 = vld [vmem:[%s75 + $0x358] sm:$0xff]
        %292 = vst [vmem:[%s76 + $0x358] sm:$0xff] %v291
        %v293 = vld [vmem:[%s75 + $0x360] sm:$0xff]
        %294 = vst [vmem:[%s76 + $0x360] sm:$0xff] %v293
        %v295 = vld [vmem:[%s75 + $0x368] sm:$0xff]
        %296 = vst [vmem:[%s76 + $0x368] sm:$0xff] %v295
        %v297 = vld [vmem:[%s75 + $0x370] sm:$0xff]
        %298 = vst [vmem:[%s76 + $0x370] sm:$0xff] %v297
        %v299 = vld [vmem:[%s75 + $0x378] sm:$0xff]
        %300 = vst [vmem:[%s76 + $0x378] sm:$0xff] %v299
        %v301 = vld [vmem:[%s75 + $0x380] sm:$0xff]
        %302 = vst [vmem:[%s76 + $0x380] sm:$0xff] %v301
        %v303 = vld [vmem:[%s75 + $0x388] sm:$0xff]
        %304 = vst [vmem:[%s76 + $0x388] sm:$0xff] %v303
        %v305 = vld [vmem:[%s75 + $0x390] sm:$0xff]
        %306 = vst [vmem:[%s76 + $0x390] sm:$0xff] %v305
        %v307 = vld [vmem:[%s75 + $0x398] sm:$0xff]
        %308 = vst [vmem:[%s76 + $0x398] sm:$0xff] %v307
        %v309 = vld [vmem:[%s75 + $0x3a0] sm:$0xff]
        %310 = vst [vmem:[%s76 + $0x3a0] sm:$0xff] %v309
        %v311 = vld [vmem:[%s75 + $0x3a8] sm:$0xff]
        %312 = vst [vmem:[%s76 + $0x3a8] sm:$0xff] %v311
        %v313 = vld [vmem:[%s75 + $0x3b0] sm:$0xff]
        %314 = vst [vmem:[%s76 + $0x3b0] sm:$0xff] %v313
        %v315 = vld [vmem:[%s75 + $0x3b8] sm:$0xff]
        %316 = vst [vmem:[%s76 + $0x3b8] sm:$0xff] %v315
        %v317 = vld [vmem:[%s75 + $0x3c0] sm:$0xff]
        %318 = vst [vmem:[%s76 + $0x3c0] sm:$0xff] %v317
        %v319 = vld [vmem:[%s75 + $0x3c8] sm:$0xff]
        %320 = vst [vmem:[%s76 + $0x3c8] sm:$0xff] %v319
        %v321 = vld [vmem:[%s75 + $0x3d0] sm:$0xff]
        %322 = vst [vmem:[%s76 + $0x3d0] sm:$0xff] %v321
        %v323 = vld [vmem:[%s75 + $0x3d8] sm:$0xff]
        %324 = vst [vmem:[%s76 + $0x3d8] sm:$0xff] %v323
        %v325 = vld [vmem:[%s75 + $0x3e0] sm:$0xff]
        %326 = vst [vmem:[%s76 + $0x3e0] sm:$0xff] %v325
        %v327 = vld [vmem:[%s75 + $0x3e8] sm:$0xff]
        %328 = vst [vmem:[%s76 + $0x3e8] sm:$0xff] %v327
        %v329 = vld [vmem:[%s75 + $0x3f0] sm:$0xff]
        %330 = vst [vmem:[%s76 + $0x3f0] sm:$0xff] %v329
        %v331 = vld [vmem:[%s75 + $0x3f8] sm:$0xff]
        %332 = vst [vmem:[%s76 + $0x3f8] sm:$0xff] %v331
        %v333 = vld [vmem:[%s75 + $0x400] sm:$0xff]
        %334 = vst [vmem:[%s76 + $0x400] sm:$0xff] %v333
        %v335 = vld [vmem:[%s75 + $0x408] sm:$0xff]
        %336 = vst [vmem:[%s76 + $0x408] sm:$0xff] %v335
        %v337 = vld [vmem:[%s75 + $0x410] sm:$0xff]
        %338 = vst [vmem:[%s76 + $0x410] sm:$0xff] %v337
        %v339 = vld [vmem:[%s75 + $0x418] sm:$0xff]
        %340 = vst [vmem:[%s76 + $0x418] sm:$0xff] %v339
        %v341 = vld [vmem:[%s75 + $0x420] sm:$0xff]
        %342 = vst [vmem:[%s76 + $0x420] sm:$0xff] %v341
        %v343 = vld [vmem:[%s75 + $0x428] sm:$0xff]
        %344 = vst [vmem:[%s76 + $0x428] sm:$0xff] %v343
        %v345 = vld [vmem:[%s75 + $0x430] sm:$0xff]
        %346 = vst [vmem:[%s76 + $0x430] sm:$0xff] %v345
        %v347 = vld [vmem:[%s75 + $0x438] sm:$0xff]
        %348 = vst [vmem:[%s76 + $0x438] sm:$0xff] %v347
        %v349 = vld [vmem:[%s75 + $0x440] sm:$0xff]
        %350 = vst [vmem:[%s76 + $0x440] sm:$0xff] %v349
        %v351 = vld [vmem:[%s75 + $0x448] sm:$0xff]
        %352 = vst [vmem:[%s76 + $0x448] sm:$0xff] %v351
        %v353 = vld [vmem:[%s75 + $0x450] sm:$0xff]
        %354 = vst [vmem:[%s76 + $0x450] sm:$0xff] %v353
        %v355 = vld [vmem:[%s75 + $0x458] sm:$0xff]
        %356 = vst [vmem:[%s76 + $0x458] sm:$0xff] %v355
        %v357 = vld [vmem:[%s75 + $0x460] sm:$0xff]
        %358 = vst [vmem:[%s76 + $0x460] sm:$0xff] %v357
        %v359 = vld [vmem:[%s75 + $0x468] sm:$0xff]
        %360 = vst [vmem:[%s76 + $0x468] sm:$0xff] %v359
        %v361 = vld [vmem:[%s75 + $0x470] sm:$0xff]
        %362 = vst [vmem:[%s76 + $0x470] sm:$0xff] %v361
        %v363 = vld [vmem:[%s75 + $0x478] sm:$0xff]
        %364 = vst [vmem:[%s76 + $0x478] sm:$0xff] %v363
        %v365 = vld [vmem:[%s75 + $0x480] sm:$0xff]
        %366 = vst [vmem:[%s76 + $0x480] sm:$0xff] %v365
        %v367 = vld [vmem:[%s75 + $0x488] sm:$0xff]
        %368 = vst [vmem:[%s76 + $0x488] sm:$0xff] %v367
        %v369 = vld [vmem:[%s75 + $0x490] sm:$0xff]
        %370 = vst [vmem:[%s76 + $0x490] sm:$0xff] %v369
        %v371 = vld [vmem:[%s75 + $0x498] sm:$0xff]
        %372 = vst [vmem:[%s76 + $0x498] sm:$0xff] %v371
        %v373 = vld [vmem:[%s75 + $0x4a0] sm:$0xff]
        %374 = vst [vmem:[%s76 + $0x4a0] sm:$0xff] %v373
        %v375 = vld [vmem:[%s75 + $0x4a8] sm:$0xff]
        %376 = vst [vmem:[%s76 + $0x4a8] sm:$0xff] %v375
        %v377 = vld [vmem:[%s75 + $0x4b0] sm:$0xff]
        %378 = vst [vmem:[%s76 + $0x4b0] sm:$0xff] %v377
        %v379 = vld [vmem:[%s75 + $0x4b8] sm:$0xff]
        %380 = vst [vmem:[%s76 + $0x4b8] sm:$0xff] %v379
        %v381 = vld [vmem:[%s75 + $0x4c0] sm:$0xff]
        %382 = vst [vmem:[%s76 + $0x4c0] sm:$0xff] %v381
        %v383 = vld [vmem:[%s75 + $0x4c8] sm:$0xff]
        %384 = vst [vmem:[%s76 + $0x4c8] sm:$0xff] %v383
        %v385 = vld [vmem:[%s75 + $0x4d0] sm:$0xff]
        %386 = vst [vmem:[%s76 + $0x4d0] sm:$0xff] %v385
        %v387 = vld [vmem:[%s75 + $0x4d8] sm:$0xff]
        %388 = vst [vmem:[%s76 + $0x4d8] sm:$0xff] %v387
        %v389 = vld [vmem:[%s75 + $0x4e0] sm:$0xff]
        %390 = vst [vmem:[%s76 + $0x4e0] sm:$0xff] %v389
        %v391 = vld [vmem:[%s75 + $0x4e8] sm:$0xff]
        %392 = vst [vmem:[%s76 + $0x4e8] sm:$0xff] %v391
        %v393 = vld [vmem:[%s75 + $0x4f0] sm:$0xff]
        %394 = vst [vmem:[%s76 + $0x4f0] sm:$0xff] %v393
        %v395 = vld [vmem:[%s75 + $0x4f8] sm:$0xff]
        %396 = vst [vmem:[%s76 + $0x4f8] sm:$0xff] %v395
        %v397 = vld [vmem:[%s75 + $0x500] sm:$0xff]
        %398 = vst [vmem:[%s76 + $0x500] sm:$0xff] %v397
        %v399 = vld [vmem:[%s75 + $0x508] sm:$0xff]
        %400 = vst [vmem:[%s76 + $0x508] sm:$0xff] %v399
        %v401 = vld [vmem:[%s75 + $0x510] sm:$0xff]
        %402 = vst [vmem:[%s76 + $0x510] sm:$0xff] %v401
        %v403 = vld [vmem:[%s75 + $0x518] sm:$0xff]
        %404 = vst [vmem:[%s76 + $0x518] sm:$0xff] %v403
        %v405 = vld [vmem:[%s75 + $0x520] sm:$0xff]
        %406 = vst [vmem:[%s76 + $0x520] sm:$0xff] %v405
        %v407 = vld [vmem:[%s75 + $0x528] sm:$0xff]
        %408 = vst [vmem:[%s76 + $0x528] sm:$0xff] %v407
        %v409 = vld [vmem:[%s75 + $0x530] sm:$0xff]
        %410 = vst [vmem:[%s76 + $0x530] sm:$0xff] %v409
        %v411 = vld [vmem:[%s75 + $0x538] sm:$0xff]
        %412 = vst [vmem:[%s76 + $0x538] sm:$0xff] %v411
        %v413 = vld [vmem:[%s75 + $0x540] sm:$0xff]
        %414 = vst [vmem:[%s76 + $0x540] sm:$0xff] %v413
        %v415 = vld [vmem:[%s75 + $0x548] sm:$0xff]
        %416 = vst [vmem:[%s76 + $0x548] sm:$0xff] %v415
        %v417 = vld [vmem:[%s75 + $0x550] sm:$0xff]
        %418 = vst [vmem:[%s76 + $0x550] sm:$0xff] %v417
        %v419 = vld [vmem:[%s75 + $0x558] sm:$0xff]
        %420 = vst [vmem:[%s76 + $0x558] sm:$0xff] %v419
        %v421 = vld [vmem:[%s75 + $0x560] sm:$0xff]
        %422 = vst [vmem:[%s76 + $0x560] sm:$0xff] %v421
        %v423 = vld [vmem:[%s75 + $0x568] sm:$0xff]
        %424 = vst [vmem:[%s76 + $0x568] sm:$0xff] %v423
        %v425 = vld [vmem:[%s75 + $0x570] sm:$0xff]
        %426 = vst [vmem:[%s76 + $0x570] sm:$0xff] %v425
        %v427 = vld [vmem:[%s75 + $0x578] sm:$0xff]
        %428 = vst [vmem:[%s76 + $0x578] sm:$0xff] %v427
        %v429 = vld [vmem:[%s75 + $0x580] sm:$0xff]
        %430 = vst [vmem:[%s76 + $0x580] sm:$0xff] %v429
        %v431 = vld [vmem:[%s75 + $0x588] sm:$0xff]
        %432 = vst [vmem:[%s76 + $0x588] sm:$0xff] %v431
        %v433 = vld [vmem:[%s75 + $0x590] sm:$0xff]
        %434 = vst [vmem:[%s76 + $0x590] sm:$0xff] %v433
        %v435 = vld [vmem:[%s75 + $0x598] sm:$0xff]
        %436 = vst [vmem:[%s76 + $0x598] sm:$0xff] %v435
        %v437 = vld [vmem:[%s75 + $0x5a0] sm:$0xff]
        %438 = vst [vmem:[%s76 + $0x5a0] sm:$0xff] %v437
        %v439 = vld [vmem:[%s75 + $0x5a8] sm:$0xff]
        %440 = vst [vmem:[%s76 + $0x5a8] sm:$0xff] %v439
        %v441 = vld [vmem:[%s75 + $0x5b0] sm:$0xff]
        %442 = vst [vmem:[%s76 + $0x5b0] sm:$0xff] %v441
        %v443 = vld [vmem:[%s75 + $0x5b8] sm:$0xff]
        %444 = vst [vmem:[%s76 + $0x5b8] sm:$0xff] %v443
        %v445 = vld [vmem:[%s75 + $0x5c0] sm:$0xff]
        %446 = vst [vmem:[%s76 + $0x5c0] sm:$0xff] %v445
        %v447 = vld [vmem:[%s75 + $0x5c8] sm:$0xff]
        %448 = vst [vmem:[%s76 + $0x5c8] sm:$0xff] %v447
        %v449 = vld [vmem:[%s75 + $0x5d0] sm:$0xff]
        %450 = vst [vmem:[%s76 + $0x5d0] sm:$0xff] %v449
        %v451 = vld [vmem:[%s75 + $0x5d8] sm:$0xff]
        %452 = vst [vmem:[%s76 + $0x5d8] sm:$0xff] %v451
        %v453 = vld [vmem:[%s75 + $0x5e0] sm:$0xff]
        %454 = vst [vmem:[%s76 + $0x5e0] sm:$0xff] %v453
        %v455 = vld [vmem:[%s75 + $0x5e8] sm:$0xff]
        %456 = vst [vmem:[%s76 + $0x5e8] sm:$0xff] %v455
        %v457 = vld [vmem:[%s75 + $0x5f0] sm:$0xff]
        %458 = vst [vmem:[%s76 + $0x5f0] sm:$0xff] %v457
        %v459 = vld [vmem:[%s75 + $0x5f8] sm:$0xff]
        %460 = vst [vmem:[%s76 + $0x5f8] sm:$0xff] %v459
        %v461 = vld [vmem:[%s75 + $0x600] sm:$0xff]
        %462 = vst [vmem:[%s76 + $0x600] sm:$0xff] %v461
        %v463 = vld [vmem:[%s75 + $0x608] sm:$0xff]
        %464 = vst [vmem:[%s76 + $0x608] sm:$0xff] %v463
        %v465 = vld [vmem:[%s75 + $0x610] sm:$0xff]
        %466 = vst [vmem:[%s76 + $0x610] sm:$0xff] %v465
        %v467 = vld [vmem:[%s75 + $0x618] sm:$0xff]
        %468 = vst [vmem:[%s76 + $0x618] sm:$0xff] %v467
        %v469 = vld [vmem:[%s75 + $0x620] sm:$0xff]
        %470 = vst [vmem:[%s76 + $0x620] sm:$0xff] %v469
        %v471 = vld [vmem:[%s75 + $0x628] sm:$0xff]
        %472 = vst [vmem:[%s76 + $0x628] sm:$0xff] %v471
        %v473 = vld [vmem:[%s75 + $0x630] sm:$0xff]
        %474 = vst [vmem:[%s76 + $0x630] sm:$0xff] %v473
        %v475 = vld [vmem:[%s75 + $0x638] sm:$0xff]
        %476 = vst [vmem:[%s76 + $0x638] sm:$0xff] %v475
        %v477 = vld [vmem:[%s75 + $0x640] sm:$0xff]
        %478 = vst [vmem:[%s76 + $0x640] sm:$0xff] %v477
        %v479 = vld [vmem:[%s75 + $0x648] sm:$0xff]
        %480 = vst [vmem:[%s76 + $0x648] sm:$0xff] %v479
        %v481 = vld [vmem:[%s75 + $0x650] sm:$0xff]
        %482 = vst [vmem:[%s76 + $0x650] sm:$0xff] %v481
        %v483 = vld [vmem:[%s75 + $0x658] sm:$0xff]
        %484 = vst [vmem:[%s76 + $0x658] sm:$0xff] %v483
        %v485 = vld [vmem:[%s75 + $0x660] sm:$0xff]
        %486 = vst [vmem:[%s76 + $0x660] sm:$0xff] %v485
        %v487 = vld [vmem:[%s75 + $0x668] sm:$0xff]
        %488 = vst [vmem:[%s76 + $0x668] sm:$0xff] %v487
        %v489 = vld [vmem:[%s75 + $0x670] sm:$0xff]
        %490 = vst [vmem:[%s76 + $0x670] sm:$0xff] %v489
        %v491 = vld [vmem:[%s75 + $0x678] sm:$0xff]
        %492 = vst [vmem:[%s76 + $0x678] sm:$0xff] %v491
        %v493 = vld [vmem:[%s75 + $0x680] sm:$0xff]
        %494 = vst [vmem:[%s76 + $0x680] sm:$0xff] %v493
        %v495 = vld [vmem:[%s75 + $0x688] sm:$0xff]
        %496 = vst [vmem:[%s76 + $0x688] sm:$0xff] %v495
        %v497 = vld [vmem:[%s75 + $0x690] sm:$0xff]
        %498 = vst [vmem:[%s76 + $0x690] sm:$0xff] %v497
        %v499 = vld [vmem:[%s75 + $0x698] sm:$0xff]
        %500 = vst [vmem:[%s76 + $0x698] sm:$0xff] %v499
        %v501 = vld [vmem:[%s75 + $0x6a0] sm:$0xff]
        %502 = vst [vmem:[%s76 + $0x6a0] sm:$0xff] %v501
        %v503 = vld [vmem:[%s75 + $0x6a8] sm:$0xff]
        %504 = vst [vmem:[%s76 + $0x6a8] sm:$0xff] %v503
        %v505 = vld [vmem:[%s75 + $0x6b0] sm:$0xff]
        %506 = vst [vmem:[%s76 + $0x6b0] sm:$0xff] %v505
        %v507 = vld [vmem:[%s75 + $0x6b8] sm:$0xff]
        %508 = vst [vmem:[%s76 + $0x6b8] sm:$0xff] %v507
        %v509 = vld [vmem:[%s75 + $0x6c0] sm:$0xff]
        %510 = vst [vmem:[%s76 + $0x6c0] sm:$0xff] %v509
        %v511 = vld [vmem:[%s75 + $0x6c8] sm:$0xff]
        %512 = vst [vmem:[%s76 + $0x6c8] sm:$0xff] %v511
        %v513 = vld [vmem:[%s75 + $0x6d0] sm:$0xff]
        %514 = vst [vmem:[%s76 + $0x6d0] sm:$0xff] %v513
        %v515 = vld [vmem:[%s75 + $0x6d8] sm:$0xff]
        %516 = vst [vmem:[%s76 + $0x6d8] sm:$0xff] %v515
        %v517 = vld [vmem:[%s75 + $0x6e0] sm:$0xff]
        %518 = vst [vmem:[%s76 + $0x6e0] sm:$0xff] %v517
        %v519 = vld [vmem:[%s75 + $0x6e8] sm:$0xff]
        %520 = vst [vmem:[%s76 + $0x6e8] sm:$0xff] %v519
        %v521 = vld [vmem:[%s75 + $0x6f0] sm:$0xff]
        %522 = vst [vmem:[%s76 + $0x6f0] sm:$0xff] %v521
        %v523 = vld [vmem:[%s75 + $0x6f8] sm:$0xff]
        %524 = vst [vmem:[%s76 + $0x6f8] sm:$0xff] %v523
        %v525 = vld [vmem:[%s75 + $0x700] sm:$0xff]
        %526 = vst [vmem:[%s76 + $0x700] sm:$0xff] %v525
        %v527 = vld [vmem:[%s75 + $0x708] sm:$0xff]
        %528 = vst [vmem:[%s76 + $0x708] sm:$0xff] %v527
        %v529 = vld [vmem:[%s75 + $0x710] sm:$0xff]
        %530 = vst [vmem:[%s76 + $0x710] sm:$0xff] %v529
        %v531 = vld [vmem:[%s75 + $0x718] sm:$0xff]
        %532 = vst [vmem:[%s76 + $0x718] sm:$0xff] %v531
        %v533 = vld [vmem:[%s75 + $0x720] sm:$0xff]
        %534 = vst [vmem:[%s76 + $0x720] sm:$0xff] %v533
        %v535 = vld [vmem:[%s75 + $0x728] sm:$0xff]
        %536 = vst [vmem:[%s76 + $0x728] sm:$0xff] %v535
        %v537 = vld [vmem:[%s75 + $0x730] sm:$0xff]
        %538 = vst [vmem:[%s76 + $0x730] sm:$0xff] %v537
        %v539 = vld [vmem:[%s75 + $0x738] sm:$0xff]
        %540 = vst [vmem:[%s76 + $0x738] sm:$0xff] %v539
        %v541 = vld [vmem:[%s75 + $0x740] sm:$0xff]
        %542 = vst [vmem:[%s76 + $0x740] sm:$0xff] %v541
        %v543 = vld [vmem:[%s75 + $0x748] sm:$0xff]
        %544 = vst [vmem:[%s76 + $0x748] sm:$0xff] %v543
        %v545 = vld [vmem:[%s75 + $0x750] sm:$0xff]
        %546 = vst [vmem:[%s76 + $0x750] sm:$0xff] %v545
        %v547 = vld [vmem:[%s75 + $0x758] sm:$0xff]
        %548 = vst [vmem:[%s76 + $0x758] sm:$0xff] %v547
        %v549 = vld [vmem:[%s75 + $0x760] sm:$0xff]
        %550 = vst [vmem:[%s76 + $0x760] sm:$0xff] %v549
        %v551 = vld [vmem:[%s75 + $0x768] sm:$0xff]
        %552 = vst [vmem:[%s76 + $0x768] sm:$0xff] %v551
        %v553 = vld [vmem:[%s75 + $0x770] sm:$0xff]
        %554 = vst [vmem:[%s76 + $0x770] sm:$0xff] %v553
        %v555 = vld [vmem:[%s75 + $0x778] sm:$0xff]
        %556 = vst [vmem:[%s76 + $0x778] sm:$0xff] %v555
        %v557 = vld [vmem:[%s75 + $0x780] sm:$0xff]
        %558 = vst [vmem:[%s76 + $0x780] sm:$0xff] %v557
        %v559 = vld [vmem:[%s75 + $0x788] sm:$0xff]
        %560 = vst [vmem:[%s76 + $0x788] sm:$0xff] %v559
        %v561 = vld [vmem:[%s75 + $0x790] sm:$0xff]
        %562 = vst [vmem:[%s76 + $0x790] sm:$0xff] %v561
        %v563 = vld [vmem:[%s75 + $0x798] sm:$0xff]
        %564 = vst [vmem:[%s76 + $0x798] sm:$0xff] %v563
        %v565 = vld [vmem:[%s75 + $0x7a0] sm:$0xff]
        %566 = vst [vmem:[%s76 + $0x7a0] sm:$0xff] %v565
        %v567 = vld [vmem:[%s75 + $0x7a8] sm:$0xff]
        %568 = vst [vmem:[%s76 + $0x7a8] sm:$0xff] %v567
        %v569 = vld [vmem:[%s75 + $0x7b0] sm:$0xff]
        %570 = vst [vmem:[%s76 + $0x7b0] sm:$0xff] %v569
        %v571 = vld [vmem:[%s75 + $0x7b8] sm:$0xff]
        %572 = vst [vmem:[%s76 + $0x7b8] sm:$0xff] %v571
        %v573 = vld [vmem:[%s75 + $0x7c0] sm:$0xff]
        %574 = vst [vmem:[%s76 + $0x7c0] sm:$0xff] %v573
        %v575 = vld [vmem:[%s75 + $0x7c8] sm:$0xff]
        %576 = vst [vmem:[%s76 + $0x7c8] sm:$0xff] %v575
        %v577 = vld [vmem:[%s75 + $0x7d0] sm:$0xff]
        %578 = vst [vmem:[%s76 + $0x7d0] sm:$0xff] %v577
        %v579 = vld [vmem:[%s75 + $0x7d8] sm:$0xff]
        %580 = vst [vmem:[%s76 + $0x7d8] sm:$0xff] %v579
        %v581 = vld [vmem:[%s75 + $0x7e0] sm:$0xff]
        %582 = vst [vmem:[%s76 + $0x7e0] sm:$0xff] %v581
        %v583 = vld [vmem:[%s75 + $0x7e8] sm:$0xff]
        %584 = vst [vmem:[%s76 + $0x7e8] sm:$0xff] %v583
        %v585 = vld [vmem:[%s75 + $0x7f0] sm:$0xff]
        %586 = vst [vmem:[%s76 + $0x7f0] sm:$0xff] %v585
        %v587 = vld [vmem:[%s75 + $0x7f8] sm:$0xff]
        %588 = vst [vmem:[%s76 + $0x7f8] sm:$0xff] %v587
        %v589 = vld [vmem:[%s75 + $0x800] sm:$0xff]
        %590 = vst [vmem:[%s76 + $0x800] sm:$0xff] %v589
        %v591 = vld [vmem:[%s75 + $0x808] sm:$0xff]
        %592 = vst [vmem:[%s76 + $0x808] sm:$0xff] %v591
        %v593 = vld [vmem:[%s75 + $0x810] sm:$0xff]
        %594 = vst [vmem:[%s76 + $0x810] sm:$0xff] %v593
        %v595 = vld [vmem:[%s75 + $0x818] sm:$0xff]
        %596 = vst [vmem:[%s76 + $0x818] sm:$0xff] %v595
        %v597 = vld [vmem:[%s75 + $0x820] sm:$0xff]
        %598 = vst [vmem:[%s76 + $0x820] sm:$0xff] %v597
        %v599 = vld [vmem:[%s75 + $0x828] sm:$0xff]
        %600 = vst [vmem:[%s76 + $0x828] sm:$0xff] %v599
        %v601 = vld [vmem:[%s75 + $0x830] sm:$0xff]
        %602 = vst [vmem:[%s76 + $0x830] sm:$0xff] %v601
        %v603 = vld [vmem:[%s75 + $0x838] sm:$0xff]
        %604 = vst [vmem:[%s76 + $0x838] sm:$0xff] %v603
        %v605 = vld [vmem:[%s75 + $0x840] sm:$0xff]
        %606 = vst [vmem:[%s76 + $0x840] sm:$0xff] %v605
        %v607 = vld [vmem:[%s75 + $0x848] sm:$0xff]
        %608 = vst [vmem:[%s76 + $0x848] sm:$0xff] %v607
        %v609 = vld [vmem:[%s75 + $0x850] sm:$0xff]
        %610 = vst [vmem:[%s76 + $0x850] sm:$0xff] %v609
        %v611 = vld [vmem:[%s75 + $0x858] sm:$0xff]
        %612 = vst [vmem:[%s76 + $0x858] sm:$0xff] %v611
        %v613 = vld [vmem:[%s75 + $0x860] sm:$0xff]
        %614 = vst [vmem:[%s76 + $0x860] sm:$0xff] %v613
        %v615 = vld [vmem:[%s75 + $0x868] sm:$0xff]
        %616 = vst [vmem:[%s76 + $0x868] sm:$0xff] %v615
        %v617 = vld [vmem:[%s75 + $0x870] sm:$0xff]
        %618 = vst [vmem:[%s76 + $0x870] sm:$0xff] %v617
        %v619 = vld [vmem:[%s75 + $0x878] sm:$0xff]
        %620 = vst [vmem:[%s76 + $0x878] sm:$0xff] %v619
        %v621 = vld [vmem:[%s75 + $0x880] sm:$0xff]
        %622 = vst [vmem:[%s76 + $0x880] sm:$0xff] %v621
        %v623 = vld [vmem:[%s75 + $0x888] sm:$0xff]
        %624 = vst [vmem:[%s76 + $0x888] sm:$0xff] %v623
        %v625 = vld [vmem:[%s75 + $0x890] sm:$0xff]
        %626 = vst [vmem:[%s76 + $0x890] sm:$0xff] %v625
        %v627 = vld [vmem:[%s75 + $0x898] sm:$0xff]
        %628 = vst [vmem:[%s76 + $0x898] sm:$0xff] %v627
        %v629 = vld [vmem:[%s75 + $0x8a0] sm:$0xff]
        %630 = vst [vmem:[%s76 + $0x8a0] sm:$0xff] %v629
        %v631 = vld [vmem:[%s75 + $0x8a8] sm:$0xff]
        %632 = vst [vmem:[%s76 + $0x8a8] sm:$0xff] %v631
        %v633 = vld [vmem:[%s75 + $0x8b0] sm:$0xff]
        %634 = vst [vmem:[%s76 + $0x8b0] sm:$0xff] %v633
        %v635 = vld [vmem:[%s75 + $0x8b8] sm:$0xff]
        %636 = vst [vmem:[%s76 + $0x8b8] sm:$0xff] %v635
        %v637 = vld [vmem:[%s75 + $0x8c0] sm:$0xff]
        %638 = vst [vmem:[%s76 + $0x8c0] sm:$0xff] %v637
        %v639 = vld [vmem:[%s75 + $0x8c8] sm:$0xff]
        %640 = vst [vmem:[%s76 + $0x8c8] sm:$0xff] %v639
        %v641 = vld [vmem:[%s75 + $0x8d0] sm:$0xff]
        %642 = vst [vmem:[%s76 + $0x8d0] sm:$0xff] %v641
        %v643 = vld [vmem:[%s75 + $0x8d8] sm:$0xff]
        %644 = vst [vmem:[%s76 + $0x8d8] sm:$0xff] %v643
        %v645 = vld [vmem:[%s75 + $0x8e0] sm:$0xff]
        %646 = vst [vmem:[%s76 + $0x8e0] sm:$0xff] %v645
        %v647 = vld [vmem:[%s75 + $0x8e8] sm:$0xff]
        %648 = vst [vmem:[%s76 + $0x8e8] sm:$0xff] %v647
        %v649 = vld [vmem:[%s75 + $0x8f0] sm:$0xff]
        %650 = vst [vmem:[%s76 + $0x8f0] sm:$0xff] %v649
        %v651 = vld [vmem:[%s75 + $0x8f8] sm:$0xff]
        %652 = vst [vmem:[%s76 + $0x8f8] sm:$0xff] %v651
        %v653 = vld [vmem:[%s75 + $0x900] sm:$0xff]
        %654 = vst [vmem:[%s76 + $0x900] sm:$0xff] %v653
        %v655 = vld [vmem:[%s75 + $0x908] sm:$0xff]
        %656 = vst [vmem:[%s76 + $0x908] sm:$0xff] %v655
        %v657 = vld [vmem:[%s75 + $0x910] sm:$0xff]
        %658 = vst [vmem:[%s76 + $0x910] sm:$0xff] %v657
        %v659 = vld [vmem:[%s75 + $0x918] sm:$0xff]
        %660 = vst [vmem:[%s76 + $0x918] sm:$0xff] %v659
        %v661 = vld [vmem:[%s75 + $0x920] sm:$0xff]
        %662 = vst [vmem:[%s76 + $0x920] sm:$0xff] %v661
        %v663 = vld [vmem:[%s75 + $0x928] sm:$0xff]
        %664 = vst [vmem:[%s76 + $0x928] sm:$0xff] %v663
        %v665 = vld [vmem:[%s75 + $0x930] sm:$0xff]
        %666 = vst [vmem:[%s76 + $0x930] sm:$0xff] %v665
        %v667 = vld [vmem:[%s75 + $0x938] sm:$0xff]
        %668 = vst [vmem:[%s76 + $0x938] sm:$0xff] %v667
        %v669 = vld [vmem:[%s75 + $0x940] sm:$0xff]
        %670 = vst [vmem:[%s76 + $0x940] sm:$0xff] %v669
        %v671 = vld [vmem:[%s75 + $0x948] sm:$0xff]
        %672 = vst [vmem:[%s76 + $0x948] sm:$0xff] %v671
        %v673 = vld [vmem:[%s75 + $0x950] sm:$0xff]
        %674 = vst [vmem:[%s76 + $0x950] sm:$0xff] %v673
        %v675 = vld [vmem:[%s75 + $0x958] sm:$0xff]
        %676 = vst [vmem:[%s76 + $0x958] sm:$0xff] %v675
      $region66: #{farmer_lstm_forward.1} parent=60 // loop_footer
        %s74 = sadd.s32 1, %s70
      $region67: #{farmer_lstm_forward.1} parent=60 // loop_footer_branch
        %69 = sbr.rel target = $region63
      $region68: #{farmer_lstm_forward.1} parent=60 // loop_exit
        _
    $region61: #{farmer_lstm_forward.1} parent=1 // pred_fallthru
      _
    // Predicated region
    $region69: #{farmer_lstm_forward.1} parent=1 // pred_check
      _
    $region70: #{farmer_lstm_forward.1} parent=1 // pred_check_branch
      %678 = sbr.rel target = $region72
    $region71: #{farmer_lstm_forward.1} parent=1 // pred_region
      _
    $region72: #{farmer_lstm_forward.1} parent=1 // pred_fallthru
      _
    // Predicated region
    $region73: #{farmer_lstm_forward.1} parent=1 // pred_check
      _
    $region74: #{farmer_lstm_forward.1} parent=1 // pred_check_branch
      %681 = sbr.rel (0) target = $region76
    $region75: #{farmer_lstm_forward.1} parent=1 // pred_region
      %682 = vsyncadd [#allocation8], 38400
    $region76: #{farmer_lstm_forward.1} parent=1 // pred_fallthru
      _
    %s683 = scalar_lea.sflag [#allocation8], 1
    // Predicated region
    $region77: #{farmer_lstm_forward.1} parent=1 // pred_check
      _
    $region78: #{farmer_lstm_forward.1} parent=1 // pred_check_branch
      %685 = sbr.rel (0) target = $region80
    $region79: #{farmer_lstm_forward.1} parent=1 // pred_region
      loop: start=0, step=1, limit=1
      $region81: #{farmer_lstm_forward.1} parent=79 // loop_pre_header
        _
      $region82: #{farmer_lstm_forward.1} parent=79 // loop_header
        %s687 = sphi 0, %s691
        %p688 = scmp.ge.s32.totalorder %s687, 1
        %s692 = sphi %s8, %s8
        %s693 = sphi [#allocation3], [#allocation3]
      $region83: #{farmer_lstm_forward.1} parent=79 // loop_header_branch
        %690 = sbr.rel (%p688) target = $region87
      $region84: #{farmer_lstm_forward.1} parent=79 // loop_body
        %v694 = vld [vmem:[%s692] sm:$0xff]
        %695 = vst [vmem:[%s693] sm:$0xff] %v694
        %v696 = vld [vmem:[%s692 + $0x8] sm:$0xff]
        %697 = vst [vmem:[%s693 + $0x8] sm:$0xff] %v696
        %v698 = vld [vmem:[%s692 + $0x10] sm:$0xff]
        %699 = vst [vmem:[%s693 + $0x10] sm:$0xff] %v698
        %v700 = vld [vmem:[%s692 + $0x18] sm:$0xff]
        %701 = vst [vmem:[%s693 + $0x18] sm:$0xff] %v700
        %v702 = vld [vmem:[%s692 + $0x20] sm:$0xff]
        %703 = vst [vmem:[%s693 + $0x20] sm:$0xff] %v702
        %v704 = vld [vmem:[%s692 + $0x28] sm:$0xff]
        %705 = vst [vmem:[%s693 + $0x28] sm:$0xff] %v704
        %v706 = vld [vmem:[%s692 + $0x30] sm:$0xff]
        %707 = vst [vmem:[%s693 + $0x30] sm:$0xff] %v706
        %v708 = vld [vmem:[%s692 + $0x38] sm:$0xff]
        %709 = vst [vmem:[%s693 + $0x38] sm:$0xff] %v708
        %v710 = vld [vmem:[%s692 + $0x40] sm:$0xff]
        %711 = vst [vmem:[%s693 + $0x40] sm:$0xff] %v710
        %v712 = vld [vmem:[%s692 + $0x48] sm:$0xff]
        %713 = vst [vmem:[%s693 + $0x48] sm:$0xff] %v712
        %v714 = vld [vmem:[%s692 + $0x50] sm:$0xff]
        %715 = vst [vmem:[%s693 + $0x50] sm:$0xff] %v714
        %v716 = vld [vmem:[%s692 + $0x58] sm:$0xff]
        %717 = vst [vmem:[%s693 + $0x58] sm:$0xff] %v716
        %v718 = vld [vmem:[%s692 + $0x60] sm:$0xff]
        %719 = vst [vmem:[%s693 + $0x60] sm:$0xff] %v718
        %v720 = vld [vmem:[%s692 + $0x68] sm:$0xff]
        %721 = vst [vmem:[%s693 + $0x68] sm:$0xff] %v720
        %v722 = vld [vmem:[%s692 + $0x70] sm:$0xff]
        %723 = vst [vmem:[%s693 + $0x70] sm:$0xff] %v722
        %v724 = vld [vmem:[%s692 + $0x78] sm:$0xff]
        %725 = vst [vmem:[%s693 + $0x78] sm:$0xff] %v724
        %v726 = vld [vmem:[%s692 + $0x80] sm:$0xff]
        %727 = vst [vmem:[%s693 + $0x80] sm:$0xff] %v726
        %v728 = vld [vmem:[%s692 + $0x88] sm:$0xff]
        %729 = vst [vmem:[%s693 + $0x88] sm:$0xff] %v728
        %v730 = vld [vmem:[%s692 + $0x90] sm:$0xff]
        %731 = vst [vmem:[%s693 + $0x90] sm:$0xff] %v730
        %v732 = vld [vmem:[%s692 + $0x98] sm:$0xff]
        %733 = vst [vmem:[%s693 + $0x98] sm:$0xff] %v732
        %v734 = vld [vmem:[%s692 + $0xa0] sm:$0xff]
        %735 = vst [vmem:[%s693 + $0xa0] sm:$0xff] %v734
        %v736 = vld [vmem:[%s692 + $0xa8] sm:$0xff]
        %737 = vst [vmem:[%s693 + $0xa8] sm:$0xff] %v736
        %v738 = vld [vmem:[%s692 + $0xb0] sm:$0xff]
        %739 = vst [vmem:[%s693 + $0xb0] sm:$0xff] %v738
        %v740 = vld [vmem:[%s692 + $0xb8] sm:$0xff]
        %741 = vst [vmem:[%s693 + $0xb8] sm:$0xff] %v740
        %v742 = vld [vmem:[%s692 + $0xc0] sm:$0xff]
        %743 = vst [vmem:[%s693 + $0xc0] sm:$0xff] %v742
        %v744 = vld [vmem:[%s692 + $0xc8] sm:$0xff]
        %745 = vst [vmem:[%s693 + $0xc8] sm:$0xff] %v744
        %v746 = vld [vmem:[%s692 + $0xd0] sm:$0xff]
        %747 = vst [vmem:[%s693 + $0xd0] sm:$0xff] %v746
        %v748 = vld [vmem:[%s692 + $0xd8] sm:$0xff]
        %749 = vst [vmem:[%s693 + $0xd8] sm:$0xff] %v748
        %v750 = vld [vmem:[%s692 + $0xe0] sm:$0xff]
        %751 = vst [vmem:[%s693 + $0xe0] sm:$0xff] %v750
        %v752 = vld [vmem:[%s692 + $0xe8] sm:$0xff]
        %753 = vst [vmem:[%s693 + $0xe8] sm:$0xff] %v752
        %v754 = vld [vmem:[%s692 + $0xf0] sm:$0xff]
        %755 = vst [vmem:[%s693 + $0xf0] sm:$0xff] %v754
        %v756 = vld [vmem:[%s692 + $0xf8] sm:$0xff]
        %757 = vst [vmem:[%s693 + $0xf8] sm:$0xff] %v756
        %v758 = vld [vmem:[%s692 + $0x100] sm:$0xff]
        %759 = vst [vmem:[%s693 + $0x100] sm:$0xff] %v758
        %v760 = vld [vmem:[%s692 + $0x108] sm:$0xff]
        %761 = vst [vmem:[%s693 + $0x108] sm:$0xff] %v760
        %v762 = vld [vmem:[%s692 + $0x110] sm:$0xff]
        %763 = vst [vmem:[%s693 + $0x110] sm:$0xff] %v762
        %v764 = vld [vmem:[%s692 + $0x118] sm:$0xff]
        %765 = vst [vmem:[%s693 + $0x118] sm:$0xff] %v764
        %v766 = vld [vmem:[%s692 + $0x120] sm:$0xff]
        %767 = vst [vmem:[%s693 + $0x120] sm:$0xff] %v766
        %v768 = vld [vmem:[%s692 + $0x128] sm:$0xff]
        %769 = vst [vmem:[%s693 + $0x128] sm:$0xff] %v768
        %v770 = vld [vmem:[%s692 + $0x130] sm:$0xff]
        %771 = vst [vmem:[%s693 + $0x130] sm:$0xff] %v770
        %v772 = vld [vmem:[%s692 + $0x138] sm:$0xff]
        %773 = vst [vmem:[%s693 + $0x138] sm:$0xff] %v772
        %v774 = vld [vmem:[%s692 + $0x140] sm:$0xff]
        %775 = vst [vmem:[%s693 + $0x140] sm:$0xff] %v774
        %v776 = vld [vmem:[%s692 + $0x148] sm:$0xff]
        %777 = vst [vmem:[%s693 + $0x148] sm:$0xff] %v776
        %v778 = vld [vmem:[%s692 + $0x150] sm:$0xff]
        %779 = vst [vmem:[%s693 + $0x150] sm:$0xff] %v778
        %v780 = vld [vmem:[%s692 + $0x158] sm:$0xff]
        %781 = vst [vmem:[%s693 + $0x158] sm:$0xff] %v780
        %v782 = vld [vmem:[%s692 + $0x160] sm:$0xff]
        %783 = vst [vmem:[%s693 + $0x160] sm:$0xff] %v782
        %v784 = vld [vmem:[%s692 + $0x168] sm:$0xff]
        %785 = vst [vmem:[%s693 + $0x168] sm:$0xff] %v784
        %v786 = vld [vmem:[%s692 + $0x170] sm:$0xff]
        %787 = vst [vmem:[%s693 + $0x170] sm:$0xff] %v786
        %v788 = vld [vmem:[%s692 + $0x178] sm:$0xff]
        %789 = vst [vmem:[%s693 + $0x178] sm:$0xff] %v788
        %v790 = vld [vmem:[%s692 + $0x180] sm:$0xff]
        %791 = vst [vmem:[%s693 + $0x180] sm:$0xff] %v790
        %v792 = vld [vmem:[%s692 + $0x188] sm:$0xff]
        %793 = vst [vmem:[%s693 + $0x188] sm:$0xff] %v792
        %v794 = vld [vmem:[%s692 + $0x190] sm:$0xff]
        %795 = vst [vmem:[%s693 + $0x190] sm:$0xff] %v794
        %v796 = vld [vmem:[%s692 + $0x198] sm:$0xff]
        %797 = vst [vmem:[%s693 + $0x198] sm:$0xff] %v796
        %v798 = vld [vmem:[%s692 + $0x1a0] sm:$0xff]
        %799 = vst [vmem:[%s693 + $0x1a0] sm:$0xff] %v798
        %v800 = vld [vmem:[%s692 + $0x1a8] sm:$0xff]
        %801 = vst [vmem:[%s693 + $0x1a8] sm:$0xff] %v800
        %v802 = vld [vmem:[%s692 + $0x1b0] sm:$0xff]
        %803 = vst [vmem:[%s693 + $0x1b0] sm:$0xff] %v802
        %v804 = vld [vmem:[%s692 + $0x1b8] sm:$0xff]
        %805 = vst [vmem:[%s693 + $0x1b8] sm:$0xff] %v804
        %v806 = vld [vmem:[%s692 + $0x1c0] sm:$0xff]
        %807 = vst [vmem:[%s693 + $0x1c0] sm:$0xff] %v806
        %v808 = vld [vmem:[%s692 + $0x1c8] sm:$0xff]
        %809 = vst [vmem:[%s693 + $0x1c8] sm:$0xff] %v808
        %v810 = vld [vmem:[%s692 + $0x1d0] sm:$0xff]
        %811 = vst [vmem:[%s693 + $0x1d0] sm:$0xff] %v810
        %v812 = vld [vmem:[%s692 + $0x1d8] sm:$0xff]
        %813 = vst [vmem:[%s693 + $0x1d8] sm:$0xff] %v812
        %v814 = vld [vmem:[%s692 + $0x1e0] sm:$0xff]
        %815 = vst [vmem:[%s693 + $0x1e0] sm:$0xff] %v814
        %v816 = vld [vmem:[%s692 + $0x1e8] sm:$0xff]
        %817 = vst [vmem:[%s693 + $0x1e8] sm:$0xff] %v816
        %v818 = vld [vmem:[%s692 + $0x1f0] sm:$0xff]
        %819 = vst [vmem:[%s693 + $0x1f0] sm:$0xff] %v818
        %v820 = vld [vmem:[%s692 + $0x1f8] sm:$0xff]
        %821 = vst [vmem:[%s693 + $0x1f8] sm:$0xff] %v820
        %v822 = vld [vmem:[%s692 + $0x200] sm:$0xff]
        %823 = vst [vmem:[%s693 + $0x200] sm:$0xff] %v822
        %v824 = vld [vmem:[%s692 + $0x208] sm:$0xff]
        %825 = vst [vmem:[%s693 + $0x208] sm:$0xff] %v824
        %v826 = vld [vmem:[%s692 + $0x210] sm:$0xff]
        %827 = vst [vmem:[%s693 + $0x210] sm:$0xff] %v826
        %v828 = vld [vmem:[%s692 + $0x218] sm:$0xff]
        %829 = vst [vmem:[%s693 + $0x218] sm:$0xff] %v828
        %v830 = vld [vmem:[%s692 + $0x220] sm:$0xff]
        %831 = vst [vmem:[%s693 + $0x220] sm:$0xff] %v830
        %v832 = vld [vmem:[%s692 + $0x228] sm:$0xff]
        %833 = vst [vmem:[%s693 + $0x228] sm:$0xff] %v832
        %v834 = vld [vmem:[%s692 + $0x230] sm:$0xff]
        %835 = vst [vmem:[%s693 + $0x230] sm:$0xff] %v834
        %v836 = vld [vmem:[%s692 + $0x238] sm:$0xff]
        %837 = vst [vmem:[%s693 + $0x238] sm:$0xff] %v836
        %v838 = vld [vmem:[%s692 + $0x240] sm:$0xff]
        %839 = vst [vmem:[%s693 + $0x240] sm:$0xff] %v838
        %v840 = vld [vmem:[%s692 + $0x248] sm:$0xff]
        %841 = vst [vmem:[%s693 + $0x248] sm:$0xff] %v840
        %v842 = vld [vmem:[%s692 + $0x250] sm:$0xff]
        %843 = vst [vmem:[%s693 + $0x250] sm:$0xff] %v842
        %v844 = vld [vmem:[%s692 + $0x258] sm:$0xff]
        %845 = vst [vmem:[%s693 + $0x258] sm:$0xff] %v844
        %v846 = vld [vmem:[%s692 + $0x260] sm:$0xff]
        %847 = vst [vmem:[%s693 + $0x260] sm:$0xff] %v846
        %v848 = vld [vmem:[%s692 + $0x268] sm:$0xff]
        %849 = vst [vmem:[%s693 + $0x268] sm:$0xff] %v848
        %v850 = vld [vmem:[%s692 + $0x270] sm:$0xff]
        %851 = vst [vmem:[%s693 + $0x270] sm:$0xff] %v850
        %v852 = vld [vmem:[%s692 + $0x278] sm:$0xff]
        %853 = vst [vmem:[%s693 + $0x278] sm:$0xff] %v852
        %v854 = vld [vmem:[%s692 + $0x280] sm:$0xff]
        %855 = vst [vmem:[%s693 + $0x280] sm:$0xff] %v854
        %v856 = vld [vmem:[%s692 + $0x288] sm:$0xff]
        %857 = vst [vmem:[%s693 + $0x288] sm:$0xff] %v856
        %v858 = vld [vmem:[%s692 + $0x290] sm:$0xff]
        %859 = vst [vmem:[%s693 + $0x290] sm:$0xff] %v858
        %v860 = vld [vmem:[%s692 + $0x298] sm:$0xff]
        %861 = vst [vmem:[%s693 + $0x298] sm:$0xff] %v860
        %v862 = vld [vmem:[%s692 + $0x2a0] sm:$0xff]
        %863 = vst [vmem:[%s693 + $0x2a0] sm:$0xff] %v862
        %v864 = vld [vmem:[%s692 + $0x2a8] sm:$0xff]
        %865 = vst [vmem:[%s693 + $0x2a8] sm:$0xff] %v864
        %v866 = vld [vmem:[%s692 + $0x2b0] sm:$0xff]
        %867 = vst [vmem:[%s693 + $0x2b0] sm:$0xff] %v866
        %v868 = vld [vmem:[%s692 + $0x2b8] sm:$0xff]
        %869 = vst [vmem:[%s693 + $0x2b8] sm:$0xff] %v868
        %v870 = vld [vmem:[%s692 + $0x2c0] sm:$0xff]
        %871 = vst [vmem:[%s693 + $0x2c0] sm:$0xff] %v870
        %v872 = vld [vmem:[%s692 + $0x2c8] sm:$0xff]
        %873 = vst [vmem:[%s693 + $0x2c8] sm:$0xff] %v872
        %v874 = vld [vmem:[%s692 + $0x2d0] sm:$0xff]
        %875 = vst [vmem:[%s693 + $0x2d0] sm:$0xff] %v874
        %v876 = vld [vmem:[%s692 + $0x2d8] sm:$0xff]
        %877 = vst [vmem:[%s693 + $0x2d8] sm:$0xff] %v876
        %v878 = vld [vmem:[%s692 + $0x2e0] sm:$0xff]
        %879 = vst [vmem:[%s693 + $0x2e0] sm:$0xff] %v878
        %v880 = vld [vmem:[%s692 + $0x2e8] sm:$0xff]
        %881 = vst [vmem:[%s693 + $0x2e8] sm:$0xff] %v880
        %v882 = vld [vmem:[%s692 + $0x2f0] sm:$0xff]
        %883 = vst [vmem:[%s693 + $0x2f0] sm:$0xff] %v882
        %v884 = vld [vmem:[%s692 + $0x2f8] sm:$0xff]
        %885 = vst [vmem:[%s693 + $0x2f8] sm:$0xff] %v884
        %v886 = vld [vmem:[%s692 + $0x300] sm:$0xff]
        %887 = vst [vmem:[%s693 + $0x300] sm:$0xff] %v886
        %v888 = vld [vmem:[%s692 + $0x308] sm:$0xff]
        %889 = vst [vmem:[%s693 + $0x308] sm:$0xff] %v888
        %v890 = vld [vmem:[%s692 + $0x310] sm:$0xff]
        %891 = vst [vmem:[%s693 + $0x310] sm:$0xff] %v890
        %v892 = vld [vmem:[%s692 + $0x318] sm:$0xff]
        %893 = vst [vmem:[%s693 + $0x318] sm:$0xff] %v892
        %v894 = vld [vmem:[%s692 + $0x320] sm:$0xff]
        %895 = vst [vmem:[%s693 + $0x320] sm:$0xff] %v894
        %v896 = vld [vmem:[%s692 + $0x328] sm:$0xff]
        %897 = vst [vmem:[%s693 + $0x328] sm:$0xff] %v896
        %v898 = vld [vmem:[%s692 + $0x330] sm:$0xff]
        %899 = vst [vmem:[%s693 + $0x330] sm:$0xff] %v898
        %v900 = vld [vmem:[%s692 + $0x338] sm:$0xff]
        %901 = vst [vmem:[%s693 + $0x338] sm:$0xff] %v900
        %v902 = vld [vmem:[%s692 + $0x340] sm:$0xff]
        %903 = vst [vmem:[%s693 + $0x340] sm:$0xff] %v902
        %v904 = vld [vmem:[%s692 + $0x348] sm:$0xff]
        %905 = vst [vmem:[%s693 + $0x348] sm:$0xff] %v904
        %v906 = vld [vmem:[%s692 + $0x350] sm:$0xff]
        %907 = vst [vmem:[%s693 + $0x350] sm:$0xff] %v906
        %v908 = vld [vmem:[%s692 + $0x358] sm:$0xff]
        %909 = vst [vmem:[%s693 + $0x358] sm:$0xff] %v908
        %v910 = vld [vmem:[%s692 + $0x360] sm:$0xff]
        %911 = vst [vmem:[%s693 + $0x360] sm:$0xff] %v910
        %v912 = vld [vmem:[%s692 + $0x368] sm:$0xff]
        %913 = vst [vmem:[%s693 + $0x368] sm:$0xff] %v912
        %v914 = vld [vmem:[%s692 + $0x370] sm:$0xff]
        %915 = vst [vmem:[%s693 + $0x370] sm:$0xff] %v914
        %v916 = vld [vmem:[%s692 + $0x378] sm:$0xff]
        %917 = vst [vmem:[%s693 + $0x378] sm:$0xff] %v916
        %v918 = vld [vmem:[%s692 + $0x380] sm:$0xff]
        %919 = vst [vmem:[%s693 + $0x380] sm:$0xff] %v918
        %v920 = vld [vmem:[%s692 + $0x388] sm:$0xff]
        %921 = vst [vmem:[%s693 + $0x388] sm:$0xff] %v920
        %v922 = vld [vmem:[%s692 + $0x390] sm:$0xff]
        %923 = vst [vmem:[%s693 + $0x390] sm:$0xff] %v922
        %v924 = vld [vmem:[%s692 + $0x398] sm:$0xff]
        %925 = vst [vmem:[%s693 + $0x398] sm:$0xff] %v924
        %v926 = vld [vmem:[%s692 + $0x3a0] sm:$0xff]
        %927 = vst [vmem:[%s693 + $0x3a0] sm:$0xff] %v926
        %v928 = vld [vmem:[%s692 + $0x3a8] sm:$0xff]
        %929 = vst [vmem:[%s693 + $0x3a8] sm:$0xff] %v928
        %v930 = vld [vmem:[%s692 + $0x3b0] sm:$0xff]
        %931 = vst [vmem:[%s693 + $0x3b0] sm:$0xff] %v930
        %v932 = vld [vmem:[%s692 + $0x3b8] sm:$0xff]
        %933 = vst [vmem:[%s693 + $0x3b8] sm:$0xff] %v932
        %v934 = vld [vmem:[%s692 + $0x3c0] sm:$0xff]
        %935 = vst [vmem:[%s693 + $0x3c0] sm:$0xff] %v934
        %v936 = vld [vmem:[%s692 + $0x3c8] sm:$0xff]
        %937 = vst [vmem:[%s693 + $0x3c8] sm:$0xff] %v936
        %v938 = vld [vmem:[%s692 + $0x3d0] sm:$0xff]
        %939 = vst [vmem:[%s693 + $0x3d0] sm:$0xff] %v938
        %v940 = vld [vmem:[%s692 + $0x3d8] sm:$0xff]
        %941 = vst [vmem:[%s693 + $0x3d8] sm:$0xff] %v940
        %v942 = vld [vmem:[%s692 + $0x3e0] sm:$0xff]
        %943 = vst [vmem:[%s693 + $0x3e0] sm:$0xff] %v942
        %v944 = vld [vmem:[%s692 + $0x3e8] sm:$0xff]
        %945 = vst [vmem:[%s693 + $0x3e8] sm:$0xff] %v944
        %v946 = vld [vmem:[%s692 + $0x3f0] sm:$0xff]
        %947 = vst [vmem:[%s693 + $0x3f0] sm:$0xff] %v946
        %v948 = vld [vmem:[%s692 + $0x3f8] sm:$0xff]
        %949 = vst [vmem:[%s693 + $0x3f8] sm:$0xff] %v948
        %v950 = vld [vmem:[%s692 + $0x400] sm:$0xff]
        %951 = vst [vmem:[%s693 + $0x400] sm:$0xff] %v950
        %v952 = vld [vmem:[%s692 + $0x408] sm:$0xff]
        %953 = vst [vmem:[%s693 + $0x408] sm:$0xff] %v952
        %v954 = vld [vmem:[%s692 + $0x410] sm:$0xff]
        %955 = vst [vmem:[%s693 + $0x410] sm:$0xff] %v954
        %v956 = vld [vmem:[%s692 + $0x418] sm:$0xff]
        %957 = vst [vmem:[%s693 + $0x418] sm:$0xff] %v956
        %v958 = vld [vmem:[%s692 + $0x420] sm:$0xff]
        %959 = vst [vmem:[%s693 + $0x420] sm:$0xff] %v958
        %v960 = vld [vmem:[%s692 + $0x428] sm:$0xff]
        %961 = vst [vmem:[%s693 + $0x428] sm:$0xff] %v960
        %v962 = vld [vmem:[%s692 + $0x430] sm:$0xff]
        %963 = vst [vmem:[%s693 + $0x430] sm:$0xff] %v962
        %v964 = vld [vmem:[%s692 + $0x438] sm:$0xff]
        %965 = vst [vmem:[%s693 + $0x438] sm:$0xff] %v964
        %v966 = vld [vmem:[%s692 + $0x440] sm:$0xff]
        %967 = vst [vmem:[%s693 + $0x440] sm:$0xff] %v966
        %v968 = vld [vmem:[%s692 + $0x448] sm:$0xff]
        %969 = vst [vmem:[%s693 + $0x448] sm:$0xff] %v968
        %v970 = vld [vmem:[%s692 + $0x450] sm:$0xff]
        %971 = vst [vmem:[%s693 + $0x450] sm:$0xff] %v970
        %v972 = vld [vmem:[%s692 + $0x458] sm:$0xff]
        %973 = vst [vmem:[%s693 + $0x458] sm:$0xff] %v972
        %v974 = vld [vmem:[%s692 + $0x460] sm:$0xff]
        %975 = vst [vmem:[%s693 + $0x460] sm:$0xff] %v974
        %v976 = vld [vmem:[%s692 + $0x468] sm:$0xff]
        %977 = vst [vmem:[%s693 + $0x468] sm:$0xff] %v976
        %v978 = vld [vmem:[%s692 + $0x470] sm:$0xff]
        %979 = vst [vmem:[%s693 + $0x470] sm:$0xff] %v978
        %v980 = vld [vmem:[%s692 + $0x478] sm:$0xff]
        %981 = vst [vmem:[%s693 + $0x478] sm:$0xff] %v980
        %v982 = vld [vmem:[%s692 + $0x480] sm:$0xff]
        %983 = vst [vmem:[%s693 + $0x480] sm:$0xff] %v982
        %v984 = vld [vmem:[%s692 + $0x488] sm:$0xff]
        %985 = vst [vmem:[%s693 + $0x488] sm:$0xff] %v984
        %v986 = vld [vmem:[%s692 + $0x490] sm:$0xff]
        %987 = vst [vmem:[%s693 + $0x490] sm:$0xff] %v986
        %v988 = vld [vmem:[%s692 + $0x498] sm:$0xff]
        %989 = vst [vmem:[%s693 + $0x498] sm:$0xff] %v988
        %v990 = vld [vmem:[%s692 + $0x4a0] sm:$0xff]
        %991 = vst [vmem:[%s693 + $0x4a0] sm:$0xff] %v990
        %v992 = vld [vmem:[%s692 + $0x4a8] sm:$0xff]
        %993 = vst [vmem:[%s693 + $0x4a8] sm:$0xff] %v992
        %v994 = vld [vmem:[%s692 + $0x4b0] sm:$0xff]
        %995 = vst [vmem:[%s693 + $0x4b0] sm:$0xff] %v994
        %v996 = vld [vmem:[%s692 + $0x4b8] sm:$0xff]
        %997 = vst [vmem:[%s693 + $0x4b8] sm:$0xff] %v996
        %v998 = vld [vmem:[%s692 + $0x4c0] sm:$0xff]
        %999 = vst [vmem:[%s693 + $0x4c0] sm:$0xff] %v998
        %v1000 = vld [vmem:[%s692 + $0x4c8] sm:$0xff]
        %1001 = vst [vmem:[%s693 + $0x4c8] sm:$0xff] %v1000
        %v1002 = vld [vmem:[%s692 + $0x4d0] sm:$0xff]
        %1003 = vst [vmem:[%s693 + $0x4d0] sm:$0xff] %v1002
        %v1004 = vld [vmem:[%s692 + $0x4d8] sm:$0xff]
        %1005 = vst [vmem:[%s693 + $0x4d8] sm:$0xff] %v1004
        %v1006 = vld [vmem:[%s692 + $0x4e0] sm:$0xff]
        %1007 = vst [vmem:[%s693 + $0x4e0] sm:$0xff] %v1006
        %v1008 = vld [vmem:[%s692 + $0x4e8] sm:$0xff]
        %1009 = vst [vmem:[%s693 + $0x4e8] sm:$0xff] %v1008
        %v1010 = vld [vmem:[%s692 + $0x4f0] sm:$0xff]
        %1011 = vst [vmem:[%s693 + $0x4f0] sm:$0xff] %v1010
        %v1012 = vld [vmem:[%s692 + $0x4f8] sm:$0xff]
        %1013 = vst [vmem:[%s693 + $0x4f8] sm:$0xff] %v1012
        %v1014 = vld [vmem:[%s692 + $0x500] sm:$0xff]
        %1015 = vst [vmem:[%s693 + $0x500] sm:$0xff] %v1014
        %v1016 = vld [vmem:[%s692 + $0x508] sm:$0xff]
        %1017 = vst [vmem:[%s693 + $0x508] sm:$0xff] %v1016
        %v1018 = vld [vmem:[%s692 + $0x510] sm:$0xff]
        %1019 = vst [vmem:[%s693 + $0x510] sm:$0xff] %v1018
        %v1020 = vld [vmem:[%s692 + $0x518] sm:$0xff]
        %1021 = vst [vmem:[%s693 + $0x518] sm:$0xff] %v1020
        %v1022 = vld [vmem:[%s692 + $0x520] sm:$0xff]
        %1023 = vst [vmem:[%s693 + $0x520] sm:$0xff] %v1022
        %v1024 = vld [vmem:[%s692 + $0x528] sm:$0xff]
        %1025 = vst [vmem:[%s693 + $0x528] sm:$0xff] %v1024
        %v1026 = vld [vmem:[%s692 + $0x530] sm:$0xff]
        %1027 = vst [vmem:[%s693 + $0x530] sm:$0xff] %v1026
        %v1028 = vld [vmem:[%s692 + $0x538] sm:$0xff]
        %1029 = vst [vmem:[%s693 + $0x538] sm:$0xff] %v1028
        %v1030 = vld [vmem:[%s692 + $0x540] sm:$0xff]
        %1031 = vst [vmem:[%s693 + $0x540] sm:$0xff] %v1030
        %v1032 = vld [vmem:[%s692 + $0x548] sm:$0xff]
        %1033 = vst [vmem:[%s693 + $0x548] sm:$0xff] %v1032
        %v1034 = vld [vmem:[%s692 + $0x550] sm:$0xff]
        %1035 = vst [vmem:[%s693 + $0x550] sm:$0xff] %v1034
        %v1036 = vld [vmem:[%s692 + $0x558] sm:$0xff]
        %1037 = vst [vmem:[%s693 + $0x558] sm:$0xff] %v1036
        %v1038 = vld [vmem:[%s692 + $0x560] sm:$0xff]
        %1039 = vst [vmem:[%s693 + $0x560] sm:$0xff] %v1038
        %v1040 = vld [vmem:[%s692 + $0x568] sm:$0xff]
        %1041 = vst [vmem:[%s693 + $0x568] sm:$0xff] %v1040
        %v1042 = vld [vmem:[%s692 + $0x570] sm:$0xff]
        %1043 = vst [vmem:[%s693 + $0x570] sm:$0xff] %v1042
        %v1044 = vld [vmem:[%s692 + $0x578] sm:$0xff]
        %1045 = vst [vmem:[%s693 + $0x578] sm:$0xff] %v1044
        %v1046 = vld [vmem:[%s692 + $0x580] sm:$0xff]
        %1047 = vst [vmem:[%s693 + $0x580] sm:$0xff] %v1046
        %v1048 = vld [vmem:[%s692 + $0x588] sm:$0xff]
        %1049 = vst [vmem:[%s693 + $0x588] sm:$0xff] %v1048
        %v1050 = vld [vmem:[%s692 + $0x590] sm:$0xff]
        %1051 = vst [vmem:[%s693 + $0x590] sm:$0xff] %v1050
        %v1052 = vld [vmem:[%s692 + $0x598] sm:$0xff]
        %1053 = vst [vmem:[%s693 + $0x598] sm:$0xff] %v1052
        %v1054 = vld [vmem:[%s692 + $0x5a0] sm:$0xff]
        %1055 = vst [vmem:[%s693 + $0x5a0] sm:$0xff] %v1054
        %v1056 = vld [vmem:[%s692 + $0x5a8] sm:$0xff]
        %1057 = vst [vmem:[%s693 + $0x5a8] sm:$0xff] %v1056
        %v1058 = vld [vmem:[%s692 + $0x5b0] sm:$0xff]
        %1059 = vst [vmem:[%s693 + $0x5b0] sm:$0xff] %v1058
        %v1060 = vld [vmem:[%s692 + $0x5b8] sm:$0xff]
        %1061 = vst [vmem:[%s693 + $0x5b8] sm:$0xff] %v1060
        %v1062 = vld [vmem:[%s692 + $0x5c0] sm:$0xff]
        %1063 = vst [vmem:[%s693 + $0x5c0] sm:$0xff] %v1062
        %v1064 = vld [vmem:[%s692 + $0x5c8] sm:$0xff]
        %1065 = vst [vmem:[%s693 + $0x5c8] sm:$0xff] %v1064
        %v1066 = vld [vmem:[%s692 + $0x5d0] sm:$0xff]
        %1067 = vst [vmem:[%s693 + $0x5d0] sm:$0xff] %v1066
        %v1068 = vld [vmem:[%s692 + $0x5d8] sm:$0xff]
        %1069 = vst [vmem:[%s693 + $0x5d8] sm:$0xff] %v1068
        %v1070 = vld [vmem:[%s692 + $0x5e0] sm:$0xff]
        %1071 = vst [vmem:[%s693 + $0x5e0] sm:$0xff] %v1070
        %v1072 = vld [vmem:[%s692 + $0x5e8] sm:$0xff]
        %1073 = vst [vmem:[%s693 + $0x5e8] sm:$0xff] %v1072
        %v1074 = vld [vmem:[%s692 + $0x5f0] sm:$0xff]
        %1075 = vst [vmem:[%s693 + $0x5f0] sm:$0xff] %v1074
        %v1076 = vld [vmem:[%s692 + $0x5f8] sm:$0xff]
        %1077 = vst [vmem:[%s693 + $0x5f8] sm:$0xff] %v1076
        %v1078 = vld [vmem:[%s692 + $0x600] sm:$0xff]
        %1079 = vst [vmem:[%s693 + $0x600] sm:$0xff] %v1078
        %v1080 = vld [vmem:[%s692 + $0x608] sm:$0xff]
        %1081 = vst [vmem:[%s693 + $0x608] sm:$0xff] %v1080
        %v1082 = vld [vmem:[%s692 + $0x610] sm:$0xff]
        %1083 = vst [vmem:[%s693 + $0x610] sm:$0xff] %v1082
        %v1084 = vld [vmem:[%s692 + $0x618] sm:$0xff]
        %1085 = vst [vmem:[%s693 + $0x618] sm:$0xff] %v1084
        %v1086 = vld [vmem:[%s692 + $0x620] sm:$0xff]
        %1087 = vst [vmem:[%s693 + $0x620] sm:$0xff] %v1086
        %v1088 = vld [vmem:[%s692 + $0x628] sm:$0xff]
        %1089 = vst [vmem:[%s693 + $0x628] sm:$0xff] %v1088
        %v1090 = vld [vmem:[%s692 + $0x630] sm:$0xff]
        %1091 = vst [vmem:[%s693 + $0x630] sm:$0xff] %v1090
        %v1092 = vld [vmem:[%s692 + $0x638] sm:$0xff]
        %1093 = vst [vmem:[%s693 + $0x638] sm:$0xff] %v1092
        %v1094 = vld [vmem:[%s692 + $0x640] sm:$0xff]
        %1095 = vst [vmem:[%s693 + $0x640] sm:$0xff] %v1094
        %v1096 = vld [vmem:[%s692 + $0x648] sm:$0xff]
        %1097 = vst [vmem:[%s693 + $0x648] sm:$0xff] %v1096
        %v1098 = vld [vmem:[%s692 + $0x650] sm:$0xff]
        %1099 = vst [vmem:[%s693 + $0x650] sm:$0xff] %v1098
        %v1100 = vld [vmem:[%s692 + $0x658] sm:$0xff]
        %1101 = vst [vmem:[%s693 + $0x658] sm:$0xff] %v1100
        %v1102 = vld [vmem:[%s692 + $0x660] sm:$0xff]
        %1103 = vst [vmem:[%s693 + $0x660] sm:$0xff] %v1102
        %v1104 = vld [vmem:[%s692 + $0x668] sm:$0xff]
        %1105 = vst [vmem:[%s693 + $0x668] sm:$0xff] %v1104
        %v1106 = vld [vmem:[%s692 + $0x670] sm:$0xff]
        %1107 = vst [vmem:[%s693 + $0x670] sm:$0xff] %v1106
        %v1108 = vld [vmem:[%s692 + $0x678] sm:$0xff]
        %1109 = vst [vmem:[%s693 + $0x678] sm:$0xff] %v1108
        %v1110 = vld [vmem:[%s692 + $0x680] sm:$0xff]
        %1111 = vst [vmem:[%s693 + $0x680] sm:$0xff] %v1110
        %v1112 = vld [vmem:[%s692 + $0x688] sm:$0xff]
        %1113 = vst [vmem:[%s693 + $0x688] sm:$0xff] %v1112
        %v1114 = vld [vmem:[%s692 + $0x690] sm:$0xff]
        %1115 = vst [vmem:[%s693 + $0x690] sm:$0xff] %v1114
        %v1116 = vld [vmem:[%s692 + $0x698] sm:$0xff]
        %1117 = vst [vmem:[%s693 + $0x698] sm:$0xff] %v1116
        %v1118 = vld [vmem:[%s692 + $0x6a0] sm:$0xff]
        %1119 = vst [vmem:[%s693 + $0x6a0] sm:$0xff] %v1118
        %v1120 = vld [vmem:[%s692 + $0x6a8] sm:$0xff]
        %1121 = vst [vmem:[%s693 + $0x6a8] sm:$0xff] %v1120
        %v1122 = vld [vmem:[%s692 + $0x6b0] sm:$0xff]
        %1123 = vst [vmem:[%s693 + $0x6b0] sm:$0xff] %v1122
        %v1124 = vld [vmem:[%s692 + $0x6b8] sm:$0xff]
        %1125 = vst [vmem:[%s693 + $0x6b8] sm:$0xff] %v1124
        %v1126 = vld [vmem:[%s692 + $0x6c0] sm:$0xff]
        %1127 = vst [vmem:[%s693 + $0x6c0] sm:$0xff] %v1126
        %v1128 = vld [vmem:[%s692 + $0x6c8] sm:$0xff]
        %1129 = vst [vmem:[%s693 + $0x6c8] sm:$0xff] %v1128
        %v1130 = vld [vmem:[%s692 + $0x6d0] sm:$0xff]
        %1131 = vst [vmem:[%s693 + $0x6d0] sm:$0xff] %v1130
        %v1132 = vld [vmem:[%s692 + $0x6d8] sm:$0xff]
        %1133 = vst [vmem:[%s693 + $0x6d8] sm:$0xff] %v1132
        %v1134 = vld [vmem:[%s692 + $0x6e0] sm:$0xff]
        %1135 = vst [vmem:[%s693 + $0x6e0] sm:$0xff] %v1134
        %v1136 = vld [vmem:[%s692 + $0x6e8] sm:$0xff]
        %1137 = vst [vmem:[%s693 + $0x6e8] sm:$0xff] %v1136
        %v1138 = vld [vmem:[%s692 + $0x6f0] sm:$0xff]
        %1139 = vst [vmem:[%s693 + $0x6f0] sm:$0xff] %v1138
        %v1140 = vld [vmem:[%s692 + $0x6f8] sm:$0xff]
        %1141 = vst [vmem:[%s693 + $0x6f8] sm:$0xff] %v1140
        %v1142 = vld [vmem:[%s692 + $0x700] sm:$0xff]
        %1143 = vst [vmem:[%s693 + $0x700] sm:$0xff] %v1142
        %v1144 = vld [vmem:[%s692 + $0x708] sm:$0xff]
        %1145 = vst [vmem:[%s693 + $0x708] sm:$0xff] %v1144
        %v1146 = vld [vmem:[%s692 + $0x710] sm:$0xff]
        %1147 = vst [vmem:[%s693 + $0x710] sm:$0xff] %v1146
        %v1148 = vld [vmem:[%s692 + $0x718] sm:$0xff]
        %1149 = vst [vmem:[%s693 + $0x718] sm:$0xff] %v1148
        %v1150 = vld [vmem:[%s692 + $0x720] sm:$0xff]
        %1151 = vst [vmem:[%s693 + $0x720] sm:$0xff] %v1150
        %v1152 = vld [vmem:[%s692 + $0x728] sm:$0xff]
        %1153 = vst [vmem:[%s693 + $0x728] sm:$0xff] %v1152
        %v1154 = vld [vmem:[%s692 + $0x730] sm:$0xff]
        %1155 = vst [vmem:[%s693 + $0x730] sm:$0xff] %v1154
        %v1156 = vld [vmem:[%s692 + $0x738] sm:$0xff]
        %1157 = vst [vmem:[%s693 + $0x738] sm:$0xff] %v1156
        %v1158 = vld [vmem:[%s692 + $0x740] sm:$0xff]
        %1159 = vst [vmem:[%s693 + $0x740] sm:$0xff] %v1158
        %v1160 = vld [vmem:[%s692 + $0x748] sm:$0xff]
        %1161 = vst [vmem:[%s693 + $0x748] sm:$0xff] %v1160
        %v1162 = vld [vmem:[%s692 + $0x750] sm:$0xff]
        %1163 = vst [vmem:[%s693 + $0x750] sm:$0xff] %v1162
        %v1164 = vld [vmem:[%s692 + $0x758] sm:$0xff]
        %1165 = vst [vmem:[%s693 + $0x758] sm:$0xff] %v1164
        %v1166 = vld [vmem:[%s692 + $0x760] sm:$0xff]
        %1167 = vst [vmem:[%s693 + $0x760] sm:$0xff] %v1166
        %v1168 = vld [vmem:[%s692 + $0x768] sm:$0xff]
        %1169 = vst [vmem:[%s693 + $0x768] sm:$0xff] %v1168
        %v1170 = vld [vmem:[%s692 + $0x770] sm:$0xff]
        %1171 = vst [vmem:[%s693 + $0x770] sm:$0xff] %v1170
        %v1172 = vld [vmem:[%s692 + $0x778] sm:$0xff]
        %1173 = vst [vmem:[%s693 + $0x778] sm:$0xff] %v1172
        %v1174 = vld [vmem:[%s692 + $0x780] sm:$0xff]
        %1175 = vst [vmem:[%s693 + $0x780] sm:$0xff] %v1174
        %v1176 = vld [vmem:[%s692 + $0x788] sm:$0xff]
        %1177 = vst [vmem:[%s693 + $0x788] sm:$0xff] %v1176
        %v1178 = vld [vmem:[%s692 + $0x790] sm:$0xff]
        %1179 = vst [vmem:[%s693 + $0x790] sm:$0xff] %v1178
        %v1180 = vld [vmem:[%s692 + $0x798] sm:$0xff]
        %1181 = vst [vmem:[%s693 + $0x798] sm:$0xff] %v1180
        %v1182 = vld [vmem:[%s692 + $0x7a0] sm:$0xff]
        %1183 = vst [vmem:[%s693 + $0x7a0] sm:$0xff] %v1182
        %v1184 = vld [vmem:[%s692 + $0x7a8] sm:$0xff]
        %1185 = vst [vmem:[%s693 + $0x7a8] sm:$0xff] %v1184
        %v1186 = vld [vmem:[%s692 + $0x7b0] sm:$0xff]
        %1187 = vst [vmem:[%s693 + $0x7b0] sm:$0xff] %v1186
        %v1188 = vld [vmem:[%s692 + $0x7b8] sm:$0xff]
        %1189 = vst [vmem:[%s693 + $0x7b8] sm:$0xff] %v1188
        %v1190 = vld [vmem:[%s692 + $0x7c0] sm:$0xff]
        %1191 = vst [vmem:[%s693 + $0x7c0] sm:$0xff] %v1190
        %v1192 = vld [vmem:[%s692 + $0x7c8] sm:$0xff]
        %1193 = vst [vmem:[%s693 + $0x7c8] sm:$0xff] %v1192
        %v1194 = vld [vmem:[%s692 + $0x7d0] sm:$0xff]
        %1195 = vst [vmem:[%s693 + $0x7d0] sm:$0xff] %v1194
        %v1196 = vld [vmem:[%s692 + $0x7d8] sm:$0xff]
        %1197 = vst [vmem:[%s693 + $0x7d8] sm:$0xff] %v1196
        %v1198 = vld [vmem:[%s692 + $0x7e0] sm:$0xff]
        %1199 = vst [vmem:[%s693 + $0x7e0] sm:$0xff] %v1198
        %v1200 = vld [vmem:[%s692 + $0x7e8] sm:$0xff]
        %1201 = vst [vmem:[%s693 + $0x7e8] sm:$0xff] %v1200
        %v1202 = vld [vmem:[%s692 + $0x7f0] sm:$0xff]
        %1203 = vst [vmem:[%s693 + $0x7f0] sm:$0xff] %v1202
        %v1204 = vld [vmem:[%s692 + $0x7f8] sm:$0xff]
        %1205 = vst [vmem:[%s693 + $0x7f8] sm:$0xff] %v1204
      $region85: #{farmer_lstm_forward.1} parent=79 // loop_footer
        %s691 = sadd.s32 1, %s687
      $region86: #{farmer_lstm_forward.1} parent=79 // loop_footer_branch
        %686 = sbr.rel target = $region82
      $region87: #{farmer_lstm_forward.1} parent=79 // loop_exit
        _
    $region80: #{farmer_lstm_forward.1} parent=1 // pred_fallthru
      _
    // Predicated region
    $region88: #{farmer_lstm_forward.1} parent=1 // pred_check
      _
    $region89: #{farmer_lstm_forward.1} parent=1 // pred_check_branch
      %1207 = sbr.rel target = $region91
    $region90: #{farmer_lstm_forward.1} parent=1 // pred_region
      _
    $region91: #{farmer_lstm_forward.1} parent=1 // pred_fallthru
      _
    // Predicated region
    $region92: #{farmer_lstm_forward.1} parent=1 // pred_check
      _
    $region93: #{farmer_lstm_forward.1} parent=1 // pred_check_branch
      %1210 = sbr.rel (0) target = $region95
    $region94: #{farmer_lstm_forward.1} parent=1 // pred_region
      %1211 = vsyncadd %s683, 32768
    $region95: #{farmer_lstm_forward.1} parent=1 // pred_fallthru
      _
    %s1212 = scalar_lea.sflag [#allocation8], 2
    // Predicated region
    $region96: #{farmer_lstm_forward.1} parent=1 // pred_check
      _
    $region97: #{farmer_lstm_forward.1} parent=1 // pred_check_branch
      %1214 = sbr.rel target = $region99
    $region98: #{farmer_lstm_forward.1} parent=1 // pred_region
      %1215 = sst [smem:[#allocation16]] [#allocation15]
      %1216 = sst [smem:[#allocation17]] [#allocation14]
    $region99: #{farmer_lstm_forward.1} parent=1 // pred_fallthru
      _
    %1218 = shalt.err (0)
    %s1220 = sshll.u32 %s10, 4
    %s1221 = int_to_ptr.hbm [resolvable:$true] %s1220
    %s1222 = sshll.u32 [#allocation4], 4
    %s1223 = int_to_ptr.vmem [resolvable:$true] %s1222
    %1225 = dma.hbm_to_vmem [thread:$0]  %s1221, 32768, %s1223, %s1212
    %s1226 = scalar_lea.sflag [#allocation8], 3
    // Predicated region
    $region100: #{farmer_lstm_forward.1} parent=1 // pred_check
      _
    $region101: #{farmer_lstm_forward.1} parent=1 // pred_check_branch
      %1228 = sbr.rel target = $region103
    $region102: #{farmer_lstm_forward.1} parent=1 // pred_region
      %1229 = sst [smem:[#allocation16]] [#allocation19]
      %1230 = sst [smem:[#allocation17]] [#allocation18]
    $region103: #{farmer_lstm_forward.1} parent=1 // pred_fallthru
      _
    %1232 = shalt.err (0)
    %s1234 = sshll.u32 %s12, 4
    %s1235 = int_to_ptr.hbm [resolvable:$true] %s1234
    %s1236 = sshll.u32 [#allocation5], 4
    %s1237 = int_to_ptr.vmem [resolvable:$true] %s1236
    %1239 = dma.hbm_to_vmem [thread:$0]  %s1235, 32768, %s1237, %s1226
    %s1240 = scalar_lea.sflag [#allocation8], 4
    // Predicated region
    $region104: #{farmer_lstm_forward.1} parent=1 // pred_check
      _
    $region105: #{farmer_lstm_forward.1} parent=1 // pred_check_branch
      %1242 = sbr.rel target = $region107
    $region106: #{farmer_lstm_forward.1} parent=1 // pred_region
      %1243 = sst [smem:[#allocation16]] [#allocation21]
      %1244 = sst [smem:[#allocation17]] [#allocation20]
    $region107: #{farmer_lstm_forward.1} parent=1 // pred_fallthru
      _
    %1246 = shalt.err (0)
    %s1248 = sshll.u32 %s14, 4
    %s1249 = int_to_ptr.hbm [resolvable:$true] %s1248
    %s1250 = sshll.u32 [#allocation6], 4
    %s1251 = int_to_ptr.vmem [resolvable:$true] %s1250
    %1253 = dma.hbm_to_vmem [thread:$0]  %s1249, 32768, %s1251, %s1240
    %v1254 = vld [vmem:[%s0] sm:$0xff]
    %v1255 = vld [vmem:[%s0 + $0x8] sm:$0xff]
    %v1256 = vld [vmem:[%s0 + $0x10] sm:$0xff]
    %v1257 = vld [vmem:[%s0 + $0x18] sm:$0xff]
    %v1258 = vld [vmem:[%s0 + $0x20] sm:$0xff]
    %v1259 = vld [vmem:[%s0 + $0x28] sm:$0xff]
    %v1260 = vld [vmem:[%s0 + $0x30] sm:$0xff]
    %v1261 = vld [vmem:[%s0 + $0x38] sm:$0xff]
    %v1262 = vld [vmem:[%s0 + $0x40] sm:$0xff]
    %v1263 = vld [vmem:[%s0 + $0x48] sm:$0xff]
    %v1264 = vld [vmem:[%s0 + $0x50] sm:$0xff]
    %v1265 = vld [vmem:[%s0 + $0x58] sm:$0xff]
    %v1266 = vld [vmem:[%s0 + $0x60] sm:$0xff]
    %v1267 = vld [vmem:[%s0 + $0x68] sm:$0xff]
    %v1268 = vld [vmem:[%s0 + $0x70] sm:$0xff]
    %v1269 = vld [vmem:[%s0 + $0x78] sm:$0xff]
    %v1270 = vld [vmem:[%s2] sm:$0xff]
    %v1271 = vld [vmem:[%s2 + $0x8] sm:$0xff]
    %v1272 = vld [vmem:[%s2 + $0x10] sm:$0xff]
    %v1273 = vld [vmem:[%s2 + $0x18] sm:$0xff]
    %v1274 = vld [vmem:[%s2 + $0x20] sm:$0xff]
    %v1275 = vld [vmem:[%s2 + $0x28] sm:$0xff]
    %v1276 = vld [vmem:[%s2 + $0x30] sm:$0xff]
    %v1277 = vld [vmem:[%s2 + $0x38] sm:$0xff]
    %v1278 = vld [vmem:[%s2 + $0x40] sm:$0xff]
    %v1279 = vld [vmem:[%s2 + $0x48] sm:$0xff]
    %v1280 = vld [vmem:[%s2 + $0x50] sm:$0xff]
    %v1281 = vld [vmem:[%s2 + $0x58] sm:$0xff]
    %v1282 = vld [vmem:[%s2 + $0x60] sm:$0xff]
    %v1283 = vld [vmem:[%s2 + $0x68] sm:$0xff]
    %v1284 = vld [vmem:[%s2 + $0x70] sm:$0xff]
    %v1285 = vld [vmem:[%s2 + $0x78] sm:$0xff]
    %v1286 = vld [vmem:[%s2 + $0x80] sm:$0xff]
    %v1287 = vld [vmem:[%s2 + $0x88] sm:$0xff]
    %v1288 = vld [vmem:[%s2 + $0x90] sm:$0xff]
    %v1289 = vld [vmem:[%s2 + $0x98] sm:$0xff]
    %v1290 = vld [vmem:[%s2 + $0xa0] sm:$0xff]
    %v1291 = vld [vmem:[%s2 + $0xa8] sm:$0xff]
    %v1292 = vld [vmem:[%s2 + $0xb0] sm:$0xff]
    %v1293 = vld [vmem:[%s2 + $0xb8] sm:$0xff]
    %v1294 = vld [vmem:[%s2 + $0xc0] sm:$0xff]
    %v1295 = vld [vmem:[%s2 + $0xc8] sm:$0xff]
    %v1296 = vld [vmem:[%s2 + $0xd0] sm:$0xff]
    %v1297 = vld [vmem:[%s2 + $0xd8] sm:$0xff]
    %v1298 = vld [vmem:[%s2 + $0xe0] sm:$0xff]
    %v1299 = vld [vmem:[%s2 + $0xe8] sm:$0xff]
    %v1300 = vld [vmem:[%s2 + $0xf0] sm:$0xff]
    %v1301 = vld [vmem:[%s2 + $0xf8] sm:$0xff]
    %v1302 = vld [vmem:[%s2 + $0x100] sm:$0xff]
    %v1303 = vld [vmem:[%s2 + $0x108] sm:$0xff]
    %v1304 = vld [vmem:[%s2 + $0x110] sm:$0xff]
    %v1305 = vld [vmem:[%s2 + $0x118] sm:$0xff]
    %v1306 = vld [vmem:[%s2 + $0x120] sm:$0xff]
    %v1307 = vld [vmem:[%s2 + $0x128] sm:$0xff]
    %v1308 = vld [vmem:[%s2 + $0x130] sm:$0xff]
    %v1309 = vld [vmem:[%s2 + $0x138] sm:$0xff]
    %v1310 = vld [vmem:[%s2 + $0x140] sm:$0xff]
    %v1311 = vld [vmem:[%s2 + $0x148] sm:$0xff]
    %v1312 = vld [vmem:[%s2 + $0x150] sm:$0xff]
    %v1313 = vld [vmem:[%s2 + $0x158] sm:$0xff]
    %v1314 = vld [vmem:[%s2 + $0x160] sm:$0xff]
    %v1315 = vld [vmem:[%s2 + $0x168] sm:$0xff]
    %v1316 = vld [vmem:[%s2 + $0x170] sm:$0xff]
    %v1317 = vld [vmem:[%s2 + $0x178] sm:$0xff]
    %v1318 = vld [vmem:[%s2 + $0x180] sm:$0xff]
    %v1319 = vld [vmem:[%s2 + $0x188] sm:$0xff]
    %v1320 = vld [vmem:[%s2 + $0x190] sm:$0xff]
    %v1321 = vld [vmem:[%s2 + $0x198] sm:$0xff]
    %v1322 = vld [vmem:[%s2 + $0x1a0] sm:$0xff]
    %v1323 = vld [vmem:[%s2 + $0x1a8] sm:$0xff]
    %v1324 = vld [vmem:[%s2 + $0x1b0] sm:$0xff]
    %v1325 = vld [vmem:[%s2 + $0x1b8] sm:$0xff]
    %v1326 = vld [vmem:[%s2 + $0x1c0] sm:$0xff]
    %v1327 = vld [vmem:[%s2 + $0x1c8] sm:$0xff]
    %v1328 = vld [vmem:[%s2 + $0x1d0] sm:$0xff]
    %v1329 = vld [vmem:[%s2 + $0x1d8] sm:$0xff]
    %v1330 = vld [vmem:[%s2 + $0x1e0] sm:$0xff]
    %v1331 = vld [vmem:[%s2 + $0x1e8] sm:$0xff]
    %v1332 = vld [vmem:[%s2 + $0x1f0] sm:$0xff]
    %v1333 = vld [vmem:[%s2 + $0x1f8] sm:$0xff]
    %v1334 = vld [vmem:[%s2 + $0x200] sm:$0xff]
    %v1335 = vld [vmem:[%s2 + $0x208] sm:$0xff]
    %v1336 = vld [vmem:[%s2 + $0x210] sm:$0xff]
    %v1337 = vld [vmem:[%s2 + $0x218] sm:$0xff]
    %v1338 = vld [vmem:[%s2 + $0x220] sm:$0xff]
    %v1339 = vld [vmem:[%s2 + $0x228] sm:$0xff]
    %v1340 = vld [vmem:[%s2 + $0x230] sm:$0xff]
    %v1341 = vld [vmem:[%s2 + $0x238] sm:$0xff]
    %v1342 = vld [vmem:[%s2 + $0x240] sm:$0xff]
    %v1343 = vld [vmem:[%s2 + $0x248] sm:$0xff]
    %v1344 = vld [vmem:[%s2 + $0x250] sm:$0xff]
    %v1345 = vld [vmem:[%s2 + $0x258] sm:$0xff]
    %v1346 = vld [vmem:[%s2 + $0x260] sm:$0xff]
    %v1347 = vld [vmem:[%s2 + $0x268] sm:$0xff]
    %v1348 = vld [vmem:[%s2 + $0x270] sm:$0xff]
    %v1349 = vld [vmem:[%s2 + $0x278] sm:$0xff]
    %v1350 = vld [vmem:[%s2 + $0x280] sm:$0xff]
    %v1351 = vld [vmem:[%s2 + $0x288] sm:$0xff]
    %v1352 = vld [vmem:[%s2 + $0x290] sm:$0xff]
    %v1353 = vld [vmem:[%s2 + $0x298] sm:$0xff]
    %v1354 = vld [vmem:[%s2 + $0x2a0] sm:$0xff]
    %v1355 = vld [vmem:[%s2 + $0x2a8] sm:$0xff]
    %v1356 = vld [vmem:[%s2 + $0x2b0] sm:$0xff]
    %v1357 = vld [vmem:[%s2 + $0x2b8] sm:$0xff]
    %v1358 = vld [vmem:[%s2 + $0x2c0] sm:$0xff]
    %v1359 = vld [vmem:[%s2 + $0x2c8] sm:$0xff]
    %v1360 = vld [vmem:[%s2 + $0x2d0] sm:$0xff]
    %v1361 = vld [vmem:[%s2 + $0x2d8] sm:$0xff]
    %v1362 = vld [vmem:[%s2 + $0x2e0] sm:$0xff]
    %v1363 = vld [vmem:[%s2 + $0x2e8] sm:$0xff]
    %v1364 = vld [vmem:[%s2 + $0x2f0] sm:$0xff]
    %v1365 = vld [vmem:[%s2 + $0x2f8] sm:$0xff]
    %v1366 = vld [vmem:[%s2 + $0x300] sm:$0xff]
    %v1367 = vld [vmem:[%s2 + $0x308] sm:$0xff]
    %v1368 = vld [vmem:[%s2 + $0x310] sm:$0xff]
    %v1369 = vld [vmem:[%s2 + $0x318] sm:$0xff]
    %v1370 = vld [vmem:[%s2 + $0x320] sm:$0xff]
    %v1371 = vld [vmem:[%s2 + $0x328] sm:$0xff]
    %v1372 = vld [vmem:[%s2 + $0x330] sm:$0xff]
    %v1373 = vld [vmem:[%s2 + $0x338] sm:$0xff]
    %v1374 = vld [vmem:[%s2 + $0x340] sm:$0xff]
    %v1375 = vld [vmem:[%s2 + $0x348] sm:$0xff]
    %v1376 = vld [vmem:[%s2 + $0x350] sm:$0xff]
    %v1377 = vld [vmem:[%s2 + $0x358] sm:$0xff]
    %v1378 = vld [vmem:[%s4] sm:$0xf]
    %v1380 = vperm.slane %v1378, 0
    %v1381 = vperm.slane %v1378, 1
    %v1382 = vperm.slane %v1378, 2
    %v1383 = vperm.slane %v1378, 3
    %vm1388 = vcmask 719872
    %v1390 = vsel %vm1388, %v1255, 0
    %v1393 = vsel %vm1388, %v1257, 0
    %v1396 = vsel %vm1388, %v1259, 0
    %v1399 = vsel %vm1388, %v1261, 0
    %v1402 = vsel %vm1388, %v1263, 0
    %v1405 = vsel %vm1388, %v1265, 0
    %v1408 = vsel %vm1388, %v1267, 0
    %v1411 = vsel %vm1388, %v1269, 0
    %1413 = vmatpush.msra.mxu0 %v1330
    %1414 = vmatpush.msra.mxu0 %v1326
    %1415 = vmatpush.msra.mxu0 %v1322
    %1416 = vmatpush.msra.mxu0 %v1318
    %1417 = vmatpush.msra.mxu0 %v1314
    %1418 = vmatpush.msra.mxu0 %v1310
    %1419 = vmatpush.msra.mxu0 %v1306
    %1420 = vmatpush.msra.mxu0 %v1302
    %1421 = vmatpush.msra.mxu0 %v1298
    %1422 = vmatpush.msra.mxu0 %v1294
    %1423 = vmatpush.msra.mxu0 %v1290
    %1424 = vmatpush.msra.mxu0 %v1286
    %1425 = vmatpush.msra.mxu0 %v1282
    %1426 = vmatpush.msra.mxu0 %v1278
    %1427 = vmatpush.msra.mxu0 %v1274
    %1428 = vmatpush.msra.mxu0 %v1270
    %1429 = vmatmul.f32.gmra.mxu0 %v1254
    %v1430 = vpop.f32.mrf.mxu0
    %v1431 = vadd.f32 %v1380, %v1430
    %1432 = vmatmul.f32.gmra.mxu0 %v1256
    %v1433 = vpop.f32.mrf.mxu0
    %v1434 = vadd.f32 %v1380, %v1433
    %1435 = vmatmul.f32.gmra.mxu0 %v1258
    %v1436 = vpop.f32.mrf.mxu0
    %v1437 = vadd.f32 %v1380, %v1436
    %1438 = vmatmul.f32.gmra.mxu0 %v1260
    %v1439 = vpop.f32.mrf.mxu0
    %v1440 = vadd.f32 %v1380, %v1439
    %1441 = vmatmul.f32.gmra.mxu0 %v1262
    %v1442 = vpop.f32.mrf.mxu0
    %v1443 = vadd.f32 %v1380, %v1442
    %1444 = vmatmul.f32.gmra.mxu0 %v1264
    %v1445 = vpop.f32.mrf.mxu0
    %v1446 = vadd.f32 %v1380, %v1445
    %1447 = vmatmul.f32.gmra.mxu0 %v1266
    %v1448 = vpop.f32.mrf.mxu0
    %v1449 = vadd.f32 %v1380, %v1448
    %1450 = vmatmul.f32.gmra.mxu0 %v1268
    %v1451 = vpop.f32.mrf.mxu0
    %v1452 = vadd.f32 %v1380, %v1451
    %1453 = vdwg.mxu0
    %1454 = vmatpush.msra.mxu0 0.0
    %1455 = vmatpush.msra.mxu0 0.0
    %1456 = vmatpush.msra.mxu0 0.0
    %1457 = vmatpush.msra.mxu0 0.0
    %1458 = vmatpush.msra.mxu0 0.0
    %1459 = vmatpush.msra.mxu0 %v1374
    %1460 = vmatpush.msra.mxu0 %v1370
    %1461 = vmatpush.msra.mxu0 %v1366
    %1462 = vmatpush.msra.mxu0 %v1362
    %1463 = vmatpush.msra.mxu0 %v1358
    %1464 = vmatpush.msra.mxu0 %v1354
    %1465 = vmatpush.msra.mxu0 %v1350
    %1466 = vmatpush.msra.mxu0 %v1346
    %1467 = vmatpush.msra.mxu0 %v1342
    %1468 = vmatpush.msra.mxu0 %v1338
    %1469 = vmatpush.msra.mxu0 %v1334
    %1470 = vmatmul.f32.gmra.mxu0 %v1390
    %v1471 = vpop.f32.mrf.mxu0
    %v1472 = vadd.f32 %v1431, %v1471
    %1473 = vmatmul.f32.gmra.mxu0 %v1393
    %v1474 = vpop.f32.mrf.mxu0
    %v1475 = vadd.f32 %v1434, %v1474
    %1476 = vmatmul.f32.gmra.mxu0 %v1396
    %v1477 = vpop.f32.mrf.mxu0
    %v1478 = vadd.f32 %v1437, %v1477
    %1479 = vmatmul.f32.gmra.mxu0 %v1399
    %v1480 = vpop.f32.mrf.mxu0
    %v1481 = vadd.f32 %v1440, %v1480
    %1482 = vmatmul.f32.gmra.mxu0 %v1402
    %v1483 = vpop.f32.mrf.mxu0
    %v1484 = vadd.f32 %v1443, %v1483
    %1485 = vmatmul.f32.gmra.mxu0 %v1405
    %v1486 = vpop.f32.mrf.mxu0
    %v1487 = vadd.f32 %v1446, %v1486
    %1488 = vmatmul.f32.gmra.mxu0 %v1408
    %v1489 = vpop.f32.mrf.mxu0
    %v1490 = vadd.f32 %v1449, %v1489
    %1491 = vmatmul.f32.gmra.mxu0 %v1411
    %v1492 = vpop.f32.mrf.mxu0
    %v1493 = vadd.f32 %v1452, %v1492
    %1494 = vdwg.mxu0
    %1495 = vmatpush.msra.mxu0 %v1331
    %1496 = vmatpush.msra.mxu0 %v1327
    %1497 = vmatpush.msra.mxu0 %v1323
    %1498 = vmatpush.msra.mxu0 %v1319
    %1499 = vmatpush.msra.mxu0 %v1315
    %1500 = vmatpush.msra.mxu0 %v1311
    %1501 = vmatpush.msra.mxu0 %v1307
    %1502 = vmatpush.msra.mxu0 %v1303
    %1503 = vmatpush.msra.mxu0 %v1299
    %1504 = vmatpush.msra.mxu0 %v1295
    %1505 = vmatpush.msra.mxu0 %v1291
    %1506 = vmatpush.msra.mxu0 %v1287
    %1507 = vmatpush.msra.mxu0 %v1283
    %1508 = vmatpush.msra.mxu0 %v1279
    %1509 = vmatpush.msra.mxu0 %v1275
    %1510 = vmatpush.msra.mxu0 %v1271
    %1511 = vmatmul.f32.gmra.mxu0 %v1254
    %v1512 = vpop.f32.mrf.mxu0
    %v1513 = vadd.f32 %v1381, %v1512
    %1514 = vmatmul.f32.gmra.mxu0 %v1256
    %v1515 = vpop.f32.mrf.mxu0
    %v1516 = vadd.f32 %v1381, %v1515
    %1517 = vmatmul.f32.gmra.mxu0 %v1258
    %v1518 = vpop.f32.mrf.mxu0
    %v1519 = vadd.f32 %v1381, %v1518
    %1520 = vmatmul.f32.gmra.mxu0 %v1260
    %v1521 = vpop.f32.mrf.mxu0
    %v1522 = vadd.f32 %v1381, %v1521
    %1523 = vmatmul.f32.gmra.mxu0 %v1262
    %v1524 = vpop.f32.mrf.mxu0
    %v1525 = vadd.f32 %v1381, %v1524
    %1526 = vmatmul.f32.gmra.mxu0 %v1264
    %v1527 = vpop.f32.mrf.mxu0
    %v1528 = vadd.f32 %v1381, %v1527
    %1529 = vmatmul.f32.gmra.mxu0 %v1266
    %v1530 = vpop.f32.mrf.mxu0
    %v1531 = vadd.f32 %v1381, %v1530
    %1532 = vmatmul.f32.gmra.mxu0 %v1268
    %v1533 = vpop.f32.mrf.mxu0
    %v1534 = vadd.f32 %v1381, %v1533
    %1535 = vdwg.mxu0
    %1536 = vmatpush.msra.mxu0 0.0
    %1537 = vmatpush.msra.mxu0 0.0
    %1538 = vmatpush.msra.mxu0 0.0
    %1539 = vmatpush.msra.mxu0 0.0
    %1540 = vmatpush.msra.mxu0 0.0
    %1541 = vmatpush.msra.mxu0 %v1375
    %1542 = vmatpush.msra.mxu0 %v1371
    %1543 = vmatpush.msra.mxu0 %v1367
    %1544 = vmatpush.msra.mxu0 %v1363
    %1545 = vmatpush.msra.mxu0 %v1359
    %1546 = vmatpush.msra.mxu0 %v1355
    %1547 = vmatpush.msra.mxu0 %v1351
    %1548 = vmatpush.msra.mxu0 %v1347
    %1549 = vmatpush.msra.mxu0 %v1343
    %1550 = vmatpush.msra.mxu0 %v1339
    %1551 = vmatpush.msra.mxu0 %v1335
    %1552 = vmatmul.f32.gmra.mxu0 %v1390
    %v1553 = vpop.f32.mrf.mxu0
    %v1554 = vadd.f32 %v1513, %v1553
    %1555 = vmatmul.f32.gmra.mxu0 %v1393
    %v1556 = vpop.f32.mrf.mxu0
    %v1557 = vadd.f32 %v1516, %v1556
    %1558 = vmatmul.f32.gmra.mxu0 %v1396
    %v1559 = vpop.f32.mrf.mxu0
    %v1560 = vadd.f32 %v1519, %v1559
    %1561 = vmatmul.f32.gmra.mxu0 %v1399
    %v1562 = vpop.f32.mrf.mxu0
    %v1563 = vadd.f32 %v1522, %v1562
    %1564 = vmatmul.f32.gmra.mxu0 %v1402
    %v1565 = vpop.f32.mrf.mxu0
    %v1566 = vadd.f32 %v1525, %v1565
    %1567 = vmatmul.f32.gmra.mxu0 %v1405
    %v1568 = vpop.f32.mrf.mxu0
    %v1569 = vadd.f32 %v1528, %v1568
    %1570 = vmatmul.f32.gmra.mxu0 %v1408
    %v1571 = vpop.f32.mrf.mxu0
    %v1572 = vadd.f32 %v1531, %v1571
    %1573 = vmatmul.f32.gmra.mxu0 %v1411
    %v1574 = vpop.f32.mrf.mxu0
    %v1575 = vadd.f32 %v1534, %v1574
    %1576 = vdwg.mxu0
    %1577 = vmatpush.msra.mxu0 %v1332
    %1578 = vmatpush.msra.mxu0 %v1328
    %1579 = vmatpush.msra.mxu0 %v1324
    %1580 = vmatpush.msra.mxu0 %v1320
    %1581 = vmatpush.msra.mxu0 %v1316
    %1582 = vmatpush.msra.mxu0 %v1312
    %1583 = vmatpush.msra.mxu0 %v1308
    %1584 = vmatpush.msra.mxu0 %v1304
    %1585 = vmatpush.msra.mxu0 %v1300
    %1586 = vmatpush.msra.mxu0 %v1296
    %1587 = vmatpush.msra.mxu0 %v1292
    %1588 = vmatpush.msra.mxu0 %v1288
    %1589 = vmatpush.msra.mxu0 %v1284
    %1590 = vmatpush.msra.mxu0 %v1280
    %1591 = vmatpush.msra.mxu0 %v1276
    %1592 = vmatpush.msra.mxu0 %v1272
    %1593 = vmatmul.f32.gmra.mxu0 %v1254
    %v1594 = vpop.f32.mrf.mxu0
    %v1595 = vadd.f32 %v1382, %v1594
    %1596 = vmatmul.f32.gmra.mxu0 %v1256
    %v1597 = vpop.f32.mrf.mxu0
    %v1598 = vadd.f32 %v1382, %v1597
    %1599 = vmatmul.f32.gmra.mxu0 %v1258
    %v1600 = vpop.f32.mrf.mxu0
    %v1601 = vadd.f32 %v1382, %v1600
    %1602 = vmatmul.f32.gmra.mxu0 %v1260
    %v1603 = vpop.f32.mrf.mxu0
    %v1604 = vadd.f32 %v1382, %v1603
    %1605 = vmatmul.f32.gmra.mxu0 %v1262
    %v1606 = vpop.f32.mrf.mxu0
    %v1607 = vadd.f32 %v1382, %v1606
    %1608 = vmatmul.f32.gmra.mxu0 %v1264
    %v1609 = vpop.f32.mrf.mxu0
    %v1610 = vadd.f32 %v1382, %v1609
    %1611 = vmatmul.f32.gmra.mxu0 %v1266
    %v1612 = vpop.f32.mrf.mxu0
    %v1613 = vadd.f32 %v1382, %v1612
    %1614 = vmatmul.f32.gmra.mxu0 %v1268
    %v1615 = vpop.f32.mrf.mxu0
    %v1616 = vadd.f32 %v1382, %v1615
    %1617 = vdwg.mxu0
    %1618 = vmatpush.msra.mxu0 0.0
    %1619 = vmatpush.msra.mxu0 0.0
    %1620 = vmatpush.msra.mxu0 0.0
    %1621 = vmatpush.msra.mxu0 0.0
    %1622 = vmatpush.msra.mxu0 0.0
    %1623 = vmatpush.msra.mxu0 %v1376
    %1624 = vmatpush.msra.mxu0 %v1372
    %1625 = vmatpush.msra.mxu0 %v1368
    %1626 = vmatpush.msra.mxu0 %v1364
    %1627 = vmatpush.msra.mxu0 %v1360
    %1628 = vmatpush.msra.mxu0 %v1356
    %1629 = vmatpush.msra.mxu0 %v1352
    %1630 = vmatpush.msra.mxu0 %v1348
    %1631 = vmatpush.msra.mxu0 %v1344
    %1632 = vmatpush.msra.mxu0 %v1340
    %1633 = vmatpush.msra.mxu0 %v1336
    %1634 = vmatmul.f32.gmra.mxu0 %v1390
    %v1635 = vpop.f32.mrf.mxu0
    %v1636 = vadd.f32 %v1595, %v1635
    %1637 = vmatmul.f32.gmra.mxu0 %v1393
    %v1638 = vpop.f32.mrf.mxu0
    %v1639 = vadd.f32 %v1598, %v1638
    %1640 = vmatmul.f32.gmra.mxu0 %v1396
    %v1641 = vpop.f32.mrf.mxu0
    %v1642 = vadd.f32 %v1601, %v1641
    %1643 = vmatmul.f32.gmra.mxu0 %v1399
    %v1644 = vpop.f32.mrf.mxu0
    %v1645 = vadd.f32 %v1604, %v1644
    %1646 = vmatmul.f32.gmra.mxu0 %v1402
    %v1647 = vpop.f32.mrf.mxu0
    %v1648 = vadd.f32 %v1607, %v1647
    %1649 = vmatmul.f32.gmra.mxu0 %v1405
    %v1650 = vpop.f32.mrf.mxu0
    %v1651 = vadd.f32 %v1610, %v1650
    %1652 = vmatmul.f32.gmra.mxu0 %v1408
    %v1653 = vpop.f32.mrf.mxu0
    %v1654 = vadd.f32 %v1613, %v1653
    %1655 = vmatmul.f32.gmra.mxu0 %v1411
    %v1656 = vpop.f32.mrf.mxu0
    %v1657 = vadd.f32 %v1616, %v1656
    %1658 = vdwg.mxu0
    %1659 = vmatpush.msra.mxu0 %v1333
    %1660 = vmatpush.msra.mxu0 %v1329
    %1661 = vmatpush.msra.mxu0 %v1325
    %1662 = vmatpush.msra.mxu0 %v1321
    %1663 = vmatpush.msra.mxu0 %v1317
    %1664 = vmatpush.msra.mxu0 %v1313
    %1665 = vmatpush.msra.mxu0 %v1309
    %1666 = vmatpush.msra.mxu0 %v1305
    %1667 = vmatpush.msra.mxu0 %v1301
    %1668 = vmatpush.msra.mxu0 %v1297
    %1669 = vmatpush.msra.mxu0 %v1293
    %1670 = vmatpush.msra.mxu0 %v1289
    %1671 = vmatpush.msra.mxu0 %v1285
    %1672 = vmatpush.msra.mxu0 %v1281
    %1673 = vmatpush.msra.mxu0 %v1277
    %1674 = vmatpush.msra.mxu0 %v1273
    %1675 = vmatmul.f32.gmra.mxu0 %v1254
    %v1676 = vpop.f32.mrf.mxu0
    %v1677 = vadd.f32 %v1383, %v1676
    %1678 = vmatmul.f32.gmra.mxu0 %v1256
    %v1679 = vpop.f32.mrf.mxu0
    %v1680 = vadd.f32 %v1383, %v1679
    %1681 = vmatmul.f32.gmra.mxu0 %v1258
    %v1682 = vpop.f32.mrf.mxu0
    %v1683 = vadd.f32 %v1383, %v1682
    %1684 = vmatmul.f32.gmra.mxu0 %v1260
    %v1685 = vpop.f32.mrf.mxu0
    %v1686 = vadd.f32 %v1383, %v1685
    %1687 = vmatmul.f32.gmra.mxu0 %v1262
    %v1688 = vpop.f32.mrf.mxu0
    %v1689 = vadd.f32 %v1383, %v1688
    %1690 = vmatmul.f32.gmra.mxu0 %v1264
    %v1691 = vpop.f32.mrf.mxu0
    %v1692 = vadd.f32 %v1383, %v1691
    %1693 = vmatmul.f32.gmra.mxu0 %v1266
    %v1694 = vpop.f32.mrf.mxu0
    %v1695 = vadd.f32 %v1383, %v1694
    %1696 = vmatmul.f32.gmra.mxu0 %v1268
    %v1697 = vpop.f32.mrf.mxu0
    %v1698 = vadd.f32 %v1383, %v1697
    %1699 = vdwg.mxu0
    %1700 = vmatpush.msra.mxu0 0.0
    %1701 = vmatpush.msra.mxu0 0.0
    %1702 = vmatpush.msra.mxu0 0.0
    %1703 = vmatpush.msra.mxu0 0.0
    %1704 = vmatpush.msra.mxu0 0.0
    %1705 = vmatpush.msra.mxu0 %v1377
    %1706 = vmatpush.msra.mxu0 %v1373
    %1707 = vmatpush.msra.mxu0 %v1369
    %1708 = vmatpush.msra.mxu0 %v1365
    %1709 = vmatpush.msra.mxu0 %v1361
    %1710 = vmatpush.msra.mxu0 %v1357
    %1711 = vmatpush.msra.mxu0 %v1353
    %1712 = vmatpush.msra.mxu0 %v1349
    %1713 = vmatpush.msra.mxu0 %v1345
    %1714 = vmatpush.msra.mxu0 %v1341
    %1715 = vmatpush.msra.mxu0 %v1337
    %1716 = vmatmul.f32.gmra.mxu0 %v1390
    %v1717 = vpop.f32.mrf.mxu0
    %v1718 = vadd.f32 %v1677, %v1717
    %1719 = vmatmul.f32.gmra.mxu0 %v1393
    %v1720 = vpop.f32.mrf.mxu0
    %v1721 = vadd.f32 %v1680, %v1720
    %1722 = vmatmul.f32.gmra.mxu0 %v1396
    %v1723 = vpop.f32.mrf.mxu0
    %v1724 = vadd.f32 %v1683, %v1723
    %1725 = vmatmul.f32.gmra.mxu0 %v1399
    %v1726 = vpop.f32.mrf.mxu0
    %v1727 = vadd.f32 %v1686, %v1726
    %1728 = vmatmul.f32.gmra.mxu0 %v1402
    %v1729 = vpop.f32.mrf.mxu0
    %v1730 = vadd.f32 %v1689, %v1729
    %1731 = vmatmul.f32.gmra.mxu0 %v1405
    %v1732 = vpop.f32.mrf.mxu0
    %v1733 = vadd.f32 %v1692, %v1732
    %1734 = vmatmul.f32.gmra.mxu0 %v1408
    %v1735 = vpop.f32.mrf.mxu0
    %v1736 = vadd.f32 %v1695, %v1735
    %1737 = vmatmul.f32.gmra.mxu0 %v1411
    %v1738 = vpop.f32.mrf.mxu0
    %v1739 = vadd.f32 %v1698, %v1738
    %1740 = vdwg.mxu0
    %1741 = vst [vmem:[#allocation7] sm:$0xff] %v1472
    %1742 = vst [vmem:[#allocation7 + $0x8] sm:$0xff] %v1554
    %1743 = vst [vmem:[#allocation7 + $0x10] sm:$0xff] %v1636
    %1744 = vst [vmem:[#allocation7 + $0x18] sm:$0xff] %v1718
    %1745 = vst [vmem:[#allocation7 + $0x20] sm:$0xff] %v1475
    %1746 = vst [vmem:[#allocation7 + $0x28] sm:$0xff] %v1557
    %1747 = vst [vmem:[#allocation7 + $0x30] sm:$0xff] %v1639
    %1748 = vst [vmem:[#allocation7 + $0x38] sm:$0xff] %v1721
    %1749 = vst [vmem:[#allocation7 + $0x40] sm:$0xff] %v1478
    %1750 = vst [vmem:[#allocation7 + $0x48] sm:$0xff] %v1560
    %1751 = vst [vmem:[#allocation7 + $0x50] sm:$0xff] %v1642
    %1752 = vst [vmem:[#allocation7 + $0x58] sm:$0xff] %v1724
    %1753 = vst [vmem:[#allocation7 + $0x60] sm:$0xff] %v1481
    %1754 = vst [vmem:[#allocation7 + $0x68] sm:$0xff] %v1563
    %1755 = vst [vmem:[#allocation7 + $0x70] sm:$0xff] %v1645
    %1756 = vst [vmem:[#allocation7 + $0x78] sm:$0xff] %v1727
    %1757 = vst [vmem:[#allocation7 + $0x80] sm:$0xff] %v1484
    %1758 = vst [vmem:[#allocation7 + $0x88] sm:$0xff] %v1566
    %1759 = vst [vmem:[#allocation7 + $0x90] sm:$0xff] %v1648
    %1760 = vst [vmem:[#allocation7 + $0x98] sm:$0xff] %v1730
    %1761 = vst [vmem:[#allocation7 + $0xa0] sm:$0xff] %v1487
    %1762 = vst [vmem:[#allocation7 + $0xa8] sm:$0xff] %v1569
    %1763 = vst [vmem:[#allocation7 + $0xb0] sm:$0xff] %v1651
    %1764 = vst [vmem:[#allocation7 + $0xb8] sm:$0xff] %v1733
    %1765 = vst [vmem:[#allocation7 + $0xc0] sm:$0xff] %v1490
    %1766 = vst [vmem:[#allocation7 + $0xc8] sm:$0xff] %v1572
    %1767 = vst [vmem:[#allocation7 + $0xd0] sm:$0xff] %v1654
    %1768 = vst [vmem:[#allocation7 + $0xd8] sm:$0xff] %v1736
    %1769 = vst [vmem:[#allocation7 + $0xe0] sm:$0xff] %v1493
    %1770 = vst [vmem:[#allocation7 + $0xe8] sm:$0xff] %v1575
    %1771 = vst [vmem:[#allocation7 + $0xf0] sm:$0xff] %v1657
    %1772 = vst [vmem:[#allocation7 + $0xf8] sm:$0xff] %v1739
    %v1773 = vld [vmem:[%s3] sm:$0xff]
    %v1774 = vld [vmem:[%s3 + $0x8] sm:$0xff]
    %v1775 = vld [vmem:[%s3 + $0x10] sm:$0xff]
    %v1776 = vld [vmem:[%s3 + $0x18] sm:$0xff]
    %v1777 = vld [vmem:[%s3 + $0x20] sm:$0xff]
    %v1778 = vld [vmem:[%s3 + $0x28] sm:$0xff]
    %v1779 = vld [vmem:[%s3 + $0x30] sm:$0xff]
    %v1780 = vld [vmem:[%s3 + $0x38] sm:$0xff]
    %v1781 = vld [vmem:[%s3 + $0x40] sm:$0xff]
    %v1782 = vld [vmem:[%s3 + $0x48] sm:$0xff]
    %v1783 = vld [vmem:[%s3 + $0x50] sm:$0xff]
    %v1784 = vld [vmem:[%s3 + $0x58] sm:$0xff]
    %v1785 = vld [vmem:[%s3 + $0x60] sm:$0xff]
    %v1786 = vld [vmem:[%s3 + $0x68] sm:$0xff]
    %v1787 = vld [vmem:[%s3 + $0x70] sm:$0xff]
    %v1788 = vld [vmem:[%s3 + $0x78] sm:$0xff]
    %v1789 = vld [vmem:[%s3 + $0x80] sm:$0xff]
    %v1790 = vld [vmem:[%s3 + $0x88] sm:$0xff]
    %v1791 = vld [vmem:[%s3 + $0x90] sm:$0xff]
    %v1792 = vld [vmem:[%s3 + $0x98] sm:$0xff]
    %v1793 = vld [vmem:[%s3 + $0xa0] sm:$0xff]
    %v1794 = vld [vmem:[%s3 + $0xa8] sm:$0xff]
    %v1795 = vld [vmem:[%s3 + $0xb0] sm:$0xff]
    %v1796 = vld [vmem:[%s3 + $0xb8] sm:$0xff]
    %v1797 = vld [vmem:[%s3 + $0xc0] sm:$0xff]
    %v1798 = vld [vmem:[%s3 + $0xc8] sm:$0xff]
    %v1799 = vld [vmem:[%s3 + $0xd0] sm:$0xff]
    %v1800 = vld [vmem:[%s3 + $0xd8] sm:$0xff]
    %v1801 = vld [vmem:[%s3 + $0xe0] sm:$0xff]
    %v1802 = vld [vmem:[%s3 + $0xe8] sm:$0xff]
    %v1803 = vld [vmem:[%s3 + $0xf0] sm:$0xff]
    %v1804 = vld [vmem:[%s3 + $0xf8] sm:$0xff]
    %v1805 = vld [vmem:[%s3 + $0x100] sm:$0xff]
    %v1806 = vld [vmem:[%s3 + $0x108] sm:$0xff]
    %v1807 = vld [vmem:[%s3 + $0x110] sm:$0xff]
    %v1808 = vld [vmem:[%s3 + $0x118] sm:$0xff]
    %v1809 = vld [vmem:[%s3 + $0x120] sm:$0xff]
    %v1810 = vld [vmem:[%s3 + $0x128] sm:$0xff]
    %v1811 = vld [vmem:[%s3 + $0x130] sm:$0xff]
    %v1812 = vld [vmem:[%s3 + $0x138] sm:$0xff]
    %v1813 = vld [vmem:[%s3 + $0x140] sm:$0xff]
    %v1814 = vld [vmem:[%s3 + $0x148] sm:$0xff]
    %v1815 = vld [vmem:[%s3 + $0x150] sm:$0xff]
    %v1816 = vld [vmem:[%s3 + $0x158] sm:$0xff]
    %v1817 = vld [vmem:[%s3 + $0x160] sm:$0xff]
    %v1818 = vld [vmem:[%s3 + $0x168] sm:$0xff]
    %v1819 = vld [vmem:[%s3 + $0x170] sm:$0xff]
    %v1820 = vld [vmem:[%s3 + $0x178] sm:$0xff]
    %v1821 = vld [vmem:[%s3 + $0x180] sm:$0xff]
    %v1822 = vld [vmem:[%s3 + $0x188] sm:$0xff]
    %v1823 = vld [vmem:[%s3 + $0x190] sm:$0xff]
    %v1824 = vld [vmem:[%s3 + $0x198] sm:$0xff]
    %v1825 = vld [vmem:[%s3 + $0x1a0] sm:$0xff]
    %v1826 = vld [vmem:[%s3 + $0x1a8] sm:$0xff]
    %v1827 = vld [vmem:[%s3 + $0x1b0] sm:$0xff]
    %v1828 = vld [vmem:[%s3 + $0x1b8] sm:$0xff]
    %v1829 = vld [vmem:[%s3 + $0x1c0] sm:$0xff]
    %v1830 = vld [vmem:[%s3 + $0x1c8] sm:$0xff]
    %v1831 = vld [vmem:[%s3 + $0x1d0] sm:$0xff]
    %v1832 = vld [vmem:[%s3 + $0x1d8] sm:$0xff]
    %v1833 = vld [vmem:[%s3 + $0x1e0] sm:$0xff]
    %v1834 = vld [vmem:[%s3 + $0x1e8] sm:$0xff]
    %v1835 = vld [vmem:[%s3 + $0x1f0] sm:$0xff]
    %v1836 = vld [vmem:[%s3 + $0x1f8] sm:$0xff]
    %v1837 = vld [vmem:[#allocation7] sm:$0xff]
    %v1838 = vld [vmem:[#allocation7 + $0x8] sm:$0xff]
    %v1839 = vld [vmem:[#allocation7 + $0x10] sm:$0xff]
    %v1840 = vld [vmem:[#allocation7 + $0x18] sm:$0xff]
    %1841 = vmatpush.msra.mxu0 %v1833
    %1842 = vmatpush.msra.mxu0 %v1829
    %1843 = vmatpush.msra.mxu0 %v1825
    %1844 = vmatpush.msra.mxu0 %v1821
    %1845 = vmatpush.msra.mxu0 %v1817
    %1846 = vmatpush.msra.mxu0 %v1813
    %1847 = vmatpush.msra.mxu0 %v1809
    %1848 = vmatpush.msra.mxu0 %v1805
    %1849 = vmatpush.msra.mxu0 %v1801
    %1850 = vmatpush.msra.mxu0 %v1797
    %1851 = vmatpush.msra.mxu0 %v1793
    %1852 = vmatpush.msra.mxu0 %v1789
    %1853 = vmatpush.msra.mxu0 %v1785
    %1854 = vmatpush.msra.mxu0 %v1781
    %1855 = vmatpush.msra.mxu0 %v1777
    %1856 = vmatpush.msra.mxu0 %v1773
    %1857 = vmatmul.f32.gmra.mxu0 0.0
    %v1858 = vpop.f32.mrf.mxu0
    %v1859 = vadd.f32 %v1837, %v1858
    %1860 = vdwg.mxu0
    %1861 = vmatpush.msra.mxu0 %v1834
    %1862 = vmatpush.msra.mxu0 %v1830
    %1863 = vmatpush.msra.mxu0 %v1826
    %1864 = vmatpush.msra.mxu0 %v1822
    %1865 = vmatpush.msra.mxu0 %v1818
    %1866 = vmatpush.msra.mxu0 %v1814
    %1867 = vmatpush.msra.mxu0 %v1810
    %1868 = vmatpush.msra.mxu0 %v1806
    %1869 = vmatpush.msra.mxu0 %v1802
    %1870 = vmatpush.msra.mxu0 %v1798
    %1871 = vmatpush.msra.mxu0 %v1794
    %1872 = vmatpush.msra.mxu0 %v1790
    %1873 = vmatpush.msra.mxu0 %v1786
    %1874 = vmatpush.msra.mxu0 %v1782
    %1875 = vmatpush.msra.mxu0 %v1778
    %1876 = vmatpush.msra.mxu0 %v1774
    %1877 = vmatmul.f32.gmra.mxu0 0.0
    %v1878 = vpop.f32.mrf.mxu0
    %v1879 = vadd.f32 %v1838, %v1878
    %1880 = vdwg.mxu0
    %1881 = vmatpush.msra.mxu0 %v1835
    %1882 = vmatpush.msra.mxu0 %v1831
    %1883 = vmatpush.msra.mxu0 %v1827
    %1884 = vmatpush.msra.mxu0 %v1823
    %1885 = vmatpush.msra.mxu0 %v1819
    %1886 = vmatpush.msra.mxu0 %v1815
    %1887 = vmatpush.msra.mxu0 %v1811
    %1888 = vmatpush.msra.mxu0 %v1807
    %1889 = vmatpush.msra.mxu0 %v1803
    %1890 = vmatpush.msra.mxu0 %v1799
    %1891 = vmatpush.msra.mxu0 %v1795
    %1892 = vmatpush.msra.mxu0 %v1791
    %1893 = vmatpush.msra.mxu0 %v1787
    %1894 = vmatpush.msra.mxu0 %v1783
    %1895 = vmatpush.msra.mxu0 %v1779
    %1896 = vmatpush.msra.mxu0 %v1775
    %1897 = vmatmul.f32.gmra.mxu0 0.0
    %v1898 = vpop.f32.mrf.mxu0
    %v1899 = vadd.f32 %v1839, %v1898
    %1900 = vdwg.mxu0
    %1901 = vmatpush.msra.mxu0 %v1836
    %1902 = vmatpush.msra.mxu0 %v1832
    %1903 = vmatpush.msra.mxu0 %v1828
    %1904 = vmatpush.msra.mxu0 %v1824
    %1905 = vmatpush.msra.mxu0 %v1820
    %1906 = vmatpush.msra.mxu0 %v1816
    %1907 = vmatpush.msra.mxu0 %v1812
    %1908 = vmatpush.msra.mxu0 %v1808
    %1909 = vmatpush.msra.mxu0 %v1804
    %1910 = vmatpush.msra.mxu0 %v1800
    %1911 = vmatpush.msra.mxu0 %v1796
    %1912 = vmatpush.msra.mxu0 %v1792
    %1913 = vmatpush.msra.mxu0 %v1788
    %1914 = vmatpush.msra.mxu0 %v1784
    %1915 = vmatpush.msra.mxu0 %v1780
    %1916 = vmatpush.msra.mxu0 %v1776
    %1917 = vmatmul.f32.gmra.mxu0 0.0
    %v1918 = vpop.f32.mrf.mxu0
    %v1919 = vadd.f32 %v1840, %v1918
    %1920 = vdwg.mxu0
    %v1921 = vxor.u32 %v1859, 2147483648
    %v1922 = vxor.u32 %v1879, 2147483648
    %v1923 = vxor.u32 %v1899, 2147483648
    %v1924 = vmul.f32 %v1921, 1.442695
    %v1925 = vpow.pop %v1924
    %v1926 = vmul.f32 %v1922, 1.442695
    %v1927 = vpow.pop %v1926
    %v1928 = vmul.f32 %v1923, 1.442695
    %v1929 = vpow.pop %v1928
    %v1930 = vadd.f32 %v1925, 1.0
    %v1931 = vadd.f32 %v1927, 1.0
    %v1932 = vadd.f32 %v1929, 1.0
    %v1933 = vrcp.pop %v1930
    %v1934 = vmul.f32 %v1930, %v1933
    %v1935 = vsub.f32 1.0, %v1934
    %v1936 = vmul.f32 %v1933, %v1935
    %v1937 = vadd.f32 %v1933, %v1936
    %vm1938 = vweird.f32 %v1930
    %vm1939 = vweird.f32 %v1933
    %vm1940 = vmor %vm1938, %vm1939
    %v1941 = vsel %vm1940, %v1933, %v1937
    %v1942 = vand.u32 2147483647, %v1930
    %vm1943 = vcmp.eq.f32.partialorder %v1942, 8.507059e+37
    %v1944 = vand.u32 %v1930, 2147483648
    %v1945 = vor.u32 1.1754944e-38, %v1944
    %v1946 = vsel %vm1943, %v1945, %v1941
    %v1947 = vmul.f32 1.0, %v1946
    %v1948 = vrcp.pop %v1931
    %v1949 = vmul.f32 %v1931, %v1948
    %v1950 = vsub.f32 1.0, %v1949
    %v1951 = vmul.f32 %v1948, %v1950
    %v1952 = vadd.f32 %v1948, %v1951
    %vm1953 = vweird.f32 %v1931
    %vm1954 = vweird.f32 %v1948
    %vm1955 = vmor %vm1953, %vm1954
    %v1956 = vsel %vm1955, %v1948, %v1952
    %v1957 = vand.u32 2147483647, %v1931
    %vm1958 = vcmp.eq.f32.partialorder %v1957, 8.507059e+37
    %v1959 = vand.u32 %v1931, 2147483648
    %v1960 = vor.u32 1.1754944e-38, %v1959
    %v1961 = vsel %vm1958, %v1960, %v1956
    %v1962 = vmul.f32 1.0, %v1961
    %v1963 = vrcp.pop %v1932
    %v1964 = vmul.f32 %v1932, %v1963
    %v1965 = vsub.f32 1.0, %v1964
    %v1966 = vmul.f32 %v1963, %v1965
    %v1967 = vadd.f32 %v1963, %v1966
    %vm1968 = vweird.f32 %v1932
    %vm1969 = vweird.f32 %v1963
    %vm1970 = vmor %vm1968, %vm1969
    %v1971 = vsel %vm1970, %v1963, %v1967
    %v1972 = vand.u32 2147483647, %v1932
    %vm1973 = vcmp.eq.f32.partialorder %v1972, 8.507059e+37
    %v1974 = vand.u32 %v1932, 2147483648
    %v1975 = vor.u32 1.1754944e-38, %v1974
    %v1976 = vsel %vm1973, %v1975, %v1971
    %v1977 = vmul.f32 1.0, %v1976
    %v1978 = vtanh.pop %v1919
    %v1979 = vmul.f32 %v1962, 0.0
    %v1980 = vmul.f32 %v1947, %v1978
    %v1981 = vadd.f32 %v1979, %v1980
    %v1982 = vtanh.pop %v1981
    %v1983 = vmul.f32 %v1977, %v1982
    %v1984 = vld [vmem:[#allocation7 + $0x20] sm:$0xff]
    %v1985 = vld [vmem:[#allocation7 + $0x28] sm:$0xff]
    %v1986 = vld [vmem:[#allocation7 + $0x30] sm:$0xff]
    %v1987 = vld [vmem:[#allocation7 + $0x38] sm:$0xff]
    %1988 = vmatpush.msra.mxu0 %v1833
    %1989 = vmatpush.msra.mxu0 %v1829
    %1990 = vmatpush.msra.mxu0 %v1825
    %1991 = vmatpush.msra.mxu0 %v1821
    %1992 = vmatpush.msra.mxu0 %v1817
    %1993 = vmatpush.msra.mxu0 %v1813
    %1994 = vmatpush.msra.mxu0 %v1809
    %1995 = vmatpush.msra.mxu0 %v1805
    %1996 = vmatpush.msra.mxu0 %v1801
    %1997 = vmatpush.msra.mxu0 %v1797
    %1998 = vmatpush.msra.mxu0 %v1793
    %1999 = vmatpush.msra.mxu0 %v1789
    %2000 = vmatpush.msra.mxu0 %v1785
    %2001 = vmatpush.msra.mxu0 %v1781
    %2002 = vmatpush.msra.mxu0 %v1777
    %2003 = vmatpush.msra.mxu0 %v1773
    %2004 = vmatmul.f32.gmra.mxu0 %v1983
    %v2005 = vpop.f32.mrf.mxu0
    %v2006 = vadd.f32 %v1984, %v2005
    %2007 = vdwg.mxu0
    %2008 = vmatpush.msra.mxu0 %v1834
    %2009 = vmatpush.msra.mxu0 %v1830
    %2010 = vmatpush.msra.mxu0 %v1826
    %2011 = vmatpush.msra.mxu0 %v1822
    %2012 = vmatpush.msra.mxu0 %v1818
    %2013 = vmatpush.msra.mxu0 %v1814
    %2014 = vmatpush.msra.mxu0 %v1810
    %2015 = vmatpush.msra.mxu0 %v1806
    %2016 = vmatpush.msra.mxu0 %v1802
    %2017 = vmatpush.msra.mxu0 %v1798
    %2018 = vmatpush.msra.mxu0 %v1794
    %2019 = vmatpush.msra.mxu0 %v1790
    %2020 = vmatpush.msra.mxu0 %v1786
    %2021 = vmatpush.msra.mxu0 %v1782
    %2022 = vmatpush.msra.mxu0 %v1778
    %2023 = vmatpush.msra.mxu0 %v1774
    %2024 = vmatmul.f32.gmra.mxu0 %v1983
    %v2025 = vpop.f32.mrf.mxu0
    %v2026 = vadd.f32 %v1985, %v2025
    %2027 = vdwg.mxu0
    %2028 = vmatpush.msra.mxu0 %v1835
    %2029 = vmatpush.msra.mxu0 %v1831
    %2030 = vmatpush.msra.mxu0 %v1827
    %2031 = vmatpush.msra.mxu0 %v1823
    %2032 = vmatpush.msra.mxu0 %v1819
    %2033 = vmatpush.msra.mxu0 %v1815
    %2034 = vmatpush.msra.mxu0 %v1811
    %2035 = vmatpush.msra.mxu0 %v1807
    %2036 = vmatpush.msra.mxu0 %v1803
    %2037 = vmatpush.msra.mxu0 %v1799
    %2038 = vmatpush.msra.mxu0 %v1795
    %2039 = vmatpush.msra.mxu0 %v1791
    %2040 = vmatpush.msra.mxu0 %v1787
    %2041 = vmatpush.msra.mxu0 %v1783
    %2042 = vmatpush.msra.mxu0 %v1779
    %2043 = vmatpush.msra.mxu0 %v1775
    %2044 = vmatmul.f32.gmra.mxu0 %v1983
    %v2045 = vpop.f32.mrf.mxu0
    %v2046 = vadd.f32 %v1986, %v2045
    %2047 = vdwg.mxu0
    %2048 = vmatpush.msra.mxu0 %v1836
    %2049 = vmatpush.msra.mxu0 %v1832
    %2050 = vmatpush.msra.mxu0 %v1828
    %2051 = vmatpush.msra.mxu0 %v1824
    %2052 = vmatpush.msra.mxu0 %v1820
    %2053 = vmatpush.msra.mxu0 %v1816
    %2054 = vmatpush.msra.mxu0 %v1812
    %2055 = vmatpush.msra.mxu0 %v1808
    %2056 = vmatpush.msra.mxu0 %v1804
    %2057 = vmatpush.msra.mxu0 %v1800
    %2058 = vmatpush.msra.mxu0 %v1796
    %2059 = vmatpush.msra.mxu0 %v1792
    %2060 = vmatpush.msra.mxu0 %v1788
    %2061 = vmatpush.msra.mxu0 %v1784
    %2062 = vmatpush.msra.mxu0 %v1780
    %2063 = vmatpush.msra.mxu0 %v1776
    %2064 = vmatmul.f32.gmra.mxu0 %v1983
    %v2065 = vpop.f32.mrf.mxu0
    %v2066 = vadd.f32 %v1987, %v2065
    %2067 = vdwg.mxu0
    %v2068 = vxor.u32 %v2006, 2147483648
    %v2069 = vxor.u32 %v2026, 2147483648
    %v2070 = vxor.u32 %v2046, 2147483648
    %v2071 = vmul.f32 %v2068, 1.442695
    %v2072 = vpow.pop %v2071
    %v2073 = vmul.f32 %v2069, 1.442695
    %v2074 = vpow.pop %v2073
    %v2075 = vmul.f32 %v2070, 1.442695
    %v2076 = vpow.pop %v2075
    %v2077 = vadd.f32 %v2072, 1.0
    %v2078 = vadd.f32 %v2074, 1.0
    %v2079 = vadd.f32 %v2076, 1.0
    %v2080 = vrcp.pop %v2077
    %v2081 = vmul.f32 %v2077, %v2080
    %v2082 = vsub.f32 1.0, %v2081
    %v2083 = vmul.f32 %v2080, %v2082
    %v2084 = vadd.f32 %v2080, %v2083
    %vm2085 = vweird.f32 %v2077
    %vm2086 = vweird.f32 %v2080
    %vm2087 = vmor %vm2085, %vm2086
    %v2088 = vsel %vm2087, %v2080, %v2084
    %v2089 = vand.u32 2147483647, %v2077
    %vm2090 = vcmp.eq.f32.partialorder %v2089, 8.507059e+37
    %v2091 = vand.u32 %v2077, 2147483648
    %v2092 = vor.u32 1.1754944e-38, %v2091
    %v2093 = vsel %vm2090, %v2092, %v2088
    %v2094 = vmul.f32 1.0, %v2093
    %v2095 = vrcp.pop %v2078
    %v2096 = vmul.f32 %v2078, %v2095
    %v2097 = vsub.f32 1.0, %v2096
    %v2098 = vmul.f32 %v2095, %v2097
    %v2099 = vadd.f32 %v2095, %v2098
    %vm2100 = vweird.f32 %v2078
    %vm2101 = vweird.f32 %v2095
    %vm2102 = vmor %vm2100, %vm2101
    %v2103 = vsel %vm2102, %v2095, %v2099
    %v2104 = vand.u32 2147483647, %v2078
    %vm2105 = vcmp.eq.f32.partialorder %v2104, 8.507059e+37
    %v2106 = vand.u32 %v2078, 2147483648
    %v2107 = vor.u32 1.1754944e-38, %v2106
    %v2108 = vsel %vm2105, %v2107, %v2103
    %v2109 = vmul.f32 1.0, %v2108
    %v2110 = vrcp.pop %v2079
    %v2111 = vmul.f32 %v2079, %v2110
    %v2112 = vsub.f32 1.0, %v2111
    %v2113 = vmul.f32 %v2110, %v2112
    %v2114 = vadd.f32 %v2110, %v2113
    %vm2115 = vweird.f32 %v2079
    %vm2116 = vweird.f32 %v2110
    %vm2117 = vmor %vm2115, %vm2116
    %v2118 = vsel %vm2117, %v2110, %v2114
    %v2119 = vand.u32 2147483647, %v2079
    %vm2120 = vcmp.eq.f32.partialorder %v2119, 8.507059e+37
    %v2121 = vand.u32 %v2079, 2147483648
    %v2122 = vor.u32 1.1754944e-38, %v2121
    %v2123 = vsel %vm2120, %v2122, %v2118
    %v2124 = vmul.f32 1.0, %v2123
    %v2125 = vtanh.pop %v2066
    %v2126 = vmul.f32 %v2109, %v1981
    %v2127 = vmul.f32 %v2094, %v2125
    %v2128 = vadd.f32 %v2126, %v2127
    %v2129 = vtanh.pop %v2128
    %v2130 = vmul.f32 %v2124, %v2129
    %v2131 = vld [vmem:[#allocation7 + $0x40] sm:$0xff]
    %v2132 = vld [vmem:[#allocation7 + $0x48] sm:$0xff]
    %v2133 = vld [vmem:[#allocation7 + $0x50] sm:$0xff]
    %v2134 = vld [vmem:[#allocation7 + $0x58] sm:$0xff]
    %2135 = vmatpush.msra.mxu0 %v1833
    %2136 = vmatpush.msra.mxu0 %v1829
    %2137 = vmatpush.msra.mxu0 %v1825
    %2138 = vmatpush.msra.mxu0 %v1821
    %2139 = vmatpush.msra.mxu0 %v1817
    %2140 = vmatpush.msra.mxu0 %v1813
    %2141 = vmatpush.msra.mxu0 %v1809
    %2142 = vmatpush.msra.mxu0 %v1805
    %2143 = vmatpush.msra.mxu0 %v1801
    %2144 = vmatpush.msra.mxu0 %v1797
    %2145 = vmatpush.msra.mxu0 %v1793
    %2146 = vmatpush.msra.mxu0 %v1789
    %2147 = vmatpush.msra.mxu0 %v1785
    %2148 = vmatpush.msra.mxu0 %v1781
    %2149 = vmatpush.msra.mxu0 %v1777
    %2150 = vmatpush.msra.mxu0 %v1773
    %2151 = vmatmul.f32.gmra.mxu0 %v2130
    %v2152 = vpop.f32.mrf.mxu0
    %v2153 = vadd.f32 %v2131, %v2152
    %2154 = vdwg.mxu0
    %2155 = vmatpush.msra.mxu0 %v1834
    %2156 = vmatpush.msra.mxu0 %v1830
    %2157 = vmatpush.msra.mxu0 %v1826
    %2158 = vmatpush.msra.mxu0 %v1822
    %2159 = vmatpush.msra.mxu0 %v1818
    %2160 = vmatpush.msra.mxu0 %v1814
    %2161 = vmatpush.msra.mxu0 %v1810
    %2162 = vmatpush.msra.mxu0 %v1806
    %2163 = vmatpush.msra.mxu0 %v1802
    %2164 = vmatpush.msra.mxu0 %v1798
    %2165 = vmatpush.msra.mxu0 %v1794
    %2166 = vmatpush.msra.mxu0 %v1790
    %2167 = vmatpush.msra.mxu0 %v1786
    %2168 = vmatpush.msra.mxu0 %v1782
    %2169 = vmatpush.msra.mxu0 %v1778
    %2170 = vmatpush.msra.mxu0 %v1774
    %2171 = vmatmul.f32.gmra.mxu0 %v2130
    %v2172 = vpop.f32.mrf.mxu0
    %v2173 = vadd.f32 %v2132, %v2172
    %2174 = vdwg.mxu0
    %2175 = vmatpush.msra.mxu0 %v1835
    %2176 = vmatpush.msra.mxu0 %v1831
    %2177 = vmatpush.msra.mxu0 %v1827
    %2178 = vmatpush.msra.mxu0 %v1823
    %2179 = vmatpush.msra.mxu0 %v1819
    %2180 = vmatpush.msra.mxu0 %v1815
    %2181 = vmatpush.msra.mxu0 %v1811
    %2182 = vmatpush.msra.mxu0 %v1807
    %2183 = vmatpush.msra.mxu0 %v1803
    %2184 = vmatpush.msra.mxu0 %v1799
    %2185 = vmatpush.msra.mxu0 %v1795
    %2186 = vmatpush.msra.mxu0 %v1791
    %2187 = vmatpush.msra.mxu0 %v1787
    %2188 = vmatpush.msra.mxu0 %v1783
    %2189 = vmatpush.msra.mxu0 %v1779
    %2190 = vmatpush.msra.mxu0 %v1775
    %2191 = vmatmul.f32.gmra.mxu0 %v2130
    %v2192 = vpop.f32.mrf.mxu0
    %v2193 = vadd.f32 %v2133, %v2192
    %2194 = vdwg.mxu0
    %2195 = vmatpush.msra.mxu0 %v1836
    %2196 = vmatpush.msra.mxu0 %v1832
    %2197 = vmatpush.msra.mxu0 %v1828
    %2198 = vmatpush.msra.mxu0 %v1824
    %2199 = vmatpush.msra.mxu0 %v1820
    %2200 = vmatpush.msra.mxu0 %v1816
    %2201 = vmatpush.msra.mxu0 %v1812
    %2202 = vmatpush.msra.mxu0 %v1808
    %2203 = vmatpush.msra.mxu0 %v1804
    %2204 = vmatpush.msra.mxu0 %v1800
    %2205 = vmatpush.msra.mxu0 %v1796
    %2206 = vmatpush.msra.mxu0 %v1792
    %2207 = vmatpush.msra.mxu0 %v1788
    %2208 = vmatpush.msra.mxu0 %v1784
    %2209 = vmatpush.msra.mxu0 %v1780
    %2210 = vmatpush.msra.mxu0 %v1776
    %2211 = vmatmul.f32.gmra.mxu0 %v2130
    %v2212 = vpop.f32.mrf.mxu0
    %v2213 = vadd.f32 %v2134, %v2212
    %2214 = vdwg.mxu0
    %v2215 = vxor.u32 %v2153, 2147483648
    %v2216 = vxor.u32 %v2173, 2147483648
    %v2217 = vxor.u32 %v2193, 2147483648
    %v2218 = vmul.f32 %v2215, 1.442695
    %v2219 = vpow.pop %v2218
    %v2220 = vmul.f32 %v2216, 1.442695
    %v2221 = vpow.pop %v2220
    %v2222 = vmul.f32 %v2217, 1.442695
    %v2223 = vpow.pop %v2222
    %v2224 = vadd.f32 %v2219, 1.0
    %v2225 = vadd.f32 %v2221, 1.0
    %v2226 = vadd.f32 %v2223, 1.0
    %v2227 = vrcp.pop %v2224
    %v2228 = vmul.f32 %v2224, %v2227
    %v2229 = vsub.f32 1.0, %v2228
    %v2230 = vmul.f32 %v2227, %v2229
    %v2231 = vadd.f32 %v2227, %v2230
    %vm2232 = vweird.f32 %v2224
    %vm2233 = vweird.f32 %v2227
    %vm2234 = vmor %vm2232, %vm2233
    %v2235 = vsel %vm2234, %v2227, %v2231
    %v2236 = vand.u32 2147483647, %v2224
    %vm2237 = vcmp.eq.f32.partialorder %v2236, 8.507059e+37
    %v2238 = vand.u32 %v2224, 2147483648
    %v2239 = vor.u32 1.1754944e-38, %v2238
    %v2240 = vsel %vm2237, %v2239, %v2235
    %v2241 = vmul.f32 1.0, %v2240
    %v2242 = vrcp.pop %v2225
    %v2243 = vmul.f32 %v2225, %v2242
    %v2244 = vsub.f32 1.0, %v2243
    %v2245 = vmul.f32 %v2242, %v2244
    %v2246 = vadd.f32 %v2242, %v2245
    %vm2247 = vweird.f32 %v2225
    %vm2248 = vweird.f32 %v2242
    %vm2249 = vmor %vm2247, %vm2248
    %v2250 = vsel %vm2249, %v2242, %v2246
    %v2251 = vand.u32 2147483647, %v2225
    %vm2252 = vcmp.eq.f32.partialorder %v2251, 8.507059e+37
    %v2253 = vand.u32 %v2225, 2147483648
    %v2254 = vor.u32 1.1754944e-38, %v2253
    %v2255 = vsel %vm2252, %v2254, %v2250
    %v2256 = vmul.f32 1.0, %v2255
    %v2257 = vrcp.pop %v2226
    %v2258 = vmul.f32 %v2226, %v2257
    %v2259 = vsub.f32 1.0, %v2258
    %v2260 = vmul.f32 %v2257, %v2259
    %v2261 = vadd.f32 %v2257, %v2260
    %vm2262 = vweird.f32 %v2226
    %vm2263 = vweird.f32 %v2257
    %vm2264 = vmor %vm2262, %vm2263
    %v2265 = vsel %vm2264, %v2257, %v2261
    %v2266 = vand.u32 2147483647, %v2226
    %vm2267 = vcmp.eq.f32.partialorder %v2266, 8.507059e+37
    %v2268 = vand.u32 %v2226, 2147483648
    %v2269 = vor.u32 1.1754944e-38, %v2268
    %v2270 = vsel %vm2267, %v2269, %v2265
    %v2271 = vmul.f32 1.0, %v2270
    %v2272 = vtanh.pop %v2213
    %v2273 = vmul.f32 %v2256, %v2128
    %v2274 = vmul.f32 %v2241, %v2272
    %v2275 = vadd.f32 %v2273, %v2274
    %v2276 = vtanh.pop %v2275
    %v2277 = vmul.f32 %v2271, %v2276
    %v2278 = vld [vmem:[#allocation7 + $0x60] sm:$0xff]
    %v2279 = vld [vmem:[#allocation7 + $0x68] sm:$0xff]
    %v2280 = vld [vmem:[#allocation7 + $0x70] sm:$0xff]
    %v2281 = vld [vmem:[#allocation7 + $0x78] sm:$0xff]
    %2282 = vmatpush.msra.mxu0 %v1833
    %2283 = vmatpush.msra.mxu0 %v1829
    %2284 = vmatpush.msra.mxu0 %v1825
    %2285 = vmatpush.msra.mxu0 %v1821
    %2286 = vmatpush.msra.mxu0 %v1817
    %2287 = vmatpush.msra.mxu0 %v1813
    %2288 = vmatpush.msra.mxu0 %v1809
    %2289 = vmatpush.msra.mxu0 %v1805
    %2290 = vmatpush.msra.mxu0 %v1801
    %2291 = vmatpush.msra.mxu0 %v1797
    %2292 = vmatpush.msra.mxu0 %v1793
    %2293 = vmatpush.msra.mxu0 %v1789
    %2294 = vmatpush.msra.mxu0 %v1785
    %2295 = vmatpush.msra.mxu0 %v1781
    %2296 = vmatpush.msra.mxu0 %v1777
    %2297 = vmatpush.msra.mxu0 %v1773
    %2298 = vmatmul.f32.gmra.mxu0 %v2277
    %v2299 = vpop.f32.mrf.mxu0
    %v2300 = vadd.f32 %v2278, %v2299
    %2301 = vdwg.mxu0
    %2302 = vmatpush.msra.mxu0 %v1834
    %2303 = vmatpush.msra.mxu0 %v1830
    %2304 = vmatpush.msra.mxu0 %v1826
    %2305 = vmatpush.msra.mxu0 %v1822
    %2306 = vmatpush.msra.mxu0 %v1818
    %2307 = vmatpush.msra.mxu0 %v1814
    %2308 = vmatpush.msra.mxu0 %v1810
    %2309 = vmatpush.msra.mxu0 %v1806
    %2310 = vmatpush.msra.mxu0 %v1802
    %2311 = vmatpush.msra.mxu0 %v1798
    %2312 = vmatpush.msra.mxu0 %v1794
    %2313 = vmatpush.msra.mxu0 %v1790
    %2314 = vmatpush.msra.mxu0 %v1786
    %2315 = vmatpush.msra.mxu0 %v1782
    %2316 = vmatpush.msra.mxu0 %v1778
    %2317 = vmatpush.msra.mxu0 %v1774
    %2318 = vmatmul.f32.gmra.mxu0 %v2277
    %v2319 = vpop.f32.mrf.mxu0
    %v2320 = vadd.f32 %v2279, %v2319
    %2321 = vdwg.mxu0
    %2322 = vmatpush.msra.mxu0 %v1835
    %2323 = vmatpush.msra.mxu0 %v1831
    %2324 = vmatpush.msra.mxu0 %v1827
    %2325 = vmatpush.msra.mxu0 %v1823
    %2326 = vmatpush.msra.mxu0 %v1819
    %2327 = vmatpush.msra.mxu0 %v1815
    %2328 = vmatpush.msra.mxu0 %v1811
    %2329 = vmatpush.msra.mxu0 %v1807
    %2330 = vmatpush.msra.mxu0 %v1803
    %2331 = vmatpush.msra.mxu0 %v1799
    %2332 = vmatpush.msra.mxu0 %v1795
    %2333 = vmatpush.msra.mxu0 %v1791
    %2334 = vmatpush.msra.mxu0 %v1787
    %2335 = vmatpush.msra.mxu0 %v1783
    %2336 = vmatpush.msra.mxu0 %v1779
    %2337 = vmatpush.msra.mxu0 %v1775
    %2338 = vmatmul.f32.gmra.mxu0 %v2277
    %v2339 = vpop.f32.mrf.mxu0
    %v2340 = vadd.f32 %v2280, %v2339
    %2341 = vdwg.mxu0
    %2342 = vmatpush.msra.mxu0 %v1836
    %2343 = vmatpush.msra.mxu0 %v1832
    %2344 = vmatpush.msra.mxu0 %v1828
    %2345 = vmatpush.msra.mxu0 %v1824
    %2346 = vmatpush.msra.mxu0 %v1820
    %2347 = vmatpush.msra.mxu0 %v1816
    %2348 = vmatpush.msra.mxu0 %v1812
    %2349 = vmatpush.msra.mxu0 %v1808
    %2350 = vmatpush.msra.mxu0 %v1804
    %2351 = vmatpush.msra.mxu0 %v1800
    %2352 = vmatpush.msra.mxu0 %v1796
    %2353 = vmatpush.msra.mxu0 %v1792
    %2354 = vmatpush.msra.mxu0 %v1788
    %2355 = vmatpush.msra.mxu0 %v1784
    %2356 = vmatpush.msra.mxu0 %v1780
    %2357 = vmatpush.msra.mxu0 %v1776
    %2358 = vmatmul.f32.gmra.mxu0 %v2277
    %v2359 = vpop.f32.mrf.mxu0
    %v2360 = vadd.f32 %v2281, %v2359
    %2361 = vdwg.mxu0
    %v2362 = vxor.u32 %v2300, 2147483648
    %v2363 = vxor.u32 %v2320, 2147483648
    %v2364 = vxor.u32 %v2340, 2147483648
    %v2365 = vmul.f32 %v2362, 1.442695
    %v2366 = vpow.pop %v2365
    %v2367 = vmul.f32 %v2363, 1.442695
    %v2368 = vpow.pop %v2367
    %v2369 = vmul.f32 %v2364, 1.442695
    %v2370 = vpow.pop %v2369
    %v2371 = vadd.f32 %v2366, 1.0
    %v2372 = vadd.f32 %v2368, 1.0
    %v2373 = vadd.f32 %v2370, 1.0
    %v2374 = vrcp.pop %v2371
    %v2375 = vmul.f32 %v2371, %v2374
    %v2376 = vsub.f32 1.0, %v2375
    %v2377 = vmul.f32 %v2374, %v2376
    %v2378 = vadd.f32 %v2374, %v2377
    %vm2379 = vweird.f32 %v2371
    %vm2380 = vweird.f32 %v2374
    %vm2381 = vmor %vm2379, %vm2380
    %v2382 = vsel %vm2381, %v2374, %v2378
    %v2383 = vand.u32 2147483647, %v2371
    %vm2384 = vcmp.eq.f32.partialorder %v2383, 8.507059e+37
    %v2385 = vand.u32 %v2371, 2147483648
    %v2386 = vor.u32 1.1754944e-38, %v2385
    %v2387 = vsel %vm2384, %v2386, %v2382
    %v2388 = vmul.f32 1.0, %v2387
    %v2389 = vrcp.pop %v2372
    %v2390 = vmul.f32 %v2372, %v2389
    %v2391 = vsub.f32 1.0, %v2390
    %v2392 = vmul.f32 %v2389, %v2391
    %v2393 = vadd.f32 %v2389, %v2392
    %vm2394 = vweird.f32 %v2372
    %vm2395 = vweird.f32 %v2389
    %vm2396 = vmor %vm2394, %vm2395
    %v2397 = vsel %vm2396, %v2389, %v2393
    %v2398 = vand.u32 2147483647, %v2372
    %vm2399 = vcmp.eq.f32.partialorder %v2398, 8.507059e+37
    %v2400 = vand.u32 %v2372, 2147483648
    %v2401 = vor.u32 1.1754944e-38, %v2400
    %v2402 = vsel %vm2399, %v2401, %v2397
    %v2403 = vmul.f32 1.0, %v2402
    %v2404 = vrcp.pop %v2373
    %v2405 = vmul.f32 %v2373, %v2404
    %v2406 = vsub.f32 1.0, %v2405
    %v2407 = vmul.f32 %v2404, %v2406
    %v2408 = vadd.f32 %v2404, %v2407
    %vm2409 = vweird.f32 %v2373
    %vm2410 = vweird.f32 %v2404
    %vm2411 = vmor %vm2409, %vm2410
    %v2412 = vsel %vm2411, %v2404, %v2408
    %v2413 = vand.u32 2147483647, %v2373
    %vm2414 = vcmp.eq.f32.partialorder %v2413, 8.507059e+37
    %v2415 = vand.u32 %v2373, 2147483648
    %v2416 = vor.u32 1.1754944e-38, %v2415
    %v2417 = vsel %vm2414, %v2416, %v2412
    %v2418 = vmul.f32 1.0, %v2417
    %v2419 = vtanh.pop %v2360
    %v2420 = vmul.f32 %v2403, %v2275
    %v2421 = vmul.f32 %v2388, %v2419
    %v2422 = vadd.f32 %v2420, %v2421
    %v2423 = vtanh.pop %v2422
    %v2424 = vmul.f32 %v2418, %v2423
    %v2425 = vld [vmem:[#allocation7 + $0x80] sm:$0xff]
    %v2426 = vld [vmem:[#allocation7 + $0x88] sm:$0xff]
    %v2427 = vld [vmem:[#allocation7 + $0x90] sm:$0xff]
    %v2428 = vld [vmem:[#allocation7 + $0x98] sm:$0xff]
    %2429 = vmatpush.msra.mxu0 %v1833
    %2430 = vmatpush.msra.mxu0 %v1829
    %2431 = vmatpush.msra.mxu0 %v1825
    %2432 = vmatpush.msra.mxu0 %v1821
    %2433 = vmatpush.msra.mxu0 %v1817
    %2434 = vmatpush.msra.mxu0 %v1813
    %2435 = vmatpush.msra.mxu0 %v1809
    %2436 = vmatpush.msra.mxu0 %v1805
    %2437 = vmatpush.msra.mxu0 %v1801
    %2438 = vmatpush.msra.mxu0 %v1797
    %2439 = vmatpush.msra.mxu0 %v1793
    %2440 = vmatpush.msra.mxu0 %v1789
    %2441 = vmatpush.msra.mxu0 %v1785
    %2442 = vmatpush.msra.mxu0 %v1781
    %2443 = vmatpush.msra.mxu0 %v1777
    %2444 = vmatpush.msra.mxu0 %v1773
    %2445 = vmatmul.f32.gmra.mxu0 %v2424
    %v2446 = vpop.f32.mrf.mxu0
    %v2447 = vadd.f32 %v2425, %v2446
    %2448 = vdwg.mxu0
    %2449 = vmatpush.msra.mxu0 %v1834
    %2450 = vmatpush.msra.mxu0 %v1830
    %2451 = vmatpush.msra.mxu0 %v1826
    %2452 = vmatpush.msra.mxu0 %v1822
    %2453 = vmatpush.msra.mxu0 %v1818
    %2454 = vmatpush.msra.mxu0 %v1814
    %2455 = vmatpush.msra.mxu0 %v1810
    %2456 = vmatpush.msra.mxu0 %v1806
    %2457 = vmatpush.msra.mxu0 %v1802
    %2458 = vmatpush.msra.mxu0 %v1798
    %2459 = vmatpush.msra.mxu0 %v1794
    %2460 = vmatpush.msra.mxu0 %v1790
    %2461 = vmatpush.msra.mxu0 %v1786
    %2462 = vmatpush.msra.mxu0 %v1782
    %2463 = vmatpush.msra.mxu0 %v1778
    %2464 = vmatpush.msra.mxu0 %v1774
    %2465 = vmatmul.f32.gmra.mxu0 %v2424
    %v2466 = vpop.f32.mrf.mxu0
    %v2467 = vadd.f32 %v2426, %v2466
    %2468 = vdwg.mxu0
    %2469 = vmatpush.msra.mxu0 %v1835
    %2470 = vmatpush.msra.mxu0 %v1831
    %2471 = vmatpush.msra.mxu0 %v1827
    %2472 = vmatpush.msra.mxu0 %v1823
    %2473 = vmatpush.msra.mxu0 %v1819
    %2474 = vmatpush.msra.mxu0 %v1815
    %2475 = vmatpush.msra.mxu0 %v1811
    %2476 = vmatpush.msra.mxu0 %v1807
    %2477 = vmatpush.msra.mxu0 %v1803
    %2478 = vmatpush.msra.mxu0 %v1799
    %2479 = vmatpush.msra.mxu0 %v1795
    %2480 = vmatpush.msra.mxu0 %v1791
    %2481 = vmatpush.msra.mxu0 %v1787
    %2482 = vmatpush.msra.mxu0 %v1783
    %2483 = vmatpush.msra.mxu0 %v1779
    %2484 = vmatpush.msra.mxu0 %v1775
    %2485 = vmatmul.f32.gmra.mxu0 %v2424
    %v2486 = vpop.f32.mrf.mxu0
    %v2487 = vadd.f32 %v2427, %v2486
    %2488 = vdwg.mxu0
    %2489 = vmatpush.msra.mxu0 %v1836
    %2490 = vmatpush.msra.mxu0 %v1832
    %2491 = vmatpush.msra.mxu0 %v1828
    %2492 = vmatpush.msra.mxu0 %v1824
    %2493 = vmatpush.msra.mxu0 %v1820
    %2494 = vmatpush.msra.mxu0 %v1816
    %2495 = vmatpush.msra.mxu0 %v1812
    %2496 = vmatpush.msra.mxu0 %v1808
    %2497 = vmatpush.msra.mxu0 %v1804
    %2498 = vmatpush.msra.mxu0 %v1800
    %2499 = vmatpush.msra.mxu0 %v1796
    %2500 = vmatpush.msra.mxu0 %v1792
    %2501 = vmatpush.msra.mxu0 %v1788
    %2502 = vmatpush.msra.mxu0 %v1784
    %2503 = vmatpush.msra.mxu0 %v1780
    %2504 = vmatpush.msra.mxu0 %v1776
    %2505 = vmatmul.f32.gmra.mxu0 %v2424
    %v2506 = vpop.f32.mrf.mxu0
    %v2507 = vadd.f32 %v2428, %v2506
    %2508 = vdwg.mxu0
    %v2509 = vxor.u32 %v2447, 2147483648
    %v2510 = vxor.u32 %v2467, 2147483648
    %v2511 = vxor.u32 %v2487, 2147483648
    %v2512 = vmul.f32 %v2509, 1.442695
    %v2513 = vpow.pop %v2512
    %v2514 = vmul.f32 %v2510, 1.442695
    %v2515 = vpow.pop %v2514
    %v2516 = vmul.f32 %v2511, 1.442695
    %v2517 = vpow.pop %v2516
    %v2518 = vadd.f32 %v2513, 1.0
    %v2519 = vadd.f32 %v2515, 1.0
    %v2520 = vadd.f32 %v2517, 1.0
    %v2521 = vrcp.pop %v2518
    %v2522 = vmul.f32 %v2518, %v2521
    %v2523 = vsub.f32 1.0, %v2522
    %v2524 = vmul.f32 %v2521, %v2523
    %v2525 = vadd.f32 %v2521, %v2524
    %vm2526 = vweird.f32 %v2518
    %vm2527 = vweird.f32 %v2521
    %vm2528 = vmor %vm2526, %vm2527
    %v2529 = vsel %vm2528, %v2521, %v2525
    %v2530 = vand.u32 2147483647, %v2518
    %vm2531 = vcmp.eq.f32.partialorder %v2530, 8.507059e+37
    %v2532 = vand.u32 %v2518, 2147483648
    %v2533 = vor.u32 1.1754944e-38, %v2532
    %v2534 = vsel %vm2531, %v2533, %v2529
    %v2535 = vmul.f32 1.0, %v2534
    %v2536 = vrcp.pop %v2519
    %v2537 = vmul.f32 %v2519, %v2536
    %v2538 = vsub.f32 1.0, %v2537
    %v2539 = vmul.f32 %v2536, %v2538
    %v2540 = vadd.f32 %v2536, %v2539
    %vm2541 = vweird.f32 %v2519
    %vm2542 = vweird.f32 %v2536
    %vm2543 = vmor %vm2541, %vm2542
    %v2544 = vsel %vm2543, %v2536, %v2540
    %v2545 = vand.u32 2147483647, %v2519
    %vm2546 = vcmp.eq.f32.partialorder %v2545, 8.507059e+37
    %v2547 = vand.u32 %v2519, 2147483648
    %v2548 = vor.u32 1.1754944e-38, %v2547
    %v2549 = vsel %vm2546, %v2548, %v2544
    %v2550 = vmul.f32 1.0, %v2549
    %v2551 = vrcp.pop %v2520
    %v2552 = vmul.f32 %v2520, %v2551
    %v2553 = vsub.f32 1.0, %v2552
    %v2554 = vmul.f32 %v2551, %v2553
    %v2555 = vadd.f32 %v2551, %v2554
    %vm2556 = vweird.f32 %v2520
    %vm2557 = vweird.f32 %v2551
    %vm2558 = vmor %vm2556, %vm2557
    %v2559 = vsel %vm2558, %v2551, %v2555
    %v2560 = vand.u32 2147483647, %v2520
    %vm2561 = vcmp.eq.f32.partialorder %v2560, 8.507059e+37
    %v2562 = vand.u32 %v2520, 2147483648
    %v2563 = vor.u32 1.1754944e-38, %v2562
    %v2564 = vsel %vm2561, %v2563, %v2559
    %v2565 = vmul.f32 1.0, %v2564
    %v2566 = vtanh.pop %v2507
    %v2567 = vmul.f32 %v2550, %v2422
    %v2568 = vmul.f32 %v2535, %v2566
    %v2569 = vadd.f32 %v2567, %v2568
    %v2570 = vtanh.pop %v2569
    %v2571 = vmul.f32 %v2565, %v2570
    %v2572 = vld [vmem:[#allocation7 + $0xa0] sm:$0xff]
    %v2573 = vld [vmem:[#allocation7 + $0xa8] sm:$0xff]
    %v2574 = vld [vmem:[#allocation7 + $0xb0] sm:$0xff]
    %v2575 = vld [vmem:[#allocation7 + $0xb8] sm:$0xff]
    %2576 = vmatpush.msra.mxu0 %v1833
    %2577 = vmatpush.msra.mxu0 %v1829
    %2578 = vmatpush.msra.mxu0 %v1825
    %2579 = vmatpush.msra.mxu0 %v1821
    %2580 = vmatpush.msra.mxu0 %v1817
    %2581 = vmatpush.msra.mxu0 %v1813
    %2582 = vmatpush.msra.mxu0 %v1809
    %2583 = vmatpush.msra.mxu0 %v1805
    %2584 = vmatpush.msra.mxu0 %v1801
    %2585 = vmatpush.msra.mxu0 %v1797
    %2586 = vmatpush.msra.mxu0 %v1793
    %2587 = vmatpush.msra.mxu0 %v1789
    %2588 = vmatpush.msra.mxu0 %v1785
    %2589 = vmatpush.msra.mxu0 %v1781
    %2590 = vmatpush.msra.mxu0 %v1777
    %2591 = vmatpush.msra.mxu0 %v1773
    %2592 = vmatmul.f32.gmra.mxu0 %v2571
    %v2593 = vpop.f32.mrf.mxu0
    %v2594 = vadd.f32 %v2572, %v2593
    %2595 = vdwg.mxu0
    %2596 = vmatpush.msra.mxu0 %v1834
    %2597 = vmatpush.msra.mxu0 %v1830
    %2598 = vmatpush.msra.mxu0 %v1826
    %2599 = vmatpush.msra.mxu0 %v1822
    %2600 = vmatpush.msra.mxu0 %v1818
    %2601 = vmatpush.msra.mxu0 %v1814
    %2602 = vmatpush.msra.mxu0 %v1810
    %2603 = vmatpush.msra.mxu0 %v1806
    %2604 = vmatpush.msra.mxu0 %v1802
    %2605 = vmatpush.msra.mxu0 %v1798
    %2606 = vmatpush.msra.mxu0 %v1794
    %2607 = vmatpush.msra.mxu0 %v1790
    %2608 = vmatpush.msra.mxu0 %v1786
    %2609 = vmatpush.msra.mxu0 %v1782
    %2610 = vmatpush.msra.mxu0 %v1778
    %2611 = vmatpush.msra.mxu0 %v1774
    %2612 = vmatmul.f32.gmra.mxu0 %v2571
    %v2613 = vpop.f32.mrf.mxu0
    %v2614 = vadd.f32 %v2573, %v2613
    %2615 = vdwg.mxu0
    %2616 = vmatpush.msra.mxu0 %v1835
    %2617 = vmatpush.msra.mxu0 %v1831
    %2618 = vmatpush.msra.mxu0 %v1827
    %2619 = vmatpush.msra.mxu0 %v1823
    %2620 = vmatpush.msra.mxu0 %v1819
    %2621 = vmatpush.msra.mxu0 %v1815
    %2622 = vmatpush.msra.mxu0 %v1811
    %2623 = vmatpush.msra.mxu0 %v1807
    %2624 = vmatpush.msra.mxu0 %v1803
    %2625 = vmatpush.msra.mxu0 %v1799
    %2626 = vmatpush.msra.mxu0 %v1795
    %2627 = vmatpush.msra.mxu0 %v1791
    %2628 = vmatpush.msra.mxu0 %v1787
    %2629 = vmatpush.msra.mxu0 %v1783
    %2630 = vmatpush.msra.mxu0 %v1779
    %2631 = vmatpush.msra.mxu0 %v1775
    %2632 = vmatmul.f32.gmra.mxu0 %v2571
    %v2633 = vpop.f32.mrf.mxu0
    %v2634 = vadd.f32 %v2574, %v2633
    %2635 = vdwg.mxu0
    %2636 = vmatpush.msra.mxu0 %v1836
    %2637 = vmatpush.msra.mxu0 %v1832
    %2638 = vmatpush.msra.mxu0 %v1828
    %2639 = vmatpush.msra.mxu0 %v1824
    %2640 = vmatpush.msra.mxu0 %v1820
    %2641 = vmatpush.msra.mxu0 %v1816
    %2642 = vmatpush.msra.mxu0 %v1812
    %2643 = vmatpush.msra.mxu0 %v1808
    %2644 = vmatpush.msra.mxu0 %v1804
    %2645 = vmatpush.msra.mxu0 %v1800
    %2646 = vmatpush.msra.mxu0 %v1796
    %2647 = vmatpush.msra.mxu0 %v1792
    %2648 = vmatpush.msra.mxu0 %v1788
    %2649 = vmatpush.msra.mxu0 %v1784
    %2650 = vmatpush.msra.mxu0 %v1780
    %2651 = vmatpush.msra.mxu0 %v1776
    %2652 = vmatmul.f32.gmra.mxu0 %v2571
    %v2653 = vpop.f32.mrf.mxu0
    %v2654 = vadd.f32 %v2575, %v2653
    %2655 = vdwg.mxu0
    %v2656 = vxor.u32 %v2594, 2147483648
    %v2657 = vxor.u32 %v2614, 2147483648
    %v2658 = vxor.u32 %v2634, 2147483648
    %v2659 = vmul.f32 %v2656, 1.442695
    %v2660 = vpow.pop %v2659
    %v2661 = vmul.f32 %v2657, 1.442695
    %v2662 = vpow.pop %v2661
    %v2663 = vmul.f32 %v2658, 1.442695
    %v2664 = vpow.pop %v2663
    %v2665 = vadd.f32 %v2660, 1.0
    %v2666 = vadd.f32 %v2662, 1.0
    %v2667 = vadd.f32 %v2664, 1.0
    %v2668 = vrcp.pop %v2665
    %v2669 = vmul.f32 %v2665, %v2668
    %v2670 = vsub.f32 1.0, %v2669
    %v2671 = vmul.f32 %v2668, %v2670
    %v2672 = vadd.f32 %v2668, %v2671
    %vm2673 = vweird.f32 %v2665
    %vm2674 = vweird.f32 %v2668
    %vm2675 = vmor %vm2673, %vm2674
    %v2676 = vsel %vm2675, %v2668, %v2672
    %v2677 = vand.u32 2147483647, %v2665
    %vm2678 = vcmp.eq.f32.partialorder %v2677, 8.507059e+37
    %v2679 = vand.u32 %v2665, 2147483648
    %v2680 = vor.u32 1.1754944e-38, %v2679
    %v2681 = vsel %vm2678, %v2680, %v2676
    %v2682 = vmul.f32 1.0, %v2681
    %v2683 = vrcp.pop %v2666
    %v2684 = vmul.f32 %v2666, %v2683
    %v2685 = vsub.f32 1.0, %v2684
    %v2686 = vmul.f32 %v2683, %v2685
    %v2687 = vadd.f32 %v2683, %v2686
    %vm2688 = vweird.f32 %v2666
    %vm2689 = vweird.f32 %v2683
    %vm2690 = vmor %vm2688, %vm2689
    %v2691 = vsel %vm2690, %v2683, %v2687
    %v2692 = vand.u32 2147483647, %v2666
    %vm2693 = vcmp.eq.f32.partialorder %v2692, 8.507059e+37
    %v2694 = vand.u32 %v2666, 2147483648
    %v2695 = vor.u32 1.1754944e-38, %v2694
    %v2696 = vsel %vm2693, %v2695, %v2691
    %v2697 = vmul.f32 1.0, %v2696
    %v2698 = vrcp.pop %v2667
    %v2699 = vmul.f32 %v2667, %v2698
    %v2700 = vsub.f32 1.0, %v2699
    %v2701 = vmul.f32 %v2698, %v2700
    %v2702 = vadd.f32 %v2698, %v2701
    %vm2703 = vweird.f32 %v2667
    %vm2704 = vweird.f32 %v2698
    %vm2705 = vmor %vm2703, %vm2704
    %v2706 = vsel %vm2705, %v2698, %v2702
    %v2707 = vand.u32 2147483647, %v2667
    %vm2708 = vcmp.eq.f32.partialorder %v2707, 8.507059e+37
    %v2709 = vand.u32 %v2667, 2147483648
    %v2710 = vor.u32 1.1754944e-38, %v2709
    %v2711 = vsel %vm2708, %v2710, %v2706
    %v2712 = vmul.f32 1.0, %v2711
    %v2713 = vtanh.pop %v2654
    %v2714 = vmul.f32 %v2697, %v2569
    %v2715 = vmul.f32 %v2682, %v2713
    %v2716 = vadd.f32 %v2714, %v2715
    %v2717 = vtanh.pop %v2716
    %v2718 = vmul.f32 %v2712, %v2717
    %v2719 = vld [vmem:[#allocation7 + $0xc0] sm:$0xff]
    %v2720 = vld [vmem:[#allocation7 + $0xc8] sm:$0xff]
    %v2721 = vld [vmem:[#allocation7 + $0xd0] sm:$0xff]
    %v2722 = vld [vmem:[#allocation7 + $0xd8] sm:$0xff]
    %2723 = vmatpush.msra.mxu0 %v1833
    %2724 = vmatpush.msra.mxu0 %v1829
    %2725 = vmatpush.msra.mxu0 %v1825
    %2726 = vmatpush.msra.mxu0 %v1821
    %2727 = vmatpush.msra.mxu0 %v1817
    %2728 = vmatpush.msra.mxu0 %v1813
    %2729 = vmatpush.msra.mxu0 %v1809
    %2730 = vmatpush.msra.mxu0 %v1805
    %2731 = vmatpush.msra.mxu0 %v1801
    %2732 = vmatpush.msra.mxu0 %v1797
    %2733 = vmatpush.msra.mxu0 %v1793
    %2734 = vmatpush.msra.mxu0 %v1789
    %2735 = vmatpush.msra.mxu0 %v1785
    %2736 = vmatpush.msra.mxu0 %v1781
    %2737 = vmatpush.msra.mxu0 %v1777
    %2738 = vmatpush.msra.mxu0 %v1773
    %2739 = vmatmul.f32.gmra.mxu0 %v2718
    %v2740 = vpop.f32.mrf.mxu0
    %v2741 = vadd.f32 %v2719, %v2740
    %2742 = vdwg.mxu0
    %2743 = vmatpush.msra.mxu0 %v1834
    %2744 = vmatpush.msra.mxu0 %v1830
    %2745 = vmatpush.msra.mxu0 %v1826
    %2746 = vmatpush.msra.mxu0 %v1822
    %2747 = vmatpush.msra.mxu0 %v1818
    %2748 = vmatpush.msra.mxu0 %v1814
    %2749 = vmatpush.msra.mxu0 %v1810
    %2750 = vmatpush.msra.mxu0 %v1806
    %2751 = vmatpush.msra.mxu0 %v1802
    %2752 = vmatpush.msra.mxu0 %v1798
    %2753 = vmatpush.msra.mxu0 %v1794
    %2754 = vmatpush.msra.mxu0 %v1790
    %2755 = vmatpush.msra.mxu0 %v1786
    %2756 = vmatpush.msra.mxu0 %v1782
    %2757 = vmatpush.msra.mxu0 %v1778
    %2758 = vmatpush.msra.mxu0 %v1774
    %2759 = vmatmul.f32.gmra.mxu0 %v2718
    %v2760 = vpop.f32.mrf.mxu0
    %v2761 = vadd.f32 %v2720, %v2760
    %2762 = vdwg.mxu0
    %2763 = vmatpush.msra.mxu0 %v1835
    %2764 = vmatpush.msra.mxu0 %v1831
    %2765 = vmatpush.msra.mxu0 %v1827
    %2766 = vmatpush.msra.mxu0 %v1823
    %2767 = vmatpush.msra.mxu0 %v1819
    %2768 = vmatpush.msra.mxu0 %v1815
    %2769 = vmatpush.msra.mxu0 %v1811
    %2770 = vmatpush.msra.mxu0 %v1807
    %2771 = vmatpush.msra.mxu0 %v1803
    %2772 = vmatpush.msra.mxu0 %v1799
    %2773 = vmatpush.msra.mxu0 %v1795
    %2774 = vmatpush.msra.mxu0 %v1791
    %2775 = vmatpush.msra.mxu0 %v1787
    %2776 = vmatpush.msra.mxu0 %v1783
    %2777 = vmatpush.msra.mxu0 %v1779
    %2778 = vmatpush.msra.mxu0 %v1775
    %2779 = vmatmul.f32.gmra.mxu0 %v2718
    %v2780 = vpop.f32.mrf.mxu0
    %v2781 = vadd.f32 %v2721, %v2780
    %2782 = vdwg.mxu0
    %2783 = vmatpush.msra.mxu0 %v1836
    %2784 = vmatpush.msra.mxu0 %v1832
    %2785 = vmatpush.msra.mxu0 %v1828
    %2786 = vmatpush.msra.mxu0 %v1824
    %2787 = vmatpush.msra.mxu0 %v1820
    %2788 = vmatpush.msra.mxu0 %v1816
    %2789 = vmatpush.msra.mxu0 %v1812
    %2790 = vmatpush.msra.mxu0 %v1808
    %2791 = vmatpush.msra.mxu0 %v1804
    %2792 = vmatpush.msra.mxu0 %v1800
    %2793 = vmatpush.msra.mxu0 %v1796
    %2794 = vmatpush.msra.mxu0 %v1792
    %2795 = vmatpush.msra.mxu0 %v1788
    %2796 = vmatpush.msra.mxu0 %v1784
    %2797 = vmatpush.msra.mxu0 %v1780
    %2798 = vmatpush.msra.mxu0 %v1776
    %2799 = vmatmul.f32.gmra.mxu0 %v2718
    %v2800 = vpop.f32.mrf.mxu0
    %v2801 = vadd.f32 %v2722, %v2800
    %2802 = vdwg.mxu0
    %v2803 = vxor.u32 %v2741, 2147483648
    %v2804 = vxor.u32 %v2761, 2147483648
    %v2805 = vxor.u32 %v2781, 2147483648
    %v2806 = vmul.f32 %v2803, 1.442695
    %v2807 = vpow.pop %v2806
    %v2808 = vmul.f32 %v2804, 1.442695
    %v2809 = vpow.pop %v2808
    %v2810 = vmul.f32 %v2805, 1.442695
    %v2811 = vpow.pop %v2810
    %v2812 = vadd.f32 %v2807, 1.0
    %v2813 = vadd.f32 %v2809, 1.0
    %v2814 = vadd.f32 %v2811, 1.0
    %v2815 = vrcp.pop %v2812
    %v2816 = vmul.f32 %v2812, %v2815
    %v2817 = vsub.f32 1.0, %v2816
    %v2818 = vmul.f32 %v2815, %v2817
    %v2819 = vadd.f32 %v2815, %v2818
    %vm2820 = vweird.f32 %v2812
    %vm2821 = vweird.f32 %v2815
    %vm2822 = vmor %vm2820, %vm2821
    %v2823 = vsel %vm2822, %v2815, %v2819
    %v2824 = vand.u32 2147483647, %v2812
    %vm2825 = vcmp.eq.f32.partialorder %v2824, 8.507059e+37
    %v2826 = vand.u32 %v2812, 2147483648
    %v2827 = vor.u32 1.1754944e-38, %v2826
    %v2828 = vsel %vm2825, %v2827, %v2823
    %v2829 = vmul.f32 1.0, %v2828
    %v2830 = vrcp.pop %v2813
    %v2831 = vmul.f32 %v2813, %v2830
    %v2832 = vsub.f32 1.0, %v2831
    %v2833 = vmul.f32 %v2830, %v2832
    %v2834 = vadd.f32 %v2830, %v2833
    %vm2835 = vweird.f32 %v2813
    %vm2836 = vweird.f32 %v2830
    %vm2837 = vmor %vm2835, %vm2836
    %v2838 = vsel %vm2837, %v2830, %v2834
    %v2839 = vand.u32 2147483647, %v2813
    %vm2840 = vcmp.eq.f32.partialorder %v2839, 8.507059e+37
    %v2841 = vand.u32 %v2813, 2147483648
    %v2842 = vor.u32 1.1754944e-38, %v2841
    %v2843 = vsel %vm2840, %v2842, %v2838
    %v2844 = vmul.f32 1.0, %v2843
    %v2845 = vrcp.pop %v2814
    %v2846 = vmul.f32 %v2814, %v2845
    %v2847 = vsub.f32 1.0, %v2846
    %v2848 = vmul.f32 %v2845, %v2847
    %v2849 = vadd.f32 %v2845, %v2848
    %vm2850 = vweird.f32 %v2814
    %vm2851 = vweird.f32 %v2845
    %vm2852 = vmor %vm2850, %vm2851
    %v2853 = vsel %vm2852, %v2845, %v2849
    %v2854 = vand.u32 2147483647, %v2814
    %vm2855 = vcmp.eq.f32.partialorder %v2854, 8.507059e+37
    %v2856 = vand.u32 %v2814, 2147483648
    %v2857 = vor.u32 1.1754944e-38, %v2856
    %v2858 = vsel %vm2855, %v2857, %v2853
    %v2859 = vmul.f32 1.0, %v2858
    %v2860 = vtanh.pop %v2801
    %v2861 = vmul.f32 %v2844, %v2716
    %v2862 = vmul.f32 %v2829, %v2860
    %v2863 = vadd.f32 %v2861, %v2862
    %v2864 = vtanh.pop %v2863
    %v2865 = vmul.f32 %v2859, %v2864
    %v2866 = vld [vmem:[#allocation7 + $0xe0] sm:$0xff]
    %v2867 = vld [vmem:[#allocation7 + $0xe8] sm:$0xff]
    %v2868 = vld [vmem:[#allocation7 + $0xf0] sm:$0xff]
    %v2869 = vld [vmem:[#allocation7 + $0xf8] sm:$0xff]
    %2870 = vmatpush.msra.mxu0 %v1833
    %2871 = vmatpush.msra.mxu0 %v1829
    %2872 = vmatpush.msra.mxu0 %v1825
    %2873 = vmatpush.msra.mxu0 %v1821
    %2874 = vmatpush.msra.mxu0 %v1817
    %2875 = vmatpush.msra.mxu0 %v1813
    %2876 = vmatpush.msra.mxu0 %v1809
    %2877 = vmatpush.msra.mxu0 %v1805
    %2878 = vmatpush.msra.mxu0 %v1801
    %2879 = vmatpush.msra.mxu0 %v1797
    %2880 = vmatpush.msra.mxu0 %v1793
    %2881 = vmatpush.msra.mxu0 %v1789
    %2882 = vmatpush.msra.mxu0 %v1785
    %2883 = vmatpush.msra.mxu0 %v1781
    %2884 = vmatpush.msra.mxu0 %v1777
    %2885 = vmatpush.msra.mxu0 %v1773
    %2886 = vmatmul.f32.gmra.mxu0 %v2865
    %v2887 = vpop.f32.mrf.mxu0
    %v2888 = vadd.f32 %v2866, %v2887
    %2889 = vdwg.mxu0
    %2890 = vmatpush.msra.mxu0 %v1834
    %2891 = vmatpush.msra.mxu0 %v1830
    %2892 = vmatpush.msra.mxu0 %v1826
    %2893 = vmatpush.msra.mxu0 %v1822
    %2894 = vmatpush.msra.mxu0 %v1818
    %2895 = vmatpush.msra.mxu0 %v1814
    %2896 = vmatpush.msra.mxu0 %v1810
    %2897 = vmatpush.msra.mxu0 %v1806
    %2898 = vmatpush.msra.mxu0 %v1802
    %2899 = vmatpush.msra.mxu0 %v1798
    %2900 = vmatpush.msra.mxu0 %v1794
    %2901 = vmatpush.msra.mxu0 %v1790
    %2902 = vmatpush.msra.mxu0 %v1786
    %2903 = vmatpush.msra.mxu0 %v1782
    %2904 = vmatpush.msra.mxu0 %v1778
    %2905 = vmatpush.msra.mxu0 %v1774
    %2906 = vmatmul.f32.gmra.mxu0 %v2865
    %v2907 = vpop.f32.mrf.mxu0
    %v2908 = vadd.f32 %v2867, %v2907
    %2909 = vdwg.mxu0
    %2910 = vmatpush.msra.mxu0 %v1835
    %2911 = vmatpush.msra.mxu0 %v1831
    %2912 = vmatpush.msra.mxu0 %v1827
    %2913 = vmatpush.msra.mxu0 %v1823
    %2914 = vmatpush.msra.mxu0 %v1819
    %2915 = vmatpush.msra.mxu0 %v1815
    %2916 = vmatpush.msra.mxu0 %v1811
    %2917 = vmatpush.msra.mxu0 %v1807
    %2918 = vmatpush.msra.mxu0 %v1803
    %2919 = vmatpush.msra.mxu0 %v1799
    %2920 = vmatpush.msra.mxu0 %v1795
    %2921 = vmatpush.msra.mxu0 %v1791
    %2922 = vmatpush.msra.mxu0 %v1787
    %2923 = vmatpush.msra.mxu0 %v1783
    %2924 = vmatpush.msra.mxu0 %v1779
    %2925 = vmatpush.msra.mxu0 %v1775
    %2926 = vmatmul.f32.gmra.mxu0 %v2865
    %v2927 = vpop.f32.mrf.mxu0
    %v2928 = vadd.f32 %v2868, %v2927
    %2929 = vdwg.mxu0
    %2930 = vmatpush.msra.mxu0 %v1836
    %2931 = vmatpush.msra.mxu0 %v1832
    %2932 = vmatpush.msra.mxu0 %v1828
    %2933 = vmatpush.msra.mxu0 %v1824
    %2934 = vmatpush.msra.mxu0 %v1820
    %2935 = vmatpush.msra.mxu0 %v1816
    %2936 = vmatpush.msra.mxu0 %v1812
    %2937 = vmatpush.msra.mxu0 %v1808
    %2938 = vmatpush.msra.mxu0 %v1804
    %2939 = vmatpush.msra.mxu0 %v1800
    %2940 = vmatpush.msra.mxu0 %v1796
    %2941 = vmatpush.msra.mxu0 %v1792
    %2942 = vmatpush.msra.mxu0 %v1788
    %2943 = vmatpush.msra.mxu0 %v1784
    %2944 = vmatpush.msra.mxu0 %v1780
    %2945 = vmatpush.msra.mxu0 %v1776
    %2946 = vmatmul.f32.gmra.mxu0 %v2865
    %v2947 = vpop.f32.mrf.mxu0
    %v2948 = vadd.f32 %v2869, %v2947
    %2949 = vdwg.mxu0
    %v2950 = vxor.u32 %v2888, 2147483648
    %v2951 = vxor.u32 %v2908, 2147483648
    %v2952 = vxor.u32 %v2928, 2147483648
    %v2953 = vmul.f32 %v2950, 1.442695
    %v2954 = vpow.pop %v2953
    %v2955 = vmul.f32 %v2951, 1.442695
    %v2956 = vpow.pop %v2955
    %v2957 = vmul.f32 %v2952, 1.442695
    %v2958 = vpow.pop %v2957
    %v2959 = vadd.f32 %v2954, 1.0
    %v2960 = vadd.f32 %v2956, 1.0
    %v2961 = vadd.f32 %v2958, 1.0
    %v2962 = vrcp.pop %v2959
    %v2963 = vmul.f32 %v2959, %v2962
    %v2964 = vsub.f32 1.0, %v2963
    %v2965 = vmul.f32 %v2962, %v2964
    %v2966 = vadd.f32 %v2962, %v2965
    %vm2967 = vweird.f32 %v2959
    %vm2968 = vweird.f32 %v2962
    %vm2969 = vmor %vm2967, %vm2968
    %v2970 = vsel %vm2969, %v2962, %v2966
    %v2971 = vand.u32 2147483647, %v2959
    %vm2972 = vcmp.eq.f32.partialorder %v2971, 8.507059e+37
    %v2973 = vand.u32 %v2959, 2147483648
    %v2974 = vor.u32 1.1754944e-38, %v2973
    %v2975 = vsel %vm2972, %v2974, %v2970
    %v2976 = vmul.f32 1.0, %v2975
    %v2977 = vrcp.pop %v2960
    %v2978 = vmul.f32 %v2960, %v2977
    %v2979 = vsub.f32 1.0, %v2978
    %v2980 = vmul.f32 %v2977, %v2979
    %v2981 = vadd.f32 %v2977, %v2980
    %vm2982 = vweird.f32 %v2960
    %vm2983 = vweird.f32 %v2977
    %vm2984 = vmor %vm2982, %vm2983
    %v2985 = vsel %vm2984, %v2977, %v2981
    %v2986 = vand.u32 2147483647, %v2960
    %vm2987 = vcmp.eq.f32.partialorder %v2986, 8.507059e+37
    %v2988 = vand.u32 %v2960, 2147483648
    %v2989 = vor.u32 1.1754944e-38, %v2988
    %v2990 = vsel %vm2987, %v2989, %v2985
    %v2991 = vmul.f32 1.0, %v2990
    %v2992 = vrcp.pop %v2961
    %v2993 = vmul.f32 %v2961, %v2992
    %v2994 = vsub.f32 1.0, %v2993
    %v2995 = vmul.f32 %v2992, %v2994
    %v2996 = vadd.f32 %v2992, %v2995
    %vm2997 = vweird.f32 %v2961
    %vm2998 = vweird.f32 %v2992
    %vm2999 = vmor %vm2997, %vm2998
    %v3000 = vsel %vm2999, %v2992, %v2996
    %v3001 = vand.u32 2147483647, %v2961
    %vm3002 = vcmp.eq.f32.partialorder %v3001, 8.507059e+37
    %v3003 = vand.u32 %v2961, 2147483648
    %v3004 = vor.u32 1.1754944e-38, %v3003
    %v3005 = vsel %vm3002, %v3004, %v3000
    %v3006 = vmul.f32 1.0, %v3005
    %v3007 = vtanh.pop %v2948
    %v3008 = vmul.f32 %v2991, %v2863
    %v3009 = vmul.f32 %v2976, %v3007
    %v3010 = vadd.f32 %v3008, %v3009
    %v3011 = vtanh.pop %v3010
    %v3012 = vmul.f32 %v3006, %v3011
    %v3013 = vld [vmem:[%s1] sm:$0xff]
    %v3014 = vld [vmem:[%s1 + $0x8] sm:$0xff]
    %v3015 = vld [vmem:[%s1 + $0x10] sm:$0xff]
    %v3016 = vld [vmem:[%s1 + $0x18] sm:$0xff]
    %v3017 = vld [vmem:[%s1 + $0x20] sm:$0xff]
    %s3018 = smul.u32 8, 75
    %s3019 = smul.u32 %s3018, 4
    %s3020 = sshll.u32 %s3019, 4
    %3021 = dma.done [#allocation8], %s3020
    %v3022 = vld [vmem:[#allocation10] sm:$0xff]
    %v3023 = vld [vmem:[#allocation10 + $0x8] sm:$0xff]
    %v3024 = vld [vmem:[#allocation10 + $0x10] sm:$0xff]
    %v3025 = vld [vmem:[#allocation10 + $0x18] sm:$0xff]
    %v3026 = vld [vmem:[#allocation10 + $0x20] sm:$0xff]
    %v3027 = vld [vmem:[#allocation10 + $0x28] sm:$0xff]
    %v3028 = vld [vmem:[#allocation10 + $0x30] sm:$0xff]
    %v3029 = vld [vmem:[#allocation10 + $0x38] sm:$0xff]
    %v3030 = vld [vmem:[#allocation10 + $0x40] sm:$0xff]
    %v3031 = vld [vmem:[#allocation10 + $0x48] sm:$0xff]
    %v3032 = vld [vmem:[#allocation10 + $0x50] sm:$0xff]
    %v3033 = vld [vmem:[#allocation10 + $0x58] sm:$0xff]
    %v3034 = vld [vmem:[#allocation10 + $0x60] sm:$0xff]
    %v3035 = vld [vmem:[#allocation10 + $0x68] sm:$0xff]
    %v3036 = vld [vmem:[#allocation10 + $0x70] sm:$0xff]
    %v3037 = vld [vmem:[#allocation10 + $0x78] sm:$0xff]
    %v3038 = vld [vmem:[#allocation10 + $0x80] sm:$0xff]
    %v3039 = vld [vmem:[#allocation10 + $0x88] sm:$0xff]
    %v3040 = vld [vmem:[#allocation10 + $0x90] sm:$0xff]
    %v3041 = vld [vmem:[#allocation10 + $0x98] sm:$0xff]
    %v3042 = vld [vmem:[#allocation10 + $0xa0] sm:$0xff]
    %v3043 = vld [vmem:[#allocation10 + $0xa8] sm:$0xff]
    %v3044 = vld [vmem:[#allocation10 + $0xb0] sm:$0xff]
    %v3045 = vld [vmem:[#allocation10 + $0xb8] sm:$0xff]
    %v3046 = vld [vmem:[#allocation10 + $0xc0] sm:$0xff]
    %v3047 = vld [vmem:[#allocation10 + $0xc8] sm:$0xff]
    %v3048 = vld [vmem:[#allocation10 + $0xd0] sm:$0xff]
    %v3049 = vld [vmem:[#allocation10 + $0xd8] sm:$0xff]
    %v3050 = vld [vmem:[#allocation10 + $0xe0] sm:$0xff]
    %v3051 = vld [vmem:[#allocation10 + $0xe8] sm:$0xff]
    %v3052 = vld [vmem:[#allocation10 + $0xf0] sm:$0xff]
    %v3053 = vld [vmem:[#allocation10 + $0xf8] sm:$0xff]
    %v3054 = vld [vmem:[#allocation10 + $0x100] sm:$0xff]
    %v3055 = vld [vmem:[#allocation10 + $0x108] sm:$0xff]
    %v3056 = vld [vmem:[#allocation10 + $0x110] sm:$0xff]
    %v3057 = vld [vmem:[#allocation10 + $0x118] sm:$0xff]
    %v3058 = vld [vmem:[#allocation10 + $0x120] sm:$0xff]
    %v3059 = vld [vmem:[#allocation10 + $0x128] sm:$0xff]
    %v3060 = vld [vmem:[#allocation10 + $0x130] sm:$0xff]
    %v3061 = vld [vmem:[#allocation10 + $0x138] sm:$0xff]
    %v3062 = vld [vmem:[#allocation10 + $0x140] sm:$0xff]
    %v3063 = vld [vmem:[#allocation10 + $0x148] sm:$0xff]
    %v3064 = vld [vmem:[#allocation10 + $0x150] sm:$0xff]
    %v3065 = vld [vmem:[#allocation10 + $0x158] sm:$0xff]
    %v3066 = vld [vmem:[#allocation10 + $0x160] sm:$0xff]
    %v3067 = vld [vmem:[#allocation10 + $0x168] sm:$0xff]
    %v3068 = vld [vmem:[#allocation10 + $0x170] sm:$0xff]
    %v3069 = vld [vmem:[#allocation10 + $0x178] sm:$0xff]
    %v3070 = vld [vmem:[#allocation10 + $0x180] sm:$0xff]
    %v3071 = vld [vmem:[#allocation10 + $0x188] sm:$0xff]
    %v3072 = vld [vmem:[#allocation10 + $0x190] sm:$0xff]
    %v3073 = vld [vmem:[#allocation10 + $0x198] sm:$0xff]
    %v3074 = vld [vmem:[#allocation10 + $0x1a0] sm:$0xff]
    %v3075 = vld [vmem:[#allocation10 + $0x1a8] sm:$0xff]
    %v3076 = vld [vmem:[#allocation10 + $0x1b0] sm:$0xff]
    %v3077 = vld [vmem:[#allocation10 + $0x1b8] sm:$0xff]
    %v3078 = vld [vmem:[#allocation10 + $0x1c0] sm:$0xff]
    %v3079 = vld [vmem:[#allocation10 + $0x1c8] sm:$0xff]
    %v3080 = vld [vmem:[#allocation10 + $0x1d0] sm:$0xff]
    %v3081 = vld [vmem:[#allocation10 + $0x1d8] sm:$0xff]
    %v3082 = vld [vmem:[#allocation10 + $0x1e0] sm:$0xff]
    %v3083 = vld [vmem:[#allocation10 + $0x1e8] sm:$0xff]
    %v3084 = vld [vmem:[#allocation10 + $0x1f0] sm:$0xff]
    %v3085 = vld [vmem:[#allocation10 + $0x1f8] sm:$0xff]
    %v3086 = vld [vmem:[#allocation2] sm:$0xff]
    %v3087 = vld [vmem:[#allocation2 + $0x8] sm:$0xff]
    %v3088 = vld [vmem:[#allocation2 + $0x10] sm:$0xff]
    %v3089 = vld [vmem:[#allocation2 + $0x18] sm:$0xff]
    %v3090 = vld [vmem:[#allocation2 + $0x20] sm:$0xff]
    %v3091 = vld [vmem:[#allocation2 + $0x28] sm:$0xff]
    %v3092 = vld [vmem:[#allocation2 + $0x30] sm:$0xff]
    %v3093 = vld [vmem:[#allocation2 + $0x38] sm:$0xff]
    %v3094 = vld [vmem:[#allocation2 + $0x40] sm:$0xff]
    %v3095 = vld [vmem:[#allocation2 + $0x48] sm:$0xff]
    %v3096 = vld [vmem:[#allocation2 + $0x50] sm:$0xff]
    %v3097 = vld [vmem:[#allocation2 + $0x58] sm:$0xff]
    %v3098 = vld [vmem:[#allocation2 + $0x60] sm:$0xff]
    %v3099 = vld [vmem:[#allocation2 + $0x68] sm:$0xff]
    %v3100 = vld [vmem:[#allocation2 + $0x70] sm:$0xff]
    %v3101 = vld [vmem:[#allocation2 + $0x78] sm:$0xff]
    %v3102 = vld [vmem:[#allocation2 + $0x80] sm:$0xff]
    %v3103 = vld [vmem:[#allocation2 + $0x88] sm:$0xff]
    %v3104 = vld [vmem:[#allocation2 + $0x90] sm:$0xff]
    %v3105 = vld [vmem:[#allocation2 + $0x98] sm:$0xff]
    %v3106 = vld [vmem:[#allocation2 + $0xa0] sm:$0xff]
    %v3107 = vld [vmem:[#allocation2 + $0xa8] sm:$0xff]
    %v3108 = vld [vmem:[#allocation2 + $0xb0] sm:$0xff]
    %v3109 = vld [vmem:[#allocation2 + $0xb8] sm:$0xff]
    %v3110 = vld [vmem:[#allocation2 + $0xc0] sm:$0xff]
    %v3111 = vld [vmem:[#allocation2 + $0xc8] sm:$0xff]
    %v3112 = vld [vmem:[#allocation2 + $0xd0] sm:$0xff]
    %v3113 = vld [vmem:[#allocation2 + $0xd8] sm:$0xff]
    %v3114 = vld [vmem:[#allocation2 + $0xe0] sm:$0xff]
    %v3115 = vld [vmem:[#allocation2 + $0xe8] sm:$0xff]
    %v3116 = vld [vmem:[#allocation2 + $0xf0] sm:$0xff]
    %v3117 = vld [vmem:[#allocation2 + $0xf8] sm:$0xff]
    %v3118 = vld [vmem:[#allocation2 + $0x100] sm:$0xff]
    %v3119 = vld [vmem:[#allocation2 + $0x108] sm:$0xff]
    %v3120 = vld [vmem:[#allocation2 + $0x110] sm:$0xff]
    %v3121 = vld [vmem:[#allocation2 + $0x118] sm:$0xff]
    %v3122 = vld [vmem:[#allocation2 + $0x120] sm:$0xff]
    %v3123 = vld [vmem:[#allocation2 + $0x128] sm:$0xff]
    %v3124 = vld [vmem:[#allocation2 + $0x130] sm:$0xff]
    %v3125 = vld [vmem:[#allocation2 + $0x138] sm:$0xff]
    %v3126 = vld [vmem:[#allocation2 + $0x140] sm:$0xff]
    %v3127 = vld [vmem:[#allocation2 + $0x148] sm:$0xff]
    %v3128 = vld [vmem:[#allocation2 + $0x150] sm:$0xff]
    %v3129 = vld [vmem:[#allocation2 + $0x158] sm:$0xff]
    %v3130 = vld [vmem:[#allocation2 + $0x160] sm:$0xff]
    %v3131 = vld [vmem:[#allocation2 + $0x168] sm:$0xff]
    %v3132 = vld [vmem:[#allocation2 + $0x170] sm:$0xff]
    %v3133 = vld [vmem:[#allocation2 + $0x178] sm:$0xff]
    %v3134 = vld [vmem:[#allocation2 + $0x180] sm:$0xff]
    %v3135 = vld [vmem:[#allocation2 + $0x188] sm:$0xff]
    %v3136 = vld [vmem:[#allocation2 + $0x190] sm:$0xff]
    %v3137 = vld [vmem:[#allocation2 + $0x198] sm:$0xff]
    %v3138 = vld [vmem:[#allocation2 + $0x1a0] sm:$0xff]
    %v3139 = vld [vmem:[#allocation2 + $0x1a8] sm:$0xff]
    %v3140 = vld [vmem:[#allocation2 + $0x1b0] sm:$0xff]
    %v3141 = vld [vmem:[#allocation2 + $0x1b8] sm:$0xff]
    %v3142 = vld [vmem:[#allocation2 + $0x1c0] sm:$0xff]
    %v3143 = vld [vmem:[#allocation2 + $0x1c8] sm:$0xff]
    %v3144 = vld [vmem:[#allocation2 + $0x1d0] sm:$0xff]
    %v3145 = vld [vmem:[#allocation2 + $0x1d8] sm:$0xff]
    %v3146 = vld [vmem:[#allocation2 + $0x1e0] sm:$0xff]
    %v3147 = vld [vmem:[#allocation2 + $0x1e8] sm:$0xff]
    %v3148 = vld [vmem:[#allocation2 + $0x1f0] sm:$0xff]
    %v3149 = vld [vmem:[#allocation2 + $0x1f8] sm:$0xff]
    %v3150 = vld [vmem:[#allocation2 + $0x200] sm:$0xff]
    %v3151 = vld [vmem:[#allocation2 + $0x208] sm:$0xff]
    %v3152 = vld [vmem:[#allocation2 + $0x210] sm:$0xff]
    %v3153 = vld [vmem:[#allocation2 + $0x218] sm:$0xff]
    %v3154 = vld [vmem:[#allocation2 + $0x220] sm:$0xff]
    %v3155 = vld [vmem:[#allocation2 + $0x228] sm:$0xff]
    %v3156 = vld [vmem:[#allocation2 + $0x230] sm:$0xff]
    %v3157 = vld [vmem:[#allocation2 + $0x238] sm:$0xff]
    %v3158 = vld [vmem:[#allocation2 + $0x240] sm:$0xff]
    %v3159 = vld [vmem:[#allocation2 + $0x248] sm:$0xff]
    %v3160 = vld [vmem:[#allocation2 + $0x250] sm:$0xff]
    %v3161 = vld [vmem:[#allocation2 + $0x258] sm:$0xff]
    %v3162 = vld [vmem:[#allocation2 + $0x260] sm:$0xff]
    %v3163 = vld [vmem:[#allocation2 + $0x268] sm:$0xff]
    %v3164 = vld [vmem:[#allocation2 + $0x270] sm:$0xff]
    %v3165 = vld [vmem:[#allocation2 + $0x278] sm:$0xff]
    %v3166 = vld [vmem:[#allocation2 + $0x280] sm:$0xff]
    %v3167 = vld [vmem:[#allocation2 + $0x288] sm:$0xff]
    %v3168 = vld [vmem:[#allocation2 + $0x290] sm:$0xff]
    %v3169 = vld [vmem:[#allocation2 + $0x298] sm:$0xff]
    %v3170 = vld [vmem:[#allocation2 + $0x2a0] sm:$0xff]
    %v3171 = vld [vmem:[#allocation2 + $0x2a8] sm:$0xff]
    %v3172 = vld [vmem:[#allocation2 + $0x2b0] sm:$0xff]
    %v3173 = vld [vmem:[#allocation2 + $0x2b8] sm:$0xff]
    %v3174 = vld [vmem:[#allocation2 + $0x2c0] sm:$0xff]
    %v3175 = vld [vmem:[#allocation2 + $0x2c8] sm:$0xff]
    %v3176 = vld [vmem:[#allocation2 + $0x2d0] sm:$0xff]
    %v3177 = vld [vmem:[#allocation2 + $0x2d8] sm:$0xff]
    %v3178 = vld [vmem:[#allocation2 + $0x2e0] sm:$0xff]
    %v3179 = vld [vmem:[#allocation2 + $0x2e8] sm:$0xff]
    %v3180 = vld [vmem:[#allocation2 + $0x2f0] sm:$0xff]
    %v3181 = vld [vmem:[#allocation2 + $0x2f8] sm:$0xff]
    %v3182 = vld [vmem:[#allocation2 + $0x300] sm:$0xff]
    %v3183 = vld [vmem:[#allocation2 + $0x308] sm:$0xff]
    %v3184 = vld [vmem:[#allocation2 + $0x310] sm:$0xff]
    %v3185 = vld [vmem:[#allocation2 + $0x318] sm:$0xff]
    %v3186 = vld [vmem:[#allocation2 + $0x320] sm:$0xff]
    %v3187 = vld [vmem:[#allocation2 + $0x328] sm:$0xff]
    %v3188 = vld [vmem:[#allocation2 + $0x330] sm:$0xff]
    %v3189 = vld [vmem:[#allocation2 + $0x338] sm:$0xff]
    %v3190 = vld [vmem:[#allocation2 + $0x340] sm:$0xff]
    %v3191 = vld [vmem:[#allocation2 + $0x348] sm:$0xff]
    %v3192 = vld [vmem:[#allocation2 + $0x350] sm:$0xff]
    %v3193 = vld [vmem:[#allocation2 + $0x358] sm:$0xff]
    %v3194 = vld [vmem:[#allocation2 + $0x360] sm:$0xff]
    %v3195 = vld [vmem:[#allocation2 + $0x368] sm:$0xff]
    %v3196 = vld [vmem:[#allocation2 + $0x370] sm:$0xff]
    %v3197 = vld [vmem:[#allocation2 + $0x378] sm:$0xff]
    %v3198 = vld [vmem:[#allocation2 + $0x380] sm:$0xff]
    %v3199 = vld [vmem:[#allocation2 + $0x388] sm:$0xff]
    %v3200 = vld [vmem:[#allocation2 + $0x390] sm:$0xff]
    %v3201 = vld [vmem:[#allocation2 + $0x398] sm:$0xff]
    %v3202 = vld [vmem:[#allocation2 + $0x3a0] sm:$0xff]
    %v3203 = vld [vmem:[#allocation2 + $0x3a8] sm:$0xff]
    %v3204 = vld [vmem:[#allocation2 + $0x3b0] sm:$0xff]
    %v3205 = vld [vmem:[#allocation2 + $0x3b8] sm:$0xff]
    %v3206 = vld [vmem:[#allocation2 + $0x3c0] sm:$0xff]
    %v3207 = vld [vmem:[#allocation2 + $0x3c8] sm:$0xff]
    %v3208 = vld [vmem:[#allocation2 + $0x3d0] sm:$0xff]
    %v3209 = vld [vmem:[#allocation2 + $0x3d8] sm:$0xff]
    %v3210 = vld [vmem:[#allocation2 + $0x3e0] sm:$0xff]
    %v3211 = vld [vmem:[#allocation2 + $0x3e8] sm:$0xff]
    %v3212 = vld [vmem:[#allocation2 + $0x3f0] sm:$0xff]
    %v3213 = vld [vmem:[#allocation2 + $0x3f8] sm:$0xff]
    %v3214 = vld [vmem:[#allocation2 + $0x400] sm:$0xff]
    %v3215 = vld [vmem:[#allocation2 + $0x408] sm:$0xff]
    %v3216 = vld [vmem:[#allocation2 + $0x410] sm:$0xff]
    %v3217 = vld [vmem:[#allocation2 + $0x418] sm:$0xff]
    %v3218 = vld [vmem:[#allocation2 + $0x420] sm:$0xff]
    %v3219 = vld [vmem:[#allocation2 + $0x428] sm:$0xff]
    %v3220 = vld [vmem:[#allocation2 + $0x430] sm:$0xff]
    %v3221 = vld [vmem:[#allocation2 + $0x438] sm:$0xff]
    %v3222 = vld [vmem:[#allocation2 + $0x440] sm:$0xff]
    %v3223 = vld [vmem:[#allocation2 + $0x448] sm:$0xff]
    %v3224 = vld [vmem:[#allocation2 + $0x450] sm:$0xff]
    %v3225 = vld [vmem:[#allocation2 + $0x458] sm:$0xff]
    %v3226 = vld [vmem:[#allocation2 + $0x460] sm:$0xff]
    %v3227 = vld [vmem:[#allocation2 + $0x468] sm:$0xff]
    %v3228 = vld [vmem:[#allocation2 + $0x470] sm:$0xff]
    %v3229 = vld [vmem:[#allocation2 + $0x478] sm:$0xff]
    %v3230 = vld [vmem:[#allocation2 + $0x480] sm:$0xff]
    %v3231 = vld [vmem:[#allocation2 + $0x488] sm:$0xff]
    %v3232 = vld [vmem:[#allocation2 + $0x490] sm:$0xff]
    %v3233 = vld [vmem:[#allocation2 + $0x498] sm:$0xff]
    %v3234 = vld [vmem:[#allocation2 + $0x4a0] sm:$0xff]
    %v3235 = vld [vmem:[#allocation2 + $0x4a8] sm:$0xff]
    %v3236 = vld [vmem:[#allocation2 + $0x4b0] sm:$0xff]
    %v3237 = vld [vmem:[#allocation2 + $0x4b8] sm:$0xff]
    %v3238 = vld [vmem:[#allocation2 + $0x4c0] sm:$0xff]
    %v3239 = vld [vmem:[#allocation2 + $0x4c8] sm:$0xff]
    %v3240 = vld [vmem:[#allocation2 + $0x4d0] sm:$0xff]
    %v3241 = vld [vmem:[#allocation2 + $0x4d8] sm:$0xff]
    %v3242 = vld [vmem:[#allocation2 + $0x4e0] sm:$0xff]
    %v3243 = vld [vmem:[#allocation2 + $0x4e8] sm:$0xff]
    %v3244 = vld [vmem:[#allocation2 + $0x4f0] sm:$0xff]
    %v3245 = vld [vmem:[#allocation2 + $0x4f8] sm:$0xff]
    %v3246 = vld [vmem:[#allocation2 + $0x500] sm:$0xff]
    %v3247 = vld [vmem:[#allocation2 + $0x508] sm:$0xff]
    %v3248 = vld [vmem:[#allocation2 + $0x510] sm:$0xff]
    %v3249 = vld [vmem:[#allocation2 + $0x518] sm:$0xff]
    %v3250 = vld [vmem:[#allocation2 + $0x520] sm:$0xff]
    %v3251 = vld [vmem:[#allocation2 + $0x528] sm:$0xff]
    %v3252 = vld [vmem:[#allocation2 + $0x530] sm:$0xff]
    %v3253 = vld [vmem:[#allocation2 + $0x538] sm:$0xff]
    %v3254 = vld [vmem:[#allocation2 + $0x540] sm:$0xff]
    %v3255 = vld [vmem:[#allocation2 + $0x548] sm:$0xff]
    %v3256 = vld [vmem:[#allocation2 + $0x550] sm:$0xff]
    %v3257 = vld [vmem:[#allocation2 + $0x558] sm:$0xff]
    %v3258 = vld [vmem:[#allocation2 + $0x560] sm:$0xff]
    %v3259 = vld [vmem:[#allocation2 + $0x568] sm:$0xff]
    %v3260 = vld [vmem:[#allocation2 + $0x570] sm:$0xff]
    %v3261 = vld [vmem:[#allocation2 + $0x578] sm:$0xff]
    %v3262 = vld [vmem:[#allocation2 + $0x580] sm:$0xff]
    %v3263 = vld [vmem:[#allocation2 + $0x588] sm:$0xff]
    %v3264 = vld [vmem:[#allocation2 + $0x590] sm:$0xff]
    %v3265 = vld [vmem:[#allocation2 + $0x598] sm:$0xff]
    %v3266 = vld [vmem:[#allocation2 + $0x5a0] sm:$0xff]
    %v3267 = vld [vmem:[#allocation2 + $0x5a8] sm:$0xff]
    %v3268 = vld [vmem:[#allocation2 + $0x5b0] sm:$0xff]
    %v3269 = vld [vmem:[#allocation2 + $0x5b8] sm:$0xff]
    %v3270 = vld [vmem:[#allocation2 + $0x5c0] sm:$0xff]
    %v3271 = vld [vmem:[#allocation2 + $0x5c8] sm:$0xff]
    %v3272 = vld [vmem:[#allocation2 + $0x5d0] sm:$0xff]
    %v3273 = vld [vmem:[#allocation2 + $0x5d8] sm:$0xff]
    %v3274 = vld [vmem:[#allocation2 + $0x5e0] sm:$0xff]
    %v3275 = vld [vmem:[#allocation2 + $0x5e8] sm:$0xff]
    %v3276 = vld [vmem:[#allocation2 + $0x5f0] sm:$0xff]
    %v3277 = vld [vmem:[#allocation2 + $0x5f8] sm:$0xff]
    %v3278 = vld [vmem:[#allocation2 + $0x600] sm:$0xff]
    %v3279 = vld [vmem:[#allocation2 + $0x608] sm:$0xff]
    %v3280 = vld [vmem:[#allocation2 + $0x610] sm:$0xff]
    %v3281 = vld [vmem:[#allocation2 + $0x618] sm:$0xff]
    %v3282 = vld [vmem:[#allocation2 + $0x620] sm:$0xff]
    %v3283 = vld [vmem:[#allocation2 + $0x628] sm:$0xff]
    %v3284 = vld [vmem:[#allocation2 + $0x630] sm:$0xff]
    %v3285 = vld [vmem:[#allocation2 + $0x638] sm:$0xff]
    %v3286 = vld [vmem:[#allocation2 + $0x640] sm:$0xff]
    %v3287 = vld [vmem:[#allocation2 + $0x648] sm:$0xff]
    %v3288 = vld [vmem:[#allocation2 + $0x650] sm:$0xff]
    %v3289 = vld [vmem:[#allocation2 + $0x658] sm:$0xff]
    %v3290 = vld [vmem:[#allocation2 + $0x660] sm:$0xff]
    %v3291 = vld [vmem:[#allocation2 + $0x668] sm:$0xff]
    %v3292 = vld [vmem:[#allocation2 + $0x670] sm:$0xff]
    %v3293 = vld [vmem:[#allocation2 + $0x678] sm:$0xff]
    %v3294 = vld [vmem:[#allocation2 + $0x680] sm:$0xff]
    %v3295 = vld [vmem:[#allocation2 + $0x688] sm:$0xff]
    %v3296 = vld [vmem:[#allocation2 + $0x690] sm:$0xff]
    %v3297 = vld [vmem:[#allocation2 + $0x698] sm:$0xff]
    %v3298 = vld [vmem:[#allocation2 + $0x6a0] sm:$0xff]
    %v3299 = vld [vmem:[#allocation2 + $0x6a8] sm:$0xff]
    %v3300 = vld [vmem:[#allocation2 + $0x6b0] sm:$0xff]
    %v3301 = vld [vmem:[#allocation2 + $0x6b8] sm:$0xff]
    %v3302 = vld [vmem:[#allocation2 + $0x6c0] sm:$0xff]
    %v3303 = vld [vmem:[#allocation2 + $0x6c8] sm:$0xff]
    %v3304 = vld [vmem:[#allocation2 + $0x6d0] sm:$0xff]
    %v3305 = vld [vmem:[#allocation2 + $0x6d8] sm:$0xff]
    %v3306 = vld [vmem:[#allocation2 + $0x6e0] sm:$0xff]
    %v3307 = vld [vmem:[#allocation2 + $0x6e8] sm:$0xff]
    %v3308 = vld [vmem:[#allocation2 + $0x6f0] sm:$0xff]
    %v3309 = vld [vmem:[#allocation2 + $0x6f8] sm:$0xff]
    %v3310 = vld [vmem:[#allocation2 + $0x700] sm:$0xff]
    %v3311 = vld [vmem:[#allocation2 + $0x708] sm:$0xff]
    %v3312 = vld [vmem:[#allocation2 + $0x710] sm:$0xff]
    %v3313 = vld [vmem:[#allocation2 + $0x718] sm:$0xff]
    %v3314 = vld [vmem:[#allocation2 + $0x720] sm:$0xff]
    %v3315 = vld [vmem:[#allocation2 + $0x728] sm:$0xff]
    %v3316 = vld [vmem:[#allocation2 + $0x730] sm:$0xff]
    %v3317 = vld [vmem:[#allocation2 + $0x738] sm:$0xff]
    %v3318 = vld [vmem:[#allocation2 + $0x740] sm:$0xff]
    %v3319 = vld [vmem:[#allocation2 + $0x748] sm:$0xff]
    %v3320 = vld [vmem:[#allocation2 + $0x750] sm:$0xff]
    %v3321 = vld [vmem:[#allocation2 + $0x758] sm:$0xff]
    %v3322 = vld [vmem:[#allocation2 + $0x760] sm:$0xff]
    %v3323 = vld [vmem:[#allocation2 + $0x768] sm:$0xff]
    %v3324 = vld [vmem:[#allocation2 + $0x770] sm:$0xff]
    %v3325 = vld [vmem:[#allocation2 + $0x778] sm:$0xff]
    %v3326 = vld [vmem:[#allocation2 + $0x780] sm:$0xff]
    %v3327 = vld [vmem:[#allocation2 + $0x788] sm:$0xff]
    %v3328 = vld [vmem:[#allocation2 + $0x790] sm:$0xff]
    %v3329 = vld [vmem:[#allocation2 + $0x798] sm:$0xff]
    %v3330 = vld [vmem:[#allocation2 + $0x7a0] sm:$0xff]
    %v3331 = vld [vmem:[#allocation2 + $0x7a8] sm:$0xff]
    %v3332 = vld [vmem:[#allocation2 + $0x7b0] sm:$0xff]
    %v3333 = vld [vmem:[#allocation2 + $0x7b8] sm:$0xff]
    %v3334 = vld [vmem:[#allocation2 + $0x7c0] sm:$0xff]
    %v3335 = vld [vmem:[#allocation2 + $0x7c8] sm:$0xff]
    %v3336 = vld [vmem:[#allocation2 + $0x7d0] sm:$0xff]
    %v3337 = vld [vmem:[#allocation2 + $0x7d8] sm:$0xff]
    %v3338 = vld [vmem:[#allocation2 + $0x7e0] sm:$0xff]
    %v3339 = vld [vmem:[#allocation2 + $0x7e8] sm:$0xff]
    %v3340 = vld [vmem:[#allocation2 + $0x7f0] sm:$0xff]
    %v3341 = vld [vmem:[#allocation2 + $0x7f8] sm:$0xff]
    %v3342 = vld [vmem:[#allocation2 + $0x800] sm:$0xff]
    %v3343 = vld [vmem:[#allocation2 + $0x808] sm:$0xff]
    %v3344 = vld [vmem:[#allocation2 + $0x810] sm:$0xff]
    %v3345 = vld [vmem:[#allocation2 + $0x818] sm:$0xff]
    %v3346 = vld [vmem:[#allocation2 + $0x820] sm:$0xff]
    %v3347 = vld [vmem:[#allocation2 + $0x828] sm:$0xff]
    %v3348 = vld [vmem:[#allocation2 + $0x830] sm:$0xff]
    %v3349 = vld [vmem:[#allocation2 + $0x838] sm:$0xff]
    %v3350 = vld [vmem:[#allocation2 + $0x840] sm:$0xff]
    %v3351 = vld [vmem:[#allocation2 + $0x848] sm:$0xff]
    %v3352 = vld [vmem:[#allocation2 + $0x850] sm:$0xff]
    %v3353 = vld [vmem:[#allocation2 + $0x858] sm:$0xff]
    %v3354 = vld [vmem:[#allocation2 + $0x860] sm:$0xff]
    %v3355 = vld [vmem:[#allocation2 + $0x868] sm:$0xff]
    %v3356 = vld [vmem:[#allocation2 + $0x870] sm:$0xff]
    %v3357 = vld [vmem:[#allocation2 + $0x878] sm:$0xff]
    %v3358 = vld [vmem:[#allocation2 + $0x880] sm:$0xff]
    %v3359 = vld [vmem:[#allocation2 + $0x888] sm:$0xff]
    %v3360 = vld [vmem:[#allocation2 + $0x890] sm:$0xff]
    %v3361 = vld [vmem:[#allocation2 + $0x898] sm:$0xff]
    %v3362 = vld [vmem:[#allocation2 + $0x8a0] sm:$0xff]
    %v3363 = vld [vmem:[#allocation2 + $0x8a8] sm:$0xff]
    %v3364 = vld [vmem:[#allocation2 + $0x8b0] sm:$0xff]
    %v3365 = vld [vmem:[#allocation2 + $0x8b8] sm:$0xff]
    %v3366 = vld [vmem:[#allocation2 + $0x8c0] sm:$0xff]
    %v3367 = vld [vmem:[#allocation2 + $0x8c8] sm:$0xff]
    %v3368 = vld [vmem:[#allocation2 + $0x8d0] sm:$0xff]
    %v3369 = vld [vmem:[#allocation2 + $0x8d8] sm:$0xff]
    %v3370 = vld [vmem:[#allocation2 + $0x8e0] sm:$0xff]
    %v3371 = vld [vmem:[#allocation2 + $0x8e8] sm:$0xff]
    %v3372 = vld [vmem:[#allocation2 + $0x8f0] sm:$0xff]
    %v3373 = vld [vmem:[#allocation2 + $0x8f8] sm:$0xff]
    %v3374 = vld [vmem:[#allocation2 + $0x900] sm:$0xff]
    %v3375 = vld [vmem:[#allocation2 + $0x908] sm:$0xff]
    %v3376 = vld [vmem:[#allocation2 + $0x910] sm:$0xff]
    %v3377 = vld [vmem:[#allocation2 + $0x918] sm:$0xff]
    %v3378 = vld [vmem:[#allocation2 + $0x920] sm:$0xff]
    %v3379 = vld [vmem:[#allocation2 + $0x928] sm:$0xff]
    %v3380 = vld [vmem:[#allocation2 + $0x930] sm:$0xff]
    %v3381 = vld [vmem:[#allocation2 + $0x938] sm:$0xff]
    %v3382 = vld [vmem:[#allocation2 + $0x940] sm:$0x3]
    %v3383 = vld [vmem:[#allocation2 + $0x948] sm:$0x3]
    %v3384 = vld [vmem:[#allocation2 + $0x950] sm:$0x3]
    %v3385 = vld [vmem:[#allocation2 + $0x958] sm:$0x3]
    %vm3386 = vcmask 670720
    %v3388 = vsel %vm3386, %v3017, 0
    %vm3390 = vcmask 1041408
    %v3392 = vsel %vm3390, %v3382, 0
    %v3395 = vsel %vm3390, %v3383, 0
    %v3398 = vsel %vm3390, %v3384, 0
    %v3401 = vsel %vm3390, %v3385, 0
    %3403 = vmatpush.msra.mxu0 %v3146
    %3404 = vmatpush.msra.mxu0 %v3142
    %3405 = vmatpush.msra.mxu0 %v3138
    %3406 = vmatpush.msra.mxu0 %v3134
    %3407 = vmatpush.msra.mxu0 %v3130
    %3408 = vmatpush.msra.mxu0 %v3126
    %3409 = vmatpush.msra.mxu0 %v3122
    %3410 = vmatpush.msra.mxu0 %v3118
    %3411 = vmatpush.msra.mxu0 %v3114
    %3412 = vmatpush.msra.mxu0 %v3110
    %3413 = vmatpush.msra.mxu0 %v3106
    %3414 = vmatpush.msra.mxu0 %v3102
    %3415 = vmatpush.msra.mxu0 %v3098
    %3416 = vmatpush.msra.mxu0 %v3094
    %3417 = vmatpush.msra.mxu0 %v3090
    %3418 = vmatpush.msra.mxu0 %v3086
    %3419 = vmatmul.f32.gmra.mxu0 %v3013
    %v3420 = vpop.f32.mrf.mxu0
    %v3421 = vadd.f32 0.0, %v3420
    %3422 = vdwg.mxu0
    %3423 = vmatpush.msra.mxu0 %v3210
    %3424 = vmatpush.msra.mxu0 %v3206
    %3425 = vmatpush.msra.mxu0 %v3202
    %3426 = vmatpush.msra.mxu0 %v3198
    %3427 = vmatpush.msra.mxu0 %v3194
    %3428 = vmatpush.msra.mxu0 %v3190
    %3429 = vmatpush.msra.mxu0 %v3186
    %3430 = vmatpush.msra.mxu0 %v3182
    %3431 = vmatpush.msra.mxu0 %v3178
    %3432 = vmatpush.msra.mxu0 %v3174
    %3433 = vmatpush.msra.mxu0 %v3170
    %3434 = vmatpush.msra.mxu0 %v3166
    %3435 = vmatpush.msra.mxu0 %v3162
    %3436 = vmatpush.msra.mxu0 %v3158
    %3437 = vmatpush.msra.mxu0 %v3154
    %3438 = vmatpush.msra.mxu0 %v3150
    %3439 = vmatmul.f32.gmra.mxu0 %v3014
    %v3440 = vpop.f32.mrf.mxu0
    %v3441 = vadd.f32 %v3421, %v3440
    %3442 = vdwg.mxu0
    %3443 = vmatpush.msra.mxu0 %v3274
    %3444 = vmatpush.msra.mxu0 %v3270
    %3445 = vmatpush.msra.mxu0 %v3266
    %3446 = vmatpush.msra.mxu0 %v3262
    %3447 = vmatpush.msra.mxu0 %v3258
    %3448 = vmatpush.msra.mxu0 %v3254
    %3449 = vmatpush.msra.mxu0 %v3250
    %3450 = vmatpush.msra.mxu0 %v3246
    %3451 = vmatpush.msra.mxu0 %v3242
    %3452 = vmatpush.msra.mxu0 %v3238
    %3453 = vmatpush.msra.mxu0 %v3234
    %3454 = vmatpush.msra.mxu0 %v3230
    %3455 = vmatpush.msra.mxu0 %v3226
    %3456 = vmatpush.msra.mxu0 %v3222
    %3457 = vmatpush.msra.mxu0 %v3218
    %3458 = vmatpush.msra.mxu0 %v3214
    %3459 = vmatmul.f32.gmra.mxu0 %v3015
    %v3460 = vpop.f32.mrf.mxu0
    %v3461 = vadd.f32 %v3441, %v3460
    %3462 = vdwg.mxu0
    %3463 = vmatpush.msra.mxu0 %v3338
    %3464 = vmatpush.msra.mxu0 %v3334
    %3465 = vmatpush.msra.mxu0 %v3330
    %3466 = vmatpush.msra.mxu0 %v3326
    %3467 = vmatpush.msra.mxu0 %v3322
    %3468 = vmatpush.msra.mxu0 %v3318
    %3469 = vmatpush.msra.mxu0 %v3314
    %3470 = vmatpush.msra.mxu0 %v3310
    %3471 = vmatpush.msra.mxu0 %v3306
    %3472 = vmatpush.msra.mxu0 %v3302
    %3473 = vmatpush.msra.mxu0 %v3298
    %3474 = vmatpush.msra.mxu0 %v3294
    %3475 = vmatpush.msra.mxu0 %v3290
    %3476 = vmatpush.msra.mxu0 %v3286
    %3477 = vmatpush.msra.mxu0 %v3282
    %3478 = vmatpush.msra.mxu0 %v3278
    %3479 = vmatmul.f32.gmra.mxu0 %v3016
    %v3480 = vpop.f32.mrf.mxu0
    %v3481 = vadd.f32 %v3461, %v3480
    %3482 = vdwg.mxu0
    %3483 = vmatpush.msra.mxu0 0.0
    %3484 = vmatpush.msra.mxu0 0.0
    %3485 = vmatpush.msra.mxu0 0.0
    %3486 = vmatpush.msra.mxu0 0.0
    %3487 = vmatpush.msra.mxu0 0.0
    %3488 = vmatpush.msra.mxu0 %v3392
    %3489 = vmatpush.msra.mxu0 %v3378
    %3490 = vmatpush.msra.mxu0 %v3374
    %3491 = vmatpush.msra.mxu0 %v3370
    %3492 = vmatpush.msra.mxu0 %v3366
    %3493 = vmatpush.msra.mxu0 %v3362
    %3494 = vmatpush.msra.mxu0 %v3358
    %3495 = vmatpush.msra.mxu0 %v3354
    %3496 = vmatpush.msra.mxu0 %v3350
    %3497 = vmatpush.msra.mxu0 %v3346
    %3498 = vmatpush.msra.mxu0 %v3342
    %3499 = vmatmul.f32.gmra.mxu0 %v3388
    %v3500 = vpop.f32.mrf.mxu0
    %v3501 = vadd.f32 %v3481, %v3500
    %3502 = vdwg.mxu0
    %3503 = vmatpush.msra.mxu0 %v3147
    %3504 = vmatpush.msra.mxu0 %v3143
    %3505 = vmatpush.msra.mxu0 %v3139
    %3506 = vmatpush.msra.mxu0 %v3135
    %3507 = vmatpush.msra.mxu0 %v3131
    %3508 = vmatpush.msra.mxu0 %v3127
    %3509 = vmatpush.msra.mxu0 %v3123
    %3510 = vmatpush.msra.mxu0 %v3119
    %3511 = vmatpush.msra.mxu0 %v3115
    %3512 = vmatpush.msra.mxu0 %v3111
    %3513 = vmatpush.msra.mxu0 %v3107
    %3514 = vmatpush.msra.mxu0 %v3103
    %3515 = vmatpush.msra.mxu0 %v3099
    %3516 = vmatpush.msra.mxu0 %v3095
    %3517 = vmatpush.msra.mxu0 %v3091
    %3518 = vmatpush.msra.mxu0 %v3087
    %3519 = vmatmul.f32.gmra.mxu0 %v3013
    %v3520 = vpop.f32.mrf.mxu0
    %v3521 = vadd.f32 0.0, %v3520
    %3522 = vdwg.mxu0
    %3523 = vmatpush.msra.mxu0 %v3211
    %3524 = vmatpush.msra.mxu0 %v3207
    %3525 = vmatpush.msra.mxu0 %v3203
    %3526 = vmatpush.msra.mxu0 %v3199
    %3527 = vmatpush.msra.mxu0 %v3195
    %3528 = vmatpush.msra.mxu0 %v3191
    %3529 = vmatpush.msra.mxu0 %v3187
    %3530 = vmatpush.msra.mxu0 %v3183
    %3531 = vmatpush.msra.mxu0 %v3179
    %3532 = vmatpush.msra.mxu0 %v3175
    %3533 = vmatpush.msra.mxu0 %v3171
    %3534 = vmatpush.msra.mxu0 %v3167
    %3535 = vmatpush.msra.mxu0 %v3163
    %3536 = vmatpush.msra.mxu0 %v3159
    %3537 = vmatpush.msra.mxu0 %v3155
    %3538 = vmatpush.msra.mxu0 %v3151
    %3539 = vmatmul.f32.gmra.mxu0 %v3014
    %v3540 = vpop.f32.mrf.mxu0
    %v3541 = vadd.f32 %v3521, %v3540
    %3542 = vdwg.mxu0
    %3543 = vmatpush.msra.mxu0 %v3275
    %3544 = vmatpush.msra.mxu0 %v3271
    %3545 = vmatpush.msra.mxu0 %v3267
    %3546 = vmatpush.msra.mxu0 %v3263
    %3547 = vmatpush.msra.mxu0 %v3259
    %3548 = vmatpush.msra.mxu0 %v3255
    %3549 = vmatpush.msra.mxu0 %v3251
    %3550 = vmatpush.msra.mxu0 %v3247
    %3551 = vmatpush.msra.mxu0 %v3243
    %3552 = vmatpush.msra.mxu0 %v3239
    %3553 = vmatpush.msra.mxu0 %v3235
    %3554 = vmatpush.msra.mxu0 %v3231
    %3555 = vmatpush.msra.mxu0 %v3227
    %3556 = vmatpush.msra.mxu0 %v3223
    %3557 = vmatpush.msra.mxu0 %v3219
    %3558 = vmatpush.msra.mxu0 %v3215
    %3559 = vmatmul.f32.gmra.mxu0 %v3015
    %v3560 = vpop.f32.mrf.mxu0
    %v3561 = vadd.f32 %v3541, %v3560
    %3562 = vdwg.mxu0
    %3563 = vmatpush.msra.mxu0 %v3339
    %3564 = vmatpush.msra.mxu0 %v3335
    %3565 = vmatpush.msra.mxu0 %v3331
    %3566 = vmatpush.msra.mxu0 %v3327
    %3567 = vmatpush.msra.mxu0 %v3323
    %3568 = vmatpush.msra.mxu0 %v3319
    %3569 = vmatpush.msra.mxu0 %v3315
    %3570 = vmatpush.msra.mxu0 %v3311
    %3571 = vmatpush.msra.mxu0 %v3307
    %3572 = vmatpush.msra.mxu0 %v3303
    %3573 = vmatpush.msra.mxu0 %v3299
    %3574 = vmatpush.msra.mxu0 %v3295
    %3575 = vmatpush.msra.mxu0 %v3291
    %3576 = vmatpush.msra.mxu0 %v3287
    %3577 = vmatpush.msra.mxu0 %v3283
    %3578 = vmatpush.msra.mxu0 %v3279
    %3579 = vmatmul.f32.gmra.mxu0 %v3016
    %v3580 = vpop.f32.mrf.mxu0
    %v3581 = vadd.f32 %v3561, %v3580
    %3582 = vdwg.mxu0
    %3583 = vmatpush.msra.mxu0 0.0
    %3584 = vmatpush.msra.mxu0 0.0
    %3585 = vmatpush.msra.mxu0 0.0
    %3586 = vmatpush.msra.mxu0 0.0
    %3587 = vmatpush.msra.mxu0 0.0
    %3588 = vmatpush.msra.mxu0 %v3395
    %3589 = vmatpush.msra.mxu0 %v3379
    %3590 = vmatpush.msra.mxu0 %v3375
    %3591 = vmatpush.msra.mxu0 %v3371
    %3592 = vmatpush.msra.mxu0 %v3367
    %3593 = vmatpush.msra.mxu0 %v3363
    %3594 = vmatpush.msra.mxu0 %v3359
    %3595 = vmatpush.msra.mxu0 %v3355
    %3596 = vmatpush.msra.mxu0 %v3351
    %3597 = vmatpush.msra.mxu0 %v3347
    %3598 = vmatpush.msra.mxu0 %v3343
    %3599 = vmatmul.f32.gmra.mxu0 %v3388
    %v3600 = vpop.f32.mrf.mxu0
    %v3601 = vadd.f32 %v3581, %v3600
    %3602 = vdwg.mxu0
    %3603 = vmatpush.msra.mxu0 %v3148
    %3604 = vmatpush.msra.mxu0 %v3144
    %3605 = vmatpush.msra.mxu0 %v3140
    %3606 = vmatpush.msra.mxu0 %v3136
    %3607 = vmatpush.msra.mxu0 %v3132
    %3608 = vmatpush.msra.mxu0 %v3128
    %3609 = vmatpush.msra.mxu0 %v3124
    %3610 = vmatpush.msra.mxu0 %v3120
    %3611 = vmatpush.msra.mxu0 %v3116
    %3612 = vmatpush.msra.mxu0 %v3112
    %3613 = vmatpush.msra.mxu0 %v3108
    %3614 = vmatpush.msra.mxu0 %v3104
    %3615 = vmatpush.msra.mxu0 %v3100
    %3616 = vmatpush.msra.mxu0 %v3096
    %3617 = vmatpush.msra.mxu0 %v3092
    %3618 = vmatpush.msra.mxu0 %v3088
    %3619 = vmatmul.f32.gmra.mxu0 %v3013
    %v3620 = vpop.f32.mrf.mxu0
    %v3621 = vadd.f32 0.0, %v3620
    %3622 = vdwg.mxu0
    %3623 = vmatpush.msra.mxu0 %v3212
    %3624 = vmatpush.msra.mxu0 %v3208
    %3625 = vmatpush.msra.mxu0 %v3204
    %3626 = vmatpush.msra.mxu0 %v3200
    %3627 = vmatpush.msra.mxu0 %v3196
    %3628 = vmatpush.msra.mxu0 %v3192
    %3629 = vmatpush.msra.mxu0 %v3188
    %3630 = vmatpush.msra.mxu0 %v3184
    %3631 = vmatpush.msra.mxu0 %v3180
    %3632 = vmatpush.msra.mxu0 %v3176
    %3633 = vmatpush.msra.mxu0 %v3172
    %3634 = vmatpush.msra.mxu0 %v3168
    %3635 = vmatpush.msra.mxu0 %v3164
    %3636 = vmatpush.msra.mxu0 %v3160
    %3637 = vmatpush.msra.mxu0 %v3156
    %3638 = vmatpush.msra.mxu0 %v3152
    %3639 = vmatmul.f32.gmra.mxu0 %v3014
    %v3640 = vpop.f32.mrf.mxu0
    %v3641 = vadd.f32 %v3621, %v3640
    %3642 = vdwg.mxu0
    %3643 = vmatpush.msra.mxu0 %v3276
    %3644 = vmatpush.msra.mxu0 %v3272
    %3645 = vmatpush.msra.mxu0 %v3268
    %3646 = vmatpush.msra.mxu0 %v3264
    %3647 = vmatpush.msra.mxu0 %v3260
    %3648 = vmatpush.msra.mxu0 %v3256
    %3649 = vmatpush.msra.mxu0 %v3252
    %3650 = vmatpush.msra.mxu0 %v3248
    %3651 = vmatpush.msra.mxu0 %v3244
    %3652 = vmatpush.msra.mxu0 %v3240
    %3653 = vmatpush.msra.mxu0 %v3236
    %3654 = vmatpush.msra.mxu0 %v3232
    %3655 = vmatpush.msra.mxu0 %v3228
    %3656 = vmatpush.msra.mxu0 %v3224
    %3657 = vmatpush.msra.mxu0 %v3220
    %3658 = vmatpush.msra.mxu0 %v3216
    %3659 = vmatmul.f32.gmra.mxu0 %v3015
    %v3660 = vpop.f32.mrf.mxu0
    %v3661 = vadd.f32 %v3641, %v3660
    %3662 = vdwg.mxu0
    %3663 = vmatpush.msra.mxu0 %v3340
    %3664 = vmatpush.msra.mxu0 %v3336
    %3665 = vmatpush.msra.mxu0 %v3332
    %3666 = vmatpush.msra.mxu0 %v3328
    %3667 = vmatpush.msra.mxu0 %v3324
    %3668 = vmatpush.msra.mxu0 %v3320
    %3669 = vmatpush.msra.mxu0 %v3316
    %3670 = vmatpush.msra.mxu0 %v3312
    %3671 = vmatpush.msra.mxu0 %v3308
    %3672 = vmatpush.msra.mxu0 %v3304
    %3673 = vmatpush.msra.mxu0 %v3300
    %3674 = vmatpush.msra.mxu0 %v3296
    %3675 = vmatpush.msra.mxu0 %v3292
    %3676 = vmatpush.msra.mxu0 %v3288
    %3677 = vmatpush.msra.mxu0 %v3284
    %3678 = vmatpush.msra.mxu0 %v3280
    %3679 = vmatmul.f32.gmra.mxu0 %v3016
    %v3680 = vpop.f32.mrf.mxu0
    %v3681 = vadd.f32 %v3661, %v3680
    %3682 = vdwg.mxu0
    %3683 = vmatpush.msra.mxu0 0.0
    %3684 = vmatpush.msra.mxu0 0.0
    %3685 = vmatpush.msra.mxu0 0.0
    %3686 = vmatpush.msra.mxu0 0.0
    %3687 = vmatpush.msra.mxu0 0.0
    %3688 = vmatpush.msra.mxu0 %v3398
    %3689 = vmatpush.msra.mxu0 %v3380
    %3690 = vmatpush.msra.mxu0 %v3376
    %3691 = vmatpush.msra.mxu0 %v3372
    %3692 = vmatpush.msra.mxu0 %v3368
    %3693 = vmatpush.msra.mxu0 %v3364
    %3694 = vmatpush.msra.mxu0 %v3360
    %3695 = vmatpush.msra.mxu0 %v3356
    %3696 = vmatpush.msra.mxu0 %v3352
    %3697 = vmatpush.msra.mxu0 %v3348
    %3698 = vmatpush.msra.mxu0 %v3344
    %3699 = vmatmul.f32.gmra.mxu0 %v3388
    %v3700 = vpop.f32.mrf.mxu0
    %v3701 = vadd.f32 %v3681, %v3700
    %3702 = vdwg.mxu0
    %3703 = vmatpush.msra.mxu0 %v3149
    %3704 = vmatpush.msra.mxu0 %v3145
    %3705 = vmatpush.msra.mxu0 %v3141
    %3706 = vmatpush.msra.mxu0 %v3137
    %3707 = vmatpush.msra.mxu0 %v3133
    %3708 = vmatpush.msra.mxu0 %v3129
    %3709 = vmatpush.msra.mxu0 %v3125
    %3710 = vmatpush.msra.mxu0 %v3121
    %3711 = vmatpush.msra.mxu0 %v3117
    %3712 = vmatpush.msra.mxu0 %v3113
    %3713 = vmatpush.msra.mxu0 %v3109
    %3714 = vmatpush.msra.mxu0 %v3105
    %3715 = vmatpush.msra.mxu0 %v3101
    %3716 = vmatpush.msra.mxu0 %v3097
    %3717 = vmatpush.msra.mxu0 %v3093
    %3718 = vmatpush.msra.mxu0 %v3089
    %3719 = vmatmul.f32.gmra.mxu0 %v3013
    %v3720 = vpop.f32.mrf.mxu0
    %v3721 = vadd.f32 0.0, %v3720
    %3722 = vdwg.mxu0
    %3723 = vmatpush.msra.mxu0 %v3213
    %3724 = vmatpush.msra.mxu0 %v3209
    %3725 = vmatpush.msra.mxu0 %v3205
    %3726 = vmatpush.msra.mxu0 %v3201
    %3727 = vmatpush.msra.mxu0 %v3197
    %3728 = vmatpush.msra.mxu0 %v3193
    %3729 = vmatpush.msra.mxu0 %v3189
    %3730 = vmatpush.msra.mxu0 %v3185
    %3731 = vmatpush.msra.mxu0 %v3181
    %3732 = vmatpush.msra.mxu0 %v3177
    %3733 = vmatpush.msra.mxu0 %v3173
    %3734 = vmatpush.msra.mxu0 %v3169
    %3735 = vmatpush.msra.mxu0 %v3165
    %3736 = vmatpush.msra.mxu0 %v3161
    %3737 = vmatpush.msra.mxu0 %v3157
    %3738 = vmatpush.msra.mxu0 %v3153
    %3739 = vmatmul.f32.gmra.mxu0 %v3014
    %v3740 = vpop.f32.mrf.mxu0
    %v3741 = vadd.f32 %v3721, %v3740
    %3742 = vdwg.mxu0
    %3743 = vmatpush.msra.mxu0 %v3277
    %3744 = vmatpush.msra.mxu0 %v3273
    %3745 = vmatpush.msra.mxu0 %v3269
    %3746 = vmatpush.msra.mxu0 %v3265
    %3747 = vmatpush.msra.mxu0 %v3261
    %3748 = vmatpush.msra.mxu0 %v3257
    %3749 = vmatpush.msra.mxu0 %v3253
    %3750 = vmatpush.msra.mxu0 %v3249
    %3751 = vmatpush.msra.mxu0 %v3245
    %3752 = vmatpush.msra.mxu0 %v3241
    %3753 = vmatpush.msra.mxu0 %v3237
    %3754 = vmatpush.msra.mxu0 %v3233
    %3755 = vmatpush.msra.mxu0 %v3229
    %3756 = vmatpush.msra.mxu0 %v3225
    %3757 = vmatpush.msra.mxu0 %v3221
    %3758 = vmatpush.msra.mxu0 %v3217
    %3759 = vmatmul.f32.gmra.mxu0 %v3015
    %v3760 = vpop.f32.mrf.mxu0
    %v3761 = vadd.f32 %v3741, %v3760
    %3762 = vdwg.mxu0
    %3763 = vmatpush.msra.mxu0 %v3341
    %3764 = vmatpush.msra.mxu0 %v3337
    %3765 = vmatpush.msra.mxu0 %v3333
    %3766 = vmatpush.msra.mxu0 %v3329
    %3767 = vmatpush.msra.mxu0 %v3325
    %3768 = vmatpush.msra.mxu0 %v3321
    %3769 = vmatpush.msra.mxu0 %v3317
    %3770 = vmatpush.msra.mxu0 %v3313
    %3771 = vmatpush.msra.mxu0 %v3309
    %3772 = vmatpush.msra.mxu0 %v3305
    %3773 = vmatpush.msra.mxu0 %v3301
    %3774 = vmatpush.msra.mxu0 %v3297
    %3775 = vmatpush.msra.mxu0 %v3293
    %3776 = vmatpush.msra.mxu0 %v3289
    %3777 = vmatpush.msra.mxu0 %v3285
    %3778 = vmatpush.msra.mxu0 %v3281
    %3779 = vmatmul.f32.gmra.mxu0 %v3016
    %v3780 = vpop.f32.mrf.mxu0
    %v3781 = vadd.f32 %v3761, %v3780
    %3782 = vdwg.mxu0
    %3783 = vmatpush.msra.mxu0 0.0
    %3784 = vmatpush.msra.mxu0 0.0
    %3785 = vmatpush.msra.mxu0 0.0
    %3786 = vmatpush.msra.mxu0 0.0
    %3787 = vmatpush.msra.mxu0 0.0
    %3788 = vmatpush.msra.mxu0 %v3401
    %3789 = vmatpush.msra.mxu0 %v3381
    %3790 = vmatpush.msra.mxu0 %v3377
    %3791 = vmatpush.msra.mxu0 %v3373
    %3792 = vmatpush.msra.mxu0 %v3369
    %3793 = vmatpush.msra.mxu0 %v3365
    %3794 = vmatpush.msra.mxu0 %v3361
    %3795 = vmatpush.msra.mxu0 %v3357
    %3796 = vmatpush.msra.mxu0 %v3353
    %3797 = vmatpush.msra.mxu0 %v3349
    %3798 = vmatpush.msra.mxu0 %v3345
    %3799 = vmatmul.f32.gmra.mxu0 %v3388
    %v3800 = vpop.f32.mrf.mxu0
    %v3801 = vadd.f32 %v3781, %v3800
    %3802 = vdwg.mxu0
    %3803 = vmatpush.msra.mxu0 %v3082
    %3804 = vmatpush.msra.mxu0 %v3078
    %3805 = vmatpush.msra.mxu0 %v3074
    %3806 = vmatpush.msra.mxu0 %v3070
    %3807 = vmatpush.msra.mxu0 %v3066
    %3808 = vmatpush.msra.mxu0 %v3062
    %3809 = vmatpush.msra.mxu0 %v3058
    %3810 = vmatpush.msra.mxu0 %v3054
    %3811 = vmatpush.msra.mxu0 %v3050
    %3812 = vmatpush.msra.mxu0 %v3046
    %3813 = vmatpush.msra.mxu0 %v3042
    %3814 = vmatpush.msra.mxu0 %v3038
    %3815 = vmatpush.msra.mxu0 %v3034
    %3816 = vmatpush.msra.mxu0 %v3030
    %3817 = vmatpush.msra.mxu0 %v3026
    %3818 = vmatpush.msra.mxu0 %v3022
    %3819 = vmatmul.f32.gmra.mxu0 %v3012
    %v3820 = vpop.f32.mrf.mxu0
    %v3821 = vadd.f32 %v3501, %v3820
    %3822 = vdwg.mxu0
    %3823 = vmatpush.msra.mxu0 %v3083
    %3824 = vmatpush.msra.mxu0 %v3079
    %3825 = vmatpush.msra.mxu0 %v3075
    %3826 = vmatpush.msra.mxu0 %v3071
    %3827 = vmatpush.msra.mxu0 %v3067
    %3828 = vmatpush.msra.mxu0 %v3063
    %3829 = vmatpush.msra.mxu0 %v3059
    %3830 = vmatpush.msra.mxu0 %v3055
    %3831 = vmatpush.msra.mxu0 %v3051
    %3832 = vmatpush.msra.mxu0 %v3047
    %3833 = vmatpush.msra.mxu0 %v3043
    %3834 = vmatpush.msra.mxu0 %v3039
    %3835 = vmatpush.msra.mxu0 %v3035
    %3836 = vmatpush.msra.mxu0 %v3031
    %3837 = vmatpush.msra.mxu0 %v3027
    %3838 = vmatpush.msra.mxu0 %v3023
    %3839 = vmatmul.f32.gmra.mxu0 %v3012
    %v3840 = vpop.f32.mrf.mxu0
    %v3841 = vadd.f32 %v3601, %v3840
    %3842 = vdwg.mxu0
    %3843 = vmatpush.msra.mxu0 %v3084
    %3844 = vmatpush.msra.mxu0 %v3080
    %3845 = vmatpush.msra.mxu0 %v3076
    %3846 = vmatpush.msra.mxu0 %v3072
    %3847 = vmatpush.msra.mxu0 %v3068
    %3848 = vmatpush.msra.mxu0 %v3064
    %3849 = vmatpush.msra.mxu0 %v3060
    %3850 = vmatpush.msra.mxu0 %v3056
    %3851 = vmatpush.msra.mxu0 %v3052
    %3852 = vmatpush.msra.mxu0 %v3048
    %3853 = vmatpush.msra.mxu0 %v3044
    %3854 = vmatpush.msra.mxu0 %v3040
    %3855 = vmatpush.msra.mxu0 %v3036
    %3856 = vmatpush.msra.mxu0 %v3032
    %3857 = vmatpush.msra.mxu0 %v3028
    %3858 = vmatpush.msra.mxu0 %v3024
    %3859 = vmatmul.f32.gmra.mxu0 %v3012
    %v3860 = vpop.f32.mrf.mxu0
    %v3861 = vadd.f32 %v3701, %v3860
    %3862 = vdwg.mxu0
    %3863 = vmatpush.msra.mxu0 %v3085
    %3864 = vmatpush.msra.mxu0 %v3081
    %3865 = vmatpush.msra.mxu0 %v3077
    %3866 = vmatpush.msra.mxu0 %v3073
    %3867 = vmatpush.msra.mxu0 %v3069
    %3868 = vmatpush.msra.mxu0 %v3065
    %3869 = vmatpush.msra.mxu0 %v3061
    %3870 = vmatpush.msra.mxu0 %v3057
    %3871 = vmatpush.msra.mxu0 %v3053
    %3872 = vmatpush.msra.mxu0 %v3049
    %3873 = vmatpush.msra.mxu0 %v3045
    %3874 = vmatpush.msra.mxu0 %v3041
    %3875 = vmatpush.msra.mxu0 %v3037
    %3876 = vmatpush.msra.mxu0 %v3033
    %3877 = vmatpush.msra.mxu0 %v3029
    %3878 = vmatpush.msra.mxu0 %v3025
    %3879 = vmatmul.f32.gmra.mxu0 %v3012
    %v3880 = vpop.f32.mrf.mxu0
    %v3881 = vadd.f32 %v3801, %v3880
    %3882 = vdwg.mxu0
    %v3883 = vld [vmem:[%s7] sm:$0xf]
    %v3885 = vperm.slane %v3883, 0
    %v3886 = vperm.slane %v3883, 1
    %v3887 = vperm.slane %v3883, 2
    %v3888 = vperm.slane %v3883, 3
    %v3893 = vadd.f32 %v3821, %v3885
    %v3894 = vadd.f32 %v3841, %v3886
    %v3895 = vadd.f32 %v3861, %v3887
    %v3896 = vadd.f32 %v3881, %v3888
    %v3897 = vmax.f32 %v3893, 0.0
    %v3898 = vmax.f32 %v3894, 0.0
    %v3899 = vmax.f32 %v3895, 0.0
    %v3900 = vmax.f32 %v3896, 0.0
    %s3901 = smul.u32 8, 64
    %s3902 = smul.u32 %s3901, 4
    %s3903 = sshll.u32 %s3902, 4
    %3904 = dma.done %s683, %s3903
    %v3905 = vld [vmem:[#allocation3] sm:$0xff]
    %v3906 = vld [vmem:[#allocation3 + $0x8] sm:$0xff]
    %v3907 = vld [vmem:[#allocation3 + $0x10] sm:$0xff]
    %v3908 = vld [vmem:[#allocation3 + $0x18] sm:$0xff]
    %v3909 = vld [vmem:[#allocation3 + $0x20] sm:$0xff]
    %v3910 = vld [vmem:[#allocation3 + $0x28] sm:$0xff]
    %v3911 = vld [vmem:[#allocation3 + $0x30] sm:$0xff]
    %v3912 = vld [vmem:[#allocation3 + $0x38] sm:$0xff]
    %v3913 = vld [vmem:[#allocation3 + $0x40] sm:$0xff]
    %v3914 = vld [vmem:[#allocation3 + $0x48] sm:$0xff]
    %v3915 = vld [vmem:[#allocation3 + $0x50] sm:$0xff]
    %v3916 = vld [vmem:[#allocation3 + $0x58] sm:$0xff]
    %v3917 = vld [vmem:[#allocation3 + $0x60] sm:$0xff]
    %v3918 = vld [vmem:[#allocation3 + $0x68] sm:$0xff]
    %v3919 = vld [vmem:[#allocation3 + $0x70] sm:$0xff]
    %v3920 = vld [vmem:[#allocation3 + $0x78] sm:$0xff]
    %v3921 = vld [vmem:[#allocation3 + $0x80] sm:$0xff]
    %v3922 = vld [vmem:[#allocation3 + $0x88] sm:$0xff]
    %v3923 = vld [vmem:[#allocation3 + $0x90] sm:$0xff]
    %v3924 = vld [vmem:[#allocation3 + $0x98] sm:$0xff]
    %v3925 = vld [vmem:[#allocation3 + $0xa0] sm:$0xff]
    %v3926 = vld [vmem:[#allocation3 + $0xa8] sm:$0xff]
    %v3927 = vld [vmem:[#allocation3 + $0xb0] sm:$0xff]
    %v3928 = vld [vmem:[#allocation3 + $0xb8] sm:$0xff]
    %v3929 = vld [vmem:[#allocation3 + $0xc0] sm:$0xff]
    %v3930 = vld [vmem:[#allocation3 + $0xc8] sm:$0xff]
    %v3931 = vld [vmem:[#allocation3 + $0xd0] sm:$0xff]
    %v3932 = vld [vmem:[#allocation3 + $0xd8] sm:$0xff]
    %v3933 = vld [vmem:[#allocation3 + $0xe0] sm:$0xff]
    %v3934 = vld [vmem:[#allocation3 + $0xe8] sm:$0xff]
    %v3935 = vld [vmem:[#allocation3 + $0xf0] sm:$0xff]
    %v3936 = vld [vmem:[#allocation3 + $0xf8] sm:$0xff]
    %v3937 = vld [vmem:[#allocation3 + $0x100] sm:$0xff]
    %v3938 = vld [vmem:[#allocation3 + $0x108] sm:$0xff]
    %v3939 = vld [vmem:[#allocation3 + $0x110] sm:$0xff]
    %v3940 = vld [vmem:[#allocation3 + $0x118] sm:$0xff]
    %v3941 = vld [vmem:[#allocation3 + $0x120] sm:$0xff]
    %v3942 = vld [vmem:[#allocation3 + $0x128] sm:$0xff]
    %v3943 = vld [vmem:[#allocation3 + $0x130] sm:$0xff]
    %v3944 = vld [vmem:[#allocation3 + $0x138] sm:$0xff]
    %v3945 = vld [vmem:[#allocation3 + $0x140] sm:$0xff]
    %v3946 = vld [vmem:[#allocation3 + $0x148] sm:$0xff]
    %v3947 = vld [vmem:[#allocation3 + $0x150] sm:$0xff]
    %v3948 = vld [vmem:[#allocation3 + $0x158] sm:$0xff]
    %v3949 = vld [vmem:[#allocation3 + $0x160] sm:$0xff]
    %v3950 = vld [vmem:[#allocation3 + $0x168] sm:$0xff]
    %v3951 = vld [vmem:[#allocation3 + $0x170] sm:$0xff]
    %v3952 = vld [vmem:[#allocation3 + $0x178] sm:$0xff]
    %v3953 = vld [vmem:[#allocation3 + $0x180] sm:$0xff]
    %v3954 = vld [vmem:[#allocation3 + $0x188] sm:$0xff]
    %v3955 = vld [vmem:[#allocation3 + $0x190] sm:$0xff]
    %v3956 = vld [vmem:[#allocation3 + $0x198] sm:$0xff]
    %v3957 = vld [vmem:[#allocation3 + $0x1a0] sm:$0xff]
    %v3958 = vld [vmem:[#allocation3 + $0x1a8] sm:$0xff]
    %v3959 = vld [vmem:[#allocation3 + $0x1b0] sm:$0xff]
    %v3960 = vld [vmem:[#allocation3 + $0x1b8] sm:$0xff]
    %v3961 = vld [vmem:[#allocation3 + $0x1c0] sm:$0xff]
    %v3962 = vld [vmem:[#allocation3 + $0x1c8] sm:$0xff]
    %v3963 = vld [vmem:[#allocation3 + $0x1d0] sm:$0xff]
    %v3964 = vld [vmem:[#allocation3 + $0x1d8] sm:$0xff]
    %v3965 = vld [vmem:[#allocation3 + $0x1e0] sm:$0xff]
    %v3966 = vld [vmem:[#allocation3 + $0x1e8] sm:$0xff]
    %v3967 = vld [vmem:[#allocation3 + $0x1f0] sm:$0xff]
    %v3968 = vld [vmem:[#allocation3 + $0x1f8] sm:$0xff]
    %v3969 = vld [vmem:[#allocation3 + $0x200] sm:$0xff]
    %v3970 = vld [vmem:[#allocation3 + $0x208] sm:$0xff]
    %v3971 = vld [vmem:[#allocation3 + $0x210] sm:$0xff]
    %v3972 = vld [vmem:[#allocation3 + $0x218] sm:$0xff]
    %v3973 = vld [vmem:[#allocation3 + $0x220] sm:$0xff]
    %v3974 = vld [vmem:[#allocation3 + $0x228] sm:$0xff]
    %v3975 = vld [vmem:[#allocation3 + $0x230] sm:$0xff]
    %v3976 = vld [vmem:[#allocation3 + $0x238] sm:$0xff]
    %v3977 = vld [vmem:[#allocation3 + $0x240] sm:$0xff]
    %v3978 = vld [vmem:[#allocation3 + $0x248] sm:$0xff]
    %v3979 = vld [vmem:[#allocation3 + $0x250] sm:$0xff]
    %v3980 = vld [vmem:[#allocation3 + $0x258] sm:$0xff]
    %v3981 = vld [vmem:[#allocation3 + $0x260] sm:$0xff]
    %v3982 = vld [vmem:[#allocation3 + $0x268] sm:$0xff]
    %v3983 = vld [vmem:[#allocation3 + $0x270] sm:$0xff]
    %v3984 = vld [vmem:[#allocation3 + $0x278] sm:$0xff]
    %v3985 = vld [vmem:[#allocation3 + $0x280] sm:$0xff]
    %v3986 = vld [vmem:[#allocation3 + $0x288] sm:$0xff]
    %v3987 = vld [vmem:[#allocation3 + $0x290] sm:$0xff]
    %v3988 = vld [vmem:[#allocation3 + $0x298] sm:$0xff]
    %v3989 = vld [vmem:[#allocation3 + $0x2a0] sm:$0xff]
    %v3990 = vld [vmem:[#allocation3 + $0x2a8] sm:$0xff]
    %v3991 = vld [vmem:[#allocation3 + $0x2b0] sm:$0xff]
    %v3992 = vld [vmem:[#allocation3 + $0x2b8] sm:$0xff]
    %v3993 = vld [vmem:[#allocation3 + $0x2c0] sm:$0xff]
    %v3994 = vld [vmem:[#allocation3 + $0x2c8] sm:$0xff]
    %v3995 = vld [vmem:[#allocation3 + $0x2d0] sm:$0xff]
    %v3996 = vld [vmem:[#allocation3 + $0x2d8] sm:$0xff]
    %v3997 = vld [vmem:[#allocation3 + $0x2e0] sm:$0xff]
    %v3998 = vld [vmem:[#allocation3 + $0x2e8] sm:$0xff]
    %v3999 = vld [vmem:[#allocation3 + $0x2f0] sm:$0xff]
    %v4000 = vld [vmem:[#allocation3 + $0x2f8] sm:$0xff]
    %v4001 = vld [vmem:[#allocation3 + $0x300] sm:$0xff]
    %v4002 = vld [vmem:[#allocation3 + $0x308] sm:$0xff]
    %v4003 = vld [vmem:[#allocation3 + $0x310] sm:$0xff]
    %v4004 = vld [vmem:[#allocation3 + $0x318] sm:$0xff]
    %v4005 = vld [vmem:[#allocation3 + $0x320] sm:$0xff]
    %v4006 = vld [vmem:[#allocation3 + $0x328] sm:$0xff]
    %v4007 = vld [vmem:[#allocation3 + $0x330] sm:$0xff]
    %v4008 = vld [vmem:[#allocation3 + $0x338] sm:$0xff]
    %v4009 = vld [vmem:[#allocation3 + $0x340] sm:$0xff]
    %v4010 = vld [vmem:[#allocation3 + $0x348] sm:$0xff]
    %v4011 = vld [vmem:[#allocation3 + $0x350] sm:$0xff]
    %v4012 = vld [vmem:[#allocation3 + $0x358] sm:$0xff]
    %v4013 = vld [vmem:[#allocation3 + $0x360] sm:$0xff]
    %v4014 = vld [vmem:[#allocation3 + $0x368] sm:$0xff]
    %v4015 = vld [vmem:[#allocation3 + $0x370] sm:$0xff]
    %v4016 = vld [vmem:[#allocation3 + $0x378] sm:$0xff]
    %v4017 = vld [vmem:[#allocation3 + $0x380] sm:$0xff]
    %v4018 = vld [vmem:[#allocation3 + $0x388] sm:$0xff]
    %v4019 = vld [vmem:[#allocation3 + $0x390] sm:$0xff]
    %v4020 = vld [vmem:[#allocation3 + $0x398] sm:$0xff]
    %v4021 = vld [vmem:[#allocation3 + $0x3a0] sm:$0xff]
    %v4022 = vld [vmem:[#allocation3 + $0x3a8] sm:$0xff]
    %v4023 = vld [vmem:[#allocation3 + $0x3b0] sm:$0xff]
    %v4024 = vld [vmem:[#allocation3 + $0x3b8] sm:$0xff]
    %v4025 = vld [vmem:[#allocation3 + $0x3c0] sm:$0xff]
    %v4026 = vld [vmem:[#allocation3 + $0x3c8] sm:$0xff]
    %v4027 = vld [vmem:[#allocation3 + $0x3d0] sm:$0xff]
    %v4028 = vld [vmem:[#allocation3 + $0x3d8] sm:$0xff]
    %v4029 = vld [vmem:[#allocation3 + $0x3e0] sm:$0xff]
    %v4030 = vld [vmem:[#allocation3 + $0x3e8] sm:$0xff]
    %v4031 = vld [vmem:[#allocation3 + $0x3f0] sm:$0xff]
    %v4032 = vld [vmem:[#allocation3 + $0x3f8] sm:$0xff]
    %v4033 = vld [vmem:[#allocation3 + $0x400] sm:$0xff]
    %v4034 = vld [vmem:[#allocation3 + $0x408] sm:$0xff]
    %v4035 = vld [vmem:[#allocation3 + $0x410] sm:$0xff]
    %v4036 = vld [vmem:[#allocation3 + $0x418] sm:$0xff]
    %v4037 = vld [vmem:[#allocation3 + $0x420] sm:$0xff]
    %v4038 = vld [vmem:[#allocation3 + $0x428] sm:$0xff]
    %v4039 = vld [vmem:[#allocation3 + $0x430] sm:$0xff]
    %v4040 = vld [vmem:[#allocation3 + $0x438] sm:$0xff]
    %v4041 = vld [vmem:[#allocation3 + $0x440] sm:$0xff]
    %v4042 = vld [vmem:[#allocation3 + $0x448] sm:$0xff]
    %v4043 = vld [vmem:[#allocation3 + $0x450] sm:$0xff]
    %v4044 = vld [vmem:[#allocation3 + $0x458] sm:$0xff]
    %v4045 = vld [vmem:[#allocation3 + $0x460] sm:$0xff]
    %v4046 = vld [vmem:[#allocation3 + $0x468] sm:$0xff]
    %v4047 = vld [vmem:[#allocation3 + $0x470] sm:$0xff]
    %v4048 = vld [vmem:[#allocation3 + $0x478] sm:$0xff]
    %v4049 = vld [vmem:[#allocation3 + $0x480] sm:$0xff]
    %v4050 = vld [vmem:[#allocation3 + $0x488] sm:$0xff]
    %v4051 = vld [vmem:[#allocation3 + $0x490] sm:$0xff]
    %v4052 = vld [vmem:[#allocation3 + $0x498] sm:$0xff]
    %v4053 = vld [vmem:[#allocation3 + $0x4a0] sm:$0xff]
    %v4054 = vld [vmem:[#allocation3 + $0x4a8] sm:$0xff]
    %v4055 = vld [vmem:[#allocation3 + $0x4b0] sm:$0xff]
    %v4056 = vld [vmem:[#allocation3 + $0x4b8] sm:$0xff]
    %v4057 = vld [vmem:[#allocation3 + $0x4c0] sm:$0xff]
    %v4058 = vld [vmem:[#allocation3 + $0x4c8] sm:$0xff]
    %v4059 = vld [vmem:[#allocation3 + $0x4d0] sm:$0xff]
    %v4060 = vld [vmem:[#allocation3 + $0x4d8] sm:$0xff]
    %v4061 = vld [vmem:[#allocation3 + $0x4e0] sm:$0xff]
    %v4062 = vld [vmem:[#allocation3 + $0x4e8] sm:$0xff]
    %v4063 = vld [vmem:[#allocation3 + $0x4f0] sm:$0xff]
    %v4064 = vld [vmem:[#allocation3 + $0x4f8] sm:$0xff]
    %v4065 = vld [vmem:[#allocation3 + $0x500] sm:$0xff]
    %v4066 = vld [vmem:[#allocation3 + $0x508] sm:$0xff]
    %v4067 = vld [vmem:[#allocation3 + $0x510] sm:$0xff]
    %v4068 = vld [vmem:[#allocation3 + $0x518] sm:$0xff]
    %v4069 = vld [vmem:[#allocation3 + $0x520] sm:$0xff]
    %v4070 = vld [vmem:[#allocation3 + $0x528] sm:$0xff]
    %v4071 = vld [vmem:[#allocation3 + $0x530] sm:$0xff]
    %v4072 = vld [vmem:[#allocation3 + $0x538] sm:$0xff]
    %v4073 = vld [vmem:[#allocation3 + $0x540] sm:$0xff]
    %v4074 = vld [vmem:[#allocation3 + $0x548] sm:$0xff]
    %v4075 = vld [vmem:[#allocation3 + $0x550] sm:$0xff]
    %v4076 = vld [vmem:[#allocation3 + $0x558] sm:$0xff]
    %v4077 = vld [vmem:[#allocation3 + $0x560] sm:$0xff]
    %v4078 = vld [vmem:[#allocation3 + $0x568] sm:$0xff]
    %v4079 = vld [vmem:[#allocation3 + $0x570] sm:$0xff]
    %v4080 = vld [vmem:[#allocation3 + $0x578] sm:$0xff]
    %v4081 = vld [vmem:[#allocation3 + $0x580] sm:$0xff]
    %v4082 = vld [vmem:[#allocation3 + $0x588] sm:$0xff]
    %v4083 = vld [vmem:[#allocation3 + $0x590] sm:$0xff]
    %v4084 = vld [vmem:[#allocation3 + $0x598] sm:$0xff]
    %v4085 = vld [vmem:[#allocation3 + $0x5a0] sm:$0xff]
    %v4086 = vld [vmem:[#allocation3 + $0x5a8] sm:$0xff]
    %v4087 = vld [vmem:[#allocation3 + $0x5b0] sm:$0xff]
    %v4088 = vld [vmem:[#allocation3 + $0x5b8] sm:$0xff]
    %v4089 = vld [vmem:[#allocation3 + $0x5c0] sm:$0xff]
    %v4090 = vld [vmem:[#allocation3 + $0x5c8] sm:$0xff]
    %v4091 = vld [vmem:[#allocation3 + $0x5d0] sm:$0xff]
    %v4092 = vld [vmem:[#allocation3 + $0x5d8] sm:$0xff]
    %v4093 = vld [vmem:[#allocation3 + $0x5e0] sm:$0xff]
    %v4094 = vld [vmem:[#allocation3 + $0x5e8] sm:$0xff]
    %v4095 = vld [vmem:[#allocation3 + $0x5f0] sm:$0xff]
    %v4096 = vld [vmem:[#allocation3 + $0x5f8] sm:$0xff]
    %v4097 = vld [vmem:[#allocation3 + $0x600] sm:$0xff]
    %v4098 = vld [vmem:[#allocation3 + $0x608] sm:$0xff]
    %v4099 = vld [vmem:[#allocation3 + $0x610] sm:$0xff]
    %v4100 = vld [vmem:[#allocation3 + $0x618] sm:$0xff]
    %v4101 = vld [vmem:[#allocation3 + $0x620] sm:$0xff]
    %v4102 = vld [vmem:[#allocation3 + $0x628] sm:$0xff]
    %v4103 = vld [vmem:[#allocation3 + $0x630] sm:$0xff]
    %v4104 = vld [vmem:[#allocation3 + $0x638] sm:$0xff]
    %v4105 = vld [vmem:[#allocation3 + $0x640] sm:$0xff]
    %v4106 = vld [vmem:[#allocation3 + $0x648] sm:$0xff]
    %v4107 = vld [vmem:[#allocation3 + $0x650] sm:$0xff]
    %v4108 = vld [vmem:[#allocation3 + $0x658] sm:$0xff]
    %v4109 = vld [vmem:[#allocation3 + $0x660] sm:$0xff]
    %v4110 = vld [vmem:[#allocation3 + $0x668] sm:$0xff]
    %v4111 = vld [vmem:[#allocation3 + $0x670] sm:$0xff]
    %v4112 = vld [vmem:[#allocation3 + $0x678] sm:$0xff]
    %v4113 = vld [vmem:[#allocation3 + $0x680] sm:$0xff]
    %v4114 = vld [vmem:[#allocation3 + $0x688] sm:$0xff]
    %v4115 = vld [vmem:[#allocation3 + $0x690] sm:$0xff]
    %v4116 = vld [vmem:[#allocation3 + $0x698] sm:$0xff]
    %v4117 = vld [vmem:[#allocation3 + $0x6a0] sm:$0xff]
    %v4118 = vld [vmem:[#allocation3 + $0x6a8] sm:$0xff]
    %v4119 = vld [vmem:[#allocation3 + $0x6b0] sm:$0xff]
    %v4120 = vld [vmem:[#allocation3 + $0x6b8] sm:$0xff]
    %v4121 = vld [vmem:[#allocation3 + $0x6c0] sm:$0xff]
    %v4122 = vld [vmem:[#allocation3 + $0x6c8] sm:$0xff]
    %v4123 = vld [vmem:[#allocation3 + $0x6d0] sm:$0xff]
    %v4124 = vld [vmem:[#allocation3 + $0x6d8] sm:$0xff]
    %v4125 = vld [vmem:[#allocation3 + $0x6e0] sm:$0xff]
    %v4126 = vld [vmem:[#allocation3 + $0x6e8] sm:$0xff]
    %v4127 = vld [vmem:[#allocation3 + $0x6f0] sm:$0xff]
    %v4128 = vld [vmem:[#allocation3 + $0x6f8] sm:$0xff]
    %v4129 = vld [vmem:[#allocation3 + $0x700] sm:$0xff]
    %v4130 = vld [vmem:[#allocation3 + $0x708] sm:$0xff]
    %v4131 = vld [vmem:[#allocation3 + $0x710] sm:$0xff]
    %v4132 = vld [vmem:[#allocation3 + $0x718] sm:$0xff]
    %v4133 = vld [vmem:[#allocation3 + $0x720] sm:$0xff]
    %v4134 = vld [vmem:[#allocation3 + $0x728] sm:$0xff]
    %v4135 = vld [vmem:[#allocation3 + $0x730] sm:$0xff]
    %v4136 = vld [vmem:[#allocation3 + $0x738] sm:$0xff]
    %v4137 = vld [vmem:[#allocation3 + $0x740] sm:$0xff]
    %v4138 = vld [vmem:[#allocation3 + $0x748] sm:$0xff]
    %v4139 = vld [vmem:[#allocation3 + $0x750] sm:$0xff]
    %v4140 = vld [vmem:[#allocation3 + $0x758] sm:$0xff]
    %v4141 = vld [vmem:[#allocation3 + $0x760] sm:$0xff]
    %v4142 = vld [vmem:[#allocation3 + $0x768] sm:$0xff]
    %v4143 = vld [vmem:[#allocation3 + $0x770] sm:$0xff]
    %v4144 = vld [vmem:[#allocation3 + $0x778] sm:$0xff]
    %v4145 = vld [vmem:[#allocation3 + $0x780] sm:$0xff]
    %v4146 = vld [vmem:[#allocation3 + $0x788] sm:$0xff]
    %v4147 = vld [vmem:[#allocation3 + $0x790] sm:$0xff]
    %v4148 = vld [vmem:[#allocation3 + $0x798] sm:$0xff]
    %v4149 = vld [vmem:[#allocation3 + $0x7a0] sm:$0xff]
    %v4150 = vld [vmem:[#allocation3 + $0x7a8] sm:$0xff]
    %v4151 = vld [vmem:[#allocation3 + $0x7b0] sm:$0xff]
    %v4152 = vld [vmem:[#allocation3 + $0x7b8] sm:$0xff]
    %v4153 = vld [vmem:[#allocation3 + $0x7c0] sm:$0xff]
    %v4154 = vld [vmem:[#allocation3 + $0x7c8] sm:$0xff]
    %v4155 = vld [vmem:[#allocation3 + $0x7d0] sm:$0xff]
    %v4156 = vld [vmem:[#allocation3 + $0x7d8] sm:$0xff]
    %v4157 = vld [vmem:[#allocation3 + $0x7e0] sm:$0xff]
    %v4158 = vld [vmem:[#allocation3 + $0x7e8] sm:$0xff]
    %v4159 = vld [vmem:[#allocation3 + $0x7f0] sm:$0xff]
    %v4160 = vld [vmem:[#allocation3 + $0x7f8] sm:$0xff]
    %v4161 = vld [vmem:[%s9] sm:$0xf]
    %v4163 = vperm.slane %v4161, 0
    %v4164 = vperm.slane %v4161, 1
    %v4165 = vperm.slane %v4161, 2
    %v4166 = vperm.slane %v4161, 3
    %4171 = vmatpush.msra.mxu0 %v3965
    %4172 = vmatpush.msra.mxu0 %v3961
    %4173 = vmatpush.msra.mxu0 %v3957
    %4174 = vmatpush.msra.mxu0 %v3953
    %4175 = vmatpush.msra.mxu0 %v3949
    %4176 = vmatpush.msra.mxu0 %v3945
    %4177 = vmatpush.msra.mxu0 %v3941
    %4178 = vmatpush.msra.mxu0 %v3937
    %4179 = vmatpush.msra.mxu0 %v3933
    %4180 = vmatpush.msra.mxu0 %v3929
    %4181 = vmatpush.msra.mxu0 %v3925
    %4182 = vmatpush.msra.mxu0 %v3921
    %4183 = vmatpush.msra.mxu0 %v3917
    %4184 = vmatpush.msra.mxu0 %v3913
    %4185 = vmatpush.msra.mxu0 %v3909
    %4186 = vmatpush.msra.mxu0 %v3905
    %4187 = vmatmul.f32.gmra.mxu0 %v3897
    %v4188 = vpop.f32.mrf.mxu0
    %v4189 = vadd.f32 %v4163, %v4188
    %4190 = vdwg.mxu0
    %4191 = vmatpush.msra.mxu0 %v4029
    %4192 = vmatpush.msra.mxu0 %v4025
    %4193 = vmatpush.msra.mxu0 %v4021
    %4194 = vmatpush.msra.mxu0 %v4017
    %4195 = vmatpush.msra.mxu0 %v4013
    %4196 = vmatpush.msra.mxu0 %v4009
    %4197 = vmatpush.msra.mxu0 %v4005
    %4198 = vmatpush.msra.mxu0 %v4001
    %4199 = vmatpush.msra.mxu0 %v3997
    %4200 = vmatpush.msra.mxu0 %v3993
    %4201 = vmatpush.msra.mxu0 %v3989
    %4202 = vmatpush.msra.mxu0 %v3985
    %4203 = vmatpush.msra.mxu0 %v3981
    %4204 = vmatpush.msra.mxu0 %v3977
    %4205 = vmatpush.msra.mxu0 %v3973
    %4206 = vmatpush.msra.mxu0 %v3969
    %4207 = vmatmul.f32.gmra.mxu0 %v3898
    %v4208 = vpop.f32.mrf.mxu0
    %v4209 = vadd.f32 %v4189, %v4208
    %4210 = vdwg.mxu0
    %4211 = vmatpush.msra.mxu0 %v4093
    %4212 = vmatpush.msra.mxu0 %v4089
    %4213 = vmatpush.msra.mxu0 %v4085
    %4214 = vmatpush.msra.mxu0 %v4081
    %4215 = vmatpush.msra.mxu0 %v4077
    %4216 = vmatpush.msra.mxu0 %v4073
    %4217 = vmatpush.msra.mxu0 %v4069
    %4218 = vmatpush.msra.mxu0 %v4065
    %4219 = vmatpush.msra.mxu0 %v4061
    %4220 = vmatpush.msra.mxu0 %v4057
    %4221 = vmatpush.msra.mxu0 %v4053
    %4222 = vmatpush.msra.mxu0 %v4049
    %4223 = vmatpush.msra.mxu0 %v4045
    %4224 = vmatpush.msra.mxu0 %v4041
    %4225 = vmatpush.msra.mxu0 %v4037
    %4226 = vmatpush.msra.mxu0 %v4033
    %4227 = vmatmul.f32.gmra.mxu0 %v3899
    %v4228 = vpop.f32.mrf.mxu0
    %v4229 = vadd.f32 %v4209, %v4228
    %4230 = vdwg.mxu0
    %4231 = vmatpush.msra.mxu0 %v4157
    %4232 = vmatpush.msra.mxu0 %v4153
    %4233 = vmatpush.msra.mxu0 %v4149
    %4234 = vmatpush.msra.mxu0 %v4145
    %4235 = vmatpush.msra.mxu0 %v4141
    %4236 = vmatpush.msra.mxu0 %v4137
    %4237 = vmatpush.msra.mxu0 %v4133
    %4238 = vmatpush.msra.mxu0 %v4129
    %4239 = vmatpush.msra.mxu0 %v4125
    %4240 = vmatpush.msra.mxu0 %v4121
    %4241 = vmatpush.msra.mxu0 %v4117
    %4242 = vmatpush.msra.mxu0 %v4113
    %4243 = vmatpush.msra.mxu0 %v4109
    %4244 = vmatpush.msra.mxu0 %v4105
    %4245 = vmatpush.msra.mxu0 %v4101
    %4246 = vmatpush.msra.mxu0 %v4097
    %4247 = vmatmul.f32.gmra.mxu0 %v3900
    %v4248 = vpop.f32.mrf.mxu0
    %v4249 = vadd.f32 %v4229, %v4248
    %4250 = vdwg.mxu0
    %4251 = vmatpush.msra.mxu0 %v3966
    %4252 = vmatpush.msra.mxu0 %v3962
    %4253 = vmatpush.msra.mxu0 %v3958
    %4254 = vmatpush.msra.mxu0 %v3954
    %4255 = vmatpush.msra.mxu0 %v3950
    %4256 = vmatpush.msra.mxu0 %v3946
    %4257 = vmatpush.msra.mxu0 %v3942
    %4258 = vmatpush.msra.mxu0 %v3938
    %4259 = vmatpush.msra.mxu0 %v3934
    %4260 = vmatpush.msra.mxu0 %v3930
    %4261 = vmatpush.msra.mxu0 %v3926
    %4262 = vmatpush.msra.mxu0 %v3922
    %4263 = vmatpush.msra.mxu0 %v3918
    %4264 = vmatpush.msra.mxu0 %v3914
    %4265 = vmatpush.msra.mxu0 %v3910
    %4266 = vmatpush.msra.mxu0 %v3906
    %4267 = vmatmul.f32.gmra.mxu0 %v3897
    %v4268 = vpop.f32.mrf.mxu0
    %v4269 = vadd.f32 %v4164, %v4268
    %4270 = vdwg.mxu0
    %4271 = vmatpush.msra.mxu0 %v4030
    %4272 = vmatpush.msra.mxu0 %v4026
    %4273 = vmatpush.msra.mxu0 %v4022
    %4274 = vmatpush.msra.mxu0 %v4018
    %4275 = vmatpush.msra.mxu0 %v4014
    %4276 = vmatpush.msra.mxu0 %v4010
    %4277 = vmatpush.msra.mxu0 %v4006
    %4278 = vmatpush.msra.mxu0 %v4002
    %4279 = vmatpush.msra.mxu0 %v3998
    %4280 = vmatpush.msra.mxu0 %v3994
    %4281 = vmatpush.msra.mxu0 %v3990
    %4282 = vmatpush.msra.mxu0 %v3986
    %4283 = vmatpush.msra.mxu0 %v3982
    %4284 = vmatpush.msra.mxu0 %v3978
    %4285 = vmatpush.msra.mxu0 %v3974
    %4286 = vmatpush.msra.mxu0 %v3970
    %4287 = vmatmul.f32.gmra.mxu0 %v3898
    %v4288 = vpop.f32.mrf.mxu0
    %v4289 = vadd.f32 %v4269, %v4288
    %4290 = vdwg.mxu0
    %4291 = vmatpush.msra.mxu0 %v4094
    %4292 = vmatpush.msra.mxu0 %v4090
    %4293 = vmatpush.msra.mxu0 %v4086
    %4294 = vmatpush.msra.mxu0 %v4082
    %4295 = vmatpush.msra.mxu0 %v4078
    %4296 = vmatpush.msra.mxu0 %v4074
    %4297 = vmatpush.msra.mxu0 %v4070
    %4298 = vmatpush.msra.mxu0 %v4066
    %4299 = vmatpush.msra.mxu0 %v4062
    %4300 = vmatpush.msra.mxu0 %v4058
    %4301 = vmatpush.msra.mxu0 %v4054
    %4302 = vmatpush.msra.mxu0 %v4050
    %4303 = vmatpush.msra.mxu0 %v4046
    %4304 = vmatpush.msra.mxu0 %v4042
    %4305 = vmatpush.msra.mxu0 %v4038
    %4306 = vmatpush.msra.mxu0 %v4034
    %4307 = vmatmul.f32.gmra.mxu0 %v3899
    %v4308 = vpop.f32.mrf.mxu0
    %v4309 = vadd.f32 %v4289, %v4308
    %4310 = vdwg.mxu0
    %4311 = vmatpush.msra.mxu0 %v4158
    %4312 = vmatpush.msra.mxu0 %v4154
    %4313 = vmatpush.msra.mxu0 %v4150
    %4314 = vmatpush.msra.mxu0 %v4146
    %4315 = vmatpush.msra.mxu0 %v4142
    %4316 = vmatpush.msra.mxu0 %v4138
    %4317 = vmatpush.msra.mxu0 %v4134
    %4318 = vmatpush.msra.mxu0 %v4130
    %4319 = vmatpush.msra.mxu0 %v4126
    %4320 = vmatpush.msra.mxu0 %v4122
    %4321 = vmatpush.msra.mxu0 %v4118
    %4322 = vmatpush.msra.mxu0 %v4114
    %4323 = vmatpush.msra.mxu0 %v4110
    %4324 = vmatpush.msra.mxu0 %v4106
    %4325 = vmatpush.msra.mxu0 %v4102
    %4326 = vmatpush.msra.mxu0 %v4098
    %4327 = vmatmul.f32.gmra.mxu0 %v3900
    %v4328 = vpop.f32.mrf.mxu0
    %v4329 = vadd.f32 %v4309, %v4328
    %4330 = vdwg.mxu0
    %4331 = vmatpush.msra.mxu0 %v3967
    %4332 = vmatpush.msra.mxu0 %v3963
    %4333 = vmatpush.msra.mxu0 %v3959
    %4334 = vmatpush.msra.mxu0 %v3955
    %4335 = vmatpush.msra.mxu0 %v3951
    %4336 = vmatpush.msra.mxu0 %v3947
    %4337 = vmatpush.msra.mxu0 %v3943
    %4338 = vmatpush.msra.mxu0 %v3939
    %4339 = vmatpush.msra.mxu0 %v3935
    %4340 = vmatpush.msra.mxu0 %v3931
    %4341 = vmatpush.msra.mxu0 %v3927
    %4342 = vmatpush.msra.mxu0 %v3923
    %4343 = vmatpush.msra.mxu0 %v3919
    %4344 = vmatpush.msra.mxu0 %v3915
    %4345 = vmatpush.msra.mxu0 %v3911
    %4346 = vmatpush.msra.mxu0 %v3907
    %4347 = vmatmul.f32.gmra.mxu0 %v3897
    %v4348 = vpop.f32.mrf.mxu0
    %v4349 = vadd.f32 %v4165, %v4348
    %4350 = vdwg.mxu0
    %4351 = vmatpush.msra.mxu0 %v4031
    %4352 = vmatpush.msra.mxu0 %v4027
    %4353 = vmatpush.msra.mxu0 %v4023
    %4354 = vmatpush.msra.mxu0 %v4019
    %4355 = vmatpush.msra.mxu0 %v4015
    %4356 = vmatpush.msra.mxu0 %v4011
    %4357 = vmatpush.msra.mxu0 %v4007
    %4358 = vmatpush.msra.mxu0 %v4003
    %4359 = vmatpush.msra.mxu0 %v3999
    %4360 = vmatpush.msra.mxu0 %v3995
    %4361 = vmatpush.msra.mxu0 %v3991
    %4362 = vmatpush.msra.mxu0 %v3987
    %4363 = vmatpush.msra.mxu0 %v3983
    %4364 = vmatpush.msra.mxu0 %v3979
    %4365 = vmatpush.msra.mxu0 %v3975
    %4366 = vmatpush.msra.mxu0 %v3971
    %4367 = vmatmul.f32.gmra.mxu0 %v3898
    %v4368 = vpop.f32.mrf.mxu0
    %v4369 = vadd.f32 %v4349, %v4368
    %4370 = vdwg.mxu0
    %4371 = vmatpush.msra.mxu0 %v4095
    %4372 = vmatpush.msra.mxu0 %v4091
    %4373 = vmatpush.msra.mxu0 %v4087
    %4374 = vmatpush.msra.mxu0 %v4083
    %4375 = vmatpush.msra.mxu0 %v4079
    %4376 = vmatpush.msra.mxu0 %v4075
    %4377 = vmatpush.msra.mxu0 %v4071
    %4378 = vmatpush.msra.mxu0 %v4067
    %4379 = vmatpush.msra.mxu0 %v4063
    %4380 = vmatpush.msra.mxu0 %v4059
    %4381 = vmatpush.msra.mxu0 %v4055
    %4382 = vmatpush.msra.mxu0 %v4051
    %4383 = vmatpush.msra.mxu0 %v4047
    %4384 = vmatpush.msra.mxu0 %v4043
    %4385 = vmatpush.msra.mxu0 %v4039
    %4386 = vmatpush.msra.mxu0 %v4035
    %4387 = vmatmul.f32.gmra.mxu0 %v3899
    %v4388 = vpop.f32.mrf.mxu0
    %v4389 = vadd.f32 %v4369, %v4388
    %4390 = vdwg.mxu0
    %4391 = vmatpush.msra.mxu0 %v4159
    %4392 = vmatpush.msra.mxu0 %v4155
    %4393 = vmatpush.msra.mxu0 %v4151
    %4394 = vmatpush.msra.mxu0 %v4147
    %4395 = vmatpush.msra.mxu0 %v4143
    %4396 = vmatpush.msra.mxu0 %v4139
    %4397 = vmatpush.msra.mxu0 %v4135
    %4398 = vmatpush.msra.mxu0 %v4131
    %4399 = vmatpush.msra.mxu0 %v4127
    %4400 = vmatpush.msra.mxu0 %v4123
    %4401 = vmatpush.msra.mxu0 %v4119
    %4402 = vmatpush.msra.mxu0 %v4115
    %4403 = vmatpush.msra.mxu0 %v4111
    %4404 = vmatpush.msra.mxu0 %v4107
    %4405 = vmatpush.msra.mxu0 %v4103
    %4406 = vmatpush.msra.mxu0 %v4099
    %4407 = vmatmul.f32.gmra.mxu0 %v3900
    %v4408 = vpop.f32.mrf.mxu0
    %v4409 = vadd.f32 %v4389, %v4408
    %4410 = vdwg.mxu0
    %4411 = vmatpush.msra.mxu0 %v3968
    %4412 = vmatpush.msra.mxu0 %v3964
    %4413 = vmatpush.msra.mxu0 %v3960
    %4414 = vmatpush.msra.mxu0 %v3956
    %4415 = vmatpush.msra.mxu0 %v3952
    %4416 = vmatpush.msra.mxu0 %v3948
    %4417 = vmatpush.msra.mxu0 %v3944
    %4418 = vmatpush.msra.mxu0 %v3940
    %4419 = vmatpush.msra.mxu0 %v3936
    %4420 = vmatpush.msra.mxu0 %v3932
    %4421 = vmatpush.msra.mxu0 %v3928
    %4422 = vmatpush.msra.mxu0 %v3924
    %4423 = vmatpush.msra.mxu0 %v3920
    %4424 = vmatpush.msra.mxu0 %v3916
    %4425 = vmatpush.msra.mxu0 %v3912
    %4426 = vmatpush.msra.mxu0 %v3908
    %4427 = vmatmul.f32.gmra.mxu0 %v3897
    %v4428 = vpop.f32.mrf.mxu0
    %v4429 = vadd.f32 %v4166, %v4428
    %4430 = vdwg.mxu0
    %4431 = vmatpush.msra.mxu0 %v4032
    %4432 = vmatpush.msra.mxu0 %v4028
    %4433 = vmatpush.msra.mxu0 %v4024
    %4434 = vmatpush.msra.mxu0 %v4020
    %4435 = vmatpush.msra.mxu0 %v4016
    %4436 = vmatpush.msra.mxu0 %v4012
    %4437 = vmatpush.msra.mxu0 %v4008
    %4438 = vmatpush.msra.mxu0 %v4004
    %4439 = vmatpush.msra.mxu0 %v4000
    %4440 = vmatpush.msra.mxu0 %v3996
    %4441 = vmatpush.msra.mxu0 %v3992
    %4442 = vmatpush.msra.mxu0 %v3988
    %4443 = vmatpush.msra.mxu0 %v3984
    %4444 = vmatpush.msra.mxu0 %v3980
    %4445 = vmatpush.msra.mxu0 %v3976
    %4446 = vmatpush.msra.mxu0 %v3972
    %4447 = vmatmul.f32.gmra.mxu0 %v3898
    %v4448 = vpop.f32.mrf.mxu0
    %v4449 = vadd.f32 %v4429, %v4448
    %4450 = vdwg.mxu0
    %4451 = vmatpush.msra.mxu0 %v4096
    %4452 = vmatpush.msra.mxu0 %v4092
    %4453 = vmatpush.msra.mxu0 %v4088
    %4454 = vmatpush.msra.mxu0 %v4084
    %4455 = vmatpush.msra.mxu0 %v4080
    %4456 = vmatpush.msra.mxu0 %v4076
    %4457 = vmatpush.msra.mxu0 %v4072
    %4458 = vmatpush.msra.mxu0 %v4068
    %4459 = vmatpush.msra.mxu0 %v4064
    %4460 = vmatpush.msra.mxu0 %v4060
    %4461 = vmatpush.msra.mxu0 %v4056
    %4462 = vmatpush.msra.mxu0 %v4052
    %4463 = vmatpush.msra.mxu0 %v4048
    %4464 = vmatpush.msra.mxu0 %v4044
    %4465 = vmatpush.msra.mxu0 %v4040
    %4466 = vmatpush.msra.mxu0 %v4036
    %4467 = vmatmul.f32.gmra.mxu0 %v3899
    %v4468 = vpop.f32.mrf.mxu0
    %v4469 = vadd.f32 %v4449, %v4468
    %4470 = vdwg.mxu0
    %4471 = vmatpush.msra.mxu0 %v4160
    %4472 = vmatpush.msra.mxu0 %v4156
    %4473 = vmatpush.msra.mxu0 %v4152
    %4474 = vmatpush.msra.mxu0 %v4148
    %4475 = vmatpush.msra.mxu0 %v4144
    %4476 = vmatpush.msra.mxu0 %v4140
    %4477 = vmatpush.msra.mxu0 %v4136
    %4478 = vmatpush.msra.mxu0 %v4132
    %4479 = vmatpush.msra.mxu0 %v4128
    %4480 = vmatpush.msra.mxu0 %v4124
    %4481 = vmatpush.msra.mxu0 %v4120
    %4482 = vmatpush.msra.mxu0 %v4116
    %4483 = vmatpush.msra.mxu0 %v4112
    %4484 = vmatpush.msra.mxu0 %v4108
    %4485 = vmatpush.msra.mxu0 %v4104
    %4486 = vmatpush.msra.mxu0 %v4100
    %4487 = vmatmul.f32.gmra.mxu0 %v3900
    %v4488 = vpop.f32.mrf.mxu0
    %v4489 = vadd.f32 %v4469, %v4488
    %4490 = vdwg.mxu0
    %v4491 = vmax.f32 %v4249, 0.0
    %v4492 = vmax.f32 %v4329, 0.0
    %v4493 = vmax.f32 %v4409, 0.0
    %v4494 = vmax.f32 %v4489, 0.0
    %s4495 = sshll.u32 %s3902, 4
    %4496 = dma.done %s1212, %s4495
    %v4497 = vld [vmem:[#allocation4] sm:$0xff]
    %v4498 = vld [vmem:[#allocation4 + $0x8] sm:$0xff]
    %v4499 = vld [vmem:[#allocation4 + $0x10] sm:$0xff]
    %v4500 = vld [vmem:[#allocation4 + $0x18] sm:$0xff]
    %v4501 = vld [vmem:[#allocation4 + $0x20] sm:$0xff]
    %v4502 = vld [vmem:[#allocation4 + $0x28] sm:$0xff]
    %v4503 = vld [vmem:[#allocation4 + $0x30] sm:$0xff]
    %v4504 = vld [vmem:[#allocation4 + $0x38] sm:$0xff]
    %v4505 = vld [vmem:[#allocation4 + $0x40] sm:$0xff]
    %v4506 = vld [vmem:[#allocation4 + $0x48] sm:$0xff]
    %v4507 = vld [vmem:[#allocation4 + $0x50] sm:$0xff]
    %v4508 = vld [vmem:[#allocation4 + $0x58] sm:$0xff]
    %v4509 = vld [vmem:[#allocation4 + $0x60] sm:$0xff]
    %v4510 = vld [vmem:[#allocation4 + $0x68] sm:$0xff]
    %v4511 = vld [vmem:[#allocation4 + $0x70] sm:$0xff]
    %v4512 = vld [vmem:[#allocation4 + $0x78] sm:$0xff]
    %v4513 = vld [vmem:[#allocation4 + $0x80] sm:$0xff]
    %v4514 = vld [vmem:[#allocation4 + $0x88] sm:$0xff]
    %v4515 = vld [vmem:[#allocation4 + $0x90] sm:$0xff]
    %v4516 = vld [vmem:[#allocation4 + $0x98] sm:$0xff]
    %v4517 = vld [vmem:[#allocation4 + $0xa0] sm:$0xff]
    %v4518 = vld [vmem:[#allocation4 + $0xa8] sm:$0xff]
    %v4519 = vld [vmem:[#allocation4 + $0xb0] sm:$0xff]
    %v4520 = vld [vmem:[#allocation4 + $0xb8] sm:$0xff]
    %v4521 = vld [vmem:[#allocation4 + $0xc0] sm:$0xff]
    %v4522 = vld [vmem:[#allocation4 + $0xc8] sm:$0xff]
    %v4523 = vld [vmem:[#allocation4 + $0xd0] sm:$0xff]
    %v4524 = vld [vmem:[#allocation4 + $0xd8] sm:$0xff]
    %v4525 = vld [vmem:[#allocation4 + $0xe0] sm:$0xff]
    %v4526 = vld [vmem:[#allocation4 + $0xe8] sm:$0xff]
    %v4527 = vld [vmem:[#allocation4 + $0xf0] sm:$0xff]
    %v4528 = vld [vmem:[#allocation4 + $0xf8] sm:$0xff]
    %v4529 = vld [vmem:[#allocation4 + $0x100] sm:$0xff]
    %v4530 = vld [vmem:[#allocation4 + $0x108] sm:$0xff]
    %v4531 = vld [vmem:[#allocation4 + $0x110] sm:$0xff]
    %v4532 = vld [vmem:[#allocation4 + $0x118] sm:$0xff]
    %v4533 = vld [vmem:[#allocation4 + $0x120] sm:$0xff]
    %v4534 = vld [vmem:[#allocation4 + $0x128] sm:$0xff]
    %v4535 = vld [vmem:[#allocation4 + $0x130] sm:$0xff]
    %v4536 = vld [vmem:[#allocation4 + $0x138] sm:$0xff]
    %v4537 = vld [vmem:[#allocation4 + $0x140] sm:$0xff]
    %v4538 = vld [vmem:[#allocation4 + $0x148] sm:$0xff]
    %v4539 = vld [vmem:[#allocation4 + $0x150] sm:$0xff]
    %v4540 = vld [vmem:[#allocation4 + $0x158] sm:$0xff]
    %v4541 = vld [vmem:[#allocation4 + $0x160] sm:$0xff]
    %v4542 = vld [vmem:[#allocation4 + $0x168] sm:$0xff]
    %v4543 = vld [vmem:[#allocation4 + $0x170] sm:$0xff]
    %v4544 = vld [vmem:[#allocation4 + $0x178] sm:$0xff]
    %v4545 = vld [vmem:[#allocation4 + $0x180] sm:$0xff]
    %v4546 = vld [vmem:[#allocation4 + $0x188] sm:$0xff]
    %v4547 = vld [vmem:[#allocation4 + $0x190] sm:$0xff]
    %v4548 = vld [vmem:[#allocation4 + $0x198] sm:$0xff]
    %v4549 = vld [vmem:[#allocation4 + $0x1a0] sm:$0xff]
    %v4550 = vld [vmem:[#allocation4 + $0x1a8] sm:$0xff]
    %v4551 = vld [vmem:[#allocation4 + $0x1b0] sm:$0xff]
    %v4552 = vld [vmem:[#allocation4 + $0x1b8] sm:$0xff]
    %v4553 = vld [vmem:[#allocation4 + $0x1c0] sm:$0xff]
    %v4554 = vld [vmem:[#allocation4 + $0x1c8] sm:$0xff]
    %v4555 = vld [vmem:[#allocation4 + $0x1d0] sm:$0xff]
    %v4556 = vld [vmem:[#allocation4 + $0x1d8] sm:$0xff]
    %v4557 = vld [vmem:[#allocation4 + $0x1e0] sm:$0xff]
    %v4558 = vld [vmem:[#allocation4 + $0x1e8] sm:$0xff]
    %v4559 = vld [vmem:[#allocation4 + $0x1f0] sm:$0xff]
    %v4560 = vld [vmem:[#allocation4 + $0x1f8] sm:$0xff]
    %v4561 = vld [vmem:[#allocation4 + $0x200] sm:$0xff]
    %v4562 = vld [vmem:[#allocation4 + $0x208] sm:$0xff]
    %v4563 = vld [vmem:[#allocation4 + $0x210] sm:$0xff]
    %v4564 = vld [vmem:[#allocation4 + $0x218] sm:$0xff]
    %v4565 = vld [vmem:[#allocation4 + $0x220] sm:$0xff]
    %v4566 = vld [vmem:[#allocation4 + $0x228] sm:$0xff]
    %v4567 = vld [vmem:[#allocation4 + $0x230] sm:$0xff]
    %v4568 = vld [vmem:[#allocation4 + $0x238] sm:$0xff]
    %v4569 = vld [vmem:[#allocation4 + $0x240] sm:$0xff]
    %v4570 = vld [vmem:[#allocation4 + $0x248] sm:$0xff]
    %v4571 = vld [vmem:[#allocation4 + $0x250] sm:$0xff]
    %v4572 = vld [vmem:[#allocation4 + $0x258] sm:$0xff]
    %v4573 = vld [vmem:[#allocation4 + $0x260] sm:$0xff]
    %v4574 = vld [vmem:[#allocation4 + $0x268] sm:$0xff]
    %v4575 = vld [vmem:[#allocation4 + $0x270] sm:$0xff]
    %v4576 = vld [vmem:[#allocation4 + $0x278] sm:$0xff]
    %v4577 = vld [vmem:[#allocation4 + $0x280] sm:$0xff]
    %v4578 = vld [vmem:[#allocation4 + $0x288] sm:$0xff]
    %v4579 = vld [vmem:[#allocation4 + $0x290] sm:$0xff]
    %v4580 = vld [vmem:[#allocation4 + $0x298] sm:$0xff]
    %v4581 = vld [vmem:[#allocation4 + $0x2a0] sm:$0xff]
    %v4582 = vld [vmem:[#allocation4 + $0x2a8] sm:$0xff]
    %v4583 = vld [vmem:[#allocation4 + $0x2b0] sm:$0xff]
    %v4584 = vld [vmem:[#allocation4 + $0x2b8] sm:$0xff]
    %v4585 = vld [vmem:[#allocation4 + $0x2c0] sm:$0xff]
    %v4586 = vld [vmem:[#allocation4 + $0x2c8] sm:$0xff]
    %v4587 = vld [vmem:[#allocation4 + $0x2d0] sm:$0xff]
    %v4588 = vld [vmem:[#allocation4 + $0x2d8] sm:$0xff]
    %v4589 = vld [vmem:[#allocation4 + $0x2e0] sm:$0xff]
    %v4590 = vld [vmem:[#allocation4 + $0x2e8] sm:$0xff]
    %v4591 = vld [vmem:[#allocation4 + $0x2f0] sm:$0xff]
    %v4592 = vld [vmem:[#allocation4 + $0x2f8] sm:$0xff]
    %v4593 = vld [vmem:[#allocation4 + $0x300] sm:$0xff]
    %v4594 = vld [vmem:[#allocation4 + $0x308] sm:$0xff]
    %v4595 = vld [vmem:[#allocation4 + $0x310] sm:$0xff]
    %v4596 = vld [vmem:[#allocation4 + $0x318] sm:$0xff]
    %v4597 = vld [vmem:[#allocation4 + $0x320] sm:$0xff]
    %v4598 = vld [vmem:[#allocation4 + $0x328] sm:$0xff]
    %v4599 = vld [vmem:[#allocation4 + $0x330] sm:$0xff]
    %v4600 = vld [vmem:[#allocation4 + $0x338] sm:$0xff]
    %v4601 = vld [vmem:[#allocation4 + $0x340] sm:$0xff]
    %v4602 = vld [vmem:[#allocation4 + $0x348] sm:$0xff]
    %v4603 = vld [vmem:[#allocation4 + $0x350] sm:$0xff]
    %v4604 = vld [vmem:[#allocation4 + $0x358] sm:$0xff]
    %v4605 = vld [vmem:[#allocation4 + $0x360] sm:$0xff]
    %v4606 = vld [vmem:[#allocation4 + $0x368] sm:$0xff]
    %v4607 = vld [vmem:[#allocation4 + $0x370] sm:$0xff]
    %v4608 = vld [vmem:[#allocation4 + $0x378] sm:$0xff]
    %v4609 = vld [vmem:[#allocation4 + $0x380] sm:$0xff]
    %v4610 = vld [vmem:[#allocation4 + $0x388] sm:$0xff]
    %v4611 = vld [vmem:[#allocation4 + $0x390] sm:$0xff]
    %v4612 = vld [vmem:[#allocation4 + $0x398] sm:$0xff]
    %v4613 = vld [vmem:[#allocation4 + $0x3a0] sm:$0xff]
    %v4614 = vld [vmem:[#allocation4 + $0x3a8] sm:$0xff]
    %v4615 = vld [vmem:[#allocation4 + $0x3b0] sm:$0xff]
    %v4616 = vld [vmem:[#allocation4 + $0x3b8] sm:$0xff]
    %v4617 = vld [vmem:[#allocation4 + $0x3c0] sm:$0xff]
    %v4618 = vld [vmem:[#allocation4 + $0x3c8] sm:$0xff]
    %v4619 = vld [vmem:[#allocation4 + $0x3d0] sm:$0xff]
    %v4620 = vld [vmem:[#allocation4 + $0x3d8] sm:$0xff]
    %v4621 = vld [vmem:[#allocation4 + $0x3e0] sm:$0xff]
    %v4622 = vld [vmem:[#allocation4 + $0x3e8] sm:$0xff]
    %v4623 = vld [vmem:[#allocation4 + $0x3f0] sm:$0xff]
    %v4624 = vld [vmem:[#allocation4 + $0x3f8] sm:$0xff]
    %v4625 = vld [vmem:[#allocation4 + $0x400] sm:$0xff]
    %v4626 = vld [vmem:[#allocation4 + $0x408] sm:$0xff]
    %v4627 = vld [vmem:[#allocation4 + $0x410] sm:$0xff]
    %v4628 = vld [vmem:[#allocation4 + $0x418] sm:$0xff]
    %v4629 = vld [vmem:[#allocation4 + $0x420] sm:$0xff]
    %v4630 = vld [vmem:[#allocation4 + $0x428] sm:$0xff]
    %v4631 = vld [vmem:[#allocation4 + $0x430] sm:$0xff]
    %v4632 = vld [vmem:[#allocation4 + $0x438] sm:$0xff]
    %v4633 = vld [vmem:[#allocation4 + $0x440] sm:$0xff]
    %v4634 = vld [vmem:[#allocation4 + $0x448] sm:$0xff]
    %v4635 = vld [vmem:[#allocation4 + $0x450] sm:$0xff]
    %v4636 = vld [vmem:[#allocation4 + $0x458] sm:$0xff]
    %v4637 = vld [vmem:[#allocation4 + $0x460] sm:$0xff]
    %v4638 = vld [vmem:[#allocation4 + $0x468] sm:$0xff]
    %v4639 = vld [vmem:[#allocation4 + $0x470] sm:$0xff]
    %v4640 = vld [vmem:[#allocation4 + $0x478] sm:$0xff]
    %v4641 = vld [vmem:[#allocation4 + $0x480] sm:$0xff]
    %v4642 = vld [vmem:[#allocation4 + $0x488] sm:$0xff]
    %v4643 = vld [vmem:[#allocation4 + $0x490] sm:$0xff]
    %v4644 = vld [vmem:[#allocation4 + $0x498] sm:$0xff]
    %v4645 = vld [vmem:[#allocation4 + $0x4a0] sm:$0xff]
    %v4646 = vld [vmem:[#allocation4 + $0x4a8] sm:$0xff]
    %v4647 = vld [vmem:[#allocation4 + $0x4b0] sm:$0xff]
    %v4648 = vld [vmem:[#allocation4 + $0x4b8] sm:$0xff]
    %v4649 = vld [vmem:[#allocation4 + $0x4c0] sm:$0xff]
    %v4650 = vld [vmem:[#allocation4 + $0x4c8] sm:$0xff]
    %v4651 = vld [vmem:[#allocation4 + $0x4d0] sm:$0xff]
    %v4652 = vld [vmem:[#allocation4 + $0x4d8] sm:$0xff]
    %v4653 = vld [vmem:[#allocation4 + $0x4e0] sm:$0xff]
    %v4654 = vld [vmem:[#allocation4 + $0x4e8] sm:$0xff]
    %v4655 = vld [vmem:[#allocation4 + $0x4f0] sm:$0xff]
    %v4656 = vld [vmem:[#allocation4 + $0x4f8] sm:$0xff]
    %v4657 = vld [vmem:[#allocation4 + $0x500] sm:$0xff]
    %v4658 = vld [vmem:[#allocation4 + $0x508] sm:$0xff]
    %v4659 = vld [vmem:[#allocation4 + $0x510] sm:$0xff]
    %v4660 = vld [vmem:[#allocation4 + $0x518] sm:$0xff]
    %v4661 = vld [vmem:[#allocation4 + $0x520] sm:$0xff]
    %v4662 = vld [vmem:[#allocation4 + $0x528] sm:$0xff]
    %v4663 = vld [vmem:[#allocation4 + $0x530] sm:$0xff]
    %v4664 = vld [vmem:[#allocation4 + $0x538] sm:$0xff]
    %v4665 = vld [vmem:[#allocation4 + $0x540] sm:$0xff]
    %v4666 = vld [vmem:[#allocation4 + $0x548] sm:$0xff]
    %v4667 = vld [vmem:[#allocation4 + $0x550] sm:$0xff]
    %v4668 = vld [vmem:[#allocation4 + $0x558] sm:$0xff]
    %v4669 = vld [vmem:[#allocation4 + $0x560] sm:$0xff]
    %v4670 = vld [vmem:[#allocation4 + $0x568] sm:$0xff]
    %v4671 = vld [vmem:[#allocation4 + $0x570] sm:$0xff]
    %v4672 = vld [vmem:[#allocation4 + $0x578] sm:$0xff]
    %v4673 = vld [vmem:[#allocation4 + $0x580] sm:$0xff]
    %v4674 = vld [vmem:[#allocation4 + $0x588] sm:$0xff]
    %v4675 = vld [vmem:[#allocation4 + $0x590] sm:$0xff]
    %v4676 = vld [vmem:[#allocation4 + $0x598] sm:$0xff]
    %v4677 = vld [vmem:[#allocation4 + $0x5a0] sm:$0xff]
    %v4678 = vld [vmem:[#allocation4 + $0x5a8] sm:$0xff]
    %v4679 = vld [vmem:[#allocation4 + $0x5b0] sm:$0xff]
    %v4680 = vld [vmem:[#allocation4 + $0x5b8] sm:$0xff]
    %v4681 = vld [vmem:[#allocation4 + $0x5c0] sm:$0xff]
    %v4682 = vld [vmem:[#allocation4 + $0x5c8] sm:$0xff]
    %v4683 = vld [vmem:[#allocation4 + $0x5d0] sm:$0xff]
    %v4684 = vld [vmem:[#allocation4 + $0x5d8] sm:$0xff]
    %v4685 = vld [vmem:[#allocation4 + $0x5e0] sm:$0xff]
    %v4686 = vld [vmem:[#allocation4 + $0x5e8] sm:$0xff]
    %v4687 = vld [vmem:[#allocation4 + $0x5f0] sm:$0xff]
    %v4688 = vld [vmem:[#allocation4 + $0x5f8] sm:$0xff]
    %v4689 = vld [vmem:[#allocation4 + $0x600] sm:$0xff]
    %v4690 = vld [vmem:[#allocation4 + $0x608] sm:$0xff]
    %v4691 = vld [vmem:[#allocation4 + $0x610] sm:$0xff]
    %v4692 = vld [vmem:[#allocation4 + $0x618] sm:$0xff]
    %v4693 = vld [vmem:[#allocation4 + $0x620] sm:$0xff]
    %v4694 = vld [vmem:[#allocation4 + $0x628] sm:$0xff]
    %v4695 = vld [vmem:[#allocation4 + $0x630] sm:$0xff]
    %v4696 = vld [vmem:[#allocation4 + $0x638] sm:$0xff]
    %v4697 = vld [vmem:[#allocation4 + $0x640] sm:$0xff]
    %v4698 = vld [vmem:[#allocation4 + $0x648] sm:$0xff]
    %v4699 = vld [vmem:[#allocation4 + $0x650] sm:$0xff]
    %v4700 = vld [vmem:[#allocation4 + $0x658] sm:$0xff]
    %v4701 = vld [vmem:[#allocation4 + $0x660] sm:$0xff]
    %v4702 = vld [vmem:[#allocation4 + $0x668] sm:$0xff]
    %v4703 = vld [vmem:[#allocation4 + $0x670] sm:$0xff]
    %v4704 = vld [vmem:[#allocation4 + $0x678] sm:$0xff]
    %v4705 = vld [vmem:[#allocation4 + $0x680] sm:$0xff]
    %v4706 = vld [vmem:[#allocation4 + $0x688] sm:$0xff]
    %v4707 = vld [vmem:[#allocation4 + $0x690] sm:$0xff]
    %v4708 = vld [vmem:[#allocation4 + $0x698] sm:$0xff]
    %v4709 = vld [vmem:[#allocation4 + $0x6a0] sm:$0xff]
    %v4710 = vld [vmem:[#allocation4 + $0x6a8] sm:$0xff]
    %v4711 = vld [vmem:[#allocation4 + $0x6b0] sm:$0xff]
    %v4712 = vld [vmem:[#allocation4 + $0x6b8] sm:$0xff]
    %v4713 = vld [vmem:[#allocation4 + $0x6c0] sm:$0xff]
    %v4714 = vld [vmem:[#allocation4 + $0x6c8] sm:$0xff]
    %v4715 = vld [vmem:[#allocation4 + $0x6d0] sm:$0xff]
    %v4716 = vld [vmem:[#allocation4 + $0x6d8] sm:$0xff]
    %v4717 = vld [vmem:[#allocation4 + $0x6e0] sm:$0xff]
    %v4718 = vld [vmem:[#allocation4 + $0x6e8] sm:$0xff]
    %v4719 = vld [vmem:[#allocation4 + $0x6f0] sm:$0xff]
    %v4720 = vld [vmem:[#allocation4 + $0x6f8] sm:$0xff]
    %v4721 = vld [vmem:[#allocation4 + $0x700] sm:$0xff]
    %v4722 = vld [vmem:[#allocation4 + $0x708] sm:$0xff]
    %v4723 = vld [vmem:[#allocation4 + $0x710] sm:$0xff]
    %v4724 = vld [vmem:[#allocation4 + $0x718] sm:$0xff]
    %v4725 = vld [vmem:[#allocation4 + $0x720] sm:$0xff]
    %v4726 = vld [vmem:[#allocation4 + $0x728] sm:$0xff]
    %v4727 = vld [vmem:[#allocation4 + $0x730] sm:$0xff]
    %v4728 = vld [vmem:[#allocation4 + $0x738] sm:$0xff]
    %v4729 = vld [vmem:[#allocation4 + $0x740] sm:$0xff]
    %v4730 = vld [vmem:[#allocation4 + $0x748] sm:$0xff]
    %v4731 = vld [vmem:[#allocation4 + $0x750] sm:$0xff]
    %v4732 = vld [vmem:[#allocation4 + $0x758] sm:$0xff]
    %v4733 = vld [vmem:[#allocation4 + $0x760] sm:$0xff]
    %v4734 = vld [vmem:[#allocation4 + $0x768] sm:$0xff]
    %v4735 = vld [vmem:[#allocation4 + $0x770] sm:$0xff]
    %v4736 = vld [vmem:[#allocation4 + $0x778] sm:$0xff]
    %v4737 = vld [vmem:[#allocation4 + $0x780] sm:$0xff]
    %v4738 = vld [vmem:[#allocation4 + $0x788] sm:$0xff]
    %v4739 = vld [vmem:[#allocation4 + $0x790] sm:$0xff]
    %v4740 = vld [vmem:[#allocation4 + $0x798] sm:$0xff]
    %v4741 = vld [vmem:[#allocation4 + $0x7a0] sm:$0xff]
    %v4742 = vld [vmem:[#allocation4 + $0x7a8] sm:$0xff]
    %v4743 = vld [vmem:[#allocation4 + $0x7b0] sm:$0xff]
    %v4744 = vld [vmem:[#allocation4 + $0x7b8] sm:$0xff]
    %v4745 = vld [vmem:[#allocation4 + $0x7c0] sm:$0xff]
    %v4746 = vld [vmem:[#allocation4 + $0x7c8] sm:$0xff]
    %v4747 = vld [vmem:[#allocation4 + $0x7d0] sm:$0xff]
    %v4748 = vld [vmem:[#allocation4 + $0x7d8] sm:$0xff]
    %v4749 = vld [vmem:[#allocation4 + $0x7e0] sm:$0xff]
    %v4750 = vld [vmem:[#allocation4 + $0x7e8] sm:$0xff]
    %v4751 = vld [vmem:[#allocation4 + $0x7f0] sm:$0xff]
    %v4752 = vld [vmem:[#allocation4 + $0x7f8] sm:$0xff]
    %v4753 = vld [vmem:[%s11] sm:$0xf]
    %v4755 = vperm.slane %v4753, 0
    %v4756 = vperm.slane %v4753, 1
    %v4757 = vperm.slane %v4753, 2
    %v4758 = vperm.slane %v4753, 3
    %4763 = vmatpush.msra.mxu0 %v4557
    %4764 = vmatpush.msra.mxu0 %v4553
    %4765 = vmatpush.msra.mxu0 %v4549
    %4766 = vmatpush.msra.mxu0 %v4545
    %4767 = vmatpush.msra.mxu0 %v4541
    %4768 = vmatpush.msra.mxu0 %v4537
    %4769 = vmatpush.msra.mxu0 %v4533
    %4770 = vmatpush.msra.mxu0 %v4529
    %4771 = vmatpush.msra.mxu0 %v4525
    %4772 = vmatpush.msra.mxu0 %v4521
    %4773 = vmatpush.msra.mxu0 %v4517
    %4774 = vmatpush.msra.mxu0 %v4513
    %4775 = vmatpush.msra.mxu0 %v4509
    %4776 = vmatpush.msra.mxu0 %v4505
    %4777 = vmatpush.msra.mxu0 %v4501
    %4778 = vmatpush.msra.mxu0 %v4497
    %4779 = vmatmul.f32.gmra.mxu0 %v4491
    %v4780 = vpop.f32.mrf.mxu0
    %v4781 = vadd.f32 %v4755, %v4780
    %4782 = vdwg.mxu0
    %4783 = vmatpush.msra.mxu0 %v4621
    %4784 = vmatpush.msra.mxu0 %v4617
    %4785 = vmatpush.msra.mxu0 %v4613
    %4786 = vmatpush.msra.mxu0 %v4609
    %4787 = vmatpush.msra.mxu0 %v4605
    %4788 = vmatpush.msra.mxu0 %v4601
    %4789 = vmatpush.msra.mxu0 %v4597
    %4790 = vmatpush.msra.mxu0 %v4593
    %4791 = vmatpush.msra.mxu0 %v4589
    %4792 = vmatpush.msra.mxu0 %v4585
    %4793 = vmatpush.msra.mxu0 %v4581
    %4794 = vmatpush.msra.mxu0 %v4577
    %4795 = vmatpush.msra.mxu0 %v4573
    %4796 = vmatpush.msra.mxu0 %v4569
    %4797 = vmatpush.msra.mxu0 %v4565
    %4798 = vmatpush.msra.mxu0 %v4561
    %4799 = vmatmul.f32.gmra.mxu0 %v4492
    %v4800 = vpop.f32.mrf.mxu0
    %v4801 = vadd.f32 %v4781, %v4800
    %4802 = vdwg.mxu0
    %4803 = vmatpush.msra.mxu0 %v4685
    %4804 = vmatpush.msra.mxu0 %v4681
    %4805 = vmatpush.msra.mxu0 %v4677
    %4806 = vmatpush.msra.mxu0 %v4673
    %4807 = vmatpush.msra.mxu0 %v4669
    %4808 = vmatpush.msra.mxu0 %v4665
    %4809 = vmatpush.msra.mxu0 %v4661
    %4810 = vmatpush.msra.mxu0 %v4657
    %4811 = vmatpush.msra.mxu0 %v4653
    %4812 = vmatpush.msra.mxu0 %v4649
    %4813 = vmatpush.msra.mxu0 %v4645
    %4814 = vmatpush.msra.mxu0 %v4641
    %4815 = vmatpush.msra.mxu0 %v4637
    %4816 = vmatpush.msra.mxu0 %v4633
    %4817 = vmatpush.msra.mxu0 %v4629
    %4818 = vmatpush.msra.mxu0 %v4625
    %4819 = vmatmul.f32.gmra.mxu0 %v4493
    %v4820 = vpop.f32.mrf.mxu0
    %v4821 = vadd.f32 %v4801, %v4820
    %4822 = vdwg.mxu0
    %4823 = vmatpush.msra.mxu0 %v4749
    %4824 = vmatpush.msra.mxu0 %v4745
    %4825 = vmatpush.msra.mxu0 %v4741
    %4826 = vmatpush.msra.mxu0 %v4737
    %4827 = vmatpush.msra.mxu0 %v4733
    %4828 = vmatpush.msra.mxu0 %v4729
    %4829 = vmatpush.msra.mxu0 %v4725
    %4830 = vmatpush.msra.mxu0 %v4721
    %4831 = vmatpush.msra.mxu0 %v4717
    %4832 = vmatpush.msra.mxu0 %v4713
    %4833 = vmatpush.msra.mxu0 %v4709
    %4834 = vmatpush.msra.mxu0 %v4705
    %4835 = vmatpush.msra.mxu0 %v4701
    %4836 = vmatpush.msra.mxu0 %v4697
    %4837 = vmatpush.msra.mxu0 %v4693
    %4838 = vmatpush.msra.mxu0 %v4689
    %4839 = vmatmul.f32.gmra.mxu0 %v4494
    %v4840 = vpop.f32.mrf.mxu0
    %v4841 = vadd.f32 %v4821, %v4840
    %4842 = vdwg.mxu0
    %4843 = vmatpush.msra.mxu0 %v4558
    %4844 = vmatpush.msra.mxu0 %v4554
    %4845 = vmatpush.msra.mxu0 %v4550
    %4846 = vmatpush.msra.mxu0 %v4546
    %4847 = vmatpush.msra.mxu0 %v4542
    %4848 = vmatpush.msra.mxu0 %v4538
    %4849 = vmatpush.msra.mxu0 %v4534
    %4850 = vmatpush.msra.mxu0 %v4530
    %4851 = vmatpush.msra.mxu0 %v4526
    %4852 = vmatpush.msra.mxu0 %v4522
    %4853 = vmatpush.msra.mxu0 %v4518
    %4854 = vmatpush.msra.mxu0 %v4514
    %4855 = vmatpush.msra.mxu0 %v4510
    %4856 = vmatpush.msra.mxu0 %v4506
    %4857 = vmatpush.msra.mxu0 %v4502
    %4858 = vmatpush.msra.mxu0 %v4498
    %4859 = vmatmul.f32.gmra.mxu0 %v4491
    %v4860 = vpop.f32.mrf.mxu0
    %v4861 = vadd.f32 %v4756, %v4860
    %4862 = vdwg.mxu0
    %4863 = vmatpush.msra.mxu0 %v4622
    %4864 = vmatpush.msra.mxu0 %v4618
    %4865 = vmatpush.msra.mxu0 %v4614
    %4866 = vmatpush.msra.mxu0 %v4610
    %4867 = vmatpush.msra.mxu0 %v4606
    %4868 = vmatpush.msra.mxu0 %v4602
    %4869 = vmatpush.msra.mxu0 %v4598
    %4870 = vmatpush.msra.mxu0 %v4594
    %4871 = vmatpush.msra.mxu0 %v4590
    %4872 = vmatpush.msra.mxu0 %v4586
    %4873 = vmatpush.msra.mxu0 %v4582
    %4874 = vmatpush.msra.mxu0 %v4578
    %4875 = vmatpush.msra.mxu0 %v4574
    %4876 = vmatpush.msra.mxu0 %v4570
    %4877 = vmatpush.msra.mxu0 %v4566
    %4878 = vmatpush.msra.mxu0 %v4562
    %4879 = vmatmul.f32.gmra.mxu0 %v4492
    %v4880 = vpop.f32.mrf.mxu0
    %v4881 = vadd.f32 %v4861, %v4880
    %4882 = vdwg.mxu0
    %4883 = vmatpush.msra.mxu0 %v4686
    %4884 = vmatpush.msra.mxu0 %v4682
    %4885 = vmatpush.msra.mxu0 %v4678
    %4886 = vmatpush.msra.mxu0 %v4674
    %4887 = vmatpush.msra.mxu0 %v4670
    %4888 = vmatpush.msra.mxu0 %v4666
    %4889 = vmatpush.msra.mxu0 %v4662
    %4890 = vmatpush.msra.mxu0 %v4658
    %4891 = vmatpush.msra.mxu0 %v4654
    %4892 = vmatpush.msra.mxu0 %v4650
    %4893 = vmatpush.msra.mxu0 %v4646
    %4894 = vmatpush.msra.mxu0 %v4642
    %4895 = vmatpush.msra.mxu0 %v4638
    %4896 = vmatpush.msra.mxu0 %v4634
    %4897 = vmatpush.msra.mxu0 %v4630
    %4898 = vmatpush.msra.mxu0 %v4626
    %4899 = vmatmul.f32.gmra.mxu0 %v4493
    %v4900 = vpop.f32.mrf.mxu0
    %v4901 = vadd.f32 %v4881, %v4900
    %4902 = vdwg.mxu0
    %4903 = vmatpush.msra.mxu0 %v4750
    %4904 = vmatpush.msra.mxu0 %v4746
    %4905 = vmatpush.msra.mxu0 %v4742
    %4906 = vmatpush.msra.mxu0 %v4738
    %4907 = vmatpush.msra.mxu0 %v4734
    %4908 = vmatpush.msra.mxu0 %v4730
    %4909 = vmatpush.msra.mxu0 %v4726
    %4910 = vmatpush.msra.mxu0 %v4722
    %4911 = vmatpush.msra.mxu0 %v4718
    %4912 = vmatpush.msra.mxu0 %v4714
    %4913 = vmatpush.msra.mxu0 %v4710
    %4914 = vmatpush.msra.mxu0 %v4706
    %4915 = vmatpush.msra.mxu0 %v4702
    %4916 = vmatpush.msra.mxu0 %v4698
    %4917 = vmatpush.msra.mxu0 %v4694
    %4918 = vmatpush.msra.mxu0 %v4690
    %4919 = vmatmul.f32.gmra.mxu0 %v4494
    %v4920 = vpop.f32.mrf.mxu0
    %v4921 = vadd.f32 %v4901, %v4920
    %4922 = vdwg.mxu0
    %4923 = vmatpush.msra.mxu0 %v4559
    %4924 = vmatpush.msra.mxu0 %v4555
    %4925 = vmatpush.msra.mxu0 %v4551
    %4926 = vmatpush.msra.mxu0 %v4547
    %4927 = vmatpush.msra.mxu0 %v4543
    %4928 = vmatpush.msra.mxu0 %v4539
    %4929 = vmatpush.msra.mxu0 %v4535
    %4930 = vmatpush.msra.mxu0 %v4531
    %4931 = vmatpush.msra.mxu0 %v4527
    %4932 = vmatpush.msra.mxu0 %v4523
    %4933 = vmatpush.msra.mxu0 %v4519
    %4934 = vmatpush.msra.mxu0 %v4515
    %4935 = vmatpush.msra.mxu0 %v4511
    %4936 = vmatpush.msra.mxu0 %v4507
    %4937 = vmatpush.msra.mxu0 %v4503
    %4938 = vmatpush.msra.mxu0 %v4499
    %4939 = vmatmul.f32.gmra.mxu0 %v4491
    %v4940 = vpop.f32.mrf.mxu0
    %v4941 = vadd.f32 %v4757, %v4940
    %4942 = vdwg.mxu0
    %4943 = vmatpush.msra.mxu0 %v4623
    %4944 = vmatpush.msra.mxu0 %v4619
    %4945 = vmatpush.msra.mxu0 %v4615
    %4946 = vmatpush.msra.mxu0 %v4611
    %4947 = vmatpush.msra.mxu0 %v4607
    %4948 = vmatpush.msra.mxu0 %v4603
    %4949 = vmatpush.msra.mxu0 %v4599
    %4950 = vmatpush.msra.mxu0 %v4595
    %4951 = vmatpush.msra.mxu0 %v4591
    %4952 = vmatpush.msra.mxu0 %v4587
    %4953 = vmatpush.msra.mxu0 %v4583
    %4954 = vmatpush.msra.mxu0 %v4579
    %4955 = vmatpush.msra.mxu0 %v4575
    %4956 = vmatpush.msra.mxu0 %v4571
    %4957 = vmatpush.msra.mxu0 %v4567
    %4958 = vmatpush.msra.mxu0 %v4563
    %4959 = vmatmul.f32.gmra.mxu0 %v4492
    %v4960 = vpop.f32.mrf.mxu0
    %v4961 = vadd.f32 %v4941, %v4960
    %4962 = vdwg.mxu0
    %4963 = vmatpush.msra.mxu0 %v4687
    %4964 = vmatpush.msra.mxu0 %v4683
    %4965 = vmatpush.msra.mxu0 %v4679
    %4966 = vmatpush.msra.mxu0 %v4675
    %4967 = vmatpush.msra.mxu0 %v4671
    %4968 = vmatpush.msra.mxu0 %v4667
    %4969 = vmatpush.msra.mxu0 %v4663
    %4970 = vmatpush.msra.mxu0 %v4659
    %4971 = vmatpush.msra.mxu0 %v4655
    %4972 = vmatpush.msra.mxu0 %v4651
    %4973 = vmatpush.msra.mxu0 %v4647
    %4974 = vmatpush.msra.mxu0 %v4643
    %4975 = vmatpush.msra.mxu0 %v4639
    %4976 = vmatpush.msra.mxu0 %v4635
    %4977 = vmatpush.msra.mxu0 %v4631
    %4978 = vmatpush.msra.mxu0 %v4627
    %4979 = vmatmul.f32.gmra.mxu0 %v4493
    %v4980 = vpop.f32.mrf.mxu0
    %v4981 = vadd.f32 %v4961, %v4980
    %4982 = vdwg.mxu0
    %4983 = vmatpush.msra.mxu0 %v4751
    %4984 = vmatpush.msra.mxu0 %v4747
    %4985 = vmatpush.msra.mxu0 %v4743
    %4986 = vmatpush.msra.mxu0 %v4739
    %4987 = vmatpush.msra.mxu0 %v4735
    %4988 = vmatpush.msra.mxu0 %v4731
    %4989 = vmatpush.msra.mxu0 %v4727
    %4990 = vmatpush.msra.mxu0 %v4723
    %4991 = vmatpush.msra.mxu0 %v4719
    %4992 = vmatpush.msra.mxu0 %v4715
    %4993 = vmatpush.msra.mxu0 %v4711
    %4994 = vmatpush.msra.mxu0 %v4707
    %4995 = vmatpush.msra.mxu0 %v4703
    %4996 = vmatpush.msra.mxu0 %v4699
    %4997 = vmatpush.msra.mxu0 %v4695
    %4998 = vmatpush.msra.mxu0 %v4691
    %4999 = vmatmul.f32.gmra.mxu0 %v4494
    %v5000 = vpop.f32.mrf.mxu0
    %v5001 = vadd.f32 %v4981, %v5000
    %5002 = vdwg.mxu0
    %5003 = vmatpush.msra.mxu0 %v4560
    %5004 = vmatpush.msra.mxu0 %v4556
    %5005 = vmatpush.msra.mxu0 %v4552
    %5006 = vmatpush.msra.mxu0 %v4548
    %5007 = vmatpush.msra.mxu0 %v4544
    %5008 = vmatpush.msra.mxu0 %v4540
    %5009 = vmatpush.msra.mxu0 %v4536
    %5010 = vmatpush.msra.mxu0 %v4532
    %5011 = vmatpush.msra.mxu0 %v4528
    %5012 = vmatpush.msra.mxu0 %v4524
    %5013 = vmatpush.msra.mxu0 %v4520
    %5014 = vmatpush.msra.mxu0 %v4516
    %5015 = vmatpush.msra.mxu0 %v4512
    %5016 = vmatpush.msra.mxu0 %v4508
    %5017 = vmatpush.msra.mxu0 %v4504
    %5018 = vmatpush.msra.mxu0 %v4500
    %5019 = vmatmul.f32.gmra.mxu0 %v4491
    %v5020 = vpop.f32.mrf.mxu0
    %v5021 = vadd.f32 %v4758, %v5020
    %5022 = vdwg.mxu0
    %5023 = vmatpush.msra.mxu0 %v4624
    %5024 = vmatpush.msra.mxu0 %v4620
    %5025 = vmatpush.msra.mxu0 %v4616
    %5026 = vmatpush.msra.mxu0 %v4612
    %5027 = vmatpush.msra.mxu0 %v4608
    %5028 = vmatpush.msra.mxu0 %v4604
    %5029 = vmatpush.msra.mxu0 %v4600
    %5030 = vmatpush.msra.mxu0 %v4596
    %5031 = vmatpush.msra.mxu0 %v4592
    %5032 = vmatpush.msra.mxu0 %v4588
    %5033 = vmatpush.msra.mxu0 %v4584
    %5034 = vmatpush.msra.mxu0 %v4580
    %5035 = vmatpush.msra.mxu0 %v4576
    %5036 = vmatpush.msra.mxu0 %v4572
    %5037 = vmatpush.msra.mxu0 %v4568
    %5038 = vmatpush.msra.mxu0 %v4564
    %5039 = vmatmul.f32.gmra.mxu0 %v4492
    %v5040 = vpop.f32.mrf.mxu0
    %v5041 = vadd.f32 %v5021, %v5040
    %5042 = vdwg.mxu0
    %5043 = vmatpush.msra.mxu0 %v4688
    %5044 = vmatpush.msra.mxu0 %v4684
    %5045 = vmatpush.msra.mxu0 %v4680
    %5046 = vmatpush.msra.mxu0 %v4676
    %5047 = vmatpush.msra.mxu0 %v4672
    %5048 = vmatpush.msra.mxu0 %v4668
    %5049 = vmatpush.msra.mxu0 %v4664
    %5050 = vmatpush.msra.mxu0 %v4660
    %5051 = vmatpush.msra.mxu0 %v4656
    %5052 = vmatpush.msra.mxu0 %v4652
    %5053 = vmatpush.msra.mxu0 %v4648
    %5054 = vmatpush.msra.mxu0 %v4644
    %5055 = vmatpush.msra.mxu0 %v4640
    %5056 = vmatpush.msra.mxu0 %v4636
    %5057 = vmatpush.msra.mxu0 %v4632
    %5058 = vmatpush.msra.mxu0 %v4628
    %5059 = vmatmul.f32.gmra.mxu0 %v4493
    %v5060 = vpop.f32.mrf.mxu0
    %v5061 = vadd.f32 %v5041, %v5060
    %5062 = vdwg.mxu0
    %5063 = vmatpush.msra.mxu0 %v4752
    %5064 = vmatpush.msra.mxu0 %v4748
    %5065 = vmatpush.msra.mxu0 %v4744
    %5066 = vmatpush.msra.mxu0 %v4740
    %5067 = vmatpush.msra.mxu0 %v4736
    %5068 = vmatpush.msra.mxu0 %v4732
    %5069 = vmatpush.msra.mxu0 %v4728
    %5070 = vmatpush.msra.mxu0 %v4724
    %5071 = vmatpush.msra.mxu0 %v4720
    %5072 = vmatpush.msra.mxu0 %v4716
    %5073 = vmatpush.msra.mxu0 %v4712
    %5074 = vmatpush.msra.mxu0 %v4708
    %5075 = vmatpush.msra.mxu0 %v4704
    %5076 = vmatpush.msra.mxu0 %v4700
    %5077 = vmatpush.msra.mxu0 %v4696
    %5078 = vmatpush.msra.mxu0 %v4692
    %5079 = vmatmul.f32.gmra.mxu0 %v4494
    %v5080 = vpop.f32.mrf.mxu0
    %v5081 = vadd.f32 %v5061, %v5080
    %5082 = vdwg.mxu0
    %v5083 = vmax.f32 %v4841, 0.0
    %v5084 = vmax.f32 %v4921, 0.0
    %v5085 = vmax.f32 %v5001, 0.0
    %v5086 = vmax.f32 %v5081, 0.0
    %s5087 = sshll.u32 %s3902, 4
    %5088 = dma.done %s1226, %s5087
    %v5089 = vld [vmem:[#allocation5] sm:$0xff]
    %v5090 = vld [vmem:[#allocation5 + $0x8] sm:$0xff]
    %v5091 = vld [vmem:[#allocation5 + $0x10] sm:$0xff]
    %v5092 = vld [vmem:[#allocation5 + $0x18] sm:$0xff]
    %v5093 = vld [vmem:[#allocation5 + $0x20] sm:$0xff]
    %v5094 = vld [vmem:[#allocation5 + $0x28] sm:$0xff]
    %v5095 = vld [vmem:[#allocation5 + $0x30] sm:$0xff]
    %v5096 = vld [vmem:[#allocation5 + $0x38] sm:$0xff]
    %v5097 = vld [vmem:[#allocation5 + $0x40] sm:$0xff]
    %v5098 = vld [vmem:[#allocation5 + $0x48] sm:$0xff]
    %v5099 = vld [vmem:[#allocation5 + $0x50] sm:$0xff]
    %v5100 = vld [vmem:[#allocation5 + $0x58] sm:$0xff]
    %v5101 = vld [vmem:[#allocation5 + $0x60] sm:$0xff]
    %v5102 = vld [vmem:[#allocation5 + $0x68] sm:$0xff]
    %v5103 = vld [vmem:[#allocation5 + $0x70] sm:$0xff]
    %v5104 = vld [vmem:[#allocation5 + $0x78] sm:$0xff]
    %v5105 = vld [vmem:[#allocation5 + $0x80] sm:$0xff]
    %v5106 = vld [vmem:[#allocation5 + $0x88] sm:$0xff]
    %v5107 = vld [vmem:[#allocation5 + $0x90] sm:$0xff]
    %v5108 = vld [vmem:[#allocation5 + $0x98] sm:$0xff]
    %v5109 = vld [vmem:[#allocation5 + $0xa0] sm:$0xff]
    %v5110 = vld [vmem:[#allocation5 + $0xa8] sm:$0xff]
    %v5111 = vld [vmem:[#allocation5 + $0xb0] sm:$0xff]
    %v5112 = vld [vmem:[#allocation5 + $0xb8] sm:$0xff]
    %v5113 = vld [vmem:[#allocation5 + $0xc0] sm:$0xff]
    %v5114 = vld [vmem:[#allocation5 + $0xc8] sm:$0xff]
    %v5115 = vld [vmem:[#allocation5 + $0xd0] sm:$0xff]
    %v5116 = vld [vmem:[#allocation5 + $0xd8] sm:$0xff]
    %v5117 = vld [vmem:[#allocation5 + $0xe0] sm:$0xff]
    %v5118 = vld [vmem:[#allocation5 + $0xe8] sm:$0xff]
    %v5119 = vld [vmem:[#allocation5 + $0xf0] sm:$0xff]
    %v5120 = vld [vmem:[#allocation5 + $0xf8] sm:$0xff]
    %v5121 = vld [vmem:[#allocation5 + $0x100] sm:$0xff]
    %v5122 = vld [vmem:[#allocation5 + $0x108] sm:$0xff]
    %v5123 = vld [vmem:[#allocation5 + $0x110] sm:$0xff]
    %v5124 = vld [vmem:[#allocation5 + $0x118] sm:$0xff]
    %v5125 = vld [vmem:[#allocation5 + $0x120] sm:$0xff]
    %v5126 = vld [vmem:[#allocation5 + $0x128] sm:$0xff]
    %v5127 = vld [vmem:[#allocation5 + $0x130] sm:$0xff]
    %v5128 = vld [vmem:[#allocation5 + $0x138] sm:$0xff]
    %v5129 = vld [vmem:[#allocation5 + $0x140] sm:$0xff]
    %v5130 = vld [vmem:[#allocation5 + $0x148] sm:$0xff]
    %v5131 = vld [vmem:[#allocation5 + $0x150] sm:$0xff]
    %v5132 = vld [vmem:[#allocation5 + $0x158] sm:$0xff]
    %v5133 = vld [vmem:[#allocation5 + $0x160] sm:$0xff]
    %v5134 = vld [vmem:[#allocation5 + $0x168] sm:$0xff]
    %v5135 = vld [vmem:[#allocation5 + $0x170] sm:$0xff]
    %v5136 = vld [vmem:[#allocation5 + $0x178] sm:$0xff]
    %v5137 = vld [vmem:[#allocation5 + $0x180] sm:$0xff]
    %v5138 = vld [vmem:[#allocation5 + $0x188] sm:$0xff]
    %v5139 = vld [vmem:[#allocation5 + $0x190] sm:$0xff]
    %v5140 = vld [vmem:[#allocation5 + $0x198] sm:$0xff]
    %v5141 = vld [vmem:[#allocation5 + $0x1a0] sm:$0xff]
    %v5142 = vld [vmem:[#allocation5 + $0x1a8] sm:$0xff]
    %v5143 = vld [vmem:[#allocation5 + $0x1b0] sm:$0xff]
    %v5144 = vld [vmem:[#allocation5 + $0x1b8] sm:$0xff]
    %v5145 = vld [vmem:[#allocation5 + $0x1c0] sm:$0xff]
    %v5146 = vld [vmem:[#allocation5 + $0x1c8] sm:$0xff]
    %v5147 = vld [vmem:[#allocation5 + $0x1d0] sm:$0xff]
    %v5148 = vld [vmem:[#allocation5 + $0x1d8] sm:$0xff]
    %v5149 = vld [vmem:[#allocation5 + $0x1e0] sm:$0xff]
    %v5150 = vld [vmem:[#allocation5 + $0x1e8] sm:$0xff]
    %v5151 = vld [vmem:[#allocation5 + $0x1f0] sm:$0xff]
    %v5152 = vld [vmem:[#allocation5 + $0x1f8] sm:$0xff]
    %v5153 = vld [vmem:[#allocation5 + $0x200] sm:$0xff]
    %v5154 = vld [vmem:[#allocation5 + $0x208] sm:$0xff]
    %v5155 = vld [vmem:[#allocation5 + $0x210] sm:$0xff]
    %v5156 = vld [vmem:[#allocation5 + $0x218] sm:$0xff]
    %v5157 = vld [vmem:[#allocation5 + $0x220] sm:$0xff]
    %v5158 = vld [vmem:[#allocation5 + $0x228] sm:$0xff]
    %v5159 = vld [vmem:[#allocation5 + $0x230] sm:$0xff]
    %v5160 = vld [vmem:[#allocation5 + $0x238] sm:$0xff]
    %v5161 = vld [vmem:[#allocation5 + $0x240] sm:$0xff]
    %v5162 = vld [vmem:[#allocation5 + $0x248] sm:$0xff]
    %v5163 = vld [vmem:[#allocation5 + $0x250] sm:$0xff]
    %v5164 = vld [vmem:[#allocation5 + $0x258] sm:$0xff]
    %v5165 = vld [vmem:[#allocation5 + $0x260] sm:$0xff]
    %v5166 = vld [vmem:[#allocation5 + $0x268] sm:$0xff]
    %v5167 = vld [vmem:[#allocation5 + $0x270] sm:$0xff]
    %v5168 = vld [vmem:[#allocation5 + $0x278] sm:$0xff]
    %v5169 = vld [vmem:[#allocation5 + $0x280] sm:$0xff]
    %v5170 = vld [vmem:[#allocation5 + $0x288] sm:$0xff]
    %v5171 = vld [vmem:[#allocation5 + $0x290] sm:$0xff]
    %v5172 = vld [vmem:[#allocation5 + $0x298] sm:$0xff]
    %v5173 = vld [vmem:[#allocation5 + $0x2a0] sm:$0xff]
    %v5174 = vld [vmem:[#allocation5 + $0x2a8] sm:$0xff]
    %v5175 = vld [vmem:[#allocation5 + $0x2b0] sm:$0xff]
    %v5176 = vld [vmem:[#allocation5 + $0x2b8] sm:$0xff]
    %v5177 = vld [vmem:[#allocation5 + $0x2c0] sm:$0xff]
    %v5178 = vld [vmem:[#allocation5 + $0x2c8] sm:$0xff]
    %v5179 = vld [vmem:[#allocation5 + $0x2d0] sm:$0xff]
    %v5180 = vld [vmem:[#allocation5 + $0x2d8] sm:$0xff]
    %v5181 = vld [vmem:[#allocation5 + $0x2e0] sm:$0xff]
    %v5182 = vld [vmem:[#allocation5 + $0x2e8] sm:$0xff]
    %v5183 = vld [vmem:[#allocation5 + $0x2f0] sm:$0xff]
    %v5184 = vld [vmem:[#allocation5 + $0x2f8] sm:$0xff]
    %v5185 = vld [vmem:[#allocation5 + $0x300] sm:$0xff]
    %v5186 = vld [vmem:[#allocation5 + $0x308] sm:$0xff]
    %v5187 = vld [vmem:[#allocation5 + $0x310] sm:$0xff]
    %v5188 = vld [vmem:[#allocation5 + $0x318] sm:$0xff]
    %v5189 = vld [vmem:[#allocation5 + $0x320] sm:$0xff]
    %v5190 = vld [vmem:[#allocation5 + $0x328] sm:$0xff]
    %v5191 = vld [vmem:[#allocation5 + $0x330] sm:$0xff]
    %v5192 = vld [vmem:[#allocation5 + $0x338] sm:$0xff]
    %v5193 = vld [vmem:[#allocation5 + $0x340] sm:$0xff]
    %v5194 = vld [vmem:[#allocation5 + $0x348] sm:$0xff]
    %v5195 = vld [vmem:[#allocation5 + $0x350] sm:$0xff]
    %v5196 = vld [vmem:[#allocation5 + $0x358] sm:$0xff]
    %v5197 = vld [vmem:[#allocation5 + $0x360] sm:$0xff]
    %v5198 = vld [vmem:[#allocation5 + $0x368] sm:$0xff]
    %v5199 = vld [vmem:[#allocation5 + $0x370] sm:$0xff]
    %v5200 = vld [vmem:[#allocation5 + $0x378] sm:$0xff]
    %v5201 = vld [vmem:[#allocation5 + $0x380] sm:$0xff]
    %v5202 = vld [vmem:[#allocation5 + $0x388] sm:$0xff]
    %v5203 = vld [vmem:[#allocation5 + $0x390] sm:$0xff]
    %v5204 = vld [vmem:[#allocation5 + $0x398] sm:$0xff]
    %v5205 = vld [vmem:[#allocation5 + $0x3a0] sm:$0xff]
    %v5206 = vld [vmem:[#allocation5 + $0x3a8] sm:$0xff]
    %v5207 = vld [vmem:[#allocation5 + $0x3b0] sm:$0xff]
    %v5208 = vld [vmem:[#allocation5 + $0x3b8] sm:$0xff]
    %v5209 = vld [vmem:[#allocation5 + $0x3c0] sm:$0xff]
    %v5210 = vld [vmem:[#allocation5 + $0x3c8] sm:$0xff]
    %v5211 = vld [vmem:[#allocation5 + $0x3d0] sm:$0xff]
    %v5212 = vld [vmem:[#allocation5 + $0x3d8] sm:$0xff]
    %v5213 = vld [vmem:[#allocation5 + $0x3e0] sm:$0xff]
    %v5214 = vld [vmem:[#allocation5 + $0x3e8] sm:$0xff]
    %v5215 = vld [vmem:[#allocation5 + $0x3f0] sm:$0xff]
    %v5216 = vld [vmem:[#allocation5 + $0x3f8] sm:$0xff]
    %v5217 = vld [vmem:[#allocation5 + $0x400] sm:$0xff]
    %v5218 = vld [vmem:[#allocation5 + $0x408] sm:$0xff]
    %v5219 = vld [vmem:[#allocation5 + $0x410] sm:$0xff]
    %v5220 = vld [vmem:[#allocation5 + $0x418] sm:$0xff]
    %v5221 = vld [vmem:[#allocation5 + $0x420] sm:$0xff]
    %v5222 = vld [vmem:[#allocation5 + $0x428] sm:$0xff]
    %v5223 = vld [vmem:[#allocation5 + $0x430] sm:$0xff]
    %v5224 = vld [vmem:[#allocation5 + $0x438] sm:$0xff]
    %v5225 = vld [vmem:[#allocation5 + $0x440] sm:$0xff]
    %v5226 = vld [vmem:[#allocation5 + $0x448] sm:$0xff]
    %v5227 = vld [vmem:[#allocation5 + $0x450] sm:$0xff]
    %v5228 = vld [vmem:[#allocation5 + $0x458] sm:$0xff]
    %v5229 = vld [vmem:[#allocation5 + $0x460] sm:$0xff]
    %v5230 = vld [vmem:[#allocation5 + $0x468] sm:$0xff]
    %v5231 = vld [vmem:[#allocation5 + $0x470] sm:$0xff]
    %v5232 = vld [vmem:[#allocation5 + $0x478] sm:$0xff]
    %v5233 = vld [vmem:[#allocation5 + $0x480] sm:$0xff]
    %v5234 = vld [vmem:[#allocation5 + $0x488] sm:$0xff]
    %v5235 = vld [vmem:[#allocation5 + $0x490] sm:$0xff]
    %v5236 = vld [vmem:[#allocation5 + $0x498] sm:$0xff]
    %v5237 = vld [vmem:[#allocation5 + $0x4a0] sm:$0xff]
    %v5238 = vld [vmem:[#allocation5 + $0x4a8] sm:$0xff]
    %v5239 = vld [vmem:[#allocation5 + $0x4b0] sm:$0xff]
    %v5240 = vld [vmem:[#allocation5 + $0x4b8] sm:$0xff]
    %v5241 = vld [vmem:[#allocation5 + $0x4c0] sm:$0xff]
    %v5242 = vld [vmem:[#allocation5 + $0x4c8] sm:$0xff]
    %v5243 = vld [vmem:[#allocation5 + $0x4d0] sm:$0xff]
    %v5244 = vld [vmem:[#allocation5 + $0x4d8] sm:$0xff]
    %v5245 = vld [vmem:[#allocation5 + $0x4e0] sm:$0xff]
    %v5246 = vld [vmem:[#allocation5 + $0x4e8] sm:$0xff]
    %v5247 = vld [vmem:[#allocation5 + $0x4f0] sm:$0xff]
    %v5248 = vld [vmem:[#allocation5 + $0x4f8] sm:$0xff]
    %v5249 = vld [vmem:[#allocation5 + $0x500] sm:$0xff]
    %v5250 = vld [vmem:[#allocation5 + $0x508] sm:$0xff]
    %v5251 = vld [vmem:[#allocation5 + $0x510] sm:$0xff]
    %v5252 = vld [vmem:[#allocation5 + $0x518] sm:$0xff]
    %v5253 = vld [vmem:[#allocation5 + $0x520] sm:$0xff]
    %v5254 = vld [vmem:[#allocation5 + $0x528] sm:$0xff]
    %v5255 = vld [vmem:[#allocation5 + $0x530] sm:$0xff]
    %v5256 = vld [vmem:[#allocation5 + $0x538] sm:$0xff]
    %v5257 = vld [vmem:[#allocation5 + $0x540] sm:$0xff]
    %v5258 = vld [vmem:[#allocation5 + $0x548] sm:$0xff]
    %v5259 = vld [vmem:[#allocation5 + $0x550] sm:$0xff]
    %v5260 = vld [vmem:[#allocation5 + $0x558] sm:$0xff]
    %v5261 = vld [vmem:[#allocation5 + $0x560] sm:$0xff]
    %v5262 = vld [vmem:[#allocation5 + $0x568] sm:$0xff]
    %v5263 = vld [vmem:[#allocation5 + $0x570] sm:$0xff]
    %v5264 = vld [vmem:[#allocation5 + $0x578] sm:$0xff]
    %v5265 = vld [vmem:[#allocation5 + $0x580] sm:$0xff]
    %v5266 = vld [vmem:[#allocation5 + $0x588] sm:$0xff]
    %v5267 = vld [vmem:[#allocation5 + $0x590] sm:$0xff]
    %v5268 = vld [vmem:[#allocation5 + $0x598] sm:$0xff]
    %v5269 = vld [vmem:[#allocation5 + $0x5a0] sm:$0xff]
    %v5270 = vld [vmem:[#allocation5 + $0x5a8] sm:$0xff]
    %v5271 = vld [vmem:[#allocation5 + $0x5b0] sm:$0xff]
    %v5272 = vld [vmem:[#allocation5 + $0x5b8] sm:$0xff]
    %v5273 = vld [vmem:[#allocation5 + $0x5c0] sm:$0xff]
    %v5274 = vld [vmem:[#allocation5 + $0x5c8] sm:$0xff]
    %v5275 = vld [vmem:[#allocation5 + $0x5d0] sm:$0xff]
    %v5276 = vld [vmem:[#allocation5 + $0x5d8] sm:$0xff]
    %v5277 = vld [vmem:[#allocation5 + $0x5e0] sm:$0xff]
    %v5278 = vld [vmem:[#allocation5 + $0x5e8] sm:$0xff]
    %v5279 = vld [vmem:[#allocation5 + $0x5f0] sm:$0xff]
    %v5280 = vld [vmem:[#allocation5 + $0x5f8] sm:$0xff]
    %v5281 = vld [vmem:[#allocation5 + $0x600] sm:$0xff]
    %v5282 = vld [vmem:[#allocation5 + $0x608] sm:$0xff]
    %v5283 = vld [vmem:[#allocation5 + $0x610] sm:$0xff]
    %v5284 = vld [vmem:[#allocation5 + $0x618] sm:$0xff]
    %v5285 = vld [vmem:[#allocation5 + $0x620] sm:$0xff]
    %v5286 = vld [vmem:[#allocation5 + $0x628] sm:$0xff]
    %v5287 = vld [vmem:[#allocation5 + $0x630] sm:$0xff]
    %v5288 = vld [vmem:[#allocation5 + $0x638] sm:$0xff]
    %v5289 = vld [vmem:[#allocation5 + $0x640] sm:$0xff]
    %v5290 = vld [vmem:[#allocation5 + $0x648] sm:$0xff]
    %v5291 = vld [vmem:[#allocation5 + $0x650] sm:$0xff]
    %v5292 = vld [vmem:[#allocation5 + $0x658] sm:$0xff]
    %v5293 = vld [vmem:[#allocation5 + $0x660] sm:$0xff]
    %v5294 = vld [vmem:[#allocation5 + $0x668] sm:$0xff]
    %v5295 = vld [vmem:[#allocation5 + $0x670] sm:$0xff]
    %v5296 = vld [vmem:[#allocation5 + $0x678] sm:$0xff]
    %v5297 = vld [vmem:[#allocation5 + $0x680] sm:$0xff]
    %v5298 = vld [vmem:[#allocation5 + $0x688] sm:$0xff]
    %v5299 = vld [vmem:[#allocation5 + $0x690] sm:$0xff]
    %v5300 = vld [vmem:[#allocation5 + $0x698] sm:$0xff]
    %v5301 = vld [vmem:[#allocation5 + $0x6a0] sm:$0xff]
    %v5302 = vld [vmem:[#allocation5 + $0x6a8] sm:$0xff]
    %v5303 = vld [vmem:[#allocation5 + $0x6b0] sm:$0xff]
    %v5304 = vld [vmem:[#allocation5 + $0x6b8] sm:$0xff]
    %v5305 = vld [vmem:[#allocation5 + $0x6c0] sm:$0xff]
    %v5306 = vld [vmem:[#allocation5 + $0x6c8] sm:$0xff]
    %v5307 = vld [vmem:[#allocation5 + $0x6d0] sm:$0xff]
    %v5308 = vld [vmem:[#allocation5 + $0x6d8] sm:$0xff]
    %v5309 = vld [vmem:[#allocation5 + $0x6e0] sm:$0xff]
    %v5310 = vld [vmem:[#allocation5 + $0x6e8] sm:$0xff]
    %v5311 = vld [vmem:[#allocation5 + $0x6f0] sm:$0xff]
    %v5312 = vld [vmem:[#allocation5 + $0x6f8] sm:$0xff]
    %v5313 = vld [vmem:[#allocation5 + $0x700] sm:$0xff]
    %v5314 = vld [vmem:[#allocation5 + $0x708] sm:$0xff]
    %v5315 = vld [vmem:[#allocation5 + $0x710] sm:$0xff]
    %v5316 = vld [vmem:[#allocation5 + $0x718] sm:$0xff]
    %v5317 = vld [vmem:[#allocation5 + $0x720] sm:$0xff]
    %v5318 = vld [vmem:[#allocation5 + $0x728] sm:$0xff]
    %v5319 = vld [vmem:[#allocation5 + $0x730] sm:$0xff]
    %v5320 = vld [vmem:[#allocation5 + $0x738] sm:$0xff]
    %v5321 = vld [vmem:[#allocation5 + $0x740] sm:$0xff]
    %v5322 = vld [vmem:[#allocation5 + $0x748] sm:$0xff]
    %v5323 = vld [vmem:[#allocation5 + $0x750] sm:$0xff]
    %v5324 = vld [vmem:[#allocation5 + $0x758] sm:$0xff]
    %v5325 = vld [vmem:[#allocation5 + $0x760] sm:$0xff]
    %v5326 = vld [vmem:[#allocation5 + $0x768] sm:$0xff]
    %v5327 = vld [vmem:[#allocation5 + $0x770] sm:$0xff]
    %v5328 = vld [vmem:[#allocation5 + $0x778] sm:$0xff]
    %v5329 = vld [vmem:[#allocation5 + $0x780] sm:$0xff]
    %v5330 = vld [vmem:[#allocation5 + $0x788] sm:$0xff]
    %v5331 = vld [vmem:[#allocation5 + $0x790] sm:$0xff]
    %v5332 = vld [vmem:[#allocation5 + $0x798] sm:$0xff]
    %v5333 = vld [vmem:[#allocation5 + $0x7a0] sm:$0xff]
    %v5334 = vld [vmem:[#allocation5 + $0x7a8] sm:$0xff]
    %v5335 = vld [vmem:[#allocation5 + $0x7b0] sm:$0xff]
    %v5336 = vld [vmem:[#allocation5 + $0x7b8] sm:$0xff]
    %v5337 = vld [vmem:[#allocation5 + $0x7c0] sm:$0xff]
    %v5338 = vld [vmem:[#allocation5 + $0x7c8] sm:$0xff]
    %v5339 = vld [vmem:[#allocation5 + $0x7d0] sm:$0xff]
    %v5340 = vld [vmem:[#allocation5 + $0x7d8] sm:$0xff]
    %v5341 = vld [vmem:[#allocation5 + $0x7e0] sm:$0xff]
    %v5342 = vld [vmem:[#allocation5 + $0x7e8] sm:$0xff]
    %v5343 = vld [vmem:[#allocation5 + $0x7f0] sm:$0xff]
    %v5344 = vld [vmem:[#allocation5 + $0x7f8] sm:$0xff]
    %v5345 = vld [vmem:[%s13] sm:$0xf]
    %v5347 = vperm.slane %v5345, 0
    %v5348 = vperm.slane %v5345, 1
    %v5349 = vperm.slane %v5345, 2
    %v5350 = vperm.slane %v5345, 3
    %5355 = vmatpush.msra.mxu0 %v5149
    %5356 = vmatpush.msra.mxu0 %v5145
    %5357 = vmatpush.msra.mxu0 %v5141
    %5358 = vmatpush.msra.mxu0 %v5137
    %5359 = vmatpush.msra.mxu0 %v5133
    %5360 = vmatpush.msra.mxu0 %v5129
    %5361 = vmatpush.msra.mxu0 %v5125
    %5362 = vmatpush.msra.mxu0 %v5121
    %5363 = vmatpush.msra.mxu0 %v5117
    %5364 = vmatpush.msra.mxu0 %v5113
    %5365 = vmatpush.msra.mxu0 %v5109
    %5366 = vmatpush.msra.mxu0 %v5105
    %5367 = vmatpush.msra.mxu0 %v5101
    %5368 = vmatpush.msra.mxu0 %v5097
    %5369 = vmatpush.msra.mxu0 %v5093
    %5370 = vmatpush.msra.mxu0 %v5089
    %5371 = vmatmul.f32.gmra.mxu0 %v5083
    %v5372 = vpop.f32.mrf.mxu0
    %v5373 = vadd.f32 %v5347, %v5372
    %5374 = vdwg.mxu0
    %5375 = vmatpush.msra.mxu0 %v5213
    %5376 = vmatpush.msra.mxu0 %v5209
    %5377 = vmatpush.msra.mxu0 %v5205
    %5378 = vmatpush.msra.mxu0 %v5201
    %5379 = vmatpush.msra.mxu0 %v5197
    %5380 = vmatpush.msra.mxu0 %v5193
    %5381 = vmatpush.msra.mxu0 %v5189
    %5382 = vmatpush.msra.mxu0 %v5185
    %5383 = vmatpush.msra.mxu0 %v5181
    %5384 = vmatpush.msra.mxu0 %v5177
    %5385 = vmatpush.msra.mxu0 %v5173
    %5386 = vmatpush.msra.mxu0 %v5169
    %5387 = vmatpush.msra.mxu0 %v5165
    %5388 = vmatpush.msra.mxu0 %v5161
    %5389 = vmatpush.msra.mxu0 %v5157
    %5390 = vmatpush.msra.mxu0 %v5153
    %5391 = vmatmul.f32.gmra.mxu0 %v5084
    %v5392 = vpop.f32.mrf.mxu0
    %v5393 = vadd.f32 %v5373, %v5392
    %5394 = vdwg.mxu0
    %5395 = vmatpush.msra.mxu0 %v5277
    %5396 = vmatpush.msra.mxu0 %v5273
    %5397 = vmatpush.msra.mxu0 %v5269
    %5398 = vmatpush.msra.mxu0 %v5265
    %5399 = vmatpush.msra.mxu0 %v5261
    %5400 = vmatpush.msra.mxu0 %v5257
    %5401 = vmatpush.msra.mxu0 %v5253
    %5402 = vmatpush.msra.mxu0 %v5249
    %5403 = vmatpush.msra.mxu0 %v5245
    %5404 = vmatpush.msra.mxu0 %v5241
    %5405 = vmatpush.msra.mxu0 %v5237
    %5406 = vmatpush.msra.mxu0 %v5233
    %5407 = vmatpush.msra.mxu0 %v5229
    %5408 = vmatpush.msra.mxu0 %v5225
    %5409 = vmatpush.msra.mxu0 %v5221
    %5410 = vmatpush.msra.mxu0 %v5217
    %5411 = vmatmul.f32.gmra.mxu0 %v5085
    %v5412 = vpop.f32.mrf.mxu0
    %v5413 = vadd.f32 %v5393, %v5412
    %5414 = vdwg.mxu0
    %5415 = vmatpush.msra.mxu0 %v5341
    %5416 = vmatpush.msra.mxu0 %v5337
    %5417 = vmatpush.msra.mxu0 %v5333
    %5418 = vmatpush.msra.mxu0 %v5329
    %5419 = vmatpush.msra.mxu0 %v5325
    %5420 = vmatpush.msra.mxu0 %v5321
    %5421 = vmatpush.msra.mxu0 %v5317
    %5422 = vmatpush.msra.mxu0 %v5313
    %5423 = vmatpush.msra.mxu0 %v5309
    %5424 = vmatpush.msra.mxu0 %v5305
    %5425 = vmatpush.msra.mxu0 %v5301
    %5426 = vmatpush.msra.mxu0 %v5297
    %5427 = vmatpush.msra.mxu0 %v5293
    %5428 = vmatpush.msra.mxu0 %v5289
    %5429 = vmatpush.msra.mxu0 %v5285
    %5430 = vmatpush.msra.mxu0 %v5281
    %5431 = vmatmul.f32.gmra.mxu0 %v5086
    %v5432 = vpop.f32.mrf.mxu0
    %v5433 = vadd.f32 %v5413, %v5432
    %5434 = vdwg.mxu0
    %5435 = vmatpush.msra.mxu0 %v5150
    %5436 = vmatpush.msra.mxu0 %v5146
    %5437 = vmatpush.msra.mxu0 %v5142
    %5438 = vmatpush.msra.mxu0 %v5138
    %5439 = vmatpush.msra.mxu0 %v5134
    %5440 = vmatpush.msra.mxu0 %v5130
    %5441 = vmatpush.msra.mxu0 %v5126
    %5442 = vmatpush.msra.mxu0 %v5122
    %5443 = vmatpush.msra.mxu0 %v5118
    %5444 = vmatpush.msra.mxu0 %v5114
    %5445 = vmatpush.msra.mxu0 %v5110
    %5446 = vmatpush.msra.mxu0 %v5106
    %5447 = vmatpush.msra.mxu0 %v5102
    %5448 = vmatpush.msra.mxu0 %v5098
    %5449 = vmatpush.msra.mxu0 %v5094
    %5450 = vmatpush.msra.mxu0 %v5090
    %5451 = vmatmul.f32.gmra.mxu0 %v5083
    %v5452 = vpop.f32.mrf.mxu0
    %v5453 = vadd.f32 %v5348, %v5452
    %5454 = vdwg.mxu0
    %5455 = vmatpush.msra.mxu0 %v5214
    %5456 = vmatpush.msra.mxu0 %v5210
    %5457 = vmatpush.msra.mxu0 %v5206
    %5458 = vmatpush.msra.mxu0 %v5202
    %5459 = vmatpush.msra.mxu0 %v5198
    %5460 = vmatpush.msra.mxu0 %v5194
    %5461 = vmatpush.msra.mxu0 %v5190
    %5462 = vmatpush.msra.mxu0 %v5186
    %5463 = vmatpush.msra.mxu0 %v5182
    %5464 = vmatpush.msra.mxu0 %v5178
    %5465 = vmatpush.msra.mxu0 %v5174
    %5466 = vmatpush.msra.mxu0 %v5170
    %5467 = vmatpush.msra.mxu0 %v5166
    %5468 = vmatpush.msra.mxu0 %v5162
    %5469 = vmatpush.msra.mxu0 %v5158
    %5470 = vmatpush.msra.mxu0 %v5154
    %5471 = vmatmul.f32.gmra.mxu0 %v5084
    %v5472 = vpop.f32.mrf.mxu0
    %v5473 = vadd.f32 %v5453, %v5472
    %5474 = vdwg.mxu0
    %5475 = vmatpush.msra.mxu0 %v5278
    %5476 = vmatpush.msra.mxu0 %v5274
    %5477 = vmatpush.msra.mxu0 %v5270
    %5478 = vmatpush.msra.mxu0 %v5266
    %5479 = vmatpush.msra.mxu0 %v5262
    %5480 = vmatpush.msra.mxu0 %v5258
    %5481 = vmatpush.msra.mxu0 %v5254
    %5482 = vmatpush.msra.mxu0 %v5250
    %5483 = vmatpush.msra.mxu0 %v5246
    %5484 = vmatpush.msra.mxu0 %v5242
    %5485 = vmatpush.msra.mxu0 %v5238
    %5486 = vmatpush.msra.mxu0 %v5234
    %5487 = vmatpush.msra.mxu0 %v5230
    %5488 = vmatpush.msra.mxu0 %v5226
    %5489 = vmatpush.msra.mxu0 %v5222
    %5490 = vmatpush.msra.mxu0 %v5218
    %5491 = vmatmul.f32.gmra.mxu0 %v5085
    %v5492 = vpop.f32.mrf.mxu0
    %v5493 = vadd.f32 %v5473, %v5492
    %5494 = vdwg.mxu0
    %5495 = vmatpush.msra.mxu0 %v5342
    %5496 = vmatpush.msra.mxu0 %v5338
    %5497 = vmatpush.msra.mxu0 %v5334
    %5498 = vmatpush.msra.mxu0 %v5330
    %5499 = vmatpush.msra.mxu0 %v5326
    %5500 = vmatpush.msra.mxu0 %v5322
    %5501 = vmatpush.msra.mxu0 %v5318
    %5502 = vmatpush.msra.mxu0 %v5314
    %5503 = vmatpush.msra.mxu0 %v5310
    %5504 = vmatpush.msra.mxu0 %v5306
    %5505 = vmatpush.msra.mxu0 %v5302
    %5506 = vmatpush.msra.mxu0 %v5298
    %5507 = vmatpush.msra.mxu0 %v5294
    %5508 = vmatpush.msra.mxu0 %v5290
    %5509 = vmatpush.msra.mxu0 %v5286
    %5510 = vmatpush.msra.mxu0 %v5282
    %5511 = vmatmul.f32.gmra.mxu0 %v5086
    %v5512 = vpop.f32.mrf.mxu0
    %v5513 = vadd.f32 %v5493, %v5512
    %5514 = vdwg.mxu0
    %5515 = vmatpush.msra.mxu0 %v5151
    %5516 = vmatpush.msra.mxu0 %v5147
    %5517 = vmatpush.msra.mxu0 %v5143
    %5518 = vmatpush.msra.mxu0 %v5139
    %5519 = vmatpush.msra.mxu0 %v5135
    %5520 = vmatpush.msra.mxu0 %v5131
    %5521 = vmatpush.msra.mxu0 %v5127
    %5522 = vmatpush.msra.mxu0 %v5123
    %5523 = vmatpush.msra.mxu0 %v5119
    %5524 = vmatpush.msra.mxu0 %v5115
    %5525 = vmatpush.msra.mxu0 %v5111
    %5526 = vmatpush.msra.mxu0 %v5107
    %5527 = vmatpush.msra.mxu0 %v5103
    %5528 = vmatpush.msra.mxu0 %v5099
    %5529 = vmatpush.msra.mxu0 %v5095
    %5530 = vmatpush.msra.mxu0 %v5091
    %5531 = vmatmul.f32.gmra.mxu0 %v5083
    %v5532 = vpop.f32.mrf.mxu0
    %v5533 = vadd.f32 %v5349, %v5532
    %5534 = vdwg.mxu0
    %5535 = vmatpush.msra.mxu0 %v5215
    %5536 = vmatpush.msra.mxu0 %v5211
    %5537 = vmatpush.msra.mxu0 %v5207
    %5538 = vmatpush.msra.mxu0 %v5203
    %5539 = vmatpush.msra.mxu0 %v5199
    %5540 = vmatpush.msra.mxu0 %v5195
    %5541 = vmatpush.msra.mxu0 %v5191
    %5542 = vmatpush.msra.mxu0 %v5187
    %5543 = vmatpush.msra.mxu0 %v5183
    %5544 = vmatpush.msra.mxu0 %v5179
    %5545 = vmatpush.msra.mxu0 %v5175
    %5546 = vmatpush.msra.mxu0 %v5171
    %5547 = vmatpush.msra.mxu0 %v5167
    %5548 = vmatpush.msra.mxu0 %v5163
    %5549 = vmatpush.msra.mxu0 %v5159
    %5550 = vmatpush.msra.mxu0 %v5155
    %5551 = vmatmul.f32.gmra.mxu0 %v5084
    %v5552 = vpop.f32.mrf.mxu0
    %v5553 = vadd.f32 %v5533, %v5552
    %5554 = vdwg.mxu0
    %5555 = vmatpush.msra.mxu0 %v5279
    %5556 = vmatpush.msra.mxu0 %v5275
    %5557 = vmatpush.msra.mxu0 %v5271
    %5558 = vmatpush.msra.mxu0 %v5267
    %5559 = vmatpush.msra.mxu0 %v5263
    %5560 = vmatpush.msra.mxu0 %v5259
    %5561 = vmatpush.msra.mxu0 %v5255
    %5562 = vmatpush.msra.mxu0 %v5251
    %5563 = vmatpush.msra.mxu0 %v5247
    %5564 = vmatpush.msra.mxu0 %v5243
    %5565 = vmatpush.msra.mxu0 %v5239
    %5566 = vmatpush.msra.mxu0 %v5235
    %5567 = vmatpush.msra.mxu0 %v5231
    %5568 = vmatpush.msra.mxu0 %v5227
    %5569 = vmatpush.msra.mxu0 %v5223
    %5570 = vmatpush.msra.mxu0 %v5219
    %5571 = vmatmul.f32.gmra.mxu0 %v5085
    %v5572 = vpop.f32.mrf.mxu0
    %v5573 = vadd.f32 %v5553, %v5572
    %5574 = vdwg.mxu0
    %5575 = vmatpush.msra.mxu0 %v5343
    %5576 = vmatpush.msra.mxu0 %v5339
    %5577 = vmatpush.msra.mxu0 %v5335
    %5578 = vmatpush.msra.mxu0 %v5331
    %5579 = vmatpush.msra.mxu0 %v5327
    %5580 = vmatpush.msra.mxu0 %v5323
    %5581 = vmatpush.msra.mxu0 %v5319
    %5582 = vmatpush.msra.mxu0 %v5315
    %5583 = vmatpush.msra.mxu0 %v5311
    %5584 = vmatpush.msra.mxu0 %v5307
    %5585 = vmatpush.msra.mxu0 %v5303
    %5586 = vmatpush.msra.mxu0 %v5299
    %5587 = vmatpush.msra.mxu0 %v5295
    %5588 = vmatpush.msra.mxu0 %v5291
    %5589 = vmatpush.msra.mxu0 %v5287
    %5590 = vmatpush.msra.mxu0 %v5283
    %5591 = vmatmul.f32.gmra.mxu0 %v5086
    %v5592 = vpop.f32.mrf.mxu0
    %v5593 = vadd.f32 %v5573, %v5592
    %5594 = vdwg.mxu0
    %5595 = vmatpush.msra.mxu0 %v5152
    %5596 = vmatpush.msra.mxu0 %v5148
    %5597 = vmatpush.msra.mxu0 %v5144
    %5598 = vmatpush.msra.mxu0 %v5140
    %5599 = vmatpush.msra.mxu0 %v5136
    %5600 = vmatpush.msra.mxu0 %v5132
    %5601 = vmatpush.msra.mxu0 %v5128
    %5602 = vmatpush.msra.mxu0 %v5124
    %5603 = vmatpush.msra.mxu0 %v5120
    %5604 = vmatpush.msra.mxu0 %v5116
    %5605 = vmatpush.msra.mxu0 %v5112
    %5606 = vmatpush.msra.mxu0 %v5108
    %5607 = vmatpush.msra.mxu0 %v5104
    %5608 = vmatpush.msra.mxu0 %v5100
    %5609 = vmatpush.msra.mxu0 %v5096
    %5610 = vmatpush.msra.mxu0 %v5092
    %5611 = vmatmul.f32.gmra.mxu0 %v5083
    %v5612 = vpop.f32.mrf.mxu0
    %v5613 = vadd.f32 %v5350, %v5612
    %5614 = vdwg.mxu0
    %5615 = vmatpush.msra.mxu0 %v5216
    %5616 = vmatpush.msra.mxu0 %v5212
    %5617 = vmatpush.msra.mxu0 %v5208
    %5618 = vmatpush.msra.mxu0 %v5204
    %5619 = vmatpush.msra.mxu0 %v5200
    %5620 = vmatpush.msra.mxu0 %v5196
    %5621 = vmatpush.msra.mxu0 %v5192
    %5622 = vmatpush.msra.mxu0 %v5188
    %5623 = vmatpush.msra.mxu0 %v5184
    %5624 = vmatpush.msra.mxu0 %v5180
    %5625 = vmatpush.msra.mxu0 %v5176
    %5626 = vmatpush.msra.mxu0 %v5172
    %5627 = vmatpush.msra.mxu0 %v5168
    %5628 = vmatpush.msra.mxu0 %v5164
    %5629 = vmatpush.msra.mxu0 %v5160
    %5630 = vmatpush.msra.mxu0 %v5156
    %5631 = vmatmul.f32.gmra.mxu0 %v5084
    %v5632 = vpop.f32.mrf.mxu0
    %v5633 = vadd.f32 %v5613, %v5632
    %5634 = vdwg.mxu0
    %5635 = vmatpush.msra.mxu0 %v5280
    %5636 = vmatpush.msra.mxu0 %v5276
    %5637 = vmatpush.msra.mxu0 %v5272
    %5638 = vmatpush.msra.mxu0 %v5268
    %5639 = vmatpush.msra.mxu0 %v5264
    %5640 = vmatpush.msra.mxu0 %v5260
    %5641 = vmatpush.msra.mxu0 %v5256
    %5642 = vmatpush.msra.mxu0 %v5252
    %5643 = vmatpush.msra.mxu0 %v5248
    %5644 = vmatpush.msra.mxu0 %v5244
    %5645 = vmatpush.msra.mxu0 %v5240
    %5646 = vmatpush.msra.mxu0 %v5236
    %5647 = vmatpush.msra.mxu0 %v5232
    %5648 = vmatpush.msra.mxu0 %v5228
    %5649 = vmatpush.msra.mxu0 %v5224
    %5650 = vmatpush.msra.mxu0 %v5220
    %5651 = vmatmul.f32.gmra.mxu0 %v5085
    %v5652 = vpop.f32.mrf.mxu0
    %v5653 = vadd.f32 %v5633, %v5652
    %5654 = vdwg.mxu0
    %5655 = vmatpush.msra.mxu0 %v5344
    %5656 = vmatpush.msra.mxu0 %v5340
    %5657 = vmatpush.msra.mxu0 %v5336
    %5658 = vmatpush.msra.mxu0 %v5332
    %5659 = vmatpush.msra.mxu0 %v5328
    %5660 = vmatpush.msra.mxu0 %v5324
    %5661 = vmatpush.msra.mxu0 %v5320
    %5662 = vmatpush.msra.mxu0 %v5316
    %5663 = vmatpush.msra.mxu0 %v5312
    %5664 = vmatpush.msra.mxu0 %v5308
    %5665 = vmatpush.msra.mxu0 %v5304
    %5666 = vmatpush.msra.mxu0 %v5300
    %5667 = vmatpush.msra.mxu0 %v5296
    %5668 = vmatpush.msra.mxu0 %v5292
    %5669 = vmatpush.msra.mxu0 %v5288
    %5670 = vmatpush.msra.mxu0 %v5284
    %5671 = vmatmul.f32.gmra.mxu0 %v5086
    %v5672 = vpop.f32.mrf.mxu0
    %v5673 = vadd.f32 %v5653, %v5672
    %5674 = vdwg.mxu0
    %v5675 = vmax.f32 %v5433, 0.0
    %v5676 = vmax.f32 %v5513, 0.0
    %v5677 = vmax.f32 %v5593, 0.0
    %v5678 = vmax.f32 %v5673, 0.0
    %s5679 = sshll.u32 %s3902, 4
    %5680 = dma.done %s1240, %s5679
    %v5681 = vld [vmem:[#allocation6] sm:$0xff]
    %v5682 = vld [vmem:[#allocation6 + $0x8] sm:$0xff]
    %v5683 = vld [vmem:[#allocation6 + $0x10] sm:$0xff]
    %v5684 = vld [vmem:[#allocation6 + $0x18] sm:$0xff]
    %v5685 = vld [vmem:[#allocation6 + $0x20] sm:$0xff]
    %v5686 = vld [vmem:[#allocation6 + $0x28] sm:$0xff]
    %v5687 = vld [vmem:[#allocation6 + $0x30] sm:$0xff]
    %v5688 = vld [vmem:[#allocation6 + $0x38] sm:$0xff]
    %v5689 = vld [vmem:[#allocation6 + $0x40] sm:$0xff]
    %v5690 = vld [vmem:[#allocation6 + $0x48] sm:$0xff]
    %v5691 = vld [vmem:[#allocation6 + $0x50] sm:$0xff]
    %v5692 = vld [vmem:[#allocation6 + $0x58] sm:$0xff]
    %v5693 = vld [vmem:[#allocation6 + $0x60] sm:$0xff]
    %v5694 = vld [vmem:[#allocation6 + $0x68] sm:$0xff]
    %v5695 = vld [vmem:[#allocation6 + $0x70] sm:$0xff]
    %v5696 = vld [vmem:[#allocation6 + $0x78] sm:$0xff]
    %v5697 = vld [vmem:[#allocation6 + $0x80] sm:$0xff]
    %v5698 = vld [vmem:[#allocation6 + $0x88] sm:$0xff]
    %v5699 = vld [vmem:[#allocation6 + $0x90] sm:$0xff]
    %v5700 = vld [vmem:[#allocation6 + $0x98] sm:$0xff]
    %v5701 = vld [vmem:[#allocation6 + $0xa0] sm:$0xff]
    %v5702 = vld [vmem:[#allocation6 + $0xa8] sm:$0xff]
    %v5703 = vld [vmem:[#allocation6 + $0xb0] sm:$0xff]
    %v5704 = vld [vmem:[#allocation6 + $0xb8] sm:$0xff]
    %v5705 = vld [vmem:[#allocation6 + $0xc0] sm:$0xff]
    %v5706 = vld [vmem:[#allocation6 + $0xc8] sm:$0xff]
    %v5707 = vld [vmem:[#allocation6 + $0xd0] sm:$0xff]
    %v5708 = vld [vmem:[#allocation6 + $0xd8] sm:$0xff]
    %v5709 = vld [vmem:[#allocation6 + $0xe0] sm:$0xff]
    %v5710 = vld [vmem:[#allocation6 + $0xe8] sm:$0xff]
    %v5711 = vld [vmem:[#allocation6 + $0xf0] sm:$0xff]
    %v5712 = vld [vmem:[#allocation6 + $0xf8] sm:$0xff]
    %v5713 = vld [vmem:[#allocation6 + $0x100] sm:$0xff]
    %v5714 = vld [vmem:[#allocation6 + $0x108] sm:$0xff]
    %v5715 = vld [vmem:[#allocation6 + $0x110] sm:$0xff]
    %v5716 = vld [vmem:[#allocation6 + $0x118] sm:$0xff]
    %v5717 = vld [vmem:[#allocation6 + $0x120] sm:$0xff]
    %v5718 = vld [vmem:[#allocation6 + $0x128] sm:$0xff]
    %v5719 = vld [vmem:[#allocation6 + $0x130] sm:$0xff]
    %v5720 = vld [vmem:[#allocation6 + $0x138] sm:$0xff]
    %v5721 = vld [vmem:[#allocation6 + $0x140] sm:$0xff]
    %v5722 = vld [vmem:[#allocation6 + $0x148] sm:$0xff]
    %v5723 = vld [vmem:[#allocation6 + $0x150] sm:$0xff]
    %v5724 = vld [vmem:[#allocation6 + $0x158] sm:$0xff]
    %v5725 = vld [vmem:[#allocation6 + $0x160] sm:$0xff]
    %v5726 = vld [vmem:[#allocation6 + $0x168] sm:$0xff]
    %v5727 = vld [vmem:[#allocation6 + $0x170] sm:$0xff]
    %v5728 = vld [vmem:[#allocation6 + $0x178] sm:$0xff]
    %v5729 = vld [vmem:[#allocation6 + $0x180] sm:$0xff]
    %v5730 = vld [vmem:[#allocation6 + $0x188] sm:$0xff]
    %v5731 = vld [vmem:[#allocation6 + $0x190] sm:$0xff]
    %v5732 = vld [vmem:[#allocation6 + $0x198] sm:$0xff]
    %v5733 = vld [vmem:[#allocation6 + $0x1a0] sm:$0xff]
    %v5734 = vld [vmem:[#allocation6 + $0x1a8] sm:$0xff]
    %v5735 = vld [vmem:[#allocation6 + $0x1b0] sm:$0xff]
    %v5736 = vld [vmem:[#allocation6 + $0x1b8] sm:$0xff]
    %v5737 = vld [vmem:[#allocation6 + $0x1c0] sm:$0xff]
    %v5738 = vld [vmem:[#allocation6 + $0x1c8] sm:$0xff]
    %v5739 = vld [vmem:[#allocation6 + $0x1d0] sm:$0xff]
    %v5740 = vld [vmem:[#allocation6 + $0x1d8] sm:$0xff]
    %v5741 = vld [vmem:[#allocation6 + $0x1e0] sm:$0xff]
    %v5742 = vld [vmem:[#allocation6 + $0x1e8] sm:$0xff]
    %v5743 = vld [vmem:[#allocation6 + $0x1f0] sm:$0xff]
    %v5744 = vld [vmem:[#allocation6 + $0x1f8] sm:$0xff]
    %v5745 = vld [vmem:[#allocation6 + $0x200] sm:$0xff]
    %v5746 = vld [vmem:[#allocation6 + $0x208] sm:$0xff]
    %v5747 = vld [vmem:[#allocation6 + $0x210] sm:$0xff]
    %v5748 = vld [vmem:[#allocation6 + $0x218] sm:$0xff]
    %v5749 = vld [vmem:[#allocation6 + $0x220] sm:$0xff]
    %v5750 = vld [vmem:[#allocation6 + $0x228] sm:$0xff]
    %v5751 = vld [vmem:[#allocation6 + $0x230] sm:$0xff]
    %v5752 = vld [vmem:[#allocation6 + $0x238] sm:$0xff]
    %v5753 = vld [vmem:[#allocation6 + $0x240] sm:$0xff]
    %v5754 = vld [vmem:[#allocation6 + $0x248] sm:$0xff]
    %v5755 = vld [vmem:[#allocation6 + $0x250] sm:$0xff]
    %v5756 = vld [vmem:[#allocation6 + $0x258] sm:$0xff]
    %v5757 = vld [vmem:[#allocation6 + $0x260] sm:$0xff]
    %v5758 = vld [vmem:[#allocation6 + $0x268] sm:$0xff]
    %v5759 = vld [vmem:[#allocation6 + $0x270] sm:$0xff]
    %v5760 = vld [vmem:[#allocation6 + $0x278] sm:$0xff]
    %v5761 = vld [vmem:[#allocation6 + $0x280] sm:$0xff]
    %v5762 = vld [vmem:[#allocation6 + $0x288] sm:$0xff]
    %v5763 = vld [vmem:[#allocation6 + $0x290] sm:$0xff]
    %v5764 = vld [vmem:[#allocation6 + $0x298] sm:$0xff]
    %v5765 = vld [vmem:[#allocation6 + $0x2a0] sm:$0xff]
    %v5766 = vld [vmem:[#allocation6 + $0x2a8] sm:$0xff]
    %v5767 = vld [vmem:[#allocation6 + $0x2b0] sm:$0xff]
    %v5768 = vld [vmem:[#allocation6 + $0x2b8] sm:$0xff]
    %v5769 = vld [vmem:[#allocation6 + $0x2c0] sm:$0xff]
    %v5770 = vld [vmem:[#allocation6 + $0x2c8] sm:$0xff]
    %v5771 = vld [vmem:[#allocation6 + $0x2d0] sm:$0xff]
    %v5772 = vld [vmem:[#allocation6 + $0x2d8] sm:$0xff]
    %v5773 = vld [vmem:[#allocation6 + $0x2e0] sm:$0xff]
    %v5774 = vld [vmem:[#allocation6 + $0x2e8] sm:$0xff]
    %v5775 = vld [vmem:[#allocation6 + $0x2f0] sm:$0xff]
    %v5776 = vld [vmem:[#allocation6 + $0x2f8] sm:$0xff]
    %v5777 = vld [vmem:[#allocation6 + $0x300] sm:$0xff]
    %v5778 = vld [vmem:[#allocation6 + $0x308] sm:$0xff]
    %v5779 = vld [vmem:[#allocation6 + $0x310] sm:$0xff]
    %v5780 = vld [vmem:[#allocation6 + $0x318] sm:$0xff]
    %v5781 = vld [vmem:[#allocation6 + $0x320] sm:$0xff]
    %v5782 = vld [vmem:[#allocation6 + $0x328] sm:$0xff]
    %v5783 = vld [vmem:[#allocation6 + $0x330] sm:$0xff]
    %v5784 = vld [vmem:[#allocation6 + $0x338] sm:$0xff]
    %v5785 = vld [vmem:[#allocation6 + $0x340] sm:$0xff]
    %v5786 = vld [vmem:[#allocation6 + $0x348] sm:$0xff]
    %v5787 = vld [vmem:[#allocation6 + $0x350] sm:$0xff]
    %v5788 = vld [vmem:[#allocation6 + $0x358] sm:$0xff]
    %v5789 = vld [vmem:[#allocation6 + $0x360] sm:$0xff]
    %v5790 = vld [vmem:[#allocation6 + $0x368] sm:$0xff]
    %v5791 = vld [vmem:[#allocation6 + $0x370] sm:$0xff]
    %v5792 = vld [vmem:[#allocation6 + $0x378] sm:$0xff]
    %v5793 = vld [vmem:[#allocation6 + $0x380] sm:$0xff]
    %v5794 = vld [vmem:[#allocation6 + $0x388] sm:$0xff]
    %v5795 = vld [vmem:[#allocation6 + $0x390] sm:$0xff]
    %v5796 = vld [vmem:[#allocation6 + $0x398] sm:$0xff]
    %v5797 = vld [vmem:[#allocation6 + $0x3a0] sm:$0xff]
    %v5798 = vld [vmem:[#allocation6 + $0x3a8] sm:$0xff]
    %v5799 = vld [vmem:[#allocation6 + $0x3b0] sm:$0xff]
    %v5800 = vld [vmem:[#allocation6 + $0x3b8] sm:$0xff]
    %v5801 = vld [vmem:[#allocation6 + $0x3c0] sm:$0xff]
    %v5802 = vld [vmem:[#allocation6 + $0x3c8] sm:$0xff]
    %v5803 = vld [vmem:[#allocation6 + $0x3d0] sm:$0xff]
    %v5804 = vld [vmem:[#allocation6 + $0x3d8] sm:$0xff]
    %v5805 = vld [vmem:[#allocation6 + $0x3e0] sm:$0xff]
    %v5806 = vld [vmem:[#allocation6 + $0x3e8] sm:$0xff]
    %v5807 = vld [vmem:[#allocation6 + $0x3f0] sm:$0xff]
    %v5808 = vld [vmem:[#allocation6 + $0x3f8] sm:$0xff]
    %v5809 = vld [vmem:[#allocation6 + $0x400] sm:$0xff]
    %v5810 = vld [vmem:[#allocation6 + $0x408] sm:$0xff]
    %v5811 = vld [vmem:[#allocation6 + $0x410] sm:$0xff]
    %v5812 = vld [vmem:[#allocation6 + $0x418] sm:$0xff]
    %v5813 = vld [vmem:[#allocation6 + $0x420] sm:$0xff]
    %v5814 = vld [vmem:[#allocation6 + $0x428] sm:$0xff]
    %v5815 = vld [vmem:[#allocation6 + $0x430] sm:$0xff]
    %v5816 = vld [vmem:[#allocation6 + $0x438] sm:$0xff]
    %v5817 = vld [vmem:[#allocation6 + $0x440] sm:$0xff]
    %v5818 = vld [vmem:[#allocation6 + $0x448] sm:$0xff]
    %v5819 = vld [vmem:[#allocation6 + $0x450] sm:$0xff]
    %v5820 = vld [vmem:[#allocation6 + $0x458] sm:$0xff]
    %v5821 = vld [vmem:[#allocation6 + $0x460] sm:$0xff]
    %v5822 = vld [vmem:[#allocation6 + $0x468] sm:$0xff]
    %v5823 = vld [vmem:[#allocation6 + $0x470] sm:$0xff]
    %v5824 = vld [vmem:[#allocation6 + $0x478] sm:$0xff]
    %v5825 = vld [vmem:[#allocation6 + $0x480] sm:$0xff]
    %v5826 = vld [vmem:[#allocation6 + $0x488] sm:$0xff]
    %v5827 = vld [vmem:[#allocation6 + $0x490] sm:$0xff]
    %v5828 = vld [vmem:[#allocation6 + $0x498] sm:$0xff]
    %v5829 = vld [vmem:[#allocation6 + $0x4a0] sm:$0xff]
    %v5830 = vld [vmem:[#allocation6 + $0x4a8] sm:$0xff]
    %v5831 = vld [vmem:[#allocation6 + $0x4b0] sm:$0xff]
    %v5832 = vld [vmem:[#allocation6 + $0x4b8] sm:$0xff]
    %v5833 = vld [vmem:[#allocation6 + $0x4c0] sm:$0xff]
    %v5834 = vld [vmem:[#allocation6 + $0x4c8] sm:$0xff]
    %v5835 = vld [vmem:[#allocation6 + $0x4d0] sm:$0xff]
    %v5836 = vld [vmem:[#allocation6 + $0x4d8] sm:$0xff]
    %v5837 = vld [vmem:[#allocation6 + $0x4e0] sm:$0xff]
    %v5838 = vld [vmem:[#allocation6 + $0x4e8] sm:$0xff]
    %v5839 = vld [vmem:[#allocation6 + $0x4f0] sm:$0xff]
    %v5840 = vld [vmem:[#allocation6 + $0x4f8] sm:$0xff]
    %v5841 = vld [vmem:[#allocation6 + $0x500] sm:$0xff]
    %v5842 = vld [vmem:[#allocation6 + $0x508] sm:$0xff]
    %v5843 = vld [vmem:[#allocation6 + $0x510] sm:$0xff]
    %v5844 = vld [vmem:[#allocation6 + $0x518] sm:$0xff]
    %v5845 = vld [vmem:[#allocation6 + $0x520] sm:$0xff]
    %v5846 = vld [vmem:[#allocation6 + $0x528] sm:$0xff]
    %v5847 = vld [vmem:[#allocation6 + $0x530] sm:$0xff]
    %v5848 = vld [vmem:[#allocation6 + $0x538] sm:$0xff]
    %v5849 = vld [vmem:[#allocation6 + $0x540] sm:$0xff]
    %v5850 = vld [vmem:[#allocation6 + $0x548] sm:$0xff]
    %v5851 = vld [vmem:[#allocation6 + $0x550] sm:$0xff]
    %v5852 = vld [vmem:[#allocation6 + $0x558] sm:$0xff]
    %v5853 = vld [vmem:[#allocation6 + $0x560] sm:$0xff]
    %v5854 = vld [vmem:[#allocation6 + $0x568] sm:$0xff]
    %v5855 = vld [vmem:[#allocation6 + $0x570] sm:$0xff]
    %v5856 = vld [vmem:[#allocation6 + $0x578] sm:$0xff]
    %v5857 = vld [vmem:[#allocation6 + $0x580] sm:$0xff]
    %v5858 = vld [vmem:[#allocation6 + $0x588] sm:$0xff]
    %v5859 = vld [vmem:[#allocation6 + $0x590] sm:$0xff]
    %v5860 = vld [vmem:[#allocation6 + $0x598] sm:$0xff]
    %v5861 = vld [vmem:[#allocation6 + $0x5a0] sm:$0xff]
    %v5862 = vld [vmem:[#allocation6 + $0x5a8] sm:$0xff]
    %v5863 = vld [vmem:[#allocation6 + $0x5b0] sm:$0xff]
    %v5864 = vld [vmem:[#allocation6 + $0x5b8] sm:$0xff]
    %v5865 = vld [vmem:[#allocation6 + $0x5c0] sm:$0xff]
    %v5866 = vld [vmem:[#allocation6 + $0x5c8] sm:$0xff]
    %v5867 = vld [vmem:[#allocation6 + $0x5d0] sm:$0xff]
    %v5868 = vld [vmem:[#allocation6 + $0x5d8] sm:$0xff]
    %v5869 = vld [vmem:[#allocation6 + $0x5e0] sm:$0xff]
    %v5870 = vld [vmem:[#allocation6 + $0x5e8] sm:$0xff]
    %v5871 = vld [vmem:[#allocation6 + $0x5f0] sm:$0xff]
    %v5872 = vld [vmem:[#allocation6 + $0x5f8] sm:$0xff]
    %v5873 = vld [vmem:[#allocation6 + $0x600] sm:$0xff]
    %v5874 = vld [vmem:[#allocation6 + $0x608] sm:$0xff]
    %v5875 = vld [vmem:[#allocation6 + $0x610] sm:$0xff]
    %v5876 = vld [vmem:[#allocation6 + $0x618] sm:$0xff]
    %v5877 = vld [vmem:[#allocation6 + $0x620] sm:$0xff]
    %v5878 = vld [vmem:[#allocation6 + $0x628] sm:$0xff]
    %v5879 = vld [vmem:[#allocation6 + $0x630] sm:$0xff]
    %v5880 = vld [vmem:[#allocation6 + $0x638] sm:$0xff]
    %v5881 = vld [vmem:[#allocation6 + $0x640] sm:$0xff]
    %v5882 = vld [vmem:[#allocation6 + $0x648] sm:$0xff]
    %v5883 = vld [vmem:[#allocation6 + $0x650] sm:$0xff]
    %v5884 = vld [vmem:[#allocation6 + $0x658] sm:$0xff]
    %v5885 = vld [vmem:[#allocation6 + $0x660] sm:$0xff]
    %v5886 = vld [vmem:[#allocation6 + $0x668] sm:$0xff]
    %v5887 = vld [vmem:[#allocation6 + $0x670] sm:$0xff]
    %v5888 = vld [vmem:[#allocation6 + $0x678] sm:$0xff]
    %v5889 = vld [vmem:[#allocation6 + $0x680] sm:$0xff]
    %v5890 = vld [vmem:[#allocation6 + $0x688] sm:$0xff]
    %v5891 = vld [vmem:[#allocation6 + $0x690] sm:$0xff]
    %v5892 = vld [vmem:[#allocation6 + $0x698] sm:$0xff]
    %v5893 = vld [vmem:[#allocation6 + $0x6a0] sm:$0xff]
    %v5894 = vld [vmem:[#allocation6 + $0x6a8] sm:$0xff]
    %v5895 = vld [vmem:[#allocation6 + $0x6b0] sm:$0xff]
    %v5896 = vld [vmem:[#allocation6 + $0x6b8] sm:$0xff]
    %v5897 = vld [vmem:[#allocation6 + $0x6c0] sm:$0xff]
    %v5898 = vld [vmem:[#allocation6 + $0x6c8] sm:$0xff]
    %v5899 = vld [vmem:[#allocation6 + $0x6d0] sm:$0xff]
    %v5900 = vld [vmem:[#allocation6 + $0x6d8] sm:$0xff]
    %v5901 = vld [vmem:[#allocation6 + $0x6e0] sm:$0xff]
    %v5902 = vld [vmem:[#allocation6 + $0x6e8] sm:$0xff]
    %v5903 = vld [vmem:[#allocation6 + $0x6f0] sm:$0xff]
    %v5904 = vld [vmem:[#allocation6 + $0x6f8] sm:$0xff]
    %v5905 = vld [vmem:[#allocation6 + $0x700] sm:$0xff]
    %v5906 = vld [vmem:[#allocation6 + $0x708] sm:$0xff]
    %v5907 = vld [vmem:[#allocation6 + $0x710] sm:$0xff]
    %v5908 = vld [vmem:[#allocation6 + $0x718] sm:$0xff]
    %v5909 = vld [vmem:[#allocation6 + $0x720] sm:$0xff]
    %v5910 = vld [vmem:[#allocation6 + $0x728] sm:$0xff]
    %v5911 = vld [vmem:[#allocation6 + $0x730] sm:$0xff]
    %v5912 = vld [vmem:[#allocation6 + $0x738] sm:$0xff]
    %v5913 = vld [vmem:[#allocation6 + $0x740] sm:$0xff]
    %v5914 = vld [vmem:[#allocation6 + $0x748] sm:$0xff]
    %v5915 = vld [vmem:[#allocation6 + $0x750] sm:$0xff]
    %v5916 = vld [vmem:[#allocation6 + $0x758] sm:$0xff]
    %v5917 = vld [vmem:[#allocation6 + $0x760] sm:$0xff]
    %v5918 = vld [vmem:[#allocation6 + $0x768] sm:$0xff]
    %v5919 = vld [vmem:[#allocation6 + $0x770] sm:$0xff]
    %v5920 = vld [vmem:[#allocation6 + $0x778] sm:$0xff]
    %v5921 = vld [vmem:[#allocation6 + $0x780] sm:$0xff]
    %v5922 = vld [vmem:[#allocation6 + $0x788] sm:$0xff]
    %v5923 = vld [vmem:[#allocation6 + $0x790] sm:$0xff]
    %v5924 = vld [vmem:[#allocation6 + $0x798] sm:$0xff]
    %v5925 = vld [vmem:[#allocation6 + $0x7a0] sm:$0xff]
    %v5926 = vld [vmem:[#allocation6 + $0x7a8] sm:$0xff]
    %v5927 = vld [vmem:[#allocation6 + $0x7b0] sm:$0xff]
    %v5928 = vld [vmem:[#allocation6 + $0x7b8] sm:$0xff]
    %v5929 = vld [vmem:[#allocation6 + $0x7c0] sm:$0xff]
    %v5930 = vld [vmem:[#allocation6 + $0x7c8] sm:$0xff]
    %v5931 = vld [vmem:[#allocation6 + $0x7d0] sm:$0xff]
    %v5932 = vld [vmem:[#allocation6 + $0x7d8] sm:$0xff]
    %v5933 = vld [vmem:[#allocation6 + $0x7e0] sm:$0xff]
    %v5934 = vld [vmem:[#allocation6 + $0x7e8] sm:$0xff]
    %v5935 = vld [vmem:[#allocation6 + $0x7f0] sm:$0xff]
    %v5936 = vld [vmem:[#allocation6 + $0x7f8] sm:$0xff]
    %v5937 = vld [vmem:[%s15] sm:$0xf]
    %v5939 = vperm.slane %v5937, 0
    %v5940 = vperm.slane %v5937, 1
    %v5941 = vperm.slane %v5937, 2
    %v5942 = vperm.slane %v5937, 3
    %5947 = vmatpush.msra.mxu0 %v5741
    %5948 = vmatpush.msra.mxu0 %v5737
    %5949 = vmatpush.msra.mxu0 %v5733
    %5950 = vmatpush.msra.mxu0 %v5729
    %5951 = vmatpush.msra.mxu0 %v5725
    %5952 = vmatpush.msra.mxu0 %v5721
    %5953 = vmatpush.msra.mxu0 %v5717
    %5954 = vmatpush.msra.mxu0 %v5713
    %5955 = vmatpush.msra.mxu0 %v5709
    %5956 = vmatpush.msra.mxu0 %v5705
    %5957 = vmatpush.msra.mxu0 %v5701
    %5958 = vmatpush.msra.mxu0 %v5697
    %5959 = vmatpush.msra.mxu0 %v5693
    %5960 = vmatpush.msra.mxu0 %v5689
    %5961 = vmatpush.msra.mxu0 %v5685
    %5962 = vmatpush.msra.mxu0 %v5681
    %5963 = vmatmul.f32.gmra.mxu0 %v5675
    %v5964 = vpop.f32.mrf.mxu0
    %v5965 = vadd.f32 %v5939, %v5964
    %5966 = vdwg.mxu0
    %5967 = vmatpush.msra.mxu0 %v5805
    %5968 = vmatpush.msra.mxu0 %v5801
    %5969 = vmatpush.msra.mxu0 %v5797
    %5970 = vmatpush.msra.mxu0 %v5793
    %5971 = vmatpush.msra.mxu0 %v5789
    %5972 = vmatpush.msra.mxu0 %v5785
    %5973 = vmatpush.msra.mxu0 %v5781
    %5974 = vmatpush.msra.mxu0 %v5777
    %5975 = vmatpush.msra.mxu0 %v5773
    %5976 = vmatpush.msra.mxu0 %v5769
    %5977 = vmatpush.msra.mxu0 %v5765
    %5978 = vmatpush.msra.mxu0 %v5761
    %5979 = vmatpush.msra.mxu0 %v5757
    %5980 = vmatpush.msra.mxu0 %v5753
    %5981 = vmatpush.msra.mxu0 %v5749
    %5982 = vmatpush.msra.mxu0 %v5745
    %5983 = vmatmul.f32.gmra.mxu0 %v5676
    %v5984 = vpop.f32.mrf.mxu0
    %v5985 = vadd.f32 %v5965, %v5984
    %5986 = vdwg.mxu0
    %5987 = vmatpush.msra.mxu0 %v5869
    %5988 = vmatpush.msra.mxu0 %v5865
    %5989 = vmatpush.msra.mxu0 %v5861
    %5990 = vmatpush.msra.mxu0 %v5857
    %5991 = vmatpush.msra.mxu0 %v5853
    %5992 = vmatpush.msra.mxu0 %v5849
    %5993 = vmatpush.msra.mxu0 %v5845
    %5994 = vmatpush.msra.mxu0 %v5841
    %5995 = vmatpush.msra.mxu0 %v5837
    %5996 = vmatpush.msra.mxu0 %v5833
    %5997 = vmatpush.msra.mxu0 %v5829
    %5998 = vmatpush.msra.mxu0 %v5825
    %5999 = vmatpush.msra.mxu0 %v5821
    %6000 = vmatpush.msra.mxu0 %v5817
    %6001 = vmatpush.msra.mxu0 %v5813
    %6002 = vmatpush.msra.mxu0 %v5809
    %6003 = vmatmul.f32.gmra.mxu0 %v5677
    %v6004 = vpop.f32.mrf.mxu0
    %v6005 = vadd.f32 %v5985, %v6004
    %6006 = vdwg.mxu0
    %6007 = vmatpush.msra.mxu0 %v5933
    %6008 = vmatpush.msra.mxu0 %v5929
    %6009 = vmatpush.msra.mxu0 %v5925
    %6010 = vmatpush.msra.mxu0 %v5921
    %6011 = vmatpush.msra.mxu0 %v5917
    %6012 = vmatpush.msra.mxu0 %v5913
    %6013 = vmatpush.msra.mxu0 %v5909
    %6014 = vmatpush.msra.mxu0 %v5905
    %6015 = vmatpush.msra.mxu0 %v5901
    %6016 = vmatpush.msra.mxu0 %v5897
    %6017 = vmatpush.msra.mxu0 %v5893
    %6018 = vmatpush.msra.mxu0 %v5889
    %6019 = vmatpush.msra.mxu0 %v5885
    %6020 = vmatpush.msra.mxu0 %v5881
    %6021 = vmatpush.msra.mxu0 %v5877
    %6022 = vmatpush.msra.mxu0 %v5873
    %6023 = vmatmul.f32.gmra.mxu0 %v5678
    %v6024 = vpop.f32.mrf.mxu0
    %v6025 = vadd.f32 %v6005, %v6024
    %6026 = vdwg.mxu0
    %6027 = vmatpush.msra.mxu0 %v5742
    %6028 = vmatpush.msra.mxu0 %v5738
    %6029 = vmatpush.msra.mxu0 %v5734
    %6030 = vmatpush.msra.mxu0 %v5730
    %6031 = vmatpush.msra.mxu0 %v5726
    %6032 = vmatpush.msra.mxu0 %v5722
    %6033 = vmatpush.msra.mxu0 %v5718
    %6034 = vmatpush.msra.mxu0 %v5714
    %6035 = vmatpush.msra.mxu0 %v5710
    %6036 = vmatpush.msra.mxu0 %v5706
    %6037 = vmatpush.msra.mxu0 %v5702
    %6038 = vmatpush.msra.mxu0 %v5698
    %6039 = vmatpush.msra.mxu0 %v5694
    %6040 = vmatpush.msra.mxu0 %v5690
    %6041 = vmatpush.msra.mxu0 %v5686
    %6042 = vmatpush.msra.mxu0 %v5682
    %6043 = vmatmul.f32.gmra.mxu0 %v5675
    %v6044 = vpop.f32.mrf.mxu0
    %v6045 = vadd.f32 %v5940, %v6044
    %6046 = vdwg.mxu0
    %6047 = vmatpush.msra.mxu0 %v5806
    %6048 = vmatpush.msra.mxu0 %v5802
    %6049 = vmatpush.msra.mxu0 %v5798
    %6050 = vmatpush.msra.mxu0 %v5794
    %6051 = vmatpush.msra.mxu0 %v5790
    %6052 = vmatpush.msra.mxu0 %v5786
    %6053 = vmatpush.msra.mxu0 %v5782
    %6054 = vmatpush.msra.mxu0 %v5778
    %6055 = vmatpush.msra.mxu0 %v5774
    %6056 = vmatpush.msra.mxu0 %v5770
    %6057 = vmatpush.msra.mxu0 %v5766
    %6058 = vmatpush.msra.mxu0 %v5762
    %6059 = vmatpush.msra.mxu0 %v5758
    %6060 = vmatpush.msra.mxu0 %v5754
    %6061 = vmatpush.msra.mxu0 %v5750
    %6062 = vmatpush.msra.mxu0 %v5746
    %6063 = vmatmul.f32.gmra.mxu0 %v5676
    %v6064 = vpop.f32.mrf.mxu0
    %v6065 = vadd.f32 %v6045, %v6064
    %6066 = vdwg.mxu0
    %6067 = vmatpush.msra.mxu0 %v5870
    %6068 = vmatpush.msra.mxu0 %v5866
    %6069 = vmatpush.msra.mxu0 %v5862
    %6070 = vmatpush.msra.mxu0 %v5858
    %6071 = vmatpush.msra.mxu0 %v5854
    %6072 = vmatpush.msra.mxu0 %v5850
    %6073 = vmatpush.msra.mxu0 %v5846
    %6074 = vmatpush.msra.mxu0 %v5842
    %6075 = vmatpush.msra.mxu0 %v5838
    %6076 = vmatpush.msra.mxu0 %v5834
    %6077 = vmatpush.msra.mxu0 %v5830
    %6078 = vmatpush.msra.mxu0 %v5826
    %6079 = vmatpush.msra.mxu0 %v5822
    %6080 = vmatpush.msra.mxu0 %v5818
    %6081 = vmatpush.msra.mxu0 %v5814
    %6082 = vmatpush.msra.mxu0 %v5810
    %6083 = vmatmul.f32.gmra.mxu0 %v5677
    %v6084 = vpop.f32.mrf.mxu0
    %v6085 = vadd.f32 %v6065, %v6084
    %6086 = vdwg.mxu0
    %6087 = vmatpush.msra.mxu0 %v5934
    %6088 = vmatpush.msra.mxu0 %v5930
    %6089 = vmatpush.msra.mxu0 %v5926
    %6090 = vmatpush.msra.mxu0 %v5922
    %6091 = vmatpush.msra.mxu0 %v5918
    %6092 = vmatpush.msra.mxu0 %v5914
    %6093 = vmatpush.msra.mxu0 %v5910
    %6094 = vmatpush.msra.mxu0 %v5906
    %6095 = vmatpush.msra.mxu0 %v5902
    %6096 = vmatpush.msra.mxu0 %v5898
    %6097 = vmatpush.msra.mxu0 %v5894
    %6098 = vmatpush.msra.mxu0 %v5890
    %6099 = vmatpush.msra.mxu0 %v5886
    %6100 = vmatpush.msra.mxu0 %v5882
    %6101 = vmatpush.msra.mxu0 %v5878
    %6102 = vmatpush.msra.mxu0 %v5874
    %6103 = vmatmul.f32.gmra.mxu0 %v5678
    %v6104 = vpop.f32.mrf.mxu0
    %v6105 = vadd.f32 %v6085, %v6104
    %6106 = vdwg.mxu0
    %6107 = vmatpush.msra.mxu0 %v5743
    %6108 = vmatpush.msra.mxu0 %v5739
    %6109 = vmatpush.msra.mxu0 %v5735
    %6110 = vmatpush.msra.mxu0 %v5731
    %6111 = vmatpush.msra.mxu0 %v5727
    %6112 = vmatpush.msra.mxu0 %v5723
    %6113 = vmatpush.msra.mxu0 %v5719
    %6114 = vmatpush.msra.mxu0 %v5715
    %6115 = vmatpush.msra.mxu0 %v5711
    %6116 = vmatpush.msra.mxu0 %v5707
    %6117 = vmatpush.msra.mxu0 %v5703
    %6118 = vmatpush.msra.mxu0 %v5699
    %6119 = vmatpush.msra.mxu0 %v5695
    %6120 = vmatpush.msra.mxu0 %v5691
    %6121 = vmatpush.msra.mxu0 %v5687
    %6122 = vmatpush.msra.mxu0 %v5683
    %6123 = vmatmul.f32.gmra.mxu0 %v5675
    %v6124 = vpop.f32.mrf.mxu0
    %v6125 = vadd.f32 %v5941, %v6124
    %6126 = vdwg.mxu0
    %6127 = vmatpush.msra.mxu0 %v5807
    %6128 = vmatpush.msra.mxu0 %v5803
    %6129 = vmatpush.msra.mxu0 %v5799
    %6130 = vmatpush.msra.mxu0 %v5795
    %6131 = vmatpush.msra.mxu0 %v5791
    %6132 = vmatpush.msra.mxu0 %v5787
    %6133 = vmatpush.msra.mxu0 %v5783
    %6134 = vmatpush.msra.mxu0 %v5779
    %6135 = vmatpush.msra.mxu0 %v5775
    %6136 = vmatpush.msra.mxu0 %v5771
    %6137 = vmatpush.msra.mxu0 %v5767
    %6138 = vmatpush.msra.mxu0 %v5763
    %6139 = vmatpush.msra.mxu0 %v5759
    %6140 = vmatpush.msra.mxu0 %v5755
    %6141 = vmatpush.msra.mxu0 %v5751
    %6142 = vmatpush.msra.mxu0 %v5747
    %6143 = vmatmul.f32.gmra.mxu0 %v5676
    %v6144 = vpop.f32.mrf.mxu0
    %v6145 = vadd.f32 %v6125, %v6144
    %6146 = vdwg.mxu0
    %6147 = vmatpush.msra.mxu0 %v5871
    %6148 = vmatpush.msra.mxu0 %v5867
    %6149 = vmatpush.msra.mxu0 %v5863
    %6150 = vmatpush.msra.mxu0 %v5859
    %6151 = vmatpush.msra.mxu0 %v5855
    %6152 = vmatpush.msra.mxu0 %v5851
    %6153 = vmatpush.msra.mxu0 %v5847
    %6154 = vmatpush.msra.mxu0 %v5843
    %6155 = vmatpush.msra.mxu0 %v5839
    %6156 = vmatpush.msra.mxu0 %v5835
    %6157 = vmatpush.msra.mxu0 %v5831
    %6158 = vmatpush.msra.mxu0 %v5827
    %6159 = vmatpush.msra.mxu0 %v5823
    %6160 = vmatpush.msra.mxu0 %v5819
    %6161 = vmatpush.msra.mxu0 %v5815
    %6162 = vmatpush.msra.mxu0 %v5811
    %6163 = vmatmul.f32.gmra.mxu0 %v5677
    %v6164 = vpop.f32.mrf.mxu0
    %v6165 = vadd.f32 %v6145, %v6164
    %6166 = vdwg.mxu0
    %6167 = vmatpush.msra.mxu0 %v5935
    %6168 = vmatpush.msra.mxu0 %v5931
    %6169 = vmatpush.msra.mxu0 %v5927
    %6170 = vmatpush.msra.mxu0 %v5923
    %6171 = vmatpush.msra.mxu0 %v5919
    %6172 = vmatpush.msra.mxu0 %v5915
    %6173 = vmatpush.msra.mxu0 %v5911
    %6174 = vmatpush.msra.mxu0 %v5907
    %6175 = vmatpush.msra.mxu0 %v5903
    %6176 = vmatpush.msra.mxu0 %v5899
    %6177 = vmatpush.msra.mxu0 %v5895
    %6178 = vmatpush.msra.mxu0 %v5891
    %6179 = vmatpush.msra.mxu0 %v5887
    %6180 = vmatpush.msra.mxu0 %v5883
    %6181 = vmatpush.msra.mxu0 %v5879
    %6182 = vmatpush.msra.mxu0 %v5875
    %6183 = vmatmul.f32.gmra.mxu0 %v5678
    %v6184 = vpop.f32.mrf.mxu0
    %v6185 = vadd.f32 %v6165, %v6184
    %6186 = vdwg.mxu0
    %6187 = vmatpush.msra.mxu0 %v5744
    %6188 = vmatpush.msra.mxu0 %v5740
    %6189 = vmatpush.msra.mxu0 %v5736
    %6190 = vmatpush.msra.mxu0 %v5732
    %6191 = vmatpush.msra.mxu0 %v5728
    %6192 = vmatpush.msra.mxu0 %v5724
    %6193 = vmatpush.msra.mxu0 %v5720
    %6194 = vmatpush.msra.mxu0 %v5716
    %6195 = vmatpush.msra.mxu0 %v5712
    %6196 = vmatpush.msra.mxu0 %v5708
    %6197 = vmatpush.msra.mxu0 %v5704
    %6198 = vmatpush.msra.mxu0 %v5700
    %6199 = vmatpush.msra.mxu0 %v5696
    %6200 = vmatpush.msra.mxu0 %v5692
    %6201 = vmatpush.msra.mxu0 %v5688
    %6202 = vmatpush.msra.mxu0 %v5684
    %6203 = vmatmul.f32.gmra.mxu0 %v5675
    %v6204 = vpop.f32.mrf.mxu0
    %v6205 = vadd.f32 %v5942, %v6204
    %6206 = vdwg.mxu0
    %6207 = vmatpush.msra.mxu0 %v5808
    %6208 = vmatpush.msra.mxu0 %v5804
    %6209 = vmatpush.msra.mxu0 %v5800
    %6210 = vmatpush.msra.mxu0 %v5796
    %6211 = vmatpush.msra.mxu0 %v5792
    %6212 = vmatpush.msra.mxu0 %v5788
    %6213 = vmatpush.msra.mxu0 %v5784
    %6214 = vmatpush.msra.mxu0 %v5780
    %6215 = vmatpush.msra.mxu0 %v5776
    %6216 = vmatpush.msra.mxu0 %v5772
    %6217 = vmatpush.msra.mxu0 %v5768
    %6218 = vmatpush.msra.mxu0 %v5764
    %6219 = vmatpush.msra.mxu0 %v5760
    %6220 = vmatpush.msra.mxu0 %v5756
    %6221 = vmatpush.msra.mxu0 %v5752
    %6222 = vmatpush.msra.mxu0 %v5748
    %6223 = vmatmul.f32.gmra.mxu0 %v5676
    %v6224 = vpop.f32.mrf.mxu0
    %v6225 = vadd.f32 %v6205, %v6224
    %6226 = vdwg.mxu0
    %6227 = vmatpush.msra.mxu0 %v5872
    %6228 = vmatpush.msra.mxu0 %v5868
    %6229 = vmatpush.msra.mxu0 %v5864
    %6230 = vmatpush.msra.mxu0 %v5860
    %6231 = vmatpush.msra.mxu0 %v5856
    %6232 = vmatpush.msra.mxu0 %v5852
    %6233 = vmatpush.msra.mxu0 %v5848
    %6234 = vmatpush.msra.mxu0 %v5844
    %6235 = vmatpush.msra.mxu0 %v5840
    %6236 = vmatpush.msra.mxu0 %v5836
    %6237 = vmatpush.msra.mxu0 %v5832
    %6238 = vmatpush.msra.mxu0 %v5828
    %6239 = vmatpush.msra.mxu0 %v5824
    %6240 = vmatpush.msra.mxu0 %v5820
    %6241 = vmatpush.msra.mxu0 %v5816
    %6242 = vmatpush.msra.mxu0 %v5812
    %6243 = vmatmul.f32.gmra.mxu0 %v5677
    %v6244 = vpop.f32.mrf.mxu0
    %v6245 = vadd.f32 %v6225, %v6244
    %6246 = vdwg.mxu0
    %6247 = vmatpush.msra.mxu0 %v5936
    %6248 = vmatpush.msra.mxu0 %v5932
    %6249 = vmatpush.msra.mxu0 %v5928
    %6250 = vmatpush.msra.mxu0 %v5924
    %6251 = vmatpush.msra.mxu0 %v5920
    %6252 = vmatpush.msra.mxu0 %v5916
    %6253 = vmatpush.msra.mxu0 %v5912
    %6254 = vmatpush.msra.mxu0 %v5908
    %6255 = vmatpush.msra.mxu0 %v5904
    %6256 = vmatpush.msra.mxu0 %v5900
    %6257 = vmatpush.msra.mxu0 %v5896
    %6258 = vmatpush.msra.mxu0 %v5892
    %6259 = vmatpush.msra.mxu0 %v5888
    %6260 = vmatpush.msra.mxu0 %v5884
    %6261 = vmatpush.msra.mxu0 %v5880
    %6262 = vmatpush.msra.mxu0 %v5876
    %6263 = vmatmul.f32.gmra.mxu0 %v5678
    %v6264 = vpop.f32.mrf.mxu0
    %v6265 = vadd.f32 %v6245, %v6264
    %6266 = vdwg.mxu0
    %v6267 = vmax.f32 %v6025, 0.0
    %v6268 = vmax.f32 %v6105, 0.0
    %v6269 = vmax.f32 %v6185, 0.0
    %v6270 = vmax.f32 %v6265, 0.0
    %v6271 = vld [vmem:[%s16] sm:$0xf]
    %v6273 = vperm.slane %v6271, 0
    %v6274 = vperm.slane %v6271, 1
    %v6275 = vperm.slane %v6271, 2
    %v6276 = vperm.slane %v6271, 3
    %v6281 = vmul.f32 %v6267, %v6273
    %v6282 = vmul.f32 %v6268, %v6274
    %v6283 = vmul.f32 %v6269, %v6275
    %v6284 = vmul.f32 %v6270, %v6276
    %v6285 = vadd.f32 %v6281, %v6282
    %v6286 = vadd.f32 %v6285, %v6283
    %v6287 = vadd.f32 %v6286, %v6284
    %6288 = vadd.xlane.f32.xlu0 %v6287
    %v6289 = vpop.xlane.xlu0 %6288
    %v6290 = vld [vmem:[#allocation9] sm:$0x1]
    %v6292 = vperm.slane %v6290, 0
    %v6294 = vadd.f32 %v6289, %v6292
    %vm6295 = vcmask 7168
    %6296 = vst.msk [vmem:[%s18] sm:$0xff] %vm6295, %v6294
    // Predicated region
    $region108: #{farmer_lstm_forward.1} parent=1 // pred_check
      _
    $region109: #{farmer_lstm_forward.1} parent=1 // pred_check_branch
      %6298 = sbr.rel (0) target = $region111
    $region110: #{farmer_lstm_forward.1} parent=1 // pred_region
      _
    $region111: #{farmer_lstm_forward.1} parent=1 // pred_fallthru
      _
    // Predicated region
    $region112: #{farmer_lstm_forward.1} parent=1 // pred_check
      _
    $region113: #{farmer_lstm_forward.1} parent=1 // pred_check_branch
      %6300 = sbr.rel (0) target = $region115
    $region114: #{farmer_lstm_forward.1} parent=1 // pred_region
      _
    $region115: #{farmer_lstm_forward.1} parent=1 // pred_fallthru
      _
    %6301 = vsyncpa [#allocation11], 1
  %6302 = vsyncmov [#allocation8]
  %s6303 = vpop.sfrf %6302
  %p6304 = scmp.eq.s32.totalorder %s6303, 0
  %p6305 = pneg %p6304
  %6307 = shalt.err (%p6305)
  %s6308 = scalar_lea.sflag [#allocation8], 1
  %6309 = vsyncmov %s6308
  %s6310 = vpop.sfrf %6309
  %p6311 = scmp.eq.s32.totalorder %s6310, 0
  %p6312 = pneg %p6311
  %6314 = shalt.err (%p6312)
  %s6315 = scalar_lea.sflag [#allocation8], 2
  %6316 = vsyncmov %s6315
  %s6317 = vpop.sfrf %6316
  %p6318 = scmp.eq.s32.totalorder %s6317, 0
  %p6319 = pneg %p6318
  %6321 = shalt.err (%p6319)
  %s6322 = scalar_lea.sflag [#allocation8], 3
  %6323 = vsyncmov %s6322
  %s6324 = vpop.sfrf %6323
  %p6325 = scmp.eq.s32.totalorder %s6324, 0
  %p6326 = pneg %p6325
  %6328 = shalt.err (%p6326)
  %s6329 = scalar_lea.sflag [#allocation8], 4
  %6330 = vsyncmov %s6329
  %s6331 = vpop.sfrf %6330
  %p6332 = scmp.eq.s32.totalorder %s6331, 0
  %p6333 = pneg %p6332
  %6335 = shalt.err (%p6333)

</llo_original>
